<compile_context>
chip_gen: v6e
topology: v6e:2x2x1
jax: 0.10.0
libtpu: 0.0.40
codegen_flags: <defaults>
</compile_context>

<pallas_src>
import jax
import jax.numpy as jnp
import numpy as np
from jax.experimental import pallas as pl
from jax.experimental.pallas import tpu as pltpu

LRELU_SLOPE = 0.1
BN_EPS = 1e-5
C1, C2, C3 = 64, 128, 256

_COMPILER_PARAMS = pltpu.CompilerParams(
    dimension_semantics=("arbitrary",),
    vmem_limit_bytes=32 * 1024 * 1024,
)


# ----------------------------- helpers -----------------------------

def _leaky_relu(x):
    # slope > 0  =>  max(x, slope*x) == leaky_relu(x)
    return jnp.maximum(x, LRELU_SLOPE * x)


def _batchnorm_lrelu(y, gamma, beta):
    # Training-mode BatchNorm: per-channel mean / biased variance over all
    # M = N*Ho*Wo rows (y is (M, C) f32), then LeakyReLU(0.1).
    mean = jnp.mean(y, axis=0, keepdims=True)
    diff = y - mean
    var = jnp.mean(diff * diff, axis=0, keepdims=True)
    scale = gamma * jax.lax.rsqrt(var + BN_EPS)          # fold gamma * inv_std
    return _leaky_relu(diff * scale + beta)


def _full_spec(shape):
    # Full-array block (satisfies the "equal to full array dims" rule), grid=(1,).
    return pl.BlockSpec(shape, lambda i: (0,) * len(shape))


def _spatial_select_matrix(ho, wo, hp, wp):
    # Constant 0/1 matrix: (16*ho*wo, hp*wp).  Row (t*ho*wo + oh*wo + ow) selects the
    # flattened padded pixel (2*oh + t//4, 2*ow + t%4), i.e. one MXU matmul against
    # the flattened padded image (hp*wp, C) produces all 16 stride-2 conv tap rows.
    m = ho * wo
    s = np.zeros((16 * m, hp * wp), np.float32)
    for t in range(16):
        ki, kj = divmod(t, 4)
        for oh in range(ho):
            for ow in range(wo):
                s[t * m + oh * wo + ow, (2 * oh + ki) * wp + (2 * ow + kj)] = 1.0
    return jnp.asarray(s, jnp.bfloat16)


def _im2col_l1(x_nhwc):
    # Layer-1 only (Cin=1, module input boundary): (N, H, W, 1) -> (N*Ho*Wo, 16)
    # bf16 patches, K ordered (kh, kw, Cin).  Cheap XLA glue.
    n, h, w, c = x_nhwc.shape
    xp = jnp.pad(x_nhwc, ((0, 0), (1, 1), (1, 1), (0, 0)))
    ho, wo = h // 2, w // 2
    cols = [xp[:, ki:ki + 2 * ho:2, kj:kj + 2 * wo:2, :]
            for ki in range(4) for kj in range(4)]
    return jnp.concatenate(cols, axis=-1).reshape(n * ho * wo, 16 * c)


# ----------------------------- fused kernel -----------------------------

def _make_fused_kernel(n, h1, w1, h2, w2, h3, w3):
    hp2, wp2 = h1 + 2, w1 + 2          # padded layer-2 input (per image, flattened)
    hp3, wp3 = h2 + 2, w2 + 2          # padded layer-3 input
    m2, m3 = h2 * w2, h3 * w3          # output positions per image

    def kernel(p1_ref, w1_ref, b1_ref,
               sel2_ref, w2_ref, g2_ref, be2_ref,
               sel3_ref, w3_ref, g3_ref, be3_ref,
               o_ref, pad1_ref, pad2_ref):
        # ---- conv1 (1->64) + bias + LeakyReLU (patches precomputed in XLA) ----
        y1 = jnp.dot(p1_ref[...], w1_ref[...], preferred_element_type=jnp.float32)
        y1 = _leaky_relu(y1 + b1_ref[...])                       # (n*h1*w1, C1) f32

        # Scatter rows into the zero-padded flattened layer-2 input (VMEM resident).
        pad1_ref[...] = jnp.zeros(pad1_ref.shape, pad1_ref.dtype)
        for ni in range(n):
            for r in range(h1):
                row = y1[(ni * h1 + r) * w1:(ni * h1 + r + 1) * w1, :]
                base = (r + 1) * wp2 + 1
                pad1_ref[ni, base:base + w1, :] = row.astype(jnp.bfloat16)

        # ---- conv2 (64->128, no bias) -> BatchNorm -> LeakyReLU ----
        parts = []
        for ni in range(n):
            # im2col via the constant selection matmul: (16*m2, hp2*wp2) @ (hp2*wp2, C1)
            taps = jnp.dot(sel2_ref[...], pad1_ref[ni],
                           preferred_element_type=jnp.float32)
            acc = jnp.zeros((m2, C2), jnp.float32)
            for t in range(16):
                acc = acc + jnp.dot(taps[t * m2:(t + 1) * m2, :].astype(jnp.bfloat16),
                                    w2_ref[t * C1:(t + 1) * C1, :],
                                    preferred_element_type=jnp.float32)
            parts.append(acc)
        y2 = _batchnorm_lrelu(jnp.concatenate(parts, axis=0),
                              g2_ref[...], be2_ref[...])          # (n*m2, C2) f32

        pad2_ref[...] = jnp.zeros(pad2_ref.shape, pad2_ref.dtype)
        for ni in range(n):
            for r in range(h2):
                row = y2[(ni * h2 + r) * w2:(ni * h2 + r + 1) * w2, :]
                base = (r + 1) * wp3 + 1
                pad2_ref[ni, base:base + w2, :] = row.astype(jnp.bfloat16)

        # ---- conv3 (128->256, no bias) -> BatchNorm -> LeakyReLU ----
        parts = []
        for ni in range(n):
            taps = jnp.dot(sel3_ref[...], pad2_ref[ni],
                           preferred_element_type=jnp.float32)
            acc = jnp.zeros((m3, C3), jnp.float32)
            for t in range(16):
                acc = acc + jnp.dot(taps[t * m3:(t + 1) * m3, :].astype(jnp.bfloat16),
                                    w3_ref[t * C2:(t + 1) * C2, :],
                                    preferred_element_type=jnp.float32)
            parts.append(acc)
        y3 = _batchnorm_lrelu(jnp.concatenate(parts, axis=0),
                              g3_ref[...], be3_ref[...])          # (n*m3, C3) f32
        o_ref[...] = y3.astype(o_ref.dtype)

    return kernel


# ----------------------------- parameters -----------------------------

def _prep_conv_weight(w_pt):
    # PyTorch (Cout, Cin, kh, kw) -> (kh*kw*Cin, Cout), bf16 MXU operand.
    cout = w_pt.shape[0]
    return jnp.transpose(w_pt, (2, 3, 1, 0)).reshape(-1, cout).astype(jnp.bfloat16)


def init_params(key, h=16, w=16):
    ks = jax.random.split(key, 8)

    def conv_w(kk, cout, cin, ksz):
        bound = 1.0 / (cin * ksz * ksz) ** 0.5
        return jax.random.uniform(kk, (cout, cin, ksz, ksz), jnp.float32,
                                  -bound, bound)

    h1, w1 = h // 2, w // 2
    h2, w2 = h1 // 2, w1 // 2
    h3, w3 = h2 // 2, w2 // 2
    return {
        "w1": _prep_conv_weight(conv_w(ks[0], C1, 1, 4)),        # (16, 64)   bf16
        "b1": jax.random.uniform(ks[1], (1, C1), jnp.float32, -0.25, 0.25),
        "w2": _prep_conv_weight(conv_w(ks[2], C2, C1, 4)),       # (1024, 128) bf16
        "g2": 1.0 + 0.1 * jax.random.normal(ks[3], (1, C2), jnp.float32),
        "be2": 0.1 * jax.random.normal(ks[4], (1, C2), jnp.float32),
        "w3": _prep_conv_weight(conv_w(ks[5], C3, C2, 4)),       # (2048, 256) bf16
        "g3": 1.0 + 0.1 * jax.random.normal(ks[6], (1, C3), jnp.float32),
        "be3": 0.1 * jax.random.normal(ks[7], (1, C3), jnp.float32),
        # Batch-independent 0/1 tap-selection matrices (in-kernel im2col).
        "sel2": _spatial_select_matrix(h2, w2, h1 + 2, w1 + 2),  # (256, 100) bf16
        "sel3": _spatial_select_matrix(h3, w3, h2 + 2, w2 + 2),  # (64, 36)   bf16
    }


# ----------------------------- Discriminator forward -----------------------------

@jax.jit
def discriminator_forward(params, x):
    # x: NCHW (PyTorch boundary).  One fused pallas_call for the whole network.
    n, _, h, w = x.shape
    h1, w1 = h // 2, w // 2
    h2, w2 = h1 // 2, w1 // 2
    h3, w3 = h2 // 2, w2 // 2

    xn = jnp.transpose(x, (0, 2, 3, 1)).astype(jnp.bfloat16)     # NHWC
    p1 = _im2col_l1(xn)                                          # (n*h1*w1, 16) bf16

    operands = (p1, params["w1"], params["b1"],
                params["sel2"], params["w2"], params["g2"], params["be2"],
                params["sel3"], params["w3"], params["g3"], params["be3"])

    out = pl.pallas_call(
        _make_fused_kernel(n, h1, w1, h2, w2, h3, w3),
        grid=(1,),
        out_shape=jax.ShapeDtypeStruct((n * h3 * w3, C3), jnp.float32),
        in_specs=[_full_spec(op.shape) for op in operands],
        out_specs=_full_spec((n * h3 * w3, C3)),
        scratch_shapes=[
            pltpu.VMEM((n, (h1 + 2) * (w1 + 2), C1), jnp.bfloat16),  # padded L2 input
            pltpu.VMEM((n, (h2 + 2) * (w2 + 2), C2), jnp.bfloat16),  # padded L3 input
        ],
        compiler_params=_COMPILER_PARAMS,
    )(*operands)

    y = out.reshape(n, h3, w3, C3)
    return jnp.transpose(y, (0, 3, 1, 2))                        # back to NCHW


if __name__ == "__main__":
    key = jax.random.PRNGKey(0)
    pkey, xkey = jax.random.split(key)
    params = init_params(pkey)

    # Conv1 expects a single input channel: (N=2, C=1, H=16, W=16).
    x = jax.random.normal(xkey, (2, 1, 16, 16), jnp.float32)

    out = discriminator_forward(params, x)
    jax.block_until_ready(out)
    assert out.shape == (2, 256, 2, 2), out.shape
    assert out.dtype == jnp.float32, out.dtype
    assert bool(jnp.all(jnp.isfinite(out)))
    print("KERNEL_OK")
</pallas_src>

<mosaic_0001>
module attributes {stable_mosaic.version = 11 : i64} {
  func.func @kernel(%arg0: i32, %arg1: memref<128x16xbf16, #tpu.memory_space<vmem>>, %arg2: memref<16x64xbf16, #tpu.memory_space<vmem>>, %arg3: memref<1x64xf32, #tpu.memory_space<vmem>>, %arg4: memref<256x100xbf16, #tpu.memory_space<vmem>>, %arg5: memref<1024x128xbf16, #tpu.memory_space<vmem>>, %arg6: memref<1x128xf32, #tpu.memory_space<vmem>>, %arg7: memref<1x128xf32, #tpu.memory_space<vmem>>, %arg8: memref<64x36xbf16, #tpu.memory_space<vmem>>, %arg9: memref<2048x256xbf16, #tpu.memory_space<vmem>>, %arg10: memref<1x256xf32, #tpu.memory_space<vmem>>, %arg11: memref<1x256xf32, #tpu.memory_space<vmem>>, %arg12: memref<8x256xf32, #tpu.memory_space<vmem>>, %arg13: memref<2x100x64xbf16, #tpu.memory_space<vmem>>, %arg14: memref<2x36x128xbf16, #tpu.memory_space<vmem>>) attributes {dimension_semantics = [#tpu.dimension_semantics<arbitrary>], iteration_bounds = array<i64: 1>, scalar_prefetch = 0 : i64, scratch_operands = 2 : i64, tpu.core_type = #tpu.core_type<tc>, window_params = [{pipeline_mode = #tpu.pipeline_mode<synchronous>, transform_indices = @transform_0, window_bounds = array<i64: 128, 16>}, {pipeline_mode = #tpu.pipeline_mode<synchronous>, transform_indices = @transform_1, window_bounds = array<i64: 16, 64>}, {pipeline_mode = #tpu.pipeline_mode<synchronous>, transform_indices = @transform_2, window_bounds = array<i64: 1, 64>}, {pipeline_mode = #tpu.pipeline_mode<synchronous>, transform_indices = @transform_3, window_bounds = array<i64: 256, 100>}, {pipeline_mode = #tpu.pipeline_mode<synchronous>, transform_indices = @transform_4, window_bounds = array<i64: 1024, 128>}, {pipeline_mode = #tpu.pipeline_mode<synchronous>, transform_indices = @transform_5, window_bounds = array<i64: 1, 128>}, {pipeline_mode = #tpu.pipeline_mode<synchronous>, transform_indices = @transform_6, window_bounds = array<i64: 1, 128>}, {pipeline_mode = #tpu.pipeline_mode<synchronous>, transform_indices = @transform_7, window_bounds = array<i64: 64, 36>}, {pipeline_mode = #tpu.pipeline_mode<synchronous>, transform_indices = @transform_8, window_bounds = array<i64: 2048, 256>}, {pipeline_mode = #tpu.pipeline_mode<synchronous>, transform_indices = @transform_9, window_bounds = array<i64: 1, 256>}, {pipeline_mode = #tpu.pipeline_mode<synchronous>, transform_indices = @transform_10, window_bounds = array<i64: 1, 256>}, {pipeline_mode = #tpu.pipeline_mode<synchronous>, transform_indices = @transform_11, window_bounds = array<i64: 8, 256>}]} {
    %c0 = arith.constant 0 : index
    %c0_0 = arith.constant 0 : index
    %0 = vector.load %arg1[%c0, %c0_0] : memref<128x16xbf16, #tpu.memory_space<vmem>>, vector<128x16xbf16>
    %c0_1 = arith.constant 0 : index
    %c0_2 = arith.constant 0 : index
    %1 = vector.load %arg2[%c0_1, %c0_2] : memref<16x64xbf16, #tpu.memory_space<vmem>>, vector<16x64xbf16>
    %cst = arith.constant dense<0.000000e+00> : vector<128x64xf32>
    %2 = tpu.matmul %0, %1, %cst {dimension_numbers = #tpu.dot_dimension_numbers<[1], [0], [0], [1], [0, 0, 1, 1], [], []>} : vector<128x16xbf16>, vector<16x64xbf16>, vector<128x64xf32> -> vector<128x64xf32>
    %c0_3 = arith.constant 0 : index
    %c0_4 = arith.constant 0 : index
    %3 = vector.load %arg3[%c0_3, %c0_4] : memref<1x64xf32, #tpu.memory_space<vmem>>, vector<1x64xf32>
    %4 = vector.broadcast %3 : vector<1x64xf32> to vector<128x64xf32>
    %5 = arith.addf %2, %4 : vector<128x64xf32>
    %cst_5 = arith.constant 1.000000e-01 : f32
    %6 = vector.broadcast %cst_5 : f32 to vector<128x64xf32>
    %7 = arith.mulf %6, %5 : vector<128x64xf32>
    %8 = arith.maximumf %5, %7 : vector<128x64xf32>
    %cst_6 = arith.constant 0.000000e+00 : bf16
    %9 = vector.broadcast %cst_6 : bf16 to vector<2x100x64xbf16>
    %c0_7 = arith.constant 0 : index
    %c0_8 = arith.constant 0 : index
    %c0_9 = arith.constant 0 : index
    %10 = vector.load %arg13[%c0_7, %c0_8, %c0_9] : memref<2x100x64xbf16, #tpu.memory_space<vmem>>, vector<2x100x64xbf16>
    tpu.vector_store %arg13[%c0_7, %c0_8, %c0_9], %9 {strides = array<i32>} : memref<2x100x64xbf16, #tpu.memory_space<vmem>>, vector<2x100x64xbf16>,
    %11 = vector.extract_strided_slice %8 {offsets = [0, 0], sizes = [8, 64], strides = [1, 1]} : vector<128x64xf32> to vector<8x64xf32>
    %12 = arith.truncf %11 : vector<8x64xf32> to vector<8x64xbf16>
    %c0_10 = arith.constant 0 : index
    %c11 = arith.constant 11 : index
    %c0_11 = arith.constant 0 : index
    %13 = vector.load %arg13[%c0_10, %c11, %c0_11] : memref<2x100x64xbf16, #tpu.memory_space<vmem>>, vector<1x8x64xbf16>
    %14 = vector.shape_cast %13 : vector<1x8x64xbf16> to vector<8x64xbf16>
    %15 = vector.shape_cast %12 : vector<8x64xbf16> to vector<1x8x64xbf16>
    tpu.vector_store %arg13[%c0_10, %c11, %c0_11], %15 {strides = array<i32>} : memref<2x100x64xbf16, #tpu.memory_space<vmem>>, vector<1x8x64xbf16>,
    %16 = vector.extract_strided_slice %8 {offsets = [8, 0], sizes = [8, 64], strides = [1, 1]} : vector<128x64xf32> to vector<8x64xf32>
    %17 = arith.truncf %16 : vector<8x64xf32> to vector<8x64xbf16>
    %c0_12 = arith.constant 0 : index
    %c21 = arith.constant 21 : index
    %c0_13 = arith.constant 0 : index
    %18 = vector.load %arg13[%c0_12, %c21, %c0_13] : memref<2x100x64xbf16, #tpu.memory_space<vmem>>, vector<1x8x64xbf16>
    %19 = vector.shape_cast %18 : vector<1x8x64xbf16> to vector<8x64xbf16>
    %20 = vector.shape_cast %17 : vector<8x64xbf16> to vector<1x8x64xbf16>
    tpu.vector_store %arg13[%c0_12, %c21, %c0_13], %20 {strides = array<i32>} : memref<2x100x64xbf16, #tpu.memory_space<vmem>>, vector<1x8x64xbf16>,
    %21 = vector.extract_strided_slice %8 {offsets = [16, 0], sizes = [8, 64], strides = [1, 1]} : vector<128x64xf32> to vector<8x64xf32>
    %22 = arith.truncf %21 : vector<8x64xf32> to vector<8x64xbf16>
    %c0_14 = arith.constant 0 : index
    %c31 = arith.constant 31 : index
    %c0_15 = arith.constant 0 : index
    %23 = vector.load %arg13[%c0_14, %c31, %c0_15] : memref<2x100x64xbf16, #tpu.memory_space<vmem>>, vector<1x8x64xbf16>
    %24 = vector.shape_cast %23 : vector<1x8x64xbf16> to vector<8x64xbf16>
    %25 = vector.shape_cast %22 : vector<8x64xbf16> to vector<1x8x64xbf16>
    tpu.vector_store %arg13[%c0_14, %c31, %c0_15], %25 {strides = array<i32>} : memref<2x100x64xbf16, #tpu.memory_space<vmem>>, vector<1x8x64xbf16>,
    %26 = vector.extract_strided_slice %8 {offsets = [24, 0], sizes = [8, 64], strides = [1, 1]} : vector<128x64xf32> to vector<8x64xf32>
    %27 = arith.truncf %26 : vector<8x64xf32> to vector<8x64xbf16>
    %c0_16 = arith.constant 0 : index
    %c41 = arith.constant 41 : index
    %c0_17 = arith.constant 0 : index
    %28 = vector.load %arg13[%c0_16, %c41, %c0_17] : memref<2x100x64xbf16, #tpu.memory_space<vmem>>, vector<1x8x64xbf16>
    %29 = vector.shape_cast %28 : vector<1x8x64xbf16> to vector<8x64xbf16>
    %30 = vector.shape_cast %27 : vector<8x64xbf16> to vector<1x8x64xbf16>
    tpu.vector_store %arg13[%c0_16, %c41, %c0_17], %30 {strides = array<i32>} : memref<2x100x64xbf16, #tpu.memory_space<vmem>>, vector<1x8x64xbf16>,
    %31 = vector.extract_strided_slice %8 {offsets = [32, 0], sizes = [8, 64], strides = [1, 1]} : vector<128x64xf32> to vector<8x64xf32>
    %32 = arith.truncf %31 : vector<8x64xf32> to vector<8x64xbf16>
    %c0_18 = arith.constant 0 : index
    %c51 = arith.constant 51 : index
    %c0_19 = arith.constant 0 : index
    %33 = vector.load %arg13[%c0_18, %c51, %c0_19] : memref<2x100x64xbf16, #tpu.memory_space<vmem>>, vector<1x8x64xbf16>
    %34 = vector.shape_cast %33 : vector<1x8x64xbf16> to vector<8x64xbf16>
    %35 = vector.shape_cast %32 : vector<8x64xbf16> to vector<1x8x64xbf16>
    tpu.vector_store %arg13[%c0_18, %c51, %c0_19], %35 {strides = array<i32>} : memref<2x100x64xbf16, #tpu.memory_space<vmem>>, vector<1x8x64xbf16>,
    %36 = vector.extract_strided_slice %8 {offsets = [40, 0], sizes = [8, 64], strides = [1, 1]} : vector<128x64xf32> to vector<8x64xf32>
    %37 = arith.truncf %36 : vector<8x64xf32> to vector<8x64xbf16>
    %c0_20 = arith.constant 0 : index
    %c61 = arith.constant 61 : index
    %c0_21 = arith.constant 0 : index
    %38 = vector.load %arg13[%c0_20, %c61, %c0_21] : memref<2x100x64xbf16, #tpu.memory_space<vmem>>, vector<1x8x64xbf16>
    %39 = vector.shape_cast %38 : vector<1x8x64xbf16> to vector<8x64xbf16>
    %40 = vector.shape_cast %37 : vector<8x64xbf16> to vector<1x8x64xbf16>
    tpu.vector_store %arg13[%c0_20, %c61, %c0_21], %40 {strides = array<i32>} : memref<2x100x64xbf16, #tpu.memory_space<vmem>>, vector<1x8x64xbf16>,
    %41 = vector.extract_strided_slice %8 {offsets = [48, 0], sizes = [8, 64], strides = [1, 1]} : vector<128x64xf32> to vector<8x64xf32>
    %42 = arith.truncf %41 : vector<8x64xf32> to vector<8x64xbf16>
    %c0_22 = arith.constant 0 : index
    %c71 = arith.constant 71 : index
    %c0_23 = arith.constant 0 : index
    %43 = vector.load %arg13[%c0_22, %c71, %c0_23] : memref<2x100x64xbf16, #tpu.memory_space<vmem>>, vector<1x8x64xbf16>
    %44 = vector.shape_cast %43 : vector<1x8x64xbf16> to vector<8x64xbf16>
    %45 = vector.shape_cast %42 : vector<8x64xbf16> to vector<1x8x64xbf16>
    tpu.vector_store %arg13[%c0_22, %c71, %c0_23], %45 {strides = array<i32>} : memref<2x100x64xbf16, #tpu.memory_space<vmem>>, vector<1x8x64xbf16>,
    %46 = vector.extract_strided_slice %8 {offsets = [56, 0], sizes = [8, 64], strides = [1, 1]} : vector<128x64xf32> to vector<8x64xf32>
    %47 = arith.truncf %46 : vector<8x64xf32> to vector<8x64xbf16>
    %c0_24 = arith.constant 0 : index
    %c81 = arith.constant 81 : index
    %c0_25 = arith.constant 0 : index
    %48 = vector.load %arg13[%c0_24, %c81, %c0_25] : memref<2x100x64xbf16, #tpu.memory_space<vmem>>, vector<1x8x64xbf16>
    %49 = vector.shape_cast %48 : vector<1x8x64xbf16> to vector<8x64xbf16>
    %50 = vector.shape_cast %47 : vector<8x64xbf16> to vector<1x8x64xbf16>
    tpu.vector_store %arg13[%c0_24, %c81, %c0_25], %50 {strides = array<i32>} : memref<2x100x64xbf16, #tpu.memory_space<vmem>>, vector<1x8x64xbf16>,
    %51 = vector.extract_strided_slice %8 {offsets = [64, 0], sizes = [8, 64], strides = [1, 1]} : vector<128x64xf32> to vector<8x64xf32>
    %52 = arith.truncf %51 : vector<8x64xf32> to vector<8x64xbf16>
    %c1 = arith.constant 1 : index
    %c11_26 = arith.constant 11 : index
    %c0_27 = arith.constant 0 : index
    %53 = vector.load %arg13[%c1, %c11_26, %c0_27] : memref<2x100x64xbf16, #tpu.memory_space<vmem>>, vector<1x8x64xbf16>
    %54 = vector.shape_cast %53 : vector<1x8x64xbf16> to vector<8x64xbf16>
    %55 = vector.shape_cast %52 : vector<8x64xbf16> to vector<1x8x64xbf16>
    tpu.vector_store %arg13[%c1, %c11_26, %c0_27], %55 {strides = array<i32>} : memref<2x100x64xbf16, #tpu.memory_space<vmem>>, vector<1x8x64xbf16>,
    %56 = vector.extract_strided_slice %8 {offsets = [72, 0], sizes = [8, 64], strides = [1, 1]} : vector<128x64xf32> to vector<8x64xf32>
    %57 = arith.truncf %56 : vector<8x64xf32> to vector<8x64xbf16>
    %c1_28 = arith.constant 1 : index
    %c21_29 = arith.constant 21 : index
    %c0_30 = arith.constant 0 : index
    %58 = vector.load %arg13[%c1_28, %c21_29, %c0_30] : memref<2x100x64xbf16, #tpu.memory_space<vmem>>, vector<1x8x64xbf16>
    %59 = vector.shape_cast %58 : vector<1x8x64xbf16> to vector<8x64xbf16>
    %60 = vector.shape_cast %57 : vector<8x64xbf16> to vector<1x8x64xbf16>
    tpu.vector_store %arg13[%c1_28, %c21_29, %c0_30], %60 {strides = array<i32>} : memref<2x100x64xbf16, #tpu.memory_space<vmem>>, vector<1x8x64xbf16>,
    %61 = vector.extract_strided_slice %8 {offsets = [80, 0], sizes = [8, 64], strides = [1, 1]} : vector<128x64xf32> to vector<8x64xf32>
    %62 = arith.truncf %61 : vector<8x64xf32> to vector<8x64xbf16>
    %c1_31 = arith.constant 1 : index
    %c31_32 = arith.constant 31 : index
    %c0_33 = arith.constant 0 : index
    %63 = vector.load %arg13[%c1_31, %c31_32, %c0_33] : memref<2x100x64xbf16, #tpu.memory_space<vmem>>, vector<1x8x64xbf16>
    %64 = vector.shape_cast %63 : vector<1x8x64xbf16> to vector<8x64xbf16>
    %65 = vector.shape_cast %62 : vector<8x64xbf16> to vector<1x8x64xbf16>
    tpu.vector_store %arg13[%c1_31, %c31_32, %c0_33], %65 {strides = array<i32>} : memref<2x100x64xbf16, #tpu.memory_space<vmem>>, vector<1x8x64xbf16>,
    %66 = vector.extract_strided_slice %8 {offsets = [88, 0], sizes = [8, 64], strides = [1, 1]} : vector<128x64xf32> to vector<8x64xf32>
    %67 = arith.truncf %66 : vector<8x64xf32> to vector<8x64xbf16>
    %c1_34 = arith.constant 1 : index
    %c41_35 = arith.constant 41 : index
    %c0_36 = arith.constant 0 : index
    %68 = vector.load %arg13[%c1_34, %c41_35, %c0_36] : memref<2x100x64xbf16, #tpu.memory_space<vmem>>, vector<1x8x64xbf16>
    %69 = vector.shape_cast %68 : vector<1x8x64xbf16> to vector<8x64xbf16>
    %70 = vector.shape_cast %67 : vector<8x64xbf16> to vector<1x8x64xbf16>
    tpu.vector_store %arg13[%c1_34, %c41_35, %c0_36], %70 {strides = array<i32>} : memref<2x100x64xbf16, #tpu.memory_space<vmem>>, vector<1x8x64xbf16>,
    %71 = vector.extract_strided_slice %8 {offsets = [96, 0], sizes = [8, 64], strides = [1, 1]} : vector<128x64xf32> to vector<8x64xf32>
    %72 = arith.truncf %71 : vector<8x64xf32> to vector<8x64xbf16>
    %c1_37 = arith.constant 1 : index
    %c51_38 = arith.constant 51 : index
    %c0_39 = arith.constant 0 : index
    %73 = vector.load %arg13[%c1_37, %c51_38, %c0_39] : memref<2x100x64xbf16, #tpu.memory_space<vmem>>, vector<1x8x64xbf16>
    %74 = vector.shape_cast %73 : vector<1x8x64xbf16> to vector<8x64xbf16>
    %75 = vector.shape_cast %72 : vector<8x64xbf16> to vector<1x8x64xbf16>
    tpu.vector_store %arg13[%c1_37, %c51_38, %c0_39], %75 {strides = array<i32>} : memref<2x100x64xbf16, #tpu.memory_space<vmem>>, vector<1x8x64xbf16>,
    %76 = vector.extract_strided_slice %8 {offsets = [104, 0], sizes = [8, 64], strides = [1, 1]} : vector<128x64xf32> to vector<8x64xf32>
    %77 = arith.truncf %76 : vector<8x64xf32> to vector<8x64xbf16>
    %c1_40 = arith.constant 1 : index
    %c61_41 = arith.constant 61 : index
    %c0_42 = arith.constant 0 : index
    %78 = vector.load %arg13[%c1_40, %c61_41, %c0_42] : memref<2x100x64xbf16, #tpu.memory_space<vmem>>, vector<1x8x64xbf16>
    %79 = vector.shape_cast %78 : vector<1x8x64xbf16> to vector<8x64xbf16>
    %80 = vector.shape_cast %77 : vector<8x64xbf16> to vector<1x8x64xbf16>
    tpu.vector_store %arg13[%c1_40, %c61_41, %c0_42], %80 {strides = array<i32>} : memref<2x100x64xbf16, #tpu.memory_space<vmem>>, vector<1x8x64xbf16>,
    %81 = vector.extract_strided_slice %8 {offsets = [112, 0], sizes = [8, 64], strides = [1, 1]} : vector<128x64xf32> to vector<8x64xf32>
    %82 = arith.truncf %81 : vector<8x64xf32> to vector<8x64xbf16>
    %c1_43 = arith.constant 1 : index
    %c71_44 = arith.constant 71 : index
    %c0_45 = arith.constant 0 : index
    %83 = vector.load %arg13[%c1_43, %c71_44, %c0_45] : memref<2x100x64xbf16, #tpu.memory_space<vmem>>, vector<1x8x64xbf16>
    %84 = vector.shape_cast %83 : vector<1x8x64xbf16> to vector<8x64xbf16>
    %85 = vector.shape_cast %82 : vector<8x64xbf16> to vector<1x8x64xbf16>
    tpu.vector_store %arg13[%c1_43, %c71_44, %c0_45], %85 {strides = array<i32>} : memref<2x100x64xbf16, #tpu.memory_space<vmem>>, vector<1x8x64xbf16>,
    %86 = vector.extract_strided_slice %8 {offsets = [120, 0], sizes = [8, 64], strides = [1, 1]} : vector<128x64xf32> to vector<8x64xf32>
    %87 = arith.truncf %86 : vector<8x64xf32> to vector<8x64xbf16>
    %c1_46 = arith.constant 1 : index
    %c81_47 = arith.constant 81 : index
    %c0_48 = arith.constant 0 : index
    %88 = vector.load %arg13[%c1_46, %c81_47, %c0_48] : memref<2x100x64xbf16, #tpu.memory_space<vmem>>, vector<1x8x64xbf16>
    %89 = vector.shape_cast %88 : vector<1x8x64xbf16> to vector<8x64xbf16>
    %90 = vector.shape_cast %87 : vector<8x64xbf16> to vector<1x8x64xbf16>
    tpu.vector_store %arg13[%c1_46, %c81_47, %c0_48], %90 {strides = array<i32>} : memref<2x100x64xbf16, #tpu.memory_space<vmem>>, vector<1x8x64xbf16>,
    %c0_49 = arith.constant 0 : index
    %c0_50 = arith.constant 0 : index
    %91 = vector.load %arg4[%c0_49, %c0_50] : memref<256x100xbf16, #tpu.memory_space<vmem>>, vector<256x100xbf16>
    %c0_51 = arith.constant 0 : index
    %c0_52 = arith.constant 0 : index
    %c0_53 = arith.constant 0 : index
    %92 = vector.load %arg13[%c0_51, %c0_52, %c0_53] : memref<2x100x64xbf16, #tpu.memory_space<vmem>>, vector<1x100x64xbf16>
    %93 = vector.shape_cast %92 : vector<1x100x64xbf16> to vector<100x64xbf16>
    %cst_54 = arith.constant dense<0.000000e+00> : vector<256x64xf32>
    %94 = tpu.matmul %91, %93, %cst_54 {dimension_numbers = #tpu.dot_dimension_numbers<[1], [0], [0], [1], [0, 0, 1, 1], [], []>} : vector<256x100xbf16>, vector<100x64xbf16>, vector<256x64xf32> -> vector<256x64xf32>
    %cst_55 = arith.constant 0.000000e+00 : f32
    %95 = vector.broadcast %cst_55 : f32 to vector<16x128xf32>
    %96 = vector.extract_strided_slice %94 {offsets = [0, 0], sizes = [16, 64], strides = [1, 1]} : vector<256x64xf32> to vector<16x64xf32>
    %97 = arith.truncf %96 : vector<16x64xf32> to vector<16x64xbf16>
    %c0_56 = arith.constant 0 : index
    %c0_57 = arith.constant 0 : index
    %98 = vector.load %arg5[%c0_56, %c0_57] : memref<1024x128xbf16, #tpu.memory_space<vmem>>, vector<64x128xbf16>
    %cst_58 = arith.constant dense<0.000000e+00> : vector<16x128xf32>
    %99 = tpu.matmul %97, %98, %cst_58 {dimension_numbers = #tpu.dot_dimension_numbers<[1], [0], [0], [1], [0, 0, 1, 1], [], []>} : vector<16x64xbf16>, vector<64x128xbf16>, vector<16x128xf32> -> vector<16x128xf32>
    %100 = arith.addf %95, %99 : vector<16x128xf32>
    %101 = vector.extract_strided_slice %94 {offsets = [16, 0], sizes = [16, 64], strides = [1, 1]} : vector<256x64xf32> to vector<16x64xf32>
    %102 = arith.truncf %101 : vector<16x64xf32> to vector<16x64xbf16>
    %c64 = arith.constant 64 : index
    %c0_59 = arith.constant 0 : index
    %103 = vector.load %arg5[%c64, %c0_59] : memref<1024x128xbf16, #tpu.memory_space<vmem>>, vector<64x128xbf16>
    %cst_60 = arith.constant dense<0.000000e+00> : vector<16x128xf32>
    %104 = tpu.matmul %102, %103, %cst_60 {dimension_numbers = #tpu.dot_dimension_numbers<[1], [0], [0], [1], [0, 0, 1, 1], [], []>} : vector<16x64xbf16>, vector<64x128xbf16>, vector<16x128xf32> -> vector<16x128xf32>
    %105 = arith.addf %100, %104 : vector<16x128xf32>
    %106 = vector.extract_strided_slice %94 {offsets = [32, 0], sizes = [16, 64], strides = [1, 1]} : vector<256x64xf32> to vector<16x64xf32>
    %107 = arith.truncf %106 : vector<16x64xf32> to vector<16x64xbf16>
    %c128 = arith.constant 128 : index
    %c0_61 = arith.constant 0 : index
    %108 = vector.load %arg5[%c128, %c0_61] : memref<1024x128xbf16, #tpu.memory_space<vmem>>, vector<64x128xbf16>
    %cst_62 = arith.constant dense<0.000000e+00> : vector<16x128xf32>
    %109 = tpu.matmul %107, %108, %cst_62 {dimension_numbers = #tpu.dot_dimension_numbers<[1], [0], [0], [1], [0, 0, 1, 1], [], []>} : vector<16x64xbf16>, vector<64x128xbf16>, vector<16x128xf32> -> vector<16x128xf32>
    %110 = arith.addf %105, %109 : vector<16x128xf32>
    %111 = vector.extract_strided_slice %94 {offsets = [48, 0], sizes = [16, 64], strides = [1, 1]} : vector<256x64xf32> to vector<16x64xf32>
    %112 = arith.truncf %111 : vector<16x64xf32> to vector<16x64xbf16>
    %c192 = arith.constant 192 : index
    %c0_63 = arith.constant 0 : index
    %113 = vector.load %arg5[%c192, %c0_63] : memref<1024x128xbf16, #tpu.memory_space<vmem>>, vector<64x128xbf16>
    %cst_64 = arith.constant dense<0.000000e+00> : vector<16x128xf32>
    %114 = tpu.matmul %112, %113, %cst_64 {dimension_numbers = #tpu.dot_dimension_numbers<[1], [0], [0], [1], [0, 0, 1, 1], [], []>} : vector<16x64xbf16>, vector<64x128xbf16>, vector<16x128xf32> -> vector<16x128xf32>
    %115 = arith.addf %110, %114 : vector<16x128xf32>
    %116 = vector.extract_strided_slice %94 {offsets = [64, 0], sizes = [16, 64], strides = [1, 1]} : vector<256x64xf32> to vector<16x64xf32>
    %117 = arith.truncf %116 : vector<16x64xf32> to vector<16x64xbf16>
    %c256 = arith.constant 256 : index
    %c0_65 = arith.constant 0 : index
    %118 = vector.load %arg5[%c256, %c0_65] : memref<1024x128xbf16, #tpu.memory_space<vmem>>, vector<64x128xbf16>
    %cst_66 = arith.constant dense<0.000000e+00> : vector<16x128xf32>
    %119 = tpu.matmul %117, %118, %cst_66 {dimension_numbers = #tpu.dot_dimension_numbers<[1], [0], [0], [1], [0, 0, 1, 1], [], []>} : vector<16x64xbf16>, vector<64x128xbf16>, vector<16x128xf32> -> vector<16x128xf32>
    %120 = arith.addf %115, %119 : vector<16x128xf32>
    %121 = vector.extract_strided_slice %94 {offsets = [80, 0], sizes = [16, 64], strides = [1, 1]} : vector<256x64xf32> to vector<16x64xf32>
    %122 = arith.truncf %121 : vector<16x64xf32> to vector<16x64xbf16>
    %c320 = arith.constant 320 : index
    %c0_67 = arith.constant 0 : index
    %123 = vector.load %arg5[%c320, %c0_67] : memref<1024x128xbf16, #tpu.memory_space<vmem>>, vector<64x128xbf16>
    %cst_68 = arith.constant dense<0.000000e+00> : vector<16x128xf32>
    %124 = tpu.matmul %122, %123, %cst_68 {dimension_numbers = #tpu.dot_dimension_numbers<[1], [0], [0], [1], [0, 0, 1, 1], [], []>} : vector<16x64xbf16>, vector<64x128xbf16>, vector<16x128xf32> -> vector<16x128xf32>
    %125 = arith.addf %120, %124 : vector<16x128xf32>
    %126 = vector.extract_strided_slice %94 {offsets = [96, 0], sizes = [16, 64], strides = [1, 1]} : vector<256x64xf32> to vector<16x64xf32>
    %127 = arith.truncf %126 : vector<16x64xf32> to vector<16x64xbf16>
    %c384 = arith.constant 384 : index
    %c0_69 = arith.constant 0 : index
    %128 = vector.load %arg5[%c384, %c0_69] : memref<1024x128xbf16, #tpu.memory_space<vmem>>, vector<64x128xbf16>
    %cst_70 = arith.constant dense<0.000000e+00> : vector<16x128xf32>
    %129 = tpu.matmul %127, %128, %cst_70 {dimension_numbers = #tpu.dot_dimension_numbers<[1], [0], [0], [1], [0, 0, 1, 1], [], []>} : vector<16x64xbf16>, vector<64x128xbf16>, vector<16x128xf32> -> vector<16x128xf32>
    %130 = arith.addf %125, %129 : vector<16x128xf32>
    %131 = vector.extract_strided_slice %94 {offsets = [112, 0], sizes = [16, 64], strides = [1, 1]} : vector<256x64xf32> to vector<16x64xf32>
    %132 = arith.truncf %131 : vector<16x64xf32> to vector<16x64xbf16>
    %c448 = arith.constant 448 : index
    %c0_71 = arith.constant 0 : index
    %133 = vector.load %arg5[%c448, %c0_71] : memref<1024x128xbf16, #tpu.memory_space<vmem>>, vector<64x128xbf16>
    %cst_72 = arith.constant dense<0.000000e+00> : vector<16x128xf32>
    %134 = tpu.matmul %132, %133, %cst_72 {dimension_numbers = #tpu.dot_dimension_numbers<[1], [0], [0], [1], [0, 0, 1, 1], [], []>} : vector<16x64xbf16>, vector<64x128xbf16>, vector<16x128xf32> -> vector<16x128xf32>
    %135 = arith.addf %130, %134 : vector<16x128xf32>
    %136 = vector.extract_strided_slice %94 {offsets = [128, 0], sizes = [16, 64], strides = [1, 1]} : vector<256x64xf32> to vector<16x64xf32>
    %137 = arith.truncf %136 : vector<16x64xf32> to vector<16x64xbf16>
    %c512 = arith.constant 512 : index
    %c0_73 = arith.constant 0 : index
    %138 = vector.load %arg5[%c512, %c0_73] : memref<1024x128xbf16, #tpu.memory_space<vmem>>, vector<64x128xbf16>
    %cst_74 = arith.constant dense<0.000000e+00> : vector<16x128xf32>
    %139 = tpu.matmul %137, %138, %cst_74 {dimension_numbers = #tpu.dot_dimension_numbers<[1], [0], [0], [1], [0, 0, 1, 1], [], []>} : vector<16x64xbf16>, vector<64x128xbf16>, vector<16x128xf32> -> vector<16x128xf32>
    %140 = arith.addf %135, %139 : vector<16x128xf32>
    %141 = vector.extract_strided_slice %94 {offsets = [144, 0], sizes = [16, 64], strides = [1, 1]} : vector<256x64xf32> to vector<16x64xf32>
    %142 = arith.truncf %141 : vector<16x64xf32> to vector<16x64xbf16>
    %c576 = arith.constant 576 : index
    %c0_75 = arith.constant 0 : index
    %143 = vector.load %arg5[%c576, %c0_75] : memref<1024x128xbf16, #tpu.memory_space<vmem>>, vector<64x128xbf16>
    %cst_76 = arith.constant dense<0.000000e+00> : vector<16x128xf32>
    %144 = tpu.matmul %142, %143, %cst_76 {dimension_numbers = #tpu.dot_dimension_numbers<[1], [0], [0], [1], [0, 0, 1, 1], [], []>} : vector<16x64xbf16>, vector<64x128xbf16>, vector<16x128xf32> -> vector<16x128xf32>
    %145 = arith.addf %140, %144 : vector<16x128xf32>
    %146 = vector.extract_strided_slice %94 {offsets = [160, 0], sizes = [16, 64], strides = [1, 1]} : vector<256x64xf32> to vector<16x64xf32>
    %147 = arith.truncf %146 : vector<16x64xf32> to vector<16x64xbf16>
    %c640 = arith.constant 640 : index
    %c0_77 = arith.constant 0 : index
    %148 = vector.load %arg5[%c640, %c0_77] : memref<1024x128xbf16, #tpu.memory_space<vmem>>, vector<64x128xbf16>
    %cst_78 = arith.constant dense<0.000000e+00> : vector<16x128xf32>
    %149 = tpu.matmul %147, %148, %cst_78 {dimension_numbers = #tpu.dot_dimension_numbers<[1], [0], [0], [1], [0, 0, 1, 1], [], []>} : vector<16x64xbf16>, vector<64x128xbf16>, vector<16x128xf32> -> vector<16x128xf32>
    %150 = arith.addf %145, %149 : vector<16x128xf32>
    %151 = vector.extract_strided_slice %94 {offsets = [176, 0], sizes = [16, 64], strides = [1, 1]} : vector<256x64xf32> to vector<16x64xf32>
    %152 = arith.truncf %151 : vector<16x64xf32> to vector<16x64xbf16>
    %c704 = arith.constant 704 : index
    %c0_79 = arith.constant 0 : index
    %153 = vector.load %arg5[%c704, %c0_79] : memref<1024x128xbf16, #tpu.memory_space<vmem>>, vector<64x128xbf16>
    %cst_80 = arith.constant dense<0.000000e+00> : vector<16x128xf32>
    %154 = tpu.matmul %152, %153, %cst_80 {dimension_numbers = #tpu.dot_dimension_numbers<[1], [0], [0], [1], [0, 0, 1, 1], [], []>} : vector<16x64xbf16>, vector<64x128xbf16>, vector<16x128xf32> -> vector<16x128xf32>
    %155 = arith.addf %150, %154 : vector<16x128xf32>
    %156 = vector.extract_strided_slice %94 {offsets = [192, 0], sizes = [16, 64], strides = [1, 1]} : vector<256x64xf32> to vector<16x64xf32>
    %157 = arith.truncf %156 : vector<16x64xf32> to vector<16x64xbf16>
    %c768 = arith.constant 768 : index
    %c0_81 = arith.constant 0 : index
    %158 = vector.load %arg5[%c768, %c0_81] : memref<1024x128xbf16, #tpu.memory_space<vmem>>, vector<64x128xbf16>
    %cst_82 = arith.constant dense<0.000000e+00> : vector<16x128xf32>
    %159 = tpu.matmul %157, %158, %cst_82 {dimension_numbers = #tpu.dot_dimension_numbers<[1], [0], [0], [1], [0, 0, 1, 1], [], []>} : vector<16x64xbf16>, vector<64x128xbf16>, vector<16x128xf32> -> vector<16x128xf32>
    %160 = arith.addf %155, %159 : vector<16x128xf32>
    %161 = vector.extract_strided_slice %94 {offsets = [208, 0], sizes = [16, 64], strides = [1, 1]} : vector<256x64xf32> to vector<16x64xf32>
    %162 = arith.truncf %161 : vector<16x64xf32> to vector<16x64xbf16>
    %c832 = arith.constant 832 : index
    %c0_83 = arith.constant 0 : index
    %163 = vector.load %arg5[%c832, %c0_83] : memref<1024x128xbf16, #tpu.memory_space<vmem>>, vector<64x128xbf16>
    %cst_84 = arith.constant dense<0.000000e+00> : vector<16x128xf32>
    %164 = tpu.matmul %162, %163, %cst_84 {dimension_numbers = #tpu.dot_dimension_numbers<[1], [0], [0], [1], [0, 0, 1, 1], [], []>} : vector<16x64xbf16>, vector<64x128xbf16>, vector<16x128xf32> -> vector<16x128xf32>
    %165 = arith.addf %160, %164 : vector<16x128xf32>
    %166 = vector.extract_strided_slice %94 {offsets = [224, 0], sizes = [16, 64], strides = [1, 1]} : vector<256x64xf32> to vector<16x64xf32>
    %167 = arith.truncf %166 : vector<16x64xf32> to vector<16x64xbf16>
    %c896 = arith.constant 896 : index
    %c0_85 = arith.constant 0 : index
    %168 = vector.load %arg5[%c896, %c0_85] : memref<1024x128xbf16, #tpu.memory_space<vmem>>, vector<64x128xbf16>
    %cst_86 = arith.constant dense<0.000000e+00> : vector<16x128xf32>
    %169 = tpu.matmul %167, %168, %cst_86 {dimension_numbers = #tpu.dot_dimension_numbers<[1], [0], [0], [1], [0, 0, 1, 1], [], []>} : vector<16x64xbf16>, vector<64x128xbf16>, vector<16x128xf32> -> vector<16x128xf32>
    %170 = arith.addf %165, %169 : vector<16x128xf32>
    %171 = vector.extract_strided_slice %94 {offsets = [240, 0], sizes = [16, 64], strides = [1, 1]} : vector<256x64xf32> to vector<16x64xf32>
    %172 = arith.truncf %171 : vector<16x64xf32> to vector<16x64xbf16>
    %c960 = arith.constant 960 : index
    %c0_87 = arith.constant 0 : index
    %173 = vector.load %arg5[%c960, %c0_87] : memref<1024x128xbf16, #tpu.memory_space<vmem>>, vector<64x128xbf16>
    %cst_88 = arith.constant dense<0.000000e+00> : vector<16x128xf32>
    %174 = tpu.matmul %172, %173, %cst_88 {dimension_numbers = #tpu.dot_dimension_numbers<[1], [0], [0], [1], [0, 0, 1, 1], [], []>} : vector<16x64xbf16>, vector<64x128xbf16>, vector<16x128xf32> -> vector<16x128xf32>
    %175 = arith.addf %170, %174 : vector<16x128xf32>
    %c0_89 = arith.constant 0 : index
    %c0_90 = arith.constant 0 : index
    %176 = vector.load %arg4[%c0_89, %c0_90] : memref<256x100xbf16, #tpu.memory_space<vmem>>, vector<256x100xbf16>
    %c1_91 = arith.constant 1 : index
    %c0_92 = arith.constant 0 : index
    %c0_93 = arith.constant 0 : index
    %177 = vector.load %arg13[%c1_91, %c0_92, %c0_93] : memref<2x100x64xbf16, #tpu.memory_space<vmem>>, vector<1x100x64xbf16>
    %178 = vector.shape_cast %177 : vector<1x100x64xbf16> to vector<100x64xbf16>
    %cst_94 = arith.constant dense<0.000000e+00> : vector<256x64xf32>
    %179 = tpu.matmul %176, %178, %cst_94 {dimension_numbers = #tpu.dot_dimension_numbers<[1], [0], [0], [1], [0, 0, 1, 1], [], []>} : vector<256x100xbf16>, vector<100x64xbf16>, vector<256x64xf32> -> vector<256x64xf32>
    %cst_95 = arith.constant 0.000000e+00 : f32
    %180 = vector.broadcast %cst_95 : f32 to vector<16x128xf32>
    %181 = vector.extract_strided_slice %179 {offsets = [0, 0], sizes = [16, 64], strides = [1, 1]} : vector<256x64xf32> to vector<16x64xf32>
    %182 = arith.truncf %181 : vector<16x64xf32> to vector<16x64xbf16>
    %c0_96 = arith.constant 0 : index
    %c0_97 = arith.constant 0 : index
    %183 = vector.load %arg5[%c0_96, %c0_97] : memref<1024x128xbf16, #tpu.memory_space<vmem>>, vector<64x128xbf16>
    %cst_98 = arith.constant dense<0.000000e+00> : vector<16x128xf32>
    %184 = tpu.matmul %182, %183, %cst_98 {dimension_numbers = #tpu.dot_dimension_numbers<[1], [0], [0], [1], [0, 0, 1, 1], [], []>} : vector<16x64xbf16>, vector<64x128xbf16>, vector<16x128xf32> -> vector<16x128xf32>
    %185 = arith.addf %180, %184 : vector<16x128xf32>
    %186 = vector.extract_strided_slice %179 {offsets = [16, 0], sizes = [16, 64], strides = [1, 1]} : vector<256x64xf32> to vector<16x64xf32>
    %187 = arith.truncf %186 : vector<16x64xf32> to vector<16x64xbf16>
    %c64_99 = arith.constant 64 : index
    %c0_100 = arith.constant 0 : index
    %188 = vector.load %arg5[%c64_99, %c0_100] : memref<1024x128xbf16, #tpu.memory_space<vmem>>, vector<64x128xbf16>
    %cst_101 = arith.constant dense<0.000000e+00> : vector<16x128xf32>
    %189 = tpu.matmul %187, %188, %cst_101 {dimension_numbers = #tpu.dot_dimension_numbers<[1], [0], [0], [1], [0, 0, 1, 1], [], []>} : vector<16x64xbf16>, vector<64x128xbf16>, vector<16x128xf32> -> vector<16x128xf32>
    %190 = arith.addf %185, %189 : vector<16x128xf32>
    %191 = vector.extract_strided_slice %179 {offsets = [32, 0], sizes = [16, 64], strides = [1, 1]} : vector<256x64xf32> to vector<16x64xf32>
    %192 = arith.truncf %191 : vector<16x64xf32> to vector<16x64xbf16>
    %c128_102 = arith.constant 128 : index
    %c0_103 = arith.constant 0 : index
    %193 = vector.load %arg5[%c128_102, %c0_103] : memref<1024x128xbf16, #tpu.memory_space<vmem>>, vector<64x128xbf16>
    %cst_104 = arith.constant dense<0.000000e+00> : vector<16x128xf32>
    %194 = tpu.matmul %192, %193, %cst_104 {dimension_numbers = #tpu.dot_dimension_numbers<[1], [0], [0], [1], [0, 0, 1, 1], [], []>} : vector<16x64xbf16>, vector<64x128xbf16>, vector<16x128xf32> -> vector<16x128xf32>
    %195 = arith.addf %190, %194 : vector<16x128xf32>
    %196 = vector.extract_strided_slice %179 {offsets = [48, 0], sizes = [16, 64], strides = [1, 1]} : vector<256x64xf32> to vector<16x64xf32>
    %197 = arith.truncf %196 : vector<16x64xf32> to vector<16x64xbf16>
    %c192_105 = arith.constant 192 : index
    %c0_106 = arith.constant 0 : index
    %198 = vector.load %arg5[%c192_105, %c0_106] : memref<1024x128xbf16, #tpu.memory_space<vmem>>, vector<64x128xbf16>
    %cst_107 = arith.constant dense<0.000000e+00> : vector<16x128xf32>
    %199 = tpu.matmul %197, %198, %cst_107 {dimension_numbers = #tpu.dot_dimension_numbers<[1], [0], [0], [1], [0, 0, 1, 1], [], []>} : vector<16x64xbf16>, vector<64x128xbf16>, vector<16x128xf32> -> vector<16x128xf32>
    %200 = arith.addf %195, %199 : vector<16x128xf32>
    %201 = vector.extract_strided_slice %179 {offsets = [64, 0], sizes = [16, 64], strides = [1, 1]} : vector<256x64xf32> to vector<16x64xf32>
    %202 = arith.truncf %201 : vector<16x64xf32> to vector<16x64xbf16>
    %c256_108 = arith.constant 256 : index
    %c0_109 = arith.constant 0 : index
    %203 = vector.load %arg5[%c256_108, %c0_109] : memref<1024x128xbf16, #tpu.memory_space<vmem>>, vector<64x128xbf16>
    %cst_110 = arith.constant dense<0.000000e+00> : vector<16x128xf32>
    %204 = tpu.matmul %202, %203, %cst_110 {dimension_numbers = #tpu.dot_dimension_numbers<[1], [0], [0], [1], [0, 0, 1, 1], [], []>} : vector<16x64xbf16>, vector<64x128xbf16>, vector<16x128xf32> -> vector<16x128xf32>
    %205 = arith.addf %200, %204 : vector<16x128xf32>
    %206 = vector.extract_strided_slice %179 {offsets = [80, 0], sizes = [16, 64], strides = [1, 1]} : vector<256x64xf32> to vector<16x64xf32>
    %207 = arith.truncf %206 : vector<16x64xf32> to vector<16x64xbf16>
    %c320_111 = arith.constant 320 : index
    %c0_112 = arith.constant 0 : index
    %208 = vector.load %arg5[%c320_111, %c0_112] : memref<1024x128xbf16, #tpu.memory_space<vmem>>, vector<64x128xbf16>
    %cst_113 = arith.constant dense<0.000000e+00> : vector<16x128xf32>
    %209 = tpu.matmul %207, %208, %cst_113 {dimension_numbers = #tpu.dot_dimension_numbers<[1], [0], [0], [1], [0, 0, 1, 1], [], []>} : vector<16x64xbf16>, vector<64x128xbf16>, vector<16x128xf32> -> vector<16x128xf32>
    %210 = arith.addf %205, %209 : vector<16x128xf32>
    %211 = vector.extract_strided_slice %179 {offsets = [96, 0], sizes = [16, 64], strides = [1, 1]} : vector<256x64xf32> to vector<16x64xf32>
    %212 = arith.truncf %211 : vector<16x64xf32> to vector<16x64xbf16>
    %c384_114 = arith.constant 384 : index
    %c0_115 = arith.constant 0 : index
    %213 = vector.load %arg5[%c384_114, %c0_115] : memref<1024x128xbf16, #tpu.memory_space<vmem>>, vector<64x128xbf16>
    %cst_116 = arith.constant dense<0.000000e+00> : vector<16x128xf32>
    %214 = tpu.matmul %212, %213, %cst_116 {dimension_numbers = #tpu.dot_dimension_numbers<[1], [0], [0], [1], [0, 0, 1, 1], [], []>} : vector<16x64xbf16>, vector<64x128xbf16>, vector<16x128xf32> -> vector<16x128xf32>
    %215 = arith.addf %210, %214 : vector<16x128xf32>
    %216 = vector.extract_strided_slice %179 {offsets = [112, 0], sizes = [16, 64], strides = [1, 1]} : vector<256x64xf32> to vector<16x64xf32>
    %217 = arith.truncf %216 : vector<16x64xf32> to vector<16x64xbf16>
    %c448_117 = arith.constant 448 : index
    %c0_118 = arith.constant 0 : index
    %218 = vector.load %arg5[%c448_117, %c0_118] : memref<1024x128xbf16, #tpu.memory_space<vmem>>, vector<64x128xbf16>
    %cst_119 = arith.constant dense<0.000000e+00> : vector<16x128xf32>
    %219 = tpu.matmul %217, %218, %cst_119 {dimension_numbers = #tpu.dot_dimension_numbers<[1], [0], [0], [1], [0, 0, 1, 1], [], []>} : vector<16x64xbf16>, vector<64x128xbf16>, vector<16x128xf32> -> vector<16x128xf32>
    %220 = arith.addf %215, %219 : vector<16x128xf32>
    %221 = vector.extract_strided_slice %179 {offsets = [128, 0], sizes = [16, 64], strides = [1, 1]} : vector<256x64xf32> to vector<16x64xf32>
    %222 = arith.truncf %221 : vector<16x64xf32> to vector<16x64xbf16>
    %c512_120 = arith.constant 512 : index
    %c0_121 = arith.constant 0 : index
    %223 = vector.load %arg5[%c512_120, %c0_121] : memref<1024x128xbf16, #tpu.memory_space<vmem>>, vector<64x128xbf16>
    %cst_122 = arith.constant dense<0.000000e+00> : vector<16x128xf32>
    %224 = tpu.matmul %222, %223, %cst_122 {dimension_numbers = #tpu.dot_dimension_numbers<[1], [0], [0], [1], [0, 0, 1, 1], [], []>} : vector<16x64xbf16>, vector<64x128xbf16>, vector<16x128xf32> -> vector<16x128xf32>
    %225 = arith.addf %220, %224 : vector<16x128xf32>
    %226 = vector.extract_strided_slice %179 {offsets = [144, 0], sizes = [16, 64], strides = [1, 1]} : vector<256x64xf32> to vector<16x64xf32>
    %227 = arith.truncf %226 : vector<16x64xf32> to vector<16x64xbf16>
    %c576_123 = arith.constant 576 : index
    %c0_124 = arith.constant 0 : index
    %228 = vector.load %arg5[%c576_123, %c0_124] : memref<1024x128xbf16, #tpu.memory_space<vmem>>, vector<64x128xbf16>
    %cst_125 = arith.constant dense<0.000000e+00> : vector<16x128xf32>
    %229 = tpu.matmul %227, %228, %cst_125 {dimension_numbers = #tpu.dot_dimension_numbers<[1], [0], [0], [1], [0, 0, 1, 1], [], []>} : vector<16x64xbf16>, vector<64x128xbf16>, vector<16x128xf32> -> vector<16x128xf32>
    %230 = arith.addf %225, %229 : vector<16x128xf32>
    %231 = vector.extract_strided_slice %179 {offsets = [160, 0], sizes = [16, 64], strides = [1, 1]} : vector<256x64xf32> to vector<16x64xf32>
    %232 = arith.truncf %231 : vector<16x64xf32> to vector<16x64xbf16>
    %c640_126 = arith.constant 640 : index
    %c0_127 = arith.constant 0 : index
    %233 = vector.load %arg5[%c640_126, %c0_127] : memref<1024x128xbf16, #tpu.memory_space<vmem>>, vector<64x128xbf16>
    %cst_128 = arith.constant dense<0.000000e+00> : vector<16x128xf32>
    %234 = tpu.matmul %232, %233, %cst_128 {dimension_numbers = #tpu.dot_dimension_numbers<[1], [0], [0], [1], [0, 0, 1, 1], [], []>} : vector<16x64xbf16>, vector<64x128xbf16>, vector<16x128xf32> -> vector<16x128xf32>
    %235 = arith.addf %230, %234 : vector<16x128xf32>
    %236 = vector.extract_strided_slice %179 {offsets = [176, 0], sizes = [16, 64], strides = [1, 1]} : vector<256x64xf32> to vector<16x64xf32>
    %237 = arith.truncf %236 : vector<16x64xf32> to vector<16x64xbf16>
    %c704_129 = arith.constant 704 : index
    %c0_130 = arith.constant 0 : index
    %238 = vector.load %arg5[%c704_129, %c0_130] : memref<1024x128xbf16, #tpu.memory_space<vmem>>, vector<64x128xbf16>
    %cst_131 = arith.constant dense<0.000000e+00> : vector<16x128xf32>
    %239 = tpu.matmul %237, %238, %cst_131 {dimension_numbers = #tpu.dot_dimension_numbers<[1], [0], [0], [1], [0, 0, 1, 1], [], []>} : vector<16x64xbf16>, vector<64x128xbf16>, vector<16x128xf32> -> vector<16x128xf32>
    %240 = arith.addf %235, %239 : vector<16x128xf32>
    %241 = vector.extract_strided_slice %179 {offsets = [192, 0], sizes = [16, 64], strides = [1, 1]} : vector<256x64xf32> to vector<16x64xf32>
    %242 = arith.truncf %241 : vector<16x64xf32> to vector<16x64xbf16>
    %c768_132 = arith.constant 768 : index
    %c0_133 = arith.constant 0 : index
    %243 = vector.load %arg5[%c768_132, %c0_133] : memref<1024x128xbf16, #tpu.memory_space<vmem>>, vector<64x128xbf16>
    %cst_134 = arith.constant dense<0.000000e+00> : vector<16x128xf32>
    %244 = tpu.matmul %242, %243, %cst_134 {dimension_numbers = #tpu.dot_dimension_numbers<[1], [0], [0], [1], [0, 0, 1, 1], [], []>} : vector<16x64xbf16>, vector<64x128xbf16>, vector<16x128xf32> -> vector<16x128xf32>
    %245 = arith.addf %240, %244 : vector<16x128xf32>
    %246 = vector.extract_strided_slice %179 {offsets = [208, 0], sizes = [16, 64], strides = [1, 1]} : vector<256x64xf32> to vector<16x64xf32>
    %247 = arith.truncf %246 : vector<16x64xf32> to vector<16x64xbf16>
    %c832_135 = arith.constant 832 : index
    %c0_136 = arith.constant 0 : index
    %248 = vector.load %arg5[%c832_135, %c0_136] : memref<1024x128xbf16, #tpu.memory_space<vmem>>, vector<64x128xbf16>
    %cst_137 = arith.constant dense<0.000000e+00> : vector<16x128xf32>
    %249 = tpu.matmul %247, %248, %cst_137 {dimension_numbers = #tpu.dot_dimension_numbers<[1], [0], [0], [1], [0, 0, 1, 1], [], []>} : vector<16x64xbf16>, vector<64x128xbf16>, vector<16x128xf32> -> vector<16x128xf32>
    %250 = arith.addf %245, %249 : vector<16x128xf32>
    %251 = vector.extract_strided_slice %179 {offsets = [224, 0], sizes = [16, 64], strides = [1, 1]} : vector<256x64xf32> to vector<16x64xf32>
    %252 = arith.truncf %251 : vector<16x64xf32> to vector<16x64xbf16>
    %c896_138 = arith.constant 896 : index
    %c0_139 = arith.constant 0 : index
    %253 = vector.load %arg5[%c896_138, %c0_139] : memref<1024x128xbf16, #tpu.memory_space<vmem>>, vector<64x128xbf16>
    %cst_140 = arith.constant dense<0.000000e+00> : vector<16x128xf32>
    %254 = tpu.matmul %252, %253, %cst_140 {dimension_numbers = #tpu.dot_dimension_numbers<[1], [0], [0], [1], [0, 0, 1, 1], [], []>} : vector<16x64xbf16>, vector<64x128xbf16>, vector<16x128xf32> -> vector<16x128xf32>
    %255 = arith.addf %250, %254 : vector<16x128xf32>
    %256 = vector.extract_strided_slice %179 {offsets = [240, 0], sizes = [16, 64], strides = [1, 1]} : vector<256x64xf32> to vector<16x64xf32>
    %257 = arith.truncf %256 : vector<16x64xf32> to vector<16x64xbf16>
    %c960_141 = arith.constant 960 : index
    %c0_142 = arith.constant 0 : index
    %258 = vector.load %arg5[%c960_141, %c0_142] : memref<1024x128xbf16, #tpu.memory_space<vmem>>, vector<64x128xbf16>
    %cst_143 = arith.constant dense<0.000000e+00> : vector<16x128xf32>
    %259 = tpu.matmul %257, %258, %cst_143 {dimension_numbers = #tpu.dot_dimension_numbers<[1], [0], [0], [1], [0, 0, 1, 1], [], []>} : vector<16x64xbf16>, vector<64x128xbf16>, vector<16x128xf32> -> vector<16x128xf32>
    %260 = arith.addf %255, %259 : vector<16x128xf32>
    %261 = tpu.concatenate %175, %260 in 0 : vector<16x128xf32>, vector<16x128xf32> -> vector<32x128xf32>
    %c0_144 = arith.constant 0 : index
    %c0_145 = arith.constant 0 : index
    %262 = vector.load %arg6[%c0_144, %c0_145] : memref<1x128xf32, #tpu.memory_space<vmem>>, vector<1x128xf32>
    %c0_146 = arith.constant 0 : index
    %c0_147 = arith.constant 0 : index
    %263 = vector.load %arg7[%c0_146, %c0_147] : memref<1x128xf32, #tpu.memory_space<vmem>>, vector<1x128xf32>
    %cst_148 = arith.constant dense<0.000000e+00> : vector<128xf32>
    %264 = vector.multi_reduction <add>, %261, %cst_148 [0] : vector<32x128xf32> to vector<128xf32>
    %265 = vector.shape_cast %264 : vector<128xf32> to vector<1x128xf32>
    %cst_149 = arith.constant 3.200000e+01 : f32
    %266 = vector.broadcast %cst_149 : f32 to vector<1x128xf32>
    %267 = arith.divf %265, %266 : vector<1x128xf32>
    %268 = vector.broadcast %267 : vector<1x128xf32> to vector<32x128xf32>
    %269 = arith.subf %261, %268 : vector<32x128xf32>
    %270 = arith.mulf %269, %269 : vector<32x128xf32>
    %cst_150 = arith.constant dense<0.000000e+00> : vector<128xf32>
    %271 = vector.multi_reduction <add>, %270, %cst_150 [0] : vector<32x128xf32> to vector<128xf32>
    %272 = vector.shape_cast %271 : vector<128xf32> to vector<1x128xf32>
    %cst_151 = arith.constant 3.200000e+01 : f32
    %273 = vector.broadcast %cst_151 : f32 to vector<1x128xf32>
    %274 = arith.divf %272, %273 : vector<1x128xf32>
    %cst_152 = arith.constant 9.99999974E-6 : f32
    %275 = vector.broadcast %cst_152 : f32 to vector<1x128xf32>
    %276 = arith.addf %274, %275 : vector<1x128xf32>
    %277 = math.rsqrt %276 : vector<1x128xf32>
    %278 = arith.mulf %262, %277 : vector<1x128xf32>
    %279 = vector.broadcast %278 : vector<1x128xf32> to vector<32x128xf32>
    %280 = arith.mulf %269, %279 : vector<32x128xf32>
    %281 = vector.broadcast %263 : vector<1x128xf32> to vector<32x128xf32>
    %282 = arith.addf %280, %281 : vector<32x128xf32>
    %cst_153 = arith.constant 1.000000e-01 : f32
    %283 = vector.broadcast %cst_153 : f32 to vector<32x128xf32>
    %284 = arith.mulf %283, %282 : vector<32x128xf32>
    %285 = arith.maximumf %282, %284 : vector<32x128xf32>
    %cst_154 = arith.constant 0.000000e+00 : bf16
    %286 = vector.broadcast %cst_154 : bf16 to vector<2x36x128xbf16>
    %c0_155 = arith.constant 0 : index
    %c0_156 = arith.constant 0 : index
    %c0_157 = arith.constant 0 : index
    %287 = vector.load %arg14[%c0_155, %c0_156, %c0_157] : memref<2x36x128xbf16, #tpu.memory_space<vmem>>, vector<2x36x128xbf16>
    tpu.vector_store %arg14[%c0_155, %c0_156, %c0_157], %286 {strides = array<i32>} : memref<2x36x128xbf16, #tpu.memory_space<vmem>>, vector<2x36x128xbf16>,
    %288 = vector.extract_strided_slice %285 {offsets = [0, 0], sizes = [4, 128], strides = [1, 1]} : vector<32x128xf32> to vector<4x128xf32>
    %289 = arith.truncf %288 : vector<4x128xf32> to vector<4x128xbf16>
    %c0_158 = arith.constant 0 : index
    %c7 = arith.constant 7 : index
    %c0_159 = arith.constant 0 : index
    %290 = vector.load %arg14[%c0_158, %c7, %c0_159] : memref<2x36x128xbf16, #tpu.memory_space<vmem>>, vector<1x4x128xbf16>
    %291 = vector.shape_cast %290 : vector<1x4x128xbf16> to vector<4x128xbf16>
    %292 = vector.shape_cast %289 : vector<4x128xbf16> to vector<1x4x128xbf16>
    tpu.vector_store %arg14[%c0_158, %c7, %c0_159], %292 {strides = array<i32>} : memref<2x36x128xbf16, #tpu.memory_space<vmem>>, vector<1x4x128xbf16>,
    %293 = vector.extract_strided_slice %285 {offsets = [4, 0], sizes = [4, 128], strides = [1, 1]} : vector<32x128xf32> to vector<4x128xf32>
    %294 = arith.truncf %293 : vector<4x128xf32> to vector<4x128xbf16>
    %c0_160 = arith.constant 0 : index
    %c13 = arith.constant 13 : index
    %c0_161 = arith.constant 0 : index
    %295 = vector.load %arg14[%c0_160, %c13, %c0_161] : memref<2x36x128xbf16, #tpu.memory_space<vmem>>, vector<1x4x128xbf16>
    %296 = vector.shape_cast %295 : vector<1x4x128xbf16> to vector<4x128xbf16>
    %297 = vector.shape_cast %294 : vector<4x128xbf16> to vector<1x4x128xbf16>
    tpu.vector_store %arg14[%c0_160, %c13, %c0_161], %297 {strides = array<i32>} : memref<2x36x128xbf16, #tpu.memory_space<vmem>>, vector<1x4x128xbf16>,
    %298 = vector.extract_strided_slice %285 {offsets = [8, 0], sizes = [4, 128], strides = [1, 1]} : vector<32x128xf32> to vector<4x128xf32>
    %299 = arith.truncf %298 : vector<4x128xf32> to vector<4x128xbf16>
    %c0_162 = arith.constant 0 : index
    %c19 = arith.constant 19 : index
    %c0_163 = arith.constant 0 : index
    %300 = vector.load %arg14[%c0_162, %c19, %c0_163] : memref<2x36x128xbf16, #tpu.memory_space<vmem>>, vector<1x4x128xbf16>
    %301 = vector.shape_cast %300 : vector<1x4x128xbf16> to vector<4x128xbf16>
    %302 = vector.shape_cast %299 : vector<4x128xbf16> to vector<1x4x128xbf16>
    tpu.vector_store %arg14[%c0_162, %c19, %c0_163], %302 {strides = array<i32>} : memref<2x36x128xbf16, #tpu.memory_space<vmem>>, vector<1x4x128xbf16>,
    %303 = vector.extract_strided_slice %285 {offsets = [12, 0], sizes = [4, 128], strides = [1, 1]} : vector<32x128xf32> to vector<4x128xf32>
    %304 = arith.truncf %303 : vector<4x128xf32> to vector<4x128xbf16>
    %c0_164 = arith.constant 0 : index
    %c25 = arith.constant 25 : index
    %c0_165 = arith.constant 0 : index
    %305 = vector.load %arg14[%c0_164, %c25, %c0_165] : memref<2x36x128xbf16, #tpu.memory_space<vmem>>, vector<1x4x128xbf16>
    %306 = vector.shape_cast %305 : vector<1x4x128xbf16> to vector<4x128xbf16>
    %307 = vector.shape_cast %304 : vector<4x128xbf16> to vector<1x4x128xbf16>
    tpu.vector_store %arg14[%c0_164, %c25, %c0_165], %307 {strides = array<i32>} : memref<2x36x128xbf16, #tpu.memory_space<vmem>>, vector<1x4x128xbf16>,
    %308 = vector.extract_strided_slice %285 {offsets = [16, 0], sizes = [4, 128], strides = [1, 1]} : vector<32x128xf32> to vector<4x128xf32>
    %309 = arith.truncf %308 : vector<4x128xf32> to vector<4x128xbf16>
    %c1_166 = arith.constant 1 : index
    %c7_167 = arith.constant 7 : index
    %c0_168 = arith.constant 0 : index
    %310 = vector.load %arg14[%c1_166, %c7_167, %c0_168] : memref<2x36x128xbf16, #tpu.memory_space<vmem>>, vector<1x4x128xbf16>
    %311 = vector.shape_cast %310 : vector<1x4x128xbf16> to vector<4x128xbf16>
    %312 = vector.shape_cast %309 : vector<4x128xbf16> to vector<1x4x128xbf16>
    tpu.vector_store %arg14[%c1_166, %c7_167, %c0_168], %312 {strides = array<i32>} : memref<2x36x128xbf16, #tpu.memory_space<vmem>>, vector<1x4x128xbf16>,
    %313 = vector.extract_strided_slice %285 {offsets = [20, 0], sizes = [4, 128], strides = [1, 1]} : vector<32x128xf32> to vector<4x128xf32>
    %314 = arith.truncf %313 : vector<4x128xf32> to vector<4x128xbf16>
    %c1_169 = arith.constant 1 : index
    %c13_170 = arith.constant 13 : index
    %c0_171 = arith.constant 0 : index
    %315 = vector.load %arg14[%c1_169, %c13_170, %c0_171] : memref<2x36x128xbf16, #tpu.memory_space<vmem>>, vector<1x4x128xbf16>
    %316 = vector.shape_cast %315 : vector<1x4x128xbf16> to vector<4x128xbf16>
    %317 = vector.shape_cast %314 : vector<4x128xbf16> to vector<1x4x128xbf16>
    tpu.vector_store %arg14[%c1_169, %c13_170, %c0_171], %317 {strides = array<i32>} : memref<2x36x128xbf16, #tpu.memory_space<vmem>>, vector<1x4x128xbf16>,
    %318 = vector.extract_strided_slice %285 {offsets = [24, 0], sizes = [4, 128], strides = [1, 1]} : vector<32x128xf32> to vector<4x128xf32>
    %319 = arith.truncf %318 : vector<4x128xf32> to vector<4x128xbf16>
    %c1_172 = arith.constant 1 : index
    %c19_173 = arith.constant 19 : index
    %c0_174 = arith.constant 0 : index
    %320 = vector.load %arg14[%c1_172, %c19_173, %c0_174] : memref<2x36x128xbf16, #tpu.memory_space<vmem>>, vector<1x4x128xbf16>
    %321 = vector.shape_cast %320 : vector<1x4x128xbf16> to vector<4x128xbf16>
    %322 = vector.shape_cast %319 : vector<4x128xbf16> to vector<1x4x128xbf16>
    tpu.vector_store %arg14[%c1_172, %c19_173, %c0_174], %322 {strides = array<i32>} : memref<2x36x128xbf16, #tpu.memory_space<vmem>>, vector<1x4x128xbf16>,
    %323 = vector.extract_strided_slice %285 {offsets = [28, 0], sizes = [4, 128], strides = [1, 1]} : vector<32x128xf32> to vector<4x128xf32>
    %324 = arith.truncf %323 : vector<4x128xf32> to vector<4x128xbf16>
    %c1_175 = arith.constant 1 : index
    %c25_176 = arith.constant 25 : index
    %c0_177 = arith.constant 0 : index
    %325 = vector.load %arg14[%c1_175, %c25_176, %c0_177] : memref<2x36x128xbf16, #tpu.memory_space<vmem>>, vector<1x4x128xbf16>
    %326 = vector.shape_cast %325 : vector<1x4x128xbf16> to vector<4x128xbf16>
    %327 = vector.shape_cast %324 : vector<4x128xbf16> to vector<1x4x128xbf16>
    tpu.vector_store %arg14[%c1_175, %c25_176, %c0_177], %327 {strides = array<i32>} : memref<2x36x128xbf16, #tpu.memory_space<vmem>>, vector<1x4x128xbf16>,
    %c0_178 = arith.constant 0 : index
    %c0_179 = arith.constant 0 : index
    %328 = vector.load %arg8[%c0_178, %c0_179] : memref<64x36xbf16, #tpu.memory_space<vmem>>, vector<64x36xbf16>
    %c0_180 = arith.constant 0 : index
    %c0_181 = arith.constant 0 : index
    %c0_182 = arith.constant 0 : index
    %329 = vector.load %arg14[%c0_180, %c0_181, %c0_182] : memref<2x36x128xbf16, #tpu.memory_space<vmem>>, vector<1x36x128xbf16>
    %330 = vector.shape_cast %329 : vector<1x36x128xbf16> to vector<36x128xbf16>
    %cst_183 = arith.constant dense<0.000000e+00> : vector<64x128xf32>
    %331 = tpu.matmul %328, %330, %cst_183 {dimension_numbers = #tpu.dot_dimension_numbers<[1], [0], [0], [1], [0, 0, 1, 1], [], []>} : vector<64x36xbf16>, vector<36x128xbf16>, vector<64x128xf32> -> vector<64x128xf32>
    %cst_184 = arith.constant 0.000000e+00 : f32
    %332 = vector.broadcast %cst_184 : f32 to vector<4x256xf32>
    %333 = vector.extract_strided_slice %331 {offsets = [0, 0], sizes = [4, 128], strides = [1, 1]} : vector<64x128xf32> to vector<4x128xf32>
    %334 = arith.truncf %333 : vector<4x128xf32> to vector<4x128xbf16>
    %c0_185 = arith.constant 0 : index
    %c0_186 = arith.constant 0 : index
    %335 = vector.load %arg9[%c0_185, %c0_186] : memref<2048x256xbf16, #tpu.memory_space<vmem>>, vector<128x256xbf16>
    %cst_187 = arith.constant dense<0.000000e+00> : vector<4x256xf32>
    %336 = tpu.matmul %334, %335, %cst_187 {dimension_numbers = #tpu.dot_dimension_numbers<[1], [0], [0], [1], [0, 0, 1, 1], [], []>} : vector<4x128xbf16>, vector<128x256xbf16>, vector<4x256xf32> -> vector<4x256xf32>
    %337 = arith.addf %332, %336 : vector<4x256xf32>
    %338 = vector.extract_strided_slice %331 {offsets = [4, 0], sizes = [4, 128], strides = [1, 1]} : vector<64x128xf32> to vector<4x128xf32>
    %339 = arith.truncf %338 : vector<4x128xf32> to vector<4x128xbf16>
    %c128_188 = arith.constant 128 : index
    %c0_189 = arith.constant 0 : index
    %340 = vector.load %arg9[%c128_188, %c0_189] : memref<2048x256xbf16, #tpu.memory_space<vmem>>, vector<128x256xbf16>
    %cst_190 = arith.constant dense<0.000000e+00> : vector<4x256xf32>
    %341 = tpu.matmul %339, %340, %cst_190 {dimension_numbers = #tpu.dot_dimension_numbers<[1], [0], [0], [1], [0, 0, 1, 1], [], []>} : vector<4x128xbf16>, vector<128x256xbf16>, vector<4x256xf32> -> vector<4x256xf32>
    %342 = arith.addf %337, %341 : vector<4x256xf32>
    %343 = vector.extract_strided_slice %331 {offsets = [8, 0], sizes = [4, 128], strides = [1, 1]} : vector<64x128xf32> to vector<4x128xf32>
    %344 = arith.truncf %343 : vector<4x128xf32> to vector<4x128xbf16>
    %c256_191 = arith.constant 256 : index
    %c0_192 = arith.constant 0 : index
    %345 = vector.load %arg9[%c256_191, %c0_192] : memref<2048x256xbf16, #tpu.memory_space<vmem>>, vector<128x256xbf16>
    %cst_193 = arith.constant dense<0.000000e+00> : vector<4x256xf32>
    %346 = tpu.matmul %344, %345, %cst_193 {dimension_numbers = #tpu.dot_dimension_numbers<[1], [0], [0], [1], [0, 0, 1, 1], [], []>} : vector<4x128xbf16>, vector<128x256xbf16>, vector<4x256xf32> -> vector<4x256xf32>
    %347 = arith.addf %342, %346 : vector<4x256xf32>
    %348 = vector.extract_strided_slice %331 {offsets = [12, 0], sizes = [4, 128], strides = [1, 1]} : vector<64x128xf32> to vector<4x128xf32>
    %349 = arith.truncf %348 : vector<4x128xf32> to vector<4x128xbf16>
    %c384_194 = arith.constant 384 : index
    %c0_195 = arith.constant 0 : index
    %350 = vector.load %arg9[%c384_194, %c0_195] : memref<2048x256xbf16, #tpu.memory_space<vmem>>, vector<128x256xbf16>
    %cst_196 = arith.constant dense<0.000000e+00> : vector<4x256xf32>
    %351 = tpu.matmul %349, %350, %cst_196 {dimension_numbers = #tpu.dot_dimension_numbers<[1], [0], [0], [1], [0, 0, 1, 1], [], []>} : vector<4x128xbf16>, vector<128x256xbf16>, vector<4x256xf32> -> vector<4x256xf32>
    %352 = arith.addf %347, %351 : vector<4x256xf32>
    %353 = vector.extract_strided_slice %331 {offsets = [16, 0], sizes = [4, 128], strides = [1, 1]} : vector<64x128xf32> to vector<4x128xf32>
    %354 = arith.truncf %353 : vector<4x128xf32> to vector<4x128xbf16>
    %c512_197 = arith.constant 512 : index
    %c0_198 = arith.constant 0 : index
    %355 = vector.load %arg9[%c512_197, %c0_198] : memref<2048x256xbf16, #tpu.memory_space<vmem>>, vector<128x256xbf16>
    %cst_199 = arith.constant dense<0.000000e+00> : vector<4x256xf32>
    %356 = tpu.matmul %354, %355, %cst_199 {dimension_numbers = #tpu.dot_dimension_numbers<[1], [0], [0], [1], [0, 0, 1, 1], [], []>} : vector<4x128xbf16>, vector<128x256xbf16>, vector<4x256xf32> -> vector<4x256xf32>
    %357 = arith.addf %352, %356 : vector<4x256xf32>
    %358 = vector.extract_strided_slice %331 {offsets = [20, 0], sizes = [4, 128], strides = [1, 1]} : vector<64x128xf32> to vector<4x128xf32>
    %359 = arith.truncf %358 : vector<4x128xf32> to vector<4x128xbf16>
    %c640_200 = arith.constant 640 : index
    %c0_201 = arith.constant 0 : index
    %360 = vector.load %arg9[%c640_200, %c0_201] : memref<2048x256xbf16, #tpu.memory_space<vmem>>, vector<128x256xbf16>
    %cst_202 = arith.constant dense<0.000000e+00> : vector<4x256xf32>
    %361 = tpu.matmul %359, %360, %cst_202 {dimension_numbers = #tpu.dot_dimension_numbers<[1], [0], [0], [1], [0, 0, 1, 1], [], []>} : vector<4x128xbf16>, vector<128x256xbf16>, vector<4x256xf32> -> vector<4x256xf32>
    %362 = arith.addf %357, %361 : vector<4x256xf32>
    %363 = vector.extract_strided_slice %331 {offsets = [24, 0], sizes = [4, 128], strides = [1, 1]} : vector<64x128xf32> to vector<4x128xf32>
    %364 = arith.truncf %363 : vector<4x128xf32> to vector<4x128xbf16>
    %c768_203 = arith.constant 768 : index
    %c0_204 = arith.constant 0 : index
    %365 = vector.load %arg9[%c768_203, %c0_204] : memref<2048x256xbf16, #tpu.memory_space<vmem>>, vector<128x256xbf16>
    %cst_205 = arith.constant dense<0.000000e+00> : vector<4x256xf32>
    %366 = tpu.matmul %364, %365, %cst_205 {dimension_numbers = #tpu.dot_dimension_numbers<[1], [0], [0], [1], [0, 0, 1, 1], [], []>} : vector<4x128xbf16>, vector<128x256xbf16>, vector<4x256xf32> -> vector<4x256xf32>
    %367 = arith.addf %362, %366 : vector<4x256xf32>
    %368 = vector.extract_strided_slice %331 {offsets = [28, 0], sizes = [4, 128], strides = [1, 1]} : vector<64x128xf32> to vector<4x128xf32>
    %369 = arith.truncf %368 : vector<4x128xf32> to vector<4x128xbf16>
    %c896_206 = arith.constant 896 : index
    %c0_207 = arith.constant 0 : index
    %370 = vector.load %arg9[%c896_206, %c0_207] : memref<2048x256xbf16, #tpu.memory_space<vmem>>, vector<128x256xbf16>
    %cst_208 = arith.constant dense<0.000000e+00> : vector<4x256xf32>
    %371 = tpu.matmul %369, %370, %cst_208 {dimension_numbers = #tpu.dot_dimension_numbers<[1], [0], [0], [1], [0, 0, 1, 1], [], []>} : vector<4x128xbf16>, vector<128x256xbf16>, vector<4x256xf32> -> vector<4x256xf32>
    %372 = arith.addf %367, %371 : vector<4x256xf32>
    %373 = vector.extract_strided_slice %331 {offsets = [32, 0], sizes = [4, 128], strides = [1, 1]} : vector<64x128xf32> to vector<4x128xf32>
    %374 = arith.truncf %373 : vector<4x128xf32> to vector<4x128xbf16>
    %c1024 = arith.constant 1024 : index
    %c0_209 = arith.constant 0 : index
    %375 = vector.load %arg9[%c1024, %c0_209] : memref<2048x256xbf16, #tpu.memory_space<vmem>>, vector<128x256xbf16>
    %cst_210 = arith.constant dense<0.000000e+00> : vector<4x256xf32>
    %376 = tpu.matmul %374, %375, %cst_210 {dimension_numbers = #tpu.dot_dimension_numbers<[1], [0], [0], [1], [0, 0, 1, 1], [], []>} : vector<4x128xbf16>, vector<128x256xbf16>, vector<4x256xf32> -> vector<4x256xf32>
    %377 = arith.addf %372, %376 : vector<4x256xf32>
    %378 = vector.extract_strided_slice %331 {offsets = [36, 0], sizes = [4, 128], strides = [1, 1]} : vector<64x128xf32> to vector<4x128xf32>
    %379 = arith.truncf %378 : vector<4x128xf32> to vector<4x128xbf16>
    %c1152 = arith.constant 1152 : index
    %c0_211 = arith.constant 0 : index
    %380 = vector.load %arg9[%c1152, %c0_211] : memref<2048x256xbf16, #tpu.memory_space<vmem>>, vector<128x256xbf16>
    %cst_212 = arith.constant dense<0.000000e+00> : vector<4x256xf32>
    %381 = tpu.matmul %379, %380, %cst_212 {dimension_numbers = #tpu.dot_dimension_numbers<[1], [0], [0], [1], [0, 0, 1, 1], [], []>} : vector<4x128xbf16>, vector<128x256xbf16>, vector<4x256xf32> -> vector<4x256xf32>
    %382 = arith.addf %377, %381 : vector<4x256xf32>
    %383 = vector.extract_strided_slice %331 {offsets = [40, 0], sizes = [4, 128], strides = [1, 1]} : vector<64x128xf32> to vector<4x128xf32>
    %384 = arith.truncf %383 : vector<4x128xf32> to vector<4x128xbf16>
    %c1280 = arith.constant 1280 : index
    %c0_213 = arith.constant 0 : index
    %385 = vector.load %arg9[%c1280, %c0_213] : memref<2048x256xbf16, #tpu.memory_space<vmem>>, vector<128x256xbf16>
    %cst_214 = arith.constant dense<0.000000e+00> : vector<4x256xf32>
    %386 = tpu.matmul %384, %385, %cst_214 {dimension_numbers = #tpu.dot_dimension_numbers<[1], [0], [0], [1], [0, 0, 1, 1], [], []>} : vector<4x128xbf16>, vector<128x256xbf16>, vector<4x256xf32> -> vector<4x256xf32>
    %387 = arith.addf %382, %386 : vector<4x256xf32>
    %388 = vector.extract_strided_slice %331 {offsets = [44, 0], sizes = [4, 128], strides = [1, 1]} : vector<64x128xf32> to vector<4x128xf32>
    %389 = arith.truncf %388 : vector<4x128xf32> to vector<4x128xbf16>
    %c1408 = arith.constant 1408 : index
    %c0_215 = arith.constant 0 : index
    %390 = vector.load %arg9[%c1408, %c0_215] : memref<2048x256xbf16, #tpu.memory_space<vmem>>, vector<128x256xbf16>
    %cst_216 = arith.constant dense<0.000000e+00> : vector<4x256xf32>
    %391 = tpu.matmul %389, %390, %cst_216 {dimension_numbers = #tpu.dot_dimension_numbers<[1], [0], [0], [1], [0, 0, 1, 1], [], []>} : vector<4x128xbf16>, vector<128x256xbf16>, vector<4x256xf32> -> vector<4x256xf32>
    %392 = arith.addf %387, %391 : vector<4x256xf32>
    %393 = vector.extract_strided_slice %331 {offsets = [48, 0], sizes = [4, 128], strides = [1, 1]} : vector<64x128xf32> to vector<4x128xf32>
    %394 = arith.truncf %393 : vector<4x128xf32> to vector<4x128xbf16>
    %c1536 = arith.constant 1536 : index
    %c0_217 = arith.constant 0 : index
    %395 = vector.load %arg9[%c1536, %c0_217] : memref<2048x256xbf16, #tpu.memory_space<vmem>>, vector<128x256xbf16>
    %cst_218 = arith.constant dense<0.000000e+00> : vector<4x256xf32>
    %396 = tpu.matmul %394, %395, %cst_218 {dimension_numbers = #tpu.dot_dimension_numbers<[1], [0], [0], [1], [0, 0, 1, 1], [], []>} : vector<4x128xbf16>, vector<128x256xbf16>, vector<4x256xf32> -> vector<4x256xf32>
    %397 = arith.addf %392, %396 : vector<4x256xf32>
    %398 = vector.extract_strided_slice %331 {offsets = [52, 0], sizes = [4, 128], strides = [1, 1]} : vector<64x128xf32> to vector<4x128xf32>
    %399 = arith.truncf %398 : vector<4x128xf32> to vector<4x128xbf16>
    %c1664 = arith.constant 1664 : index
    %c0_219 = arith.constant 0 : index
    %400 = vector.load %arg9[%c1664, %c0_219] : memref<2048x256xbf16, #tpu.memory_space<vmem>>, vector<128x256xbf16>
    %cst_220 = arith.constant dense<0.000000e+00> : vector<4x256xf32>
    %401 = tpu.matmul %399, %400, %cst_220 {dimension_numbers = #tpu.dot_dimension_numbers<[1], [0], [0], [1], [0, 0, 1, 1], [], []>} : vector<4x128xbf16>, vector<128x256xbf16>, vector<4x256xf32> -> vector<4x256xf32>
    %402 = arith.addf %397, %401 : vector<4x256xf32>
    %403 = vector.extract_strided_slice %331 {offsets = [56, 0], sizes = [4, 128], strides = [1, 1]} : vector<64x128xf32> to vector<4x128xf32>
    %404 = arith.truncf %403 : vector<4x128xf32> to vector<4x128xbf16>
    %c1792 = arith.constant 1792 : index
    %c0_221 = arith.constant 0 : index
    %405 = vector.load %arg9[%c1792, %c0_221] : memref<2048x256xbf16, #tpu.memory_space<vmem>>, vector<128x256xbf16>
    %cst_222 = arith.constant dense<0.000000e+00> : vector<4x256xf32>
    %406 = tpu.matmul %404, %405, %cst_222 {dimension_numbers = #tpu.dot_dimension_numbers<[1], [0], [0], [1], [0, 0, 1, 1], [], []>} : vector<4x128xbf16>, vector<128x256xbf16>, vector<4x256xf32> -> vector<4x256xf32>
    %407 = arith.addf %402, %406 : vector<4x256xf32>
    %408 = vector.extract_strided_slice %331 {offsets = [60, 0], sizes = [4, 128], strides = [1, 1]} : vector<64x128xf32> to vector<4x128xf32>
    %409 = arith.truncf %408 : vector<4x128xf32> to vector<4x128xbf16>
    %c1920 = arith.constant 1920 : index
    %c0_223 = arith.constant 0 : index
    %410 = vector.load %arg9[%c1920, %c0_223] : memref<2048x256xbf16, #tpu.memory_space<vmem>>, vector<128x256xbf16>
    %cst_224 = arith.constant dense<0.000000e+00> : vector<4x256xf32>
    %411 = tpu.matmul %409, %410, %cst_224 {dimension_numbers = #tpu.dot_dimension_numbers<[1], [0], [0], [1], [0, 0, 1, 1], [], []>} : vector<4x128xbf16>, vector<128x256xbf16>, vector<4x256xf32> -> vector<4x256xf32>
    %412 = arith.addf %407, %411 : vector<4x256xf32>
    %c0_225 = arith.constant 0 : index
    %c0_226 = arith.constant 0 : index
    %413 = vector.load %arg8[%c0_225, %c0_226] : memref<64x36xbf16, #tpu.memory_space<vmem>>, vector<64x36xbf16>
    %c1_227 = arith.constant 1 : index
    %c0_228 = arith.constant 0 : index
    %c0_229 = arith.constant 0 : index
    %414 = vector.load %arg14[%c1_227, %c0_228, %c0_229] : memref<2x36x128xbf16, #tpu.memory_space<vmem>>, vector<1x36x128xbf16>
    %415 = vector.shape_cast %414 : vector<1x36x128xbf16> to vector<36x128xbf16>
    %cst_230 = arith.constant dense<0.000000e+00> : vector<64x128xf32>
    %416 = tpu.matmul %413, %415, %cst_230 {dimension_numbers = #tpu.dot_dimension_numbers<[1], [0], [0], [1], [0, 0, 1, 1], [], []>} : vector<64x36xbf16>, vector<36x128xbf16>, vector<64x128xf32> -> vector<64x128xf32>
    %cst_231 = arith.constant 0.000000e+00 : f32
    %417 = vector.broadcast %cst_231 : f32 to vector<4x256xf32>
    %418 = vector.extract_strided_slice %416 {offsets = [0, 0], sizes = [4, 128], strides = [1, 1]} : vector<64x128xf32> to vector<4x128xf32>
    %419 = arith.truncf %418 : vector<4x128xf32> to vector<4x128xbf16>
    %c0_232 = arith.constant 0 : index
    %c0_233 = arith.constant 0 : index
    %420 = vector.load %arg9[%c0_232, %c0_233] : memref<2048x256xbf16, #tpu.memory_space<vmem>>, vector<128x256xbf16>
    %cst_234 = arith.constant dense<0.000000e+00> : vector<4x256xf32>
    %421 = tpu.matmul %419, %420, %cst_234 {dimension_numbers = #tpu.dot_dimension_numbers<[1], [0], [0], [1], [0, 0, 1, 1], [], []>} : vector<4x128xbf16>, vector<128x256xbf16>, vector<4x256xf32> -> vector<4x256xf32>
    %422 = arith.addf %417, %421 : vector<4x256xf32>
    %423 = vector.extract_strided_slice %416 {offsets = [4, 0], sizes = [4, 128], strides = [1, 1]} : vector<64x128xf32> to vector<4x128xf32>
    %424 = arith.truncf %423 : vector<4x128xf32> to vector<4x128xbf16>
    %c128_235 = arith.constant 128 : index
    %c0_236 = arith.constant 0 : index
    %425 = vector.load %arg9[%c128_235, %c0_236] : memref<2048x256xbf16, #tpu.memory_space<vmem>>, vector<128x256xbf16>
    %cst_237 = arith.constant dense<0.000000e+00> : vector<4x256xf32>
    %426 = tpu.matmul %424, %425, %cst_237 {dimension_numbers = #tpu.dot_dimension_numbers<[1], [0], [0], [1], [0, 0, 1, 1], [], []>} : vector<4x128xbf16>, vector<128x256xbf16>, vector<4x256xf32> -> vector<4x256xf32>
    %427 = arith.addf %422, %426 : vector<4x256xf32>
    %428 = vector.extract_strided_slice %416 {offsets = [8, 0], sizes = [4, 128], strides = [1, 1]} : vector<64x128xf32> to vector<4x128xf32>
    %429 = arith.truncf %428 : vector<4x128xf32> to vector<4x128xbf16>
    %c256_238 = arith.constant 256 : index
    %c0_239 = arith.constant 0 : index
    %430 = vector.load %arg9[%c256_238, %c0_239] : memref<2048x256xbf16, #tpu.memory_space<vmem>>, vector<128x256xbf16>
    %cst_240 = arith.constant dense<0.000000e+00> : vector<4x256xf32>
    %431 = tpu.matmul %429, %430, %cst_240 {dimension_numbers = #tpu.dot_dimension_numbers<[1], [0], [0], [1], [0, 0, 1, 1], [], []>} : vector<4x128xbf16>, vector<128x256xbf16>, vector<4x256xf32> -> vector<4x256xf32>
    %432 = arith.addf %427, %431 : vector<4x256xf32>
    %433 = vector.extract_strided_slice %416 {offsets = [12, 0], sizes = [4, 128], strides = [1, 1]} : vector<64x128xf32> to vector<4x128xf32>
    %434 = arith.truncf %433 : vector<4x128xf32> to vector<4x128xbf16>
    %c384_241 = arith.constant 384 : index
    %c0_242 = arith.constant 0 : index
    %435 = vector.load %arg9[%c384_241, %c0_242] : memref<2048x256xbf16, #tpu.memory_space<vmem>>, vector<128x256xbf16>
    %cst_243 = arith.constant dense<0.000000e+00> : vector<4x256xf32>
    %436 = tpu.matmul %434, %435, %cst_243 {dimension_numbers = #tpu.dot_dimension_numbers<[1], [0], [0], [1], [0, 0, 1, 1], [], []>} : vector<4x128xbf16>, vector<128x256xbf16>, vector<4x256xf32> -> vector<4x256xf32>
    %437 = arith.addf %432, %436 : vector<4x256xf32>
    %438 = vector.extract_strided_slice %416 {offsets = [16, 0], sizes = [4, 128], strides = [1, 1]} : vector<64x128xf32> to vector<4x128xf32>
    %439 = arith.truncf %438 : vector<4x128xf32> to vector<4x128xbf16>
    %c512_244 = arith.constant 512 : index
    %c0_245 = arith.constant 0 : index
    %440 = vector.load %arg9[%c512_244, %c0_245] : memref<2048x256xbf16, #tpu.memory_space<vmem>>, vector<128x256xbf16>
    %cst_246 = arith.constant dense<0.000000e+00> : vector<4x256xf32>
    %441 = tpu.matmul %439, %440, %cst_246 {dimension_numbers = #tpu.dot_dimension_numbers<[1], [0], [0], [1], [0, 0, 1, 1], [], []>} : vector<4x128xbf16>, vector<128x256xbf16>, vector<4x256xf32> -> vector<4x256xf32>
    %442 = arith.addf %437, %441 : vector<4x256xf32>
    %443 = vector.extract_strided_slice %416 {offsets = [20, 0], sizes = [4, 128], strides = [1, 1]} : vector<64x128xf32> to vector<4x128xf32>
    %444 = arith.truncf %443 : vector<4x128xf32> to vector<4x128xbf16>
    %c640_247 = arith.constant 640 : index
    %c0_248 = arith.constant 0 : index
    %445 = vector.load %arg9[%c640_247, %c0_248] : memref<2048x256xbf16, #tpu.memory_space<vmem>>, vector<128x256xbf16>
    %cst_249 = arith.constant dense<0.000000e+00> : vector<4x256xf32>
    %446 = tpu.matmul %444, %445, %cst_249 {dimension_numbers = #tpu.dot_dimension_numbers<[1], [0], [0], [1], [0, 0, 1, 1], [], []>} : vector<4x128xbf16>, vector<128x256xbf16>, vector<4x256xf32> -> vector<4x256xf32>
    %447 = arith.addf %442, %446 : vector<4x256xf32>
    %448 = vector.extract_strided_slice %416 {offsets = [24, 0], sizes = [4, 128], strides = [1, 1]} : vector<64x128xf32> to vector<4x128xf32>
    %449 = arith.truncf %448 : vector<4x128xf32> to vector<4x128xbf16>
    %c768_250 = arith.constant 768 : index
    %c0_251 = arith.constant 0 : index
    %450 = vector.load %arg9[%c768_250, %c0_251] : memref<2048x256xbf16, #tpu.memory_space<vmem>>, vector<128x256xbf16>
    %cst_252 = arith.constant dense<0.000000e+00> : vector<4x256xf32>
    %451 = tpu.matmul %449, %450, %cst_252 {dimension_numbers = #tpu.dot_dimension_numbers<[1], [0], [0], [1], [0, 0, 1, 1], [], []>} : vector<4x128xbf16>, vector<128x256xbf16>, vector<4x256xf32> -> vector<4x256xf32>
    %452 = arith.addf %447, %451 : vector<4x256xf32>
    %453 = vector.extract_strided_slice %416 {offsets = [28, 0], sizes = [4, 128], strides = [1, 1]} : vector<64x128xf32> to vector<4x128xf32>
    %454 = arith.truncf %453 : vector<4x128xf32> to vector<4x128xbf16>
    %c896_253 = arith.constant 896 : index
    %c0_254 = arith.constant 0 : index
    %455 = vector.load %arg9[%c896_253, %c0_254] : memref<2048x256xbf16, #tpu.memory_space<vmem>>, vector<128x256xbf16>
    %cst_255 = arith.constant dense<0.000000e+00> : vector<4x256xf32>
    %456 = tpu.matmul %454, %455, %cst_255 {dimension_numbers = #tpu.dot_dimension_numbers<[1], [0], [0], [1], [0, 0, 1, 1], [], []>} : vector<4x128xbf16>, vector<128x256xbf16>, vector<4x256xf32> -> vector<4x256xf32>
    %457 = arith.addf %452, %456 : vector<4x256xf32>
    %458 = vector.extract_strided_slice %416 {offsets = [32, 0], sizes = [4, 128], strides = [1, 1]} : vector<64x128xf32> to vector<4x128xf32>
    %459 = arith.truncf %458 : vector<4x128xf32> to vector<4x128xbf16>
    %c1024_256 = arith.constant 1024 : index
    %c0_257 = arith.constant 0 : index
    %460 = vector.load %arg9[%c1024_256, %c0_257] : memref<2048x256xbf16, #tpu.memory_space<vmem>>, vector<128x256xbf16>
    %cst_258 = arith.constant dense<0.000000e+00> : vector<4x256xf32>
    %461 = tpu.matmul %459, %460, %cst_258 {dimension_numbers = #tpu.dot_dimension_numbers<[1], [0], [0], [1], [0, 0, 1, 1], [], []>} : vector<4x128xbf16>, vector<128x256xbf16>, vector<4x256xf32> -> vector<4x256xf32>
    %462 = arith.addf %457, %461 : vector<4x256xf32>
    %463 = vector.extract_strided_slice %416 {offsets = [36, 0], sizes = [4, 128], strides = [1, 1]} : vector<64x128xf32> to vector<4x128xf32>
    %464 = arith.truncf %463 : vector<4x128xf32> to vector<4x128xbf16>
    %c1152_259 = arith.constant 1152 : index
    %c0_260 = arith.constant 0 : index
    %465 = vector.load %arg9[%c1152_259, %c0_260] : memref<2048x256xbf16, #tpu.memory_space<vmem>>, vector<128x256xbf16>
    %cst_261 = arith.constant dense<0.000000e+00> : vector<4x256xf32>
    %466 = tpu.matmul %464, %465, %cst_261 {dimension_numbers = #tpu.dot_dimension_numbers<[1], [0], [0], [1], [0, 0, 1, 1], [], []>} : vector<4x128xbf16>, vector<128x256xbf16>, vector<4x256xf32> -> vector<4x256xf32>
    %467 = arith.addf %462, %466 : vector<4x256xf32>
    %468 = vector.extract_strided_slice %416 {offsets = [40, 0], sizes = [4, 128], strides = [1, 1]} : vector<64x128xf32> to vector<4x128xf32>
    %469 = arith.truncf %468 : vector<4x128xf32> to vector<4x128xbf16>
    %c1280_262 = arith.constant 1280 : index
    %c0_263 = arith.constant 0 : index
    %470 = vector.load %arg9[%c1280_262, %c0_263] : memref<2048x256xbf16, #tpu.memory_space<vmem>>, vector<128x256xbf16>
    %cst_264 = arith.constant dense<0.000000e+00> : vector<4x256xf32>
    %471 = tpu.matmul %469, %470, %cst_264 {dimension_numbers = #tpu.dot_dimension_numbers<[1], [0], [0], [1], [0, 0, 1, 1], [], []>} : vector<4x128xbf16>, vector<128x256xbf16>, vector<4x256xf32> -> vector<4x256xf32>
    %472 = arith.addf %467, %471 : vector<4x256xf32>
    %473 = vector.extract_strided_slice %416 {offsets = [44, 0], sizes = [4, 128], strides = [1, 1]} : vector<64x128xf32> to vector<4x128xf32>
    %474 = arith.truncf %473 : vector<4x128xf32> to vector<4x128xbf16>
    %c1408_265 = arith.constant 1408 : index
    %c0_266 = arith.constant 0 : index
    %475 = vector.load %arg9[%c1408_265, %c0_266] : memref<2048x256xbf16, #tpu.memory_space<vmem>>, vector<128x256xbf16>
    %cst_267 = arith.constant dense<0.000000e+00> : vector<4x256xf32>
    %476 = tpu.matmul %474, %475, %cst_267 {dimension_numbers = #tpu.dot_dimension_numbers<[1], [0], [0], [1], [0, 0, 1, 1], [], []>} : vector<4x128xbf16>, vector<128x256xbf16>, vector<4x256xf32> -> vector<4x256xf32>
    %477 = arith.addf %472, %476 : vector<4x256xf32>
    %478 = vector.extract_strided_slice %416 {offsets = [48, 0], sizes = [4, 128], strides = [1, 1]} : vector<64x128xf32> to vector<4x128xf32>
    %479 = arith.truncf %478 : vector<4x128xf32> to vector<4x128xbf16>
    %c1536_268 = arith.constant 1536 : index
    %c0_269 = arith.constant 0 : index
    %480 = vector.load %arg9[%c1536_268, %c0_269] : memref<2048x256xbf16, #tpu.memory_space<vmem>>, vector<128x256xbf16>
    %cst_270 = arith.constant dense<0.000000e+00> : vector<4x256xf32>
    %481 = tpu.matmul %479, %480, %cst_270 {dimension_numbers = #tpu.dot_dimension_numbers<[1], [0], [0], [1], [0, 0, 1, 1], [], []>} : vector<4x128xbf16>, vector<128x256xbf16>, vector<4x256xf32> -> vector<4x256xf32>
    %482 = arith.addf %477, %481 : vector<4x256xf32>
    %483 = vector.extract_strided_slice %416 {offsets = [52, 0], sizes = [4, 128], strides = [1, 1]} : vector<64x128xf32> to vector<4x128xf32>
    %484 = arith.truncf %483 : vector<4x128xf32> to vector<4x128xbf16>
    %c1664_271 = arith.constant 1664 : index
    %c0_272 = arith.constant 0 : index
    %485 = vector.load %arg9[%c1664_271, %c0_272] : memref<2048x256xbf16, #tpu.memory_space<vmem>>, vector<128x256xbf16>
    %cst_273 = arith.constant dense<0.000000e+00> : vector<4x256xf32>
    %486 = tpu.matmul %484, %485, %cst_273 {dimension_numbers = #tpu.dot_dimension_numbers<[1], [0], [0], [1], [0, 0, 1, 1], [], []>} : vector<4x128xbf16>, vector<128x256xbf16>, vector<4x256xf32> -> vector<4x256xf32>
    %487 = arith.addf %482, %486 : vector<4x256xf32>
    %488 = vector.extract_strided_slice %416 {offsets = [56, 0], sizes = [4, 128], strides = [1, 1]} : vector<64x128xf32> to vector<4x128xf32>
    %489 = arith.truncf %488 : vector<4x128xf32> to vector<4x128xbf16>
    %c1792_274 = arith.constant 1792 : index
    %c0_275 = arith.constant 0 : index
    %490 = vector.load %arg9[%c1792_274, %c0_275] : memref<2048x256xbf16, #tpu.memory_space<vmem>>, vector<128x256xbf16>
    %cst_276 = arith.constant dense<0.000000e+00> : vector<4x256xf32>
    %491 = tpu.matmul %489, %490, %cst_276 {dimension_numbers = #tpu.dot_dimension_numbers<[1], [0], [0], [1], [0, 0, 1, 1], [], []>} : vector<4x128xbf16>, vector<128x256xbf16>, vector<4x256xf32> -> vector<4x256xf32>
    %492 = arith.addf %487, %491 : vector<4x256xf32>
    %493 = vector.extract_strided_slice %416 {offsets = [60, 0], sizes = [4, 128], strides = [1, 1]} : vector<64x128xf32> to vector<4x128xf32>
    %494 = arith.truncf %493 : vector<4x128xf32> to vector<4x128xbf16>
    %c1920_277 = arith.constant 1920 : index
    %c0_278 = arith.constant 0 : index
    %495 = vector.load %arg9[%c1920_277, %c0_278] : memref<2048x256xbf16, #tpu.memory_space<vmem>>, vector<128x256xbf16>
    %cst_279 = arith.constant dense<0.000000e+00> : vector<4x256xf32>
    %496 = tpu.matmul %494, %495, %cst_279 {dimension_numbers = #tpu.dot_dimension_numbers<[1], [0], [0], [1], [0, 0, 1, 1], [], []>} : vector<4x128xbf16>, vector<128x256xbf16>, vector<4x256xf32> -> vector<4x256xf32>
    %497 = arith.addf %492, %496 : vector<4x256xf32>
    %498 = tpu.concatenate %412, %497 in 0 : vector<4x256xf32>, vector<4x256xf32> -> vector<8x256xf32>
    %c0_280 = arith.constant 0 : index
    %c0_281 = arith.constant 0 : index
    %499 = vector.load %arg10[%c0_280, %c0_281] : memref<1x256xf32, #tpu.memory_space<vmem>>, vector<1x256xf32>
    %c0_282 = arith.constant 0 : index
    %c0_283 = arith.constant 0 : index
    %500 = vector.load %arg11[%c0_282, %c0_283] : memref<1x256xf32, #tpu.memory_space<vmem>>, vector<1x256xf32>
    %cst_284 = arith.constant dense<0.000000e+00> : vector<256xf32>
    %501 = vector.multi_reduction <add>, %498, %cst_284 [0] : vector<8x256xf32> to vector<256xf32>
    %502 = vector.shape_cast %501 : vector<256xf32> to vector<1x256xf32>
    %cst_285 = arith.constant 8.000000e+00 : f32
    %503 = vector.broadcast %cst_285 : f32 to vector<1x256xf32>
    %504 = arith.divf %502, %503 : vector<1x256xf32>
    %505 = vector.broadcast %504 : vector<1x256xf32> to vector<8x256xf32>
    %506 = arith.subf %498, %505 : vector<8x256xf32>
    %507 = arith.mulf %506, %506 : vector<8x256xf32>
    %cst_286 = arith.constant dense<0.000000e+00> : vector<256xf32>
    %508 = vector.multi_reduction <add>, %507, %cst_286 [0] : vector<8x256xf32> to vector<256xf32>
    %509 = vector.shape_cast %508 : vector<256xf32> to vector<1x256xf32>
    %cst_287 = arith.constant 8.000000e+00 : f32
    %510 = vector.broadcast %cst_287 : f32 to vector<1x256xf32>
    %511 = arith.divf %509, %510 : vector<1x256xf32>
    %cst_288 = arith.constant 9.99999974E-6 : f32
    %512 = vector.broadcast %cst_288 : f32 to vector<1x256xf32>
    %513 = arith.addf %511, %512 : vector<1x256xf32>
    %514 = math.rsqrt %513 : vector<1x256xf32>
    %515 = arith.mulf %499, %514 : vector<1x256xf32>
    %516 = vector.broadcast %515 : vector<1x256xf32> to vector<8x256xf32>
    %517 = arith.mulf %506, %516 : vector<8x256xf32>
    %518 = vector.broadcast %500 : vector<1x256xf32> to vector<8x256xf32>
    %519 = arith.addf %517, %518 : vector<8x256xf32>
    %cst_289 = arith.constant 1.000000e-01 : f32
    %520 = vector.broadcast %cst_289 : f32 to vector<8x256xf32>
    %521 = arith.mulf %520, %519 : vector<8x256xf32>
    %522 = arith.maximumf %519, %521 : vector<8x256xf32>
    %c0_290 = arith.constant 0 : index
    %c0_291 = arith.constant 0 : index
    %523 = vector.load %arg12[%c0_290, %c0_291] : memref<8x256xf32, #tpu.memory_space<vmem>>, vector<8x256xf32>
    tpu.vector_store %arg12[%c0_290, %c0_291], %522 {strides = array<i32>} : memref<8x256xf32, #tpu.memory_space<vmem>>, vector<8x256xf32>,
    return
  }
  func.func @transform_0(%arg0: i32) -> (i32, i32) {
    %c0_i32 = arith.constant 0 : i32
    %c0_i32_0 = arith.constant 0 : i32
    %c0_i32_1 = arith.constant 0 : i32
    return %c0_i32, %c0_i32_0 : i32, i32
  }
  func.func @transform_1(%arg0: i32) -> (i32, i32) {
    %c0_i32 = arith.constant 0 : i32
    %c0_i32_0 = arith.constant 0 : i32
    %c0_i32_1 = arith.constant 0 : i32
    return %c0_i32, %c0_i32_0 : i32, i32
  }
  func.func @transform_2(%arg0: i32) -> (i32, i32) {
    %c0_i32 = arith.constant 0 : i32
    %c0_i32_0 = arith.constant 0 : i32
    %c0_i32_1 = arith.constant 0 : i32
    return %c0_i32, %c0_i32_0 : i32, i32
  }
  func.func @transform_3(%arg0: i32) -> (i32, i32) {
    %c0_i32 = arith.constant 0 : i32
    %c0_i32_0 = arith.constant 0 : i32
    %c0_i32_1 = arith.constant 0 : i32
    return %c0_i32, %c0_i32_0 : i32, i32
  }
  func.func @transform_4(%arg0: i32) -> (i32, i32) {
    %c0_i32 = arith.constant 0 : i32
    %c0_i32_0 = arith.constant 0 : i32
    %c0_i32_1 = arith.constant 0 : i32
    return %c0_i32, %c0_i32_0 : i32, i32
  }
  func.func @transform_5(%arg0: i32) -> (i32, i32) {
    %c0_i32 = arith.constant 0 : i32
    %c0_i32_0 = arith.constant 0 : i32
    %c0_i32_1 = arith.constant 0 : i32
    return %c0_i32, %c0_i32_0 : i32, i32
  }
  func.func @transform_6(%arg0: i32) -> (i32, i32) {
    %c0_i32 = arith.constant 0 : i32
    %c0_i32_0 = arith.constant 0 : i32
    %c0_i32_1 = arith.constant 0 : i32
    return %c0_i32, %c0_i32_0 : i32, i32
  }
  func.func @transform_7(%arg0: i32) -> (i32, i32) {
    %c0_i32 = arith.constant 0 : i32
    %c0_i32_0 = arith.constant 0 : i32
    %c0_i32_1 = arith.constant 0 : i32
    return %c0_i32, %c0_i32_0 : i32, i32
  }
  func.func @transform_8(%arg0: i32) -> (i32, i32) {
    %c0_i32 = arith.constant 0 : i32
    %c0_i32_0 = arith.constant 0 : i32
    %c0_i32_1 = arith.constant 0 : i32
    return %c0_i32, %c0_i32_0 : i32, i32
  }
  func.func @transform_9(%arg0: i32) -> (i32, i32) {
    %c0_i32 = arith.constant 0 : i32
    %c0_i32_0 = arith.constant 0 : i32
    %c0_i32_1 = arith.constant 0 : i32
    return %c0_i32, %c0_i32_0 : i32, i32
  }
  func.func @transform_10(%arg0: i32) -> (i32, i32) {
    %c0_i32 = arith.constant 0 : i32
    %c0_i32_0 = arith.constant 0 : i32
    %c0_i32_1 = arith.constant 0 : i32
    return %c0_i32, %c0_i32_0 : i32, i32
  }
  func.func @transform_11(%arg0: i32) -> (i32, i32) {
    %c0_i32 = arith.constant 0 : i32
    %c0_i32_0 = arith.constant 0 : i32
    %c0_i32_1 = arith.constant 0 : i32
    return %c0_i32, %c0_i32_0 : i32, i32
  }
}

</mosaic_0001>

<llo_original>
// kernel: discriminator_forward.1
$region0: #{discriminator_forward.1}
  #allocation0 [shape = 'u32[]', space=smem, size = 0x4, offset = 0x4, fixed_abs, tag = 'smem constant byte address 0x4 - core index']
  #allocation1 [shape = 'u32[144,128]{1,0:T(1,128)}', space=vmem, size = 0x12000, scoped, tag = 'internal scratch']
  #allocation2 [shape = 'bf16[2,100,64]{2,1,0:T(8,128)(2,1)}', space=vmem, size = 0xd000, scoped, tag = 'scratch operand']
  #allocation3 [shape = 'bf16[2,36,128]{2,1,0:T(8,128)(2,1)}', space=vmem, size = 0x5000, scoped, tag = 'scratch operand']
  %s0 = inlined_call_operand.vmem [shape: bf16[128,16], index: 0, kind: input, shape index: {}]
  %s1 = inlined_call_operand.vmem [shape: bf16[16,64], index: 1, kind: input, shape index: {}]
  %s2 = inlined_call_operand.vmem [shape: f32[1,64], index: 2, kind: input, shape index: {}]
  %s3 = inlined_call_operand.vmem [shape: bf16[256,100], index: 3, kind: input, shape index: {}]
  %s4 = inlined_call_operand.vmem [shape: bf16[1024,128], index: 4, kind: input, shape index: {}]
  %s5 = inlined_call_operand.vmem [shape: f32[1,128], index: 5, kind: input, shape index: {}]
  %s6 = inlined_call_operand.vmem [shape: f32[1,128], index: 6, kind: input, shape index: {}]
  %s7 = inlined_call_operand.vmem [shape: bf16[64,36], index: 7, kind: input, shape index: {}]
  %s8 = inlined_call_operand.hbm [shape: bf16[2048,256], index: 8, kind: input, shape index: {}]
  %s9 = inlined_call_operand.vmem [shape: f32[1,256], index: 9, kind: input, shape index: {}]
  %s10 = inlined_call_operand.vmem [shape: f32[1,256], index: 10, kind: input, shape index: {}]
  %s11 = inlined_call_operand.vmem [shape: f32[8,256], index: 11, kind: output, shape index: {}]
  %s12 = sld [smem:[#allocation0]]
  $region58: #{discriminator_forward.1} parent=0
    _
  %s14 = ssub.s32 1, %s12
  %s15 = scalar_select 0, %s14, %s12
  $region1: #{discriminator_forward.1} parent=0
    #allocation4 [shape = 'u8[1048576]{0}', space=vmem, size = 0x100000, scoped, tag = 'input window, operand 8, single buffered']
    #allocation5 [shape = 's32[1]{0}', space=sflag, size = 0x4, scoped, tag = 'scoped memory for discriminator_forward.1']
    %16 = vsyncpa [#allocation5], 0
    // Predicated region
    $region2: #{discriminator_forward.1} parent=1 // pred_check
      _
    $region3: #{discriminator_forward.1} parent=1 // pred_check_branch
      %18 = sbr.rel (0) target = $region5
    $region4: #{discriminator_forward.1} parent=1 // pred_region
      _
    $region5: #{discriminator_forward.1} parent=1 // pred_fallthru
      _
    // Predicated region
    $region6: #{discriminator_forward.1} parent=1 // pred_check
      _
    $region7: #{discriminator_forward.1} parent=1 // pred_check_branch
      %20 = sbr.rel (0) target = $region9
    $region8: #{discriminator_forward.1} parent=1 // pred_region
      _
    $region9: #{discriminator_forward.1} parent=1 // pred_fallthru
      _
    // Predicated region
    $region10: #{discriminator_forward.1} parent=1 // pred_check
      _
    $region11: #{discriminator_forward.1} parent=1 // pred_check_branch
      %22 = sbr.rel (0) target = $region13
    $region12: #{discriminator_forward.1} parent=1 // pred_region
      _
    $region13: #{discriminator_forward.1} parent=1 // pred_fallthru
      _
    // Predicated region
    $region14: #{discriminator_forward.1} parent=1 // pred_check
      _
    $region15: #{discriminator_forward.1} parent=1 // pred_check_branch
      %24 = sbr.rel (0) target = $region17
    $region16: #{discriminator_forward.1} parent=1 // pred_region
      _
    $region17: #{discriminator_forward.1} parent=1 // pred_fallthru
      _
    // Predicated region
    $region18: #{discriminator_forward.1} parent=1 // pred_check
      _
    $region19: #{discriminator_forward.1} parent=1 // pred_check_branch
      %26 = sbr.rel (0) target = $region21
    $region20: #{discriminator_forward.1} parent=1 // pred_region
      _
    $region21: #{discriminator_forward.1} parent=1 // pred_fallthru
      _
    // Predicated region
    $region22: #{discriminator_forward.1} parent=1 // pred_check
      _
    $region23: #{discriminator_forward.1} parent=1 // pred_check_branch
      %28 = sbr.rel (0) target = $region25
    $region24: #{discriminator_forward.1} parent=1 // pred_region
      _
    $region25: #{discriminator_forward.1} parent=1 // pred_fallthru
      _
    // Predicated region
    $region26: #{discriminator_forward.1} parent=1 // pred_check
      _
    $region27: #{discriminator_forward.1} parent=1 // pred_check_branch
      %30 = sbr.rel (0) target = $region29
    $region28: #{discriminator_forward.1} parent=1 // pred_region
      _
    $region29: #{discriminator_forward.1} parent=1 // pred_fallthru
      _
    // Predicated region
    $region30: #{discriminator_forward.1} parent=1 // pred_check
      _
    $region31: #{discriminator_forward.1} parent=1 // pred_check_branch
      %32 = sbr.rel (0) target = $region33
    $region32: #{discriminator_forward.1} parent=1 // pred_region
      _
    $region33: #{discriminator_forward.1} parent=1 // pred_fallthru
      _
    // Predicated region
    $region34: #{discriminator_forward.1} parent=1 // pred_check
      _
    $region35: #{discriminator_forward.1} parent=1 // pred_check_branch
      %34 = sbr.rel (0) target = $region37
    $region36: #{discriminator_forward.1} parent=1 // pred_region
      %s36 = ssub.s32 32768, 32768
      %37 = vsyncadd [#allocation5], %s36
      %s38 = sshll.u32 [#allocation4], 4
      %s39 = int_to_ptr.vmem [resolvable:$true] %s38
      %44 = dma.hbm_to_vmem [thread:$0]  %s8, 32768, %s39, [#allocation5], 128, 128, 8
    $region37: #{discriminator_forward.1} parent=1 // pred_fallthru
      _
    // Predicated region
    $region38: #{discriminator_forward.1} parent=1 // pred_check
      _
    $region39: #{discriminator_forward.1} parent=1 // pred_check_branch
      %46 = sbr.rel (0) target = $region41
    $region40: #{discriminator_forward.1} parent=1 // pred_region
      _
    $region41: #{discriminator_forward.1} parent=1 // pred_fallthru
      _
    // Predicated region
    $region42: #{discriminator_forward.1} parent=1 // pred_check
      _
    $region43: #{discriminator_forward.1} parent=1 // pred_check_branch
      %48 = sbr.rel (0) target = $region45
    $region44: #{discriminator_forward.1} parent=1 // pred_region
      _
    $region45: #{discriminator_forward.1} parent=1 // pred_fallthru
      _
    // Predicated region
    $region46: #{discriminator_forward.1} parent=1 // pred_check
      _
    $region47: #{discriminator_forward.1} parent=1 // pred_check_branch
      %50 = sbr.rel (0) target = $region49
    $region48: #{discriminator_forward.1} parent=1 // pred_region
      %51 = dma.done [#allocation5], 32768
    $region49: #{discriminator_forward.1} parent=1 // pred_fallthru
      _
    %v53 = vld [vmem:[%s0] sm:$0xf]
    %v54 = vld [vmem:[%s0 + $0x4] sm:$0xf]
    %v55 = vld [vmem:[%s0 + $0x8] sm:$0xf]
    %v56 = vld [vmem:[%s0 + $0xc] sm:$0xf]
    %v57 = vld [vmem:[%s0 + $0x10] sm:$0xf]
    %v58 = vld [vmem:[%s0 + $0x14] sm:$0xf]
    %v59 = vld [vmem:[%s0 + $0x18] sm:$0xf]
    %v60 = vld [vmem:[%s0 + $0x1c] sm:$0xf]
    %v61 = vld [vmem:[%s0 + $0x20] sm:$0xf]
    %v62 = vld [vmem:[%s0 + $0x24] sm:$0xf]
    %v63 = vld [vmem:[%s0 + $0x28] sm:$0xf]
    %v64 = vld [vmem:[%s0 + $0x2c] sm:$0xf]
    %v65 = vld [vmem:[%s0 + $0x30] sm:$0xf]
    %v66 = vld [vmem:[%s0 + $0x34] sm:$0xf]
    %v67 = vld [vmem:[%s0 + $0x38] sm:$0xf]
    %v68 = vld [vmem:[%s0 + $0x3c] sm:$0xf]
    %v69 = vld [vmem:[%s1] sm:$0xf]
    %v70 = vld [vmem:[%s1 + $0x4] sm:$0xf]
    %v71 = vld [vmem:[%s2] sm:$0x1]
    %v73 = vlaneseq
    %v74 = vshrl.u32 %v73, 7
    %v75 = vsub.s32 0, %v74
    %v76 = vrot.slane %v71, %v75
    %v94 = vunpack.c.l.b16 %v53
    %v95 = vunpack.c.l.b16 %v54
    %v96 = vunpack.c.l.b16 %v55
    %v97 = vunpack.c.l.b16 %v56
    %v98 = vunpack.c.l.b16 %v57
    %v99 = vunpack.c.l.b16 %v58
    %v100 = vunpack.c.l.b16 %v59
    %v101 = vunpack.c.l.b16 %v60
    %v102 = vunpack.c.l.b16 %v61
    %v103 = vunpack.c.l.b16 %v62
    %v104 = vunpack.c.l.b16 %v63
    %v105 = vunpack.c.l.b16 %v64
    %v106 = vunpack.c.l.b16 %v65
    %v107 = vunpack.c.l.b16 %v66
    %v108 = vunpack.c.l.b16 %v67
    %v109 = vunpack.c.l.b16 %v68
    %v110 = vpack.c.b16 %v95, %v94
    %v111 = vpack.c.b16 %v97, %v96
    %v112 = vpack.c.b16 %v99, %v98
    %v113 = vpack.c.b16 %v101, %v100
    %v114 = vpack.c.b16 %v103, %v102
    %v115 = vpack.c.b16 %v105, %v104
    %v116 = vpack.c.b16 %v107, %v106
    %v117 = vpack.c.b16 %v109, %v108
    %v120 = vunpack.c.l.b16 %v69
    %v121 = vunpack.c.l.b16 %v70
    %v122 = vpack.c.b16 %v121, %v120
    %vm124 = vcmask 130048
    %v126 = vsel %vm124, %v110, 0
    %v129 = vsel %vm124, %v111, 0
    %v132 = vsel %vm124, %v112, 0
    %v135 = vsel %vm124, %v113, 0
    %v138 = vsel %vm124, %v114, 0
    %v141 = vsel %vm124, %v115, 0
    %v144 = vsel %vm124, %v116, 0
    %v147 = vsel %vm124, %v117, 0
    %149 = vmatprep.subr.bf16.mxu0 0
    %150 = vmatpush1.bf16.msra.mxu0 0
    %151 = vmatprep.subr.bf16.mxu0 0
    %152 = vmatpush1.bf16.msra.mxu0 0
    %153 = vmatprep.subr.bf16.mxu0 0
    %154 = vmatpush1.bf16.msra.mxu0 0
    %155 = vmatprep.subr.bf16.mxu0 0
    %156 = vmatpush1.bf16.msra.mxu0 0
    %157 = vmatprep.subr.bf16.mxu0 0
    %158 = vmatpush1.bf16.msra.mxu0 0
    %159 = vmatprep.subr.bf16.mxu0 0
    %160 = vmatpush1.bf16.msra.mxu0 0
    %161 = vmatprep.subr.bf16.mxu0 0
    %162 = vmatpush1.bf16.msra.mxu0 0
    %163 = vmatprep.subr.bf16.mxu0 0
    %164 = vmatpush1.bf16.msra.mxu0 %v122
    %165 = vmatprep.subr.bf16.mxu0 0
    %166 = vmatpush2.bf16.msra.mxu0 0
    %167 = vmatprep.subr.bf16.mxu0 0
    %168 = vmatpush2.bf16.msra.mxu0 0
    %169 = vmatprep.subr.bf16.mxu0 0
    %170 = vmatpush2.bf16.msra.mxu0 0
    %171 = vmatprep.subr.bf16.mxu0 0
    %172 = vmatpush2.bf16.msra.mxu0 0
    %173 = vmatprep.subr.bf16.mxu0 0
    %174 = vmatpush2.bf16.msra.mxu0 0
    %175 = vmatprep.subr.bf16.mxu0 0
    %176 = vmatpush2.bf16.msra.mxu0 0
    %177 = vmatprep.subr.bf16.mxu0 0
    %178 = vmatpush2.bf16.msra.mxu0 0
    %179 = vmatprep.subr.bf16.mxu0 0
    %180 = vmatpush2.bf16.msra.mxu0 0
    %181 = vmatprep.mubr.bf16.mxu0 0
    %182 = vmatmul.mubr.bf16.gmra.mxu0 %v126
    %v183 = vpop.f32.mrf.mxu0
    %v184 = vadd.f32 %v76, %v183
    %v185 = vpop.f32.mrf.mxu0
    %v186 = vpop.f32.mrf.mxu0
    %v187 = vadd.f32 %v76, %v186
    %v188 = vpop.f32.mrf.mxu0
    %189 = vmatprep.mubr.bf16.mxu0 0
    %190 = vmatmul.mubr.bf16.gmra.mxu0 %v129
    %v191 = vpop.f32.mrf.mxu0
    %v192 = vadd.f32 %v76, %v191
    %v193 = vpop.f32.mrf.mxu0
    %v194 = vpop.f32.mrf.mxu0
    %v195 = vadd.f32 %v76, %v194
    %v196 = vpop.f32.mrf.mxu0
    %197 = vmatprep.mubr.bf16.mxu0 0
    %198 = vmatmul.mubr.bf16.gmra.mxu0 %v132
    %v199 = vpop.f32.mrf.mxu0
    %v200 = vadd.f32 %v76, %v199
    %v201 = vpop.f32.mrf.mxu0
    %v202 = vpop.f32.mrf.mxu0
    %v203 = vadd.f32 %v76, %v202
    %v204 = vpop.f32.mrf.mxu0
    %205 = vmatprep.mubr.bf16.mxu0 0
    %206 = vmatmul.mubr.bf16.gmra.mxu0 %v135
    %v207 = vpop.f32.mrf.mxu0
    %v208 = vadd.f32 %v76, %v207
    %v209 = vpop.f32.mrf.mxu0
    %v210 = vpop.f32.mrf.mxu0
    %v211 = vadd.f32 %v76, %v210
    %v212 = vpop.f32.mrf.mxu0
    %213 = vmatprep.mubr.bf16.mxu0 0
    %214 = vmatmul.mubr.bf16.gmra.mxu0 %v138
    %v215 = vpop.f32.mrf.mxu0
    %v216 = vadd.f32 %v76, %v215
    %v217 = vpop.f32.mrf.mxu0
    %v218 = vpop.f32.mrf.mxu0
    %v219 = vadd.f32 %v76, %v218
    %v220 = vpop.f32.mrf.mxu0
    %221 = vmatprep.mubr.bf16.mxu0 0
    %222 = vmatmul.mubr.bf16.gmra.mxu0 %v141
    %v223 = vpop.f32.mrf.mxu0
    %v224 = vadd.f32 %v76, %v223
    %v225 = vpop.f32.mrf.mxu0
    %v226 = vpop.f32.mrf.mxu0
    %v227 = vadd.f32 %v76, %v226
    %v228 = vpop.f32.mrf.mxu0
    %229 = vmatprep.mubr.bf16.mxu0 0
    %230 = vmatmul.mubr.bf16.gmra.mxu0 %v144
    %v231 = vpop.f32.mrf.mxu0
    %v232 = vadd.f32 %v76, %v231
    %v233 = vpop.f32.mrf.mxu0
    %v234 = vpop.f32.mrf.mxu0
    %v235 = vadd.f32 %v76, %v234
    %v236 = vpop.f32.mrf.mxu0
    %237 = vmatprep.mubr.bf16.mxu0 0
    %238 = vmatmul.mubr.bf16.gmra.mxu0 %v147
    %v239 = vpop.f32.mrf.mxu0
    %v240 = vadd.f32 %v76, %v239
    %v241 = vpop.f32.mrf.mxu0
    %v242 = vpop.f32.mrf.mxu0
    %v243 = vadd.f32 %v76, %v242
    %v244 = vpop.f32.mrf.mxu0
    %245 = vdwg.mxu0
    %v246 = vmul.f32 %v184, 0.1
    %v247 = vmul.f32 %v187, 0.1
    %v248 = vmul.f32 %v192, 0.1
    %v249 = vmul.f32 %v195, 0.1
    %v250 = vmul.f32 %v200, 0.1
    %v251 = vmul.f32 %v203, 0.1
    %v252 = vmul.f32 %v208, 0.1
    %v253 = vmul.f32 %v211, 0.1
    %v254 = vmul.f32 %v216, 0.1
    %v255 = vmul.f32 %v219, 0.1
    %v256 = vmul.f32 %v224, 0.1
    %v257 = vmul.f32 %v227, 0.1
    %v258 = vmul.f32 %v232, 0.1
    %v259 = vmul.f32 %v235, 0.1
    %v260 = vmul.f32 %v240, 0.1
    %v261 = vmul.f32 %v243, 0.1
    %v262 = vmax.f32 %v184, %v246
    %v263 = vmax.f32 %v187, %v247
    %v264 = vmax.f32 %v192, %v248
    %v265 = vmax.f32 %v195, %v249
    %v266 = vmax.f32 %v200, %v250
    %v267 = vmax.f32 %v203, %v251
    %v268 = vmax.f32 %v208, %v252
    %v269 = vmax.f32 %v211, %v253
    %v270 = vmax.f32 %v216, %v254
    %v271 = vmax.f32 %v219, %v255
    %v272 = vmax.f32 %v224, %v256
    %v273 = vmax.f32 %v227, %v257
    %v274 = vmax.f32 %v232, %v258
    %v275 = vmax.f32 %v235, %v259
    %v276 = vmax.f32 %v240, %v260
    %v277 = vmax.f32 %v243, %v261
    %vm278 = vcmask 519168
    %279 = vst.msk [vmem:[#allocation2] sm:$0xf] %vm278, 0
    %280 = vst.msk [vmem:[#allocation2 + $0x4] sm:$0xf] %vm278, 0
    %281 = vst.msk [vmem:[#allocation2 + $0x8] sm:$0xf] %vm278, 0
    %282 = vst.msk [vmem:[#allocation2 + $0xc] sm:$0xf] %vm278, 0
    %283 = vst.msk [vmem:[#allocation2 + $0x10] sm:$0xf] %vm278, 0
    %284 = vst.msk [vmem:[#allocation2 + $0x14] sm:$0xf] %vm278, 0
    %285 = vst.msk [vmem:[#allocation2 + $0x18] sm:$0xf] %vm278, 0
    %286 = vst.msk [vmem:[#allocation2 + $0x1c] sm:$0xf] %vm278, 0
    %287 = vst.msk [vmem:[#allocation2 + $0x20] sm:$0xf] %vm278, 0
    %288 = vst.msk [vmem:[#allocation2 + $0x24] sm:$0xf] %vm278, 0
    %289 = vst.msk [vmem:[#allocation2 + $0x28] sm:$0xf] %vm278, 0
    %290 = vst.msk [vmem:[#allocation2 + $0x2c] sm:$0xf] %vm278, 0
    %vm291 = vcmask 517120
    %292 = vst.msk [vmem:[#allocation2 + $0x30] sm:$0x3] %vm291, 0
    %293 = vst.msk [vmem:[#allocation2 + $0x34] sm:$0xf] %vm278, 0
    %294 = vst.msk [vmem:[#allocation2 + $0x38] sm:$0xf] %vm278, 0
    %295 = vst.msk [vmem:[#allocation2 + $0x3c] sm:$0xf] %vm278, 0
    %296 = vst.msk [vmem:[#allocation2 + $0x40] sm:$0xf] %vm278, 0
    %297 = vst.msk [vmem:[#allocation2 + $0x44] sm:$0xf] %vm278, 0
    %298 = vst.msk [vmem:[#allocation2 + $0x48] sm:$0xf] %vm278, 0
    %299 = vst.msk [vmem:[#allocation2 + $0x4c] sm:$0xf] %vm278, 0
    %300 = vst.msk [vmem:[#allocation2 + $0x50] sm:$0xf] %vm278, 0
    %301 = vst.msk [vmem:[#allocation2 + $0x54] sm:$0xf] %vm278, 0
    %302 = vst.msk [vmem:[#allocation2 + $0x58] sm:$0xf] %vm278, 0
    %303 = vst.msk [vmem:[#allocation2 + $0x5c] sm:$0xf] %vm278, 0
    %304 = vst.msk [vmem:[#allocation2 + $0x60] sm:$0xf] %vm278, 0
    %305 = vst.msk [vmem:[#allocation2 + $0x64] sm:$0x3] %vm291, 0
    %v306 = vpack.c.bf16 %v262, %v262
    %v308 = vunpack.c.l.b16 %v306
    %v309 = vpack.c.b16 %v308, %v308
    %v311 = vshrl.u32 %v309, 16
    %v313 = vrot.slane %v311, 6
    %v314 = vshll.u32 %v309, 16
    %v316 = vrot.slane %v314, 7
    %v317 = vor.u32 %v313, %v316
    %v318 = vrot.slane %v317, 4
    %vm321 = vcmask 519169
    %vm322 = vsmask.f32 7942
    %vm323 = vmand %vm321, %vm322
    %v324 = vld [vmem:[#allocation2 + $0x4] sm:$0xe]
    %v325 = vsel %vm323, %v317, %v324
    %326 = vst [vmem:[#allocation2 + $0x4] sm:$0xe] %v325
    %vm327 = vcmask 517120
    %vm328 = vsmask.f32 1280
    %vm329 = vmand %vm327, %vm328
    %v330 = vld [vmem:[#allocation2 + $0x8] sm:$0x3]
    %v331 = vsel %vm329, %v318, %v330
    %332 = vst [vmem:[#allocation2 + $0x8] sm:$0x3] %v331
    %v333 = vpack.c.bf16 %v263, %v263
    %v335 = vunpack.c.l.b16 %v333
    %v336 = vpack.c.b16 %v335, %v335
    %v338 = vshrl.u32 %v336, 16
    %v340 = vrot.slane %v338, 5
    %v341 = vshll.u32 %v336, 16
    %v343 = vrot.slane %v341, 6
    %v344 = vor.u32 %v340, %v343
    %v345 = vrot.slane %v344, 4
    %vm348 = vcmask 519170
    %vm349 = vsmask.f32 7946
    %vm350 = vmand %vm348, %vm349
    %v351 = vld [vmem:[#allocation2 + $0x8] sm:$0xc]
    %v352 = vsel %vm350, %v344, %v351
    %353 = vst [vmem:[#allocation2 + $0x8] sm:$0xc] %v352
    %vm354 = vcmask 518144
    %vm355 = vsmask.f32 2304
    %vm356 = vmand %vm354, %vm355
    %v357 = vld [vmem:[#allocation2 + $0xc] sm:$0x7]
    %v358 = vsel %vm356, %v345, %v357
    %359 = vst [vmem:[#allocation2 + $0xc] sm:$0x7] %v358
    %v360 = vpack.c.bf16 %v264, %v264
    %v362 = vunpack.c.l.b16 %v360
    %v363 = vpack.c.b16 %v362, %v362
    %v365 = vshll.u32 %v363, 16
    %v367 = vrot.slane %v365, 5
    %v368 = vshrl.u32 %v363, 16
    %v370 = vrot.slane %v368, 4
    %v371 = vor.u32 %v370, %v367
    %v372 = vrot.slane %v371, 4
    %vm375 = vcmask 519171
    %vm376 = vsmask.f32 7950
    %vm377 = vmand %vm375, %vm376
    %v378 = vld [vmem:[#allocation2 + $0xc] sm:$0x8]
    %v379 = vsel %vm377, %v367, %v378
    %380 = vst [vmem:[#allocation2 + $0xc] sm:$0x8] %v379
    %vm381 = vcmask 519168
    %vm382 = vsmask.f32 3328
    %vm383 = vmand %vm381, %vm382
    %v384 = vld [vmem:[#allocation2 + $0x10] sm:$0xf]
    %v385 = vsel %vm383, %v372, %v384
    %386 = vst [vmem:[#allocation2 + $0x10] sm:$0xf] %v385
    %v387 = vpack.c.bf16 %v265, %v265
    %v389 = vunpack.c.l.b16 %v387
    %v390 = vpack.c.b16 %v389, %v389
    %v392 = vshrl.u32 %v390, 16
    %v394 = vrot.slane %v392, 7
    %v395 = vshll.u32 %v390, 16
    %v397 = vor.u32 %v394, %v395
    %v398 = vrot.slane %v394, 4
    %vm401 = vsmask.f32 7938
    %vm402 = vmand %vm381, %vm401
    %v403 = vld [vmem:[#allocation2 + $0x14] sm:$0xf]
    %v404 = vsel %vm402, %v397, %v403
    %405 = vst [vmem:[#allocation2 + $0x14] sm:$0xf] %v404
    %vm406 = vcmask 516096
    %vm407 = vsmask.f32 256
    %vm408 = vmand %vm406, %vm407
    %v409 = vld [vmem:[#allocation2 + $0x18] sm:$0x1]
    %v410 = vsel %vm408, %v398, %v409
    %411 = vst [vmem:[#allocation2 + $0x18] sm:$0x1] %v410
    %v412 = vpack.c.bf16 %v266, %v266
    %v414 = vunpack.c.l.b16 %v412
    %v415 = vpack.c.b16 %v414, %v414
    %v417 = vshrl.u32 %v415, 16
    %v419 = vrot.slane %v417, 6
    %v420 = vshll.u32 %v415, 16
    %v422 = vrot.slane %v420, 7
    %v423 = vor.u32 %v419, %v422
    %v424 = vrot.slane %v423, 4
    %v427 = vld [vmem:[#allocation2 + $0x18] sm:$0xe]
    %v428 = vsel %vm323, %v423, %v427
    %429 = vst [vmem:[#allocation2 + $0x18] sm:$0xe] %v428
    %v430 = vld [vmem:[#allocation2 + $0x1c] sm:$0x3]
    %v431 = vsel %vm329, %v424, %v430
    %432 = vst [vmem:[#allocation2 + $0x1c] sm:$0x3] %v431
    %v433 = vpack.c.bf16 %v267, %v267
    %v435 = vunpack.c.l.b16 %v433
    %v436 = vpack.c.b16 %v435, %v435
    %v438 = vshrl.u32 %v436, 16
    %v440 = vrot.slane %v438, 5
    %v441 = vshll.u32 %v436, 16
    %v443 = vrot.slane %v441, 6
    %v444 = vor.u32 %v440, %v443
    %v445 = vrot.slane %v444, 4
    %v448 = vld [vmem:[#allocation2 + $0x1c] sm:$0xc]
    %v449 = vsel %vm350, %v444, %v448
    %450 = vst [vmem:[#allocation2 + $0x1c] sm:$0xc] %v449
    %v451 = vld [vmem:[#allocation2 + $0x20] sm:$0x7]
    %v452 = vsel %vm356, %v445, %v451
    %453 = vst [vmem:[#allocation2 + $0x20] sm:$0x7] %v452
    %v454 = vpack.c.bf16 %v268, %v268
    %v456 = vunpack.c.l.b16 %v454
    %v457 = vpack.c.b16 %v456, %v456
    %v459 = vshll.u32 %v457, 16
    %v461 = vrot.slane %v459, 5
    %v462 = vshrl.u32 %v457, 16
    %v464 = vrot.slane %v462, 4
    %v465 = vor.u32 %v464, %v461
    %v466 = vrot.slane %v465, 4
    %v469 = vld [vmem:[#allocation2 + $0x20] sm:$0x8]
    %v470 = vsel %vm377, %v461, %v469
    %471 = vst [vmem:[#allocation2 + $0x20] sm:$0x8] %v470
    %v472 = vld [vmem:[#allocation2 + $0x24] sm:$0xf]
    %v473 = vsel %vm383, %v466, %v472
    %474 = vst [vmem:[#allocation2 + $0x24] sm:$0xf] %v473
    %v475 = vpack.c.bf16 %v269, %v269
    %v477 = vunpack.c.l.b16 %v475
    %v478 = vpack.c.b16 %v477, %v477
    %v480 = vshrl.u32 %v478, 16
    %v482 = vrot.slane %v480, 7
    %v483 = vshll.u32 %v478, 16
    %v485 = vor.u32 %v482, %v483
    %v486 = vrot.slane %v482, 4
    %v489 = vld [vmem:[#allocation2 + $0x28] sm:$0xf]
    %v490 = vsel %vm402, %v485, %v489
    %491 = vst [vmem:[#allocation2 + $0x28] sm:$0xf] %v490
    %v492 = vld [vmem:[#allocation2 + $0x2c] sm:$0x1]
    %v493 = vsel %vm408, %v486, %v492
    %494 = vst [vmem:[#allocation2 + $0x2c] sm:$0x1] %v493
    %v495 = vpack.c.bf16 %v270, %v270
    %v497 = vunpack.c.l.b16 %v495
    %v498 = vpack.c.b16 %v497, %v497
    %v500 = vshrl.u32 %v498, 16
    %v502 = vrot.slane %v500, 6
    %v503 = vshll.u32 %v498, 16
    %v505 = vrot.slane %v503, 7
    %v506 = vor.u32 %v502, %v505
    %v507 = vrot.slane %v506, 4
    %s510 = scalar_lea.vmem [#allocation2], 52
    %v511 = vld [vmem:[%s510 + $0x4] sm:$0xe]
    %v512 = vsel %vm323, %v506, %v511
    %513 = vst [vmem:[%s510 + $0x4] sm:$0xe] %v512
    %v514 = vld [vmem:[%s510 + $0x8] sm:$0x3]
    %v515 = vsel %vm329, %v507, %v514
    %516 = vst [vmem:[%s510 + $0x8] sm:$0x3] %v515
    %v517 = vpack.c.bf16 %v271, %v271
    %v519 = vunpack.c.l.b16 %v517
    %v520 = vpack.c.b16 %v519, %v519
    %v522 = vshrl.u32 %v520, 16
    %v524 = vrot.slane %v522, 5
    %v525 = vshll.u32 %v520, 16
    %v527 = vrot.slane %v525, 6
    %v528 = vor.u32 %v524, %v527
    %v529 = vrot.slane %v528, 4
    %v532 = vld [vmem:[%s510 + $0x8] sm:$0xc]
    %v533 = vsel %vm350, %v528, %v532
    %534 = vst [vmem:[%s510 + $0x8] sm:$0xc] %v533
    %v535 = vld [vmem:[%s510 + $0xc] sm:$0x7]
    %v536 = vsel %vm356, %v529, %v535
    %537 = vst [vmem:[%s510 + $0xc] sm:$0x7] %v536
    %v538 = vpack.c.bf16 %v272, %v272
    %v540 = vunpack.c.l.b16 %v538
    %v541 = vpack.c.b16 %v540, %v540
    %v543 = vshll.u32 %v541, 16
    %v545 = vrot.slane %v543, 5
    %v546 = vshrl.u32 %v541, 16
    %v548 = vrot.slane %v546, 4
    %v549 = vor.u32 %v548, %v545
    %v550 = vrot.slane %v549, 4
    %v553 = vld [vmem:[%s510 + $0xc] sm:$0x8]
    %v554 = vsel %vm377, %v545, %v553
    %555 = vst [vmem:[%s510 + $0xc] sm:$0x8] %v554
    %v556 = vld [vmem:[%s510 + $0x10] sm:$0xf]
    %v557 = vsel %vm383, %v550, %v556
    %558 = vst [vmem:[%s510 + $0x10] sm:$0xf] %v557
    %v559 = vpack.c.bf16 %v273, %v273
    %v561 = vunpack.c.l.b16 %v559
    %v562 = vpack.c.b16 %v561, %v561
    %v564 = vshrl.u32 %v562, 16
    %v566 = vrot.slane %v564, 7
    %v567 = vshll.u32 %v562, 16
    %v569 = vor.u32 %v566, %v567
    %v570 = vrot.slane %v566, 4
    %v573 = vld [vmem:[%s510 + $0x14] sm:$0xf]
    %v574 = vsel %vm402, %v569, %v573
    %575 = vst [vmem:[%s510 + $0x14] sm:$0xf] %v574
    %v576 = vld [vmem:[%s510 + $0x18] sm:$0x1]
    %v577 = vsel %vm408, %v570, %v576
    %578 = vst [vmem:[%s510 + $0x18] sm:$0x1] %v577
    %v579 = vpack.c.bf16 %v274, %v274
    %v581 = vunpack.c.l.b16 %v579
    %v582 = vpack.c.b16 %v581, %v581
    %v584 = vshrl.u32 %v582, 16
    %v586 = vrot.slane %v584, 6
    %v587 = vshll.u32 %v582, 16
    %v589 = vrot.slane %v587, 7
    %v590 = vor.u32 %v586, %v589
    %v591 = vrot.slane %v590, 4
    %v594 = vld [vmem:[%s510 + $0x18] sm:$0xe]
    %v595 = vsel %vm323, %v590, %v594
    %596 = vst [vmem:[%s510 + $0x18] sm:$0xe] %v595
    %v597 = vld [vmem:[%s510 + $0x1c] sm:$0x3]
    %v598 = vsel %vm329, %v591, %v597
    %599 = vst [vmem:[%s510 + $0x1c] sm:$0x3] %v598
    %v600 = vpack.c.bf16 %v275, %v275
    %v602 = vunpack.c.l.b16 %v600
    %v603 = vpack.c.b16 %v602, %v602
    %v605 = vshrl.u32 %v603, 16
    %v607 = vrot.slane %v605, 5
    %v608 = vshll.u32 %v603, 16
    %v610 = vrot.slane %v608, 6
    %v611 = vor.u32 %v607, %v610
    %v612 = vrot.slane %v611, 4
    %v615 = vld [vmem:[%s510 + $0x1c] sm:$0xc]
    %v616 = vsel %vm350, %v611, %v615
    %617 = vst [vmem:[%s510 + $0x1c] sm:$0xc] %v616
    %v618 = vld [vmem:[%s510 + $0x20] sm:$0x7]
    %v619 = vsel %vm356, %v612, %v618
    %620 = vst [vmem:[%s510 + $0x20] sm:$0x7] %v619
    %v621 = vpack.c.bf16 %v276, %v276
    %v623 = vunpack.c.l.b16 %v621
    %v624 = vpack.c.b16 %v623, %v623
    %v626 = vshll.u32 %v624, 16
    %v628 = vrot.slane %v626, 5
    %v629 = vshrl.u32 %v624, 16
    %v631 = vrot.slane %v629, 4
    %v632 = vor.u32 %v631, %v628
    %v633 = vrot.slane %v632, 4
    %v636 = vld [vmem:[%s510 + $0x20] sm:$0x8]
    %v637 = vsel %vm377, %v628, %v636
    %638 = vst [vmem:[%s510 + $0x20] sm:$0x8] %v637
    %v639 = vld [vmem:[%s510 + $0x24] sm:$0xf]
    %v640 = vsel %vm383, %v633, %v639
    %641 = vst [vmem:[%s510 + $0x24] sm:$0xf] %v640
    %v642 = vpack.c.bf16 %v277, %v277
    %v644 = vunpack.c.l.b16 %v642
    %v645 = vpack.c.b16 %v644, %v644
    %v647 = vshrl.u32 %v645, 16
    %v649 = vrot.slane %v647, 7
    %v650 = vshll.u32 %v645, 16
    %v652 = vor.u32 %v649, %v650
    %v653 = vrot.slane %v649, 4
    %v656 = vld [vmem:[%s510 + $0x28] sm:$0xf]
    %v657 = vsel %vm402, %v652, %v656
    %658 = vst [vmem:[%s510 + $0x28] sm:$0xf] %v657
    %v659 = vld [vmem:[%s510 + $0x2c] sm:$0x1]
    %v660 = vsel %vm408, %v653, %v659
    %661 = vst [vmem:[%s510 + $0x2c] sm:$0x1] %v660
    %v662 = vld [vmem:[%s3] sm:$0xf]
    %v663 = vld [vmem:[%s3 + $0x4] sm:$0xf]
    %v664 = vld [vmem:[%s3 + $0x8] sm:$0xf]
    %v665 = vld [vmem:[%s3 + $0xc] sm:$0xf]
    %v666 = vld [vmem:[%s3 + $0x10] sm:$0xf]
    %v667 = vld [vmem:[%s3 + $0x14] sm:$0xf]
    %v668 = vld [vmem:[%s3 + $0x18] sm:$0xf]
    %v669 = vld [vmem:[%s3 + $0x1c] sm:$0xf]
    %v670 = vld [vmem:[%s3 + $0x20] sm:$0xf]
    %v671 = vld [vmem:[%s3 + $0x24] sm:$0xf]
    %v672 = vld [vmem:[%s3 + $0x28] sm:$0xf]
    %v673 = vld [vmem:[%s3 + $0x2c] sm:$0xf]
    %v674 = vld [vmem:[%s3 + $0x30] sm:$0xf]
    %v675 = vld [vmem:[%s3 + $0x34] sm:$0xf]
    %v676 = vld [vmem:[%s3 + $0x38] sm:$0xf]
    %v677 = vld [vmem:[%s3 + $0x3c] sm:$0xf]
    %v678 = vld [vmem:[%s3 + $0x40] sm:$0xf]
    %v679 = vld [vmem:[%s3 + $0x44] sm:$0xf]
    %v680 = vld [vmem:[%s3 + $0x48] sm:$0xf]
    %v681 = vld [vmem:[%s3 + $0x4c] sm:$0xf]
    %v682 = vld [vmem:[%s3 + $0x50] sm:$0xf]
    %v683 = vld [vmem:[%s3 + $0x54] sm:$0xf]
    %v684 = vld [vmem:[%s3 + $0x58] sm:$0xf]
    %v685 = vld [vmem:[%s3 + $0x5c] sm:$0xf]
    %v686 = vld [vmem:[%s3 + $0x60] sm:$0xf]
    %v687 = vld [vmem:[%s3 + $0x64] sm:$0xf]
    %v688 = vld [vmem:[%s3 + $0x68] sm:$0xf]
    %v689 = vld [vmem:[%s3 + $0x6c] sm:$0xf]
    %v690 = vld [vmem:[%s3 + $0x70] sm:$0xf]
    %v691 = vld [vmem:[%s3 + $0x74] sm:$0xf]
    %v692 = vld [vmem:[%s3 + $0x78] sm:$0xf]
    %v693 = vld [vmem:[%s3 + $0x7c] sm:$0xf]
    %v694 = vld [vmem:[#allocation2] sm:$0xf]
    %v695 = vld [vmem:[#allocation2 + $0x4] sm:$0xf]
    %v696 = vld [vmem:[#allocation2 + $0x8] sm:$0xf]
    %v697 = vld [vmem:[#allocation2 + $0xc] sm:$0xf]
    %v698 = vld [vmem:[#allocation2 + $0x10] sm:$0xf]
    %v699 = vld [vmem:[#allocation2 + $0x14] sm:$0xf]
    %v700 = vld [vmem:[#allocation2 + $0x18] sm:$0xf]
    %v701 = vld [vmem:[#allocation2 + $0x1c] sm:$0xf]
    %v702 = vld [vmem:[#allocation2 + $0x20] sm:$0xf]
    %v703 = vld [vmem:[#allocation2 + $0x24] sm:$0xf]
    %v704 = vld [vmem:[#allocation2 + $0x28] sm:$0xf]
    %v705 = vld [vmem:[#allocation2 + $0x2c] sm:$0xf]
    %v706 = vld [vmem:[#allocation2 + $0x30] sm:$0x3]
    %v739 = vunpack.c.l.b16 %v662
    %v740 = vunpack.c.l.b16 %v663
    %v741 = vunpack.c.l.b16 %v664
    %v742 = vunpack.c.l.b16 %v665
    %v743 = vunpack.c.l.b16 %v666
    %v744 = vunpack.c.l.b16 %v667
    %v745 = vunpack.c.l.b16 %v668
    %v746 = vunpack.c.l.b16 %v669
    %v747 = vunpack.c.l.b16 %v670
    %v748 = vunpack.c.l.b16 %v671
    %v749 = vunpack.c.l.b16 %v672
    %v750 = vunpack.c.l.b16 %v673
    %v751 = vunpack.c.l.b16 %v674
    %v752 = vunpack.c.l.b16 %v675
    %v753 = vunpack.c.l.b16 %v676
    %v754 = vunpack.c.l.b16 %v677
    %v755 = vunpack.c.l.b16 %v678
    %v756 = vunpack.c.l.b16 %v679
    %v757 = vunpack.c.l.b16 %v680
    %v758 = vunpack.c.l.b16 %v681
    %v759 = vunpack.c.l.b16 %v682
    %v760 = vunpack.c.l.b16 %v683
    %v761 = vunpack.c.l.b16 %v684
    %v762 = vunpack.c.l.b16 %v685
    %v763 = vunpack.c.l.b16 %v686
    %v764 = vunpack.c.l.b16 %v687
    %v765 = vunpack.c.l.b16 %v688
    %v766 = vunpack.c.l.b16 %v689
    %v767 = vunpack.c.l.b16 %v690
    %v768 = vunpack.c.l.b16 %v691
    %v769 = vunpack.c.l.b16 %v692
    %v770 = vunpack.c.l.b16 %v693
    %v771 = vpack.c.b16 %v740, %v739
    %v772 = vpack.c.b16 %v742, %v741
    %v773 = vpack.c.b16 %v744, %v743
    %v774 = vpack.c.b16 %v746, %v745
    %v775 = vpack.c.b16 %v748, %v747
    %v776 = vpack.c.b16 %v750, %v749
    %v777 = vpack.c.b16 %v752, %v751
    %v778 = vpack.c.b16 %v754, %v753
    %v779 = vpack.c.b16 %v756, %v755
    %v780 = vpack.c.b16 %v758, %v757
    %v781 = vpack.c.b16 %v760, %v759
    %v782 = vpack.c.b16 %v762, %v761
    %v783 = vpack.c.b16 %v764, %v763
    %v784 = vpack.c.b16 %v766, %v765
    %v785 = vpack.c.b16 %v768, %v767
    %v786 = vpack.c.b16 %v770, %v769
    %v800 = vunpack.c.l.b16 %v694
    %v801 = vunpack.c.l.b16 %v695
    %v802 = vunpack.c.l.b16 %v696
    %v803 = vunpack.c.l.b16 %v697
    %v804 = vunpack.c.l.b16 %v698
    %v805 = vunpack.c.l.b16 %v699
    %v806 = vunpack.c.l.b16 %v700
    %v807 = vunpack.c.l.b16 %v701
    %v808 = vunpack.c.l.b16 %v702
    %v809 = vunpack.c.l.b16 %v703
    %v810 = vunpack.c.l.b16 %v704
    %v811 = vunpack.c.l.b16 %v705
    %v812 = vunpack.c.l.b16 %v706
    %v813 = vpack.c.b16 %v801, %v800
    %v814 = vpack.c.b16 %v803, %v802
    %v815 = vpack.c.b16 %v805, %v804
    %v816 = vpack.c.b16 %v807, %v806
    %v817 = vpack.c.b16 %v809, %v808
    %v818 = vpack.c.b16 %v811, %v810
    %v819 = vpack.c.b16 %v812, %v812
    %vm826 = vcmask 818176
    %v828 = vsel %vm826, %v771, 0
    %v831 = vsel %vm826, %v772, 0
    %v834 = vsel %vm826, %v773, 0
    %v837 = vsel %vm826, %v774, 0
    %v840 = vsel %vm826, %v775, 0
    %v843 = vsel %vm826, %v776, 0
    %v846 = vsel %vm826, %v777, 0
    %v849 = vsel %vm826, %v778, 0
    %v852 = vsel %vm826, %v779, 0
    %v855 = vsel %vm826, %v780, 0
    %v858 = vsel %vm826, %v781, 0
    %v861 = vsel %vm826, %v782, 0
    %v864 = vsel %vm826, %v783, 0
    %v867 = vsel %vm826, %v784, 0
    %v870 = vsel %vm826, %v785, 0
    %v873 = vsel %vm826, %v786, 0
    %vm875 = vcmask 1041408
    %v877 = vsel %vm875, %v819, 0
    %879 = vmatprep.subr.bf16.mxu0 0
    %880 = vmatpush1.bf16.msra.mxu0 0
    %881 = vmatprep.subr.bf16.mxu0 0
    %882 = vmatpush1.bf16.msra.mxu0 %v877
    %883 = vmatprep.subr.bf16.mxu0 0
    %884 = vmatpush1.bf16.msra.mxu0 %v818
    %885 = vmatprep.subr.bf16.mxu0 0
    %886 = vmatpush1.bf16.msra.mxu0 %v817
    %887 = vmatprep.subr.bf16.mxu0 0
    %888 = vmatpush1.bf16.msra.mxu0 %v816
    %889 = vmatprep.subr.bf16.mxu0 0
    %890 = vmatpush1.bf16.msra.mxu0 %v815
    %891 = vmatprep.subr.bf16.mxu0 0
    %892 = vmatpush1.bf16.msra.mxu0 %v814
    %893 = vmatprep.subr.bf16.mxu0 0
    %894 = vmatpush1.bf16.msra.mxu0 %v813
    %895 = vmatprep.subr.bf16.mxu0 0
    %896 = vmatpush2.bf16.msra.mxu0 0
    %897 = vmatprep.subr.bf16.mxu0 0
    %898 = vmatpush2.bf16.msra.mxu0 0
    %899 = vmatprep.subr.bf16.mxu0 0
    %900 = vmatpush2.bf16.msra.mxu0 0
    %901 = vmatprep.subr.bf16.mxu0 0
    %902 = vmatpush2.bf16.msra.mxu0 0
    %903 = vmatprep.subr.bf16.mxu0 0
    %904 = vmatpush2.bf16.msra.mxu0 0
    %905 = vmatprep.subr.bf16.mxu0 0
    %906 = vmatpush2.bf16.msra.mxu0 0
    %907 = vmatprep.subr.bf16.mxu0 0
    %908 = vmatpush2.bf16.msra.mxu0 0
    %909 = vmatprep.subr.bf16.mxu0 0
    %910 = vmatpush2.bf16.msra.mxu0 0
    %911 = vmatprep.mubr.bf16.mxu0 0
    %912 = vmatmul.mubr.bf16.gmra.mxu0 %v828
    %v913 = vpop.f32.mrf.mxu0
    %v914 = vadd.f32 0.0, %v913
    %v915 = vpop.f32.mrf.mxu0
    %v916 = vpop.f32.mrf.mxu0
    %v917 = vadd.f32 0.0, %v916
    %v918 = vpop.f32.mrf.mxu0
    %919 = vmatprep.mubr.bf16.mxu0 0
    %920 = vmatmul.mubr.bf16.gmra.mxu0 %v831
    %v921 = vpop.f32.mrf.mxu0
    %v922 = vadd.f32 0.0, %v921
    %v923 = vpop.f32.mrf.mxu0
    %v924 = vpop.f32.mrf.mxu0
    %v925 = vadd.f32 0.0, %v924
    %v926 = vpop.f32.mrf.mxu0
    %927 = vmatprep.mubr.bf16.mxu0 0
    %928 = vmatmul.mubr.bf16.gmra.mxu0 %v834
    %v929 = vpop.f32.mrf.mxu0
    %v930 = vadd.f32 0.0, %v929
    %v931 = vpop.f32.mrf.mxu0
    %v932 = vpop.f32.mrf.mxu0
    %v933 = vadd.f32 0.0, %v932
    %v934 = vpop.f32.mrf.mxu0
    %935 = vmatprep.mubr.bf16.mxu0 0
    %936 = vmatmul.mubr.bf16.gmra.mxu0 %v837
    %v937 = vpop.f32.mrf.mxu0
    %v938 = vadd.f32 0.0, %v937
    %v939 = vpop.f32.mrf.mxu0
    %v940 = vpop.f32.mrf.mxu0
    %v941 = vadd.f32 0.0, %v940
    %v942 = vpop.f32.mrf.mxu0
    %943 = vmatprep.mubr.bf16.mxu0 0
    %944 = vmatmul.mubr.bf16.gmra.mxu0 %v840
    %v945 = vpop.f32.mrf.mxu0
    %v946 = vadd.f32 0.0, %v945
    %v947 = vpop.f32.mrf.mxu0
    %v948 = vpop.f32.mrf.mxu0
    %v949 = vadd.f32 0.0, %v948
    %v950 = vpop.f32.mrf.mxu0
    %951 = vmatprep.mubr.bf16.mxu0 0
    %952 = vmatmul.mubr.bf16.gmra.mxu0 %v843
    %v953 = vpop.f32.mrf.mxu0
    %v954 = vadd.f32 0.0, %v953
    %v955 = vpop.f32.mrf.mxu0
    %v956 = vpop.f32.mrf.mxu0
    %v957 = vadd.f32 0.0, %v956
    %v958 = vpop.f32.mrf.mxu0
    %959 = vmatprep.mubr.bf16.mxu0 0
    %960 = vmatmul.mubr.bf16.gmra.mxu0 %v846
    %v961 = vpop.f32.mrf.mxu0
    %v962 = vadd.f32 0.0, %v961
    %v963 = vpop.f32.mrf.mxu0
    %v964 = vpop.f32.mrf.mxu0
    %v965 = vadd.f32 0.0, %v964
    %v966 = vpop.f32.mrf.mxu0
    %967 = vmatprep.mubr.bf16.mxu0 0
    %968 = vmatmul.mubr.bf16.gmra.mxu0 %v849
    %v969 = vpop.f32.mrf.mxu0
    %v970 = vadd.f32 0.0, %v969
    %v971 = vpop.f32.mrf.mxu0
    %v972 = vpop.f32.mrf.mxu0
    %v973 = vadd.f32 0.0, %v972
    %v974 = vpop.f32.mrf.mxu0
    %975 = vmatprep.mubr.bf16.mxu0 0
    %976 = vmatmul.mubr.bf16.gmra.mxu0 %v852
    %v977 = vpop.f32.mrf.mxu0
    %v978 = vadd.f32 0.0, %v977
    %v979 = vpop.f32.mrf.mxu0
    %v980 = vpop.f32.mrf.mxu0
    %v981 = vadd.f32 0.0, %v980
    %v982 = vpop.f32.mrf.mxu0
    %983 = vmatprep.mubr.bf16.mxu0 0
    %984 = vmatmul.mubr.bf16.gmra.mxu0 %v855
    %v985 = vpop.f32.mrf.mxu0
    %v986 = vadd.f32 0.0, %v985
    %v987 = vpop.f32.mrf.mxu0
    %v988 = vpop.f32.mrf.mxu0
    %v989 = vadd.f32 0.0, %v988
    %v990 = vpop.f32.mrf.mxu0
    %991 = vmatprep.mubr.bf16.mxu0 0
    %992 = vmatmul.mubr.bf16.gmra.mxu0 %v858
    %v993 = vpop.f32.mrf.mxu0
    %v994 = vadd.f32 0.0, %v993
    %v995 = vpop.f32.mrf.mxu0
    %v996 = vpop.f32.mrf.mxu0
    %v997 = vadd.f32 0.0, %v996
    %v998 = vpop.f32.mrf.mxu0
    %999 = vmatprep.mubr.bf16.mxu0 0
    %1000 = vmatmul.mubr.bf16.gmra.mxu0 %v861
    %v1001 = vpop.f32.mrf.mxu0
    %v1002 = vadd.f32 0.0, %v1001
    %v1003 = vpop.f32.mrf.mxu0
    %v1004 = vpop.f32.mrf.mxu0
    %v1005 = vadd.f32 0.0, %v1004
    %v1006 = vpop.f32.mrf.mxu0
    %1007 = vmatprep.mubr.bf16.mxu0 0
    %1008 = vmatmul.mubr.bf16.gmra.mxu0 %v864
    %v1009 = vpop.f32.mrf.mxu0
    %v1010 = vadd.f32 0.0, %v1009
    %v1011 = vpop.f32.mrf.mxu0
    %v1012 = vpop.f32.mrf.mxu0
    %v1013 = vadd.f32 0.0, %v1012
    %v1014 = vpop.f32.mrf.mxu0
    %1015 = vmatprep.mubr.bf16.mxu0 0
    %1016 = vmatmul.mubr.bf16.gmra.mxu0 %v867
    %v1017 = vpop.f32.mrf.mxu0
    %v1018 = vadd.f32 0.0, %v1017
    %v1019 = vpop.f32.mrf.mxu0
    %v1020 = vpop.f32.mrf.mxu0
    %v1021 = vadd.f32 0.0, %v1020
    %v1022 = vpop.f32.mrf.mxu0
    %1023 = vmatprep.mubr.bf16.mxu0 0
    %1024 = vmatmul.mubr.bf16.gmra.mxu0 %v870
    %v1025 = vpop.f32.mrf.mxu0
    %v1026 = vadd.f32 0.0, %v1025
    %v1027 = vpop.f32.mrf.mxu0
    %v1028 = vpop.f32.mrf.mxu0
    %v1029 = vadd.f32 0.0, %v1028
    %v1030 = vpop.f32.mrf.mxu0
    %1031 = vmatprep.mubr.bf16.mxu0 0
    %1032 = vmatmul.mubr.bf16.gmra.mxu0 %v873
    %v1033 = vpop.f32.mrf.mxu0
    %v1034 = vadd.f32 0.0, %v1033
    %v1035 = vpop.f32.mrf.mxu0
    %v1036 = vpop.f32.mrf.mxu0
    %v1037 = vadd.f32 0.0, %v1036
    %v1038 = vpop.f32.mrf.mxu0
    %1039 = vdwg.mxu0
    %v1040 = vpack.c.bf16 %v917, %v914
    %v1041 = vld [vmem:[%s4] sm:$0xf]
    %v1042 = vld [vmem:[%s4 + $0x4] sm:$0xf]
    %v1043 = vld [vmem:[%s4 + $0x8] sm:$0xf]
    %v1044 = vld [vmem:[%s4 + $0xc] sm:$0xf]
    %v1045 = vld [vmem:[%s4 + $0x10] sm:$0xf]
    %v1046 = vld [vmem:[%s4 + $0x14] sm:$0xf]
    %v1047 = vld [vmem:[%s4 + $0x18] sm:$0xf]
    %v1048 = vld [vmem:[%s4 + $0x1c] sm:$0xf]
    %v1049 = vpack.c.bf16 %v925, %v922
    %v1050 = vld [vmem:[%s4 + $0x20] sm:$0xf]
    %v1051 = vld [vmem:[%s4 + $0x24] sm:$0xf]
    %v1052 = vld [vmem:[%s4 + $0x28] sm:$0xf]
    %v1053 = vld [vmem:[%s4 + $0x2c] sm:$0xf]
    %v1054 = vld [vmem:[%s4 + $0x30] sm:$0xf]
    %v1055 = vld [vmem:[%s4 + $0x34] sm:$0xf]
    %v1056 = vld [vmem:[%s4 + $0x38] sm:$0xf]
    %v1057 = vld [vmem:[%s4 + $0x3c] sm:$0xf]
    %v1066 = vunpack.c.l.b16 %v1050
    %v1067 = vunpack.c.l.b16 %v1051
    %v1068 = vunpack.c.l.b16 %v1052
    %v1069 = vunpack.c.l.b16 %v1053
    %v1070 = vunpack.c.l.b16 %v1054
    %v1071 = vunpack.c.l.b16 %v1055
    %v1072 = vunpack.c.l.b16 %v1056
    %v1073 = vunpack.c.l.b16 %v1057
    %v1074 = vpack.c.b16 %v1067, %v1066
    %v1075 = vpack.c.b16 %v1069, %v1068
    %v1076 = vpack.c.b16 %v1071, %v1070
    %v1077 = vpack.c.b16 %v1073, %v1072
    %vm1082 = vcmask 523264
    %v1084 = vsel %vm1082, %v1049, 0
    %1086 = vmatprep.subr.bf16.mxu0 0
    %1087 = vmatpush1.bf16.msra.mxu0 0
    %1088 = vmatprep.subr.bf16.mxu0 0
    %1089 = vmatpush1.bf16.msra.mxu0 0
    %1090 = vmatprep.subr.bf16.mxu0 0
    %1091 = vmatpush1.bf16.msra.mxu0 0
    %1092 = vmatprep.subr.bf16.mxu0 0
    %1093 = vmatpush1.bf16.msra.mxu0 0
    %1094 = vmatprep.subr.bf16.mxu0 0
    %1095 = vmatpush1.bf16.msra.mxu0 %v1077
    %1096 = vmatprep.subr.bf16.mxu0 0
    %1097 = vmatpush1.bf16.msra.mxu0 %v1076
    %1098 = vmatprep.subr.bf16.mxu0 0
    %1099 = vmatpush1.bf16.msra.mxu0 %v1075
    %1100 = vmatprep.subr.bf16.mxu0 0
    %1101 = vmatpush1.bf16.msra.mxu0 %v1074
    %1102 = vmatprep.subr.bf16.mxu0 0
    %1103 = vmatpush2.bf16.msra.mxu0 0
    %1104 = vmatprep.subr.bf16.mxu0 0
    %1105 = vmatpush2.bf16.msra.mxu0 0
    %1106 = vmatprep.subr.bf16.mxu0 0
    %1107 = vmatpush2.bf16.msra.mxu0 0
    %1108 = vmatprep.subr.bf16.mxu0 0
    %1109 = vmatpush2.bf16.msra.mxu0 0
    %1110 = vmatprep.subr.bf16.mxu0 0
    %1111 = vmatpush2.bf16.msra.mxu0 0
    %1112 = vmatprep.subr.bf16.mxu0 0
    %1113 = vmatpush2.bf16.msra.mxu0 0
    %1114 = vmatprep.subr.bf16.mxu0 0
    %1115 = vmatpush2.bf16.msra.mxu0 0
    %1116 = vmatprep.subr.bf16.mxu0 0
    %1117 = vmatpush2.bf16.msra.mxu0 0
    %1118 = vmatprep.mubr.bf16.mxu0 0
    %1119 = vmatmul.mubr.bf16.gmra.mxu0 %v1084
    %v1120 = vpop.f32.mrf.mxu0
    %v1121 = vadd.f32 0.0, %v1120
    %v1122 = vpop.f32.mrf.mxu0
    %v1123 = vpop.f32.mrf.mxu0
    %v1124 = vadd.f32 0.0, %v1123
    %v1125 = vpop.f32.mrf.mxu0
    %1126 = vdwg.mxu0
    %v1135 = vunpack.c.l.b16 %v1041
    %v1136 = vunpack.c.l.b16 %v1042
    %v1137 = vunpack.c.l.b16 %v1043
    %v1138 = vunpack.c.l.b16 %v1044
    %v1139 = vunpack.c.l.b16 %v1045
    %v1140 = vunpack.c.l.b16 %v1046
    %v1141 = vunpack.c.l.b16 %v1047
    %v1142 = vunpack.c.l.b16 %v1048
    %v1143 = vpack.c.b16 %v1136, %v1135
    %v1144 = vpack.c.b16 %v1138, %v1137
    %v1145 = vpack.c.b16 %v1140, %v1139
    %v1146 = vpack.c.b16 %v1142, %v1141
    %v1152 = vsel %vm1082, %v1040, 0
    %1154 = vmatprep.subr.bf16.mxu0 0
    %1155 = vmatpush1.bf16.msra.mxu0 0
    %1156 = vmatprep.subr.bf16.mxu0 0
    %1157 = vmatpush1.bf16.msra.mxu0 0
    %1158 = vmatprep.subr.bf16.mxu0 0
    %1159 = vmatpush1.bf16.msra.mxu0 0
    %1160 = vmatprep.subr.bf16.mxu0 0
    %1161 = vmatpush1.bf16.msra.mxu0 0
    %1162 = vmatprep.subr.bf16.mxu0 0
    %1163 = vmatpush1.bf16.msra.mxu0 %v1146
    %1164 = vmatprep.subr.bf16.mxu0 0
    %1165 = vmatpush1.bf16.msra.mxu0 %v1145
    %1166 = vmatprep.subr.bf16.mxu0 0
    %1167 = vmatpush1.bf16.msra.mxu0 %v1144
    %1168 = vmatprep.subr.bf16.mxu0 0
    %1169 = vmatpush1.bf16.msra.mxu0 %v1143
    %1170 = vmatprep.subr.bf16.mxu0 0
    %1171 = vmatpush2.bf16.msra.mxu0 0
    %1172 = vmatprep.subr.bf16.mxu0 0
    %1173 = vmatpush2.bf16.msra.mxu0 0
    %1174 = vmatprep.subr.bf16.mxu0 0
    %1175 = vmatpush2.bf16.msra.mxu0 0
    %1176 = vmatprep.subr.bf16.mxu0 0
    %1177 = vmatpush2.bf16.msra.mxu0 0
    %1178 = vmatprep.subr.bf16.mxu0 0
    %1179 = vmatpush2.bf16.msra.mxu0 0
    %1180 = vmatprep.subr.bf16.mxu0 0
    %1181 = vmatpush2.bf16.msra.mxu0 0
    %1182 = vmatprep.subr.bf16.mxu0 0
    %1183 = vmatpush2.bf16.msra.mxu0 0
    %1184 = vmatprep.subr.bf16.mxu0 0
    %1185 = vmatpush2.bf16.msra.mxu0 0
    %1186 = vmatprep.mubr.bf16.mxu0 0
    %1187 = vmatmul.mubr.bf16.gmra.mxu0 %v1152
    %v1188 = vpop.f32.mrf.mxu0
    %v1189 = vadd.f32 %v1121, %v1188
    %v1190 = vpop.f32.mrf.mxu0
    %v1191 = vpop.f32.mrf.mxu0
    %v1192 = vadd.f32 %v1124, %v1191
    %v1193 = vpop.f32.mrf.mxu0
    %1194 = vdwg.mxu0
    %v1195 = vpack.c.bf16 %v933, %v930
    %v1196 = vld [vmem:[%s4 + $0x40] sm:$0xf]
    %v1197 = vld [vmem:[%s4 + $0x44] sm:$0xf]
    %v1198 = vld [vmem:[%s4 + $0x48] sm:$0xf]
    %v1199 = vld [vmem:[%s4 + $0x4c] sm:$0xf]
    %v1200 = vld [vmem:[%s4 + $0x50] sm:$0xf]
    %v1201 = vld [vmem:[%s4 + $0x54] sm:$0xf]
    %v1202 = vld [vmem:[%s4 + $0x58] sm:$0xf]
    %v1203 = vld [vmem:[%s4 + $0x5c] sm:$0xf]
    %v1212 = vunpack.c.l.b16 %v1196
    %v1213 = vunpack.c.l.b16 %v1197
    %v1214 = vunpack.c.l.b16 %v1198
    %v1215 = vunpack.c.l.b16 %v1199
    %v1216 = vunpack.c.l.b16 %v1200
    %v1217 = vunpack.c.l.b16 %v1201
    %v1218 = vunpack.c.l.b16 %v1202
    %v1219 = vunpack.c.l.b16 %v1203
    %v1220 = vpack.c.b16 %v1213, %v1212
    %v1221 = vpack.c.b16 %v1215, %v1214
    %v1222 = vpack.c.b16 %v1217, %v1216
    %v1223 = vpack.c.b16 %v1219, %v1218
    %v1229 = vsel %vm1082, %v1195, 0
    %1231 = vmatprep.subr.bf16.mxu0 0
    %1232 = vmatpush1.bf16.msra.mxu0 0
    %1233 = vmatprep.subr.bf16.mxu0 0
    %1234 = vmatpush1.bf16.msra.mxu0 0
    %1235 = vmatprep.subr.bf16.mxu0 0
    %1236 = vmatpush1.bf16.msra.mxu0 0
    %1237 = vmatprep.subr.bf16.mxu0 0
    %1238 = vmatpush1.bf16.msra.mxu0 0
    %1239 = vmatprep.subr.bf16.mxu0 0
    %1240 = vmatpush1.bf16.msra.mxu0 %v1223
    %1241 = vmatprep.subr.bf16.mxu0 0
    %1242 = vmatpush1.bf16.msra.mxu0 %v1222
    %1243 = vmatprep.subr.bf16.mxu0 0
    %1244 = vmatpush1.bf16.msra.mxu0 %v1221
    %1245 = vmatprep.subr.bf16.mxu0 0
    %1246 = vmatpush1.bf16.msra.mxu0 %v1220
    %1247 = vmatprep.subr.bf16.mxu0 0
    %1248 = vmatpush2.bf16.msra.mxu0 0
    %1249 = vmatprep.subr.bf16.mxu0 0
    %1250 = vmatpush2.bf16.msra.mxu0 0
    %1251 = vmatprep.subr.bf16.mxu0 0
    %1252 = vmatpush2.bf16.msra.mxu0 0
    %1253 = vmatprep.subr.bf16.mxu0 0
    %1254 = vmatpush2.bf16.msra.mxu0 0
    %1255 = vmatprep.subr.bf16.mxu0 0
    %1256 = vmatpush2.bf16.msra.mxu0 0
    %1257 = vmatprep.subr.bf16.mxu0 0
    %1258 = vmatpush2.bf16.msra.mxu0 0
    %1259 = vmatprep.subr.bf16.mxu0 0
    %1260 = vmatpush2.bf16.msra.mxu0 0
    %1261 = vmatprep.subr.bf16.mxu0 0
    %1262 = vmatpush2.bf16.msra.mxu0 0
    %1263 = vmatprep.mubr.bf16.mxu0 0
    %1264 = vmatmul.mubr.bf16.gmra.mxu0 %v1229
    %v1265 = vpop.f32.mrf.mxu0
    %v1266 = vadd.f32 0.0, %v1265
    %v1267 = vpop.f32.mrf.mxu0
    %v1268 = vpop.f32.mrf.mxu0
    %v1269 = vadd.f32 0.0, %v1268
    %v1270 = vpop.f32.mrf.mxu0
    %1271 = vdwg.mxu0
    %v1272 = vadd.f32 %v1189, %v1266
    %v1273 = vadd.f32 %v1192, %v1269
    %v1274 = vpack.c.bf16 %v941, %v938
    %v1275 = vld [vmem:[%s4 + $0x60] sm:$0xf]
    %v1276 = vld [vmem:[%s4 + $0x64] sm:$0xf]
    %v1277 = vld [vmem:[%s4 + $0x68] sm:$0xf]
    %v1278 = vld [vmem:[%s4 + $0x6c] sm:$0xf]
    %v1279 = vld [vmem:[%s4 + $0x70] sm:$0xf]
    %v1280 = vld [vmem:[%s4 + $0x74] sm:$0xf]
    %v1281 = vld [vmem:[%s4 + $0x78] sm:$0xf]
    %v1282 = vld [vmem:[%s4 + $0x7c] sm:$0xf]
    %v1291 = vunpack.c.l.b16 %v1275
    %v1292 = vunpack.c.l.b16 %v1276
    %v1293 = vunpack.c.l.b16 %v1277
    %v1294 = vunpack.c.l.b16 %v1278
    %v1295 = vunpack.c.l.b16 %v1279
    %v1296 = vunpack.c.l.b16 %v1280
    %v1297 = vunpack.c.l.b16 %v1281
    %v1298 = vunpack.c.l.b16 %v1282
    %v1299 = vpack.c.b16 %v1292, %v1291
    %v1300 = vpack.c.b16 %v1294, %v1293
    %v1301 = vpack.c.b16 %v1296, %v1295
    %v1302 = vpack.c.b16 %v1298, %v1297
    %v1308 = vsel %vm1082, %v1274, 0
    %1310 = vmatprep.subr.bf16.mxu0 0
    %1311 = vmatpush1.bf16.msra.mxu0 0
    %1312 = vmatprep.subr.bf16.mxu0 0
    %1313 = vmatpush1.bf16.msra.mxu0 0
    %1314 = vmatprep.subr.bf16.mxu0 0
    %1315 = vmatpush1.bf16.msra.mxu0 0
    %1316 = vmatprep.subr.bf16.mxu0 0
    %1317 = vmatpush1.bf16.msra.mxu0 0
    %1318 = vmatprep.subr.bf16.mxu0 0
    %1319 = vmatpush1.bf16.msra.mxu0 %v1302
    %1320 = vmatprep.subr.bf16.mxu0 0
    %1321 = vmatpush1.bf16.msra.mxu0 %v1301
    %1322 = vmatprep.subr.bf16.mxu0 0
    %1323 = vmatpush1.bf16.msra.mxu0 %v1300
    %1324 = vmatprep.subr.bf16.mxu0 0
    %1325 = vmatpush1.bf16.msra.mxu0 %v1299
    %1326 = vmatprep.subr.bf16.mxu0 0
    %1327 = vmatpush2.bf16.msra.mxu0 0
    %1328 = vmatprep.subr.bf16.mxu0 0
    %1329 = vmatpush2.bf16.msra.mxu0 0
    %1330 = vmatprep.subr.bf16.mxu0 0
    %1331 = vmatpush2.bf16.msra.mxu0 0
    %1332 = vmatprep.subr.bf16.mxu0 0
    %1333 = vmatpush2.bf16.msra.mxu0 0
    %1334 = vmatprep.subr.bf16.mxu0 0
    %1335 = vmatpush2.bf16.msra.mxu0 0
    %1336 = vmatprep.subr.bf16.mxu0 0
    %1337 = vmatpush2.bf16.msra.mxu0 0
    %1338 = vmatprep.subr.bf16.mxu0 0
    %1339 = vmatpush2.bf16.msra.mxu0 0
    %1340 = vmatprep.subr.bf16.mxu0 0
    %1341 = vmatpush2.bf16.msra.mxu0 0
    %1342 = vmatprep.mubr.bf16.mxu0 0
    %1343 = vmatmul.mubr.bf16.gmra.mxu0 %v1308
    %v1344 = vpop.f32.mrf.mxu0
    %v1345 = vadd.f32 0.0, %v1344
    %v1346 = vpop.f32.mrf.mxu0
    %v1347 = vpop.f32.mrf.mxu0
    %v1348 = vadd.f32 0.0, %v1347
    %v1349 = vpop.f32.mrf.mxu0
    %1350 = vdwg.mxu0
    %v1351 = vadd.f32 %v1272, %v1345
    %v1352 = vadd.f32 %v1273, %v1348
    %v1353 = vpack.c.bf16 %v949, %v946
    %v1354 = vld [vmem:[%s4 + $0x80] sm:$0xf]
    %v1355 = vld [vmem:[%s4 + $0x84] sm:$0xf]
    %v1356 = vld [vmem:[%s4 + $0x88] sm:$0xf]
    %v1357 = vld [vmem:[%s4 + $0x8c] sm:$0xf]
    %v1358 = vld [vmem:[%s4 + $0x90] sm:$0xf]
    %v1359 = vld [vmem:[%s4 + $0x94] sm:$0xf]
    %v1360 = vld [vmem:[%s4 + $0x98] sm:$0xf]
    %v1361 = vld [vmem:[%s4 + $0x9c] sm:$0xf]
    %v1370 = vunpack.c.l.b16 %v1354
    %v1371 = vunpack.c.l.b16 %v1355
    %v1372 = vunpack.c.l.b16 %v1356
    %v1373 = vunpack.c.l.b16 %v1357
    %v1374 = vunpack.c.l.b16 %v1358
    %v1375 = vunpack.c.l.b16 %v1359
    %v1376 = vunpack.c.l.b16 %v1360
    %v1377 = vunpack.c.l.b16 %v1361
    %v1378 = vpack.c.b16 %v1371, %v1370
    %v1379 = vpack.c.b16 %v1373, %v1372
    %v1380 = vpack.c.b16 %v1375, %v1374
    %v1381 = vpack.c.b16 %v1377, %v1376
    %v1387 = vsel %vm1082, %v1353, 0
    %1389 = vmatprep.subr.bf16.mxu0 0
    %1390 = vmatpush1.bf16.msra.mxu0 0
    %1391 = vmatprep.subr.bf16.mxu0 0
    %1392 = vmatpush1.bf16.msra.mxu0 0
    %1393 = vmatprep.subr.bf16.mxu0 0
    %1394 = vmatpush1.bf16.msra.mxu0 0
    %1395 = vmatprep.subr.bf16.mxu0 0
    %1396 = vmatpush1.bf16.msra.mxu0 0
    %1397 = vmatprep.subr.bf16.mxu0 0
    %1398 = vmatpush1.bf16.msra.mxu0 %v1381
    %1399 = vmatprep.subr.bf16.mxu0 0
    %1400 = vmatpush1.bf16.msra.mxu0 %v1380
    %1401 = vmatprep.subr.bf16.mxu0 0
    %1402 = vmatpush1.bf16.msra.mxu0 %v1379
    %1403 = vmatprep.subr.bf16.mxu0 0
    %1404 = vmatpush1.bf16.msra.mxu0 %v1378
    %1405 = vmatprep.subr.bf16.mxu0 0
    %1406 = vmatpush2.bf16.msra.mxu0 0
    %1407 = vmatprep.subr.bf16.mxu0 0
    %1408 = vmatpush2.bf16.msra.mxu0 0
    %1409 = vmatprep.subr.bf16.mxu0 0
    %1410 = vmatpush2.bf16.msra.mxu0 0
    %1411 = vmatprep.subr.bf16.mxu0 0
    %1412 = vmatpush2.bf16.msra.mxu0 0
    %1413 = vmatprep.subr.bf16.mxu0 0
    %1414 = vmatpush2.bf16.msra.mxu0 0
    %1415 = vmatprep.subr.bf16.mxu0 0
    %1416 = vmatpush2.bf16.msra.mxu0 0
    %1417 = vmatprep.subr.bf16.mxu0 0
    %1418 = vmatpush2.bf16.msra.mxu0 0
    %1419 = vmatprep.subr.bf16.mxu0 0
    %1420 = vmatpush2.bf16.msra.mxu0 0
    %1421 = vmatprep.mubr.bf16.mxu0 0
    %1422 = vmatmul.mubr.bf16.gmra.mxu0 %v1387
    %v1423 = vpop.f32.mrf.mxu0
    %v1424 = vadd.f32 0.0, %v1423
    %v1425 = vpop.f32.mrf.mxu0
    %v1426 = vpop.f32.mrf.mxu0
    %v1427 = vadd.f32 0.0, %v1426
    %v1428 = vpop.f32.mrf.mxu0
    %1429 = vdwg.mxu0
    %v1430 = vadd.f32 %v1351, %v1424
    %v1431 = vadd.f32 %v1352, %v1427
    %v1432 = vpack.c.bf16 %v957, %v954
    %v1433 = vld [vmem:[%s4 + $0xa0] sm:$0xf]
    %v1434 = vld [vmem:[%s4 + $0xa4] sm:$0xf]
    %v1435 = vld [vmem:[%s4 + $0xa8] sm:$0xf]
    %v1436 = vld [vmem:[%s4 + $0xac] sm:$0xf]
    %v1437 = vld [vmem:[%s4 + $0xb0] sm:$0xf]
    %v1438 = vld [vmem:[%s4 + $0xb4] sm:$0xf]
    %v1439 = vld [vmem:[%s4 + $0xb8] sm:$0xf]
    %v1440 = vld [vmem:[%s4 + $0xbc] sm:$0xf]
    %v1449 = vunpack.c.l.b16 %v1433
    %v1450 = vunpack.c.l.b16 %v1434
    %v1451 = vunpack.c.l.b16 %v1435
    %v1452 = vunpack.c.l.b16 %v1436
    %v1453 = vunpack.c.l.b16 %v1437
    %v1454 = vunpack.c.l.b16 %v1438
    %v1455 = vunpack.c.l.b16 %v1439
    %v1456 = vunpack.c.l.b16 %v1440
    %v1457 = vpack.c.b16 %v1450, %v1449
    %v1458 = vpack.c.b16 %v1452, %v1451
    %v1459 = vpack.c.b16 %v1454, %v1453
    %v1460 = vpack.c.b16 %v1456, %v1455
    %v1466 = vsel %vm1082, %v1432, 0
    %1468 = vmatprep.subr.bf16.mxu0 0
    %1469 = vmatpush1.bf16.msra.mxu0 0
    %1470 = vmatprep.subr.bf16.mxu0 0
    %1471 = vmatpush1.bf16.msra.mxu0 0
    %1472 = vmatprep.subr.bf16.mxu0 0
    %1473 = vmatpush1.bf16.msra.mxu0 0
    %1474 = vmatprep.subr.bf16.mxu0 0
    %1475 = vmatpush1.bf16.msra.mxu0 0
    %1476 = vmatprep.subr.bf16.mxu0 0
    %1477 = vmatpush1.bf16.msra.mxu0 %v1460
    %1478 = vmatprep.subr.bf16.mxu0 0
    %1479 = vmatpush1.bf16.msra.mxu0 %v1459
    %1480 = vmatprep.subr.bf16.mxu0 0
    %1481 = vmatpush1.bf16.msra.mxu0 %v1458
    %1482 = vmatprep.subr.bf16.mxu0 0
    %1483 = vmatpush1.bf16.msra.mxu0 %v1457
    %1484 = vmatprep.subr.bf16.mxu0 0
    %1485 = vmatpush2.bf16.msra.mxu0 0
    %1486 = vmatprep.subr.bf16.mxu0 0
    %1487 = vmatpush2.bf16.msra.mxu0 0
    %1488 = vmatprep.subr.bf16.mxu0 0
    %1489 = vmatpush2.bf16.msra.mxu0 0
    %1490 = vmatprep.subr.bf16.mxu0 0
    %1491 = vmatpush2.bf16.msra.mxu0 0
    %1492 = vmatprep.subr.bf16.mxu0 0
    %1493 = vmatpush2.bf16.msra.mxu0 0
    %1494 = vmatprep.subr.bf16.mxu0 0
    %1495 = vmatpush2.bf16.msra.mxu0 0
    %1496 = vmatprep.subr.bf16.mxu0 0
    %1497 = vmatpush2.bf16.msra.mxu0 0
    %1498 = vmatprep.subr.bf16.mxu0 0
    %1499 = vmatpush2.bf16.msra.mxu0 0
    %1500 = vmatprep.mubr.bf16.mxu0 0
    %1501 = vmatmul.mubr.bf16.gmra.mxu0 %v1466
    %v1502 = vpop.f32.mrf.mxu0
    %v1503 = vadd.f32 0.0, %v1502
    %v1504 = vpop.f32.mrf.mxu0
    %v1505 = vpop.f32.mrf.mxu0
    %v1506 = vadd.f32 0.0, %v1505
    %v1507 = vpop.f32.mrf.mxu0
    %1508 = vdwg.mxu0
    %v1509 = vadd.f32 %v1430, %v1503
    %v1510 = vadd.f32 %v1431, %v1506
    %v1511 = vpack.c.bf16 %v965, %v962
    %v1512 = vld [vmem:[%s4 + $0xc0] sm:$0xf]
    %v1513 = vld [vmem:[%s4 + $0xc4] sm:$0xf]
    %v1514 = vld [vmem:[%s4 + $0xc8] sm:$0xf]
    %v1515 = vld [vmem:[%s4 + $0xcc] sm:$0xf]
    %v1516 = vld [vmem:[%s4 + $0xd0] sm:$0xf]
    %v1517 = vld [vmem:[%s4 + $0xd4] sm:$0xf]
    %v1518 = vld [vmem:[%s4 + $0xd8] sm:$0xf]
    %v1519 = vld [vmem:[%s4 + $0xdc] sm:$0xf]
    %v1528 = vunpack.c.l.b16 %v1512
    %v1529 = vunpack.c.l.b16 %v1513
    %v1530 = vunpack.c.l.b16 %v1514
    %v1531 = vunpack.c.l.b16 %v1515
    %v1532 = vunpack.c.l.b16 %v1516
    %v1533 = vunpack.c.l.b16 %v1517
    %v1534 = vunpack.c.l.b16 %v1518
    %v1535 = vunpack.c.l.b16 %v1519
    %v1536 = vpack.c.b16 %v1529, %v1528
    %v1537 = vpack.c.b16 %v1531, %v1530
    %v1538 = vpack.c.b16 %v1533, %v1532
    %v1539 = vpack.c.b16 %v1535, %v1534
    %v1545 = vsel %vm1082, %v1511, 0
    %1547 = vmatprep.subr.bf16.mxu0 0
    %1548 = vmatpush1.bf16.msra.mxu0 0
    %1549 = vmatprep.subr.bf16.mxu0 0
    %1550 = vmatpush1.bf16.msra.mxu0 0
    %1551 = vmatprep.subr.bf16.mxu0 0
    %1552 = vmatpush1.bf16.msra.mxu0 0
    %1553 = vmatprep.subr.bf16.mxu0 0
    %1554 = vmatpush1.bf16.msra.mxu0 0
    %1555 = vmatprep.subr.bf16.mxu0 0
    %1556 = vmatpush1.bf16.msra.mxu0 %v1539
    %1557 = vmatprep.subr.bf16.mxu0 0
    %1558 = vmatpush1.bf16.msra.mxu0 %v1538
    %1559 = vmatprep.subr.bf16.mxu0 0
    %1560 = vmatpush1.bf16.msra.mxu0 %v1537
    %1561 = vmatprep.subr.bf16.mxu0 0
    %1562 = vmatpush1.bf16.msra.mxu0 %v1536
    %1563 = vmatprep.subr.bf16.mxu0 0
    %1564 = vmatpush2.bf16.msra.mxu0 0
    %1565 = vmatprep.subr.bf16.mxu0 0
    %1566 = vmatpush2.bf16.msra.mxu0 0
    %1567 = vmatprep.subr.bf16.mxu0 0
    %1568 = vmatpush2.bf16.msra.mxu0 0
    %1569 = vmatprep.subr.bf16.mxu0 0
    %1570 = vmatpush2.bf16.msra.mxu0 0
    %1571 = vmatprep.subr.bf16.mxu0 0
    %1572 = vmatpush2.bf16.msra.mxu0 0
    %1573 = vmatprep.subr.bf16.mxu0 0
    %1574 = vmatpush2.bf16.msra.mxu0 0
    %1575 = vmatprep.subr.bf16.mxu0 0
    %1576 = vmatpush2.bf16.msra.mxu0 0
    %1577 = vmatprep.subr.bf16.mxu0 0
    %1578 = vmatpush2.bf16.msra.mxu0 0
    %1579 = vmatprep.mubr.bf16.mxu0 0
    %1580 = vmatmul.mubr.bf16.gmra.mxu0 %v1545
    %v1581 = vpop.f32.mrf.mxu0
    %v1582 = vadd.f32 0.0, %v1581
    %v1583 = vpop.f32.mrf.mxu0
    %v1584 = vpop.f32.mrf.mxu0
    %v1585 = vadd.f32 0.0, %v1584
    %v1586 = vpop.f32.mrf.mxu0
    %1587 = vdwg.mxu0
    %v1588 = vadd.f32 %v1509, %v1582
    %v1589 = vadd.f32 %v1510, %v1585
    %v1590 = vpack.c.bf16 %v973, %v970
    %v1591 = vld [vmem:[%s4 + $0xe0] sm:$0xf]
    %v1592 = vld [vmem:[%s4 + $0xe4] sm:$0xf]
    %v1593 = vld [vmem:[%s4 + $0xe8] sm:$0xf]
    %v1594 = vld [vmem:[%s4 + $0xec] sm:$0xf]
    %v1595 = vld [vmem:[%s4 + $0xf0] sm:$0xf]
    %v1596 = vld [vmem:[%s4 + $0xf4] sm:$0xf]
    %v1597 = vld [vmem:[%s4 + $0xf8] sm:$0xf]
    %v1598 = vld [vmem:[%s4 + $0xfc] sm:$0xf]
    %v1607 = vunpack.c.l.b16 %v1591
    %v1608 = vunpack.c.l.b16 %v1592
    %v1609 = vunpack.c.l.b16 %v1593
    %v1610 = vunpack.c.l.b16 %v1594
    %v1611 = vunpack.c.l.b16 %v1595
    %v1612 = vunpack.c.l.b16 %v1596
    %v1613 = vunpack.c.l.b16 %v1597
    %v1614 = vunpack.c.l.b16 %v1598
    %v1615 = vpack.c.b16 %v1608, %v1607
    %v1616 = vpack.c.b16 %v1610, %v1609
    %v1617 = vpack.c.b16 %v1612, %v1611
    %v1618 = vpack.c.b16 %v1614, %v1613
    %v1624 = vsel %vm1082, %v1590, 0
    %1626 = vmatprep.subr.bf16.mxu0 0
    %1627 = vmatpush1.bf16.msra.mxu0 0
    %1628 = vmatprep.subr.bf16.mxu0 0
    %1629 = vmatpush1.bf16.msra.mxu0 0
    %1630 = vmatprep.subr.bf16.mxu0 0
    %1631 = vmatpush1.bf16.msra.mxu0 0
    %1632 = vmatprep.subr.bf16.mxu0 0
    %1633 = vmatpush1.bf16.msra.mxu0 0
    %1634 = vmatprep.subr.bf16.mxu0 0
    %1635 = vmatpush1.bf16.msra.mxu0 %v1618
    %1636 = vmatprep.subr.bf16.mxu0 0
    %1637 = vmatpush1.bf16.msra.mxu0 %v1617
    %1638 = vmatprep.subr.bf16.mxu0 0
    %1639 = vmatpush1.bf16.msra.mxu0 %v1616
    %1640 = vmatprep.subr.bf16.mxu0 0
    %1641 = vmatpush1.bf16.msra.mxu0 %v1615
    %1642 = vmatprep.subr.bf16.mxu0 0
    %1643 = vmatpush2.bf16.msra.mxu0 0
    %1644 = vmatprep.subr.bf16.mxu0 0
    %1645 = vmatpush2.bf16.msra.mxu0 0
    %1646 = vmatprep.subr.bf16.mxu0 0
    %1647 = vmatpush2.bf16.msra.mxu0 0
    %1648 = vmatprep.subr.bf16.mxu0 0
    %1649 = vmatpush2.bf16.msra.mxu0 0
    %1650 = vmatprep.subr.bf16.mxu0 0
    %1651 = vmatpush2.bf16.msra.mxu0 0
    %1652 = vmatprep.subr.bf16.mxu0 0
    %1653 = vmatpush2.bf16.msra.mxu0 0
    %1654 = vmatprep.subr.bf16.mxu0 0
    %1655 = vmatpush2.bf16.msra.mxu0 0
    %1656 = vmatprep.subr.bf16.mxu0 0
    %1657 = vmatpush2.bf16.msra.mxu0 0
    %1658 = vmatprep.mubr.bf16.mxu0 0
    %1659 = vmatmul.mubr.bf16.gmra.mxu0 %v1624
    %v1660 = vpop.f32.mrf.mxu0
    %v1661 = vadd.f32 0.0, %v1660
    %v1662 = vpop.f32.mrf.mxu0
    %v1663 = vpop.f32.mrf.mxu0
    %v1664 = vadd.f32 0.0, %v1663
    %v1665 = vpop.f32.mrf.mxu0
    %1666 = vdwg.mxu0
    %v1667 = vadd.f32 %v1588, %v1661
    %v1668 = vadd.f32 %v1589, %v1664
    %v1669 = vpack.c.bf16 %v981, %v978
    %v1670 = vld [vmem:[%s4 + $0x100] sm:$0xf]
    %v1671 = vld [vmem:[%s4 + $0x104] sm:$0xf]
    %v1672 = vld [vmem:[%s4 + $0x108] sm:$0xf]
    %v1673 = vld [vmem:[%s4 + $0x10c] sm:$0xf]
    %v1674 = vld [vmem:[%s4 + $0x110] sm:$0xf]
    %v1675 = vld [vmem:[%s4 + $0x114] sm:$0xf]
    %v1676 = vld [vmem:[%s4 + $0x118] sm:$0xf]
    %v1677 = vld [vmem:[%s4 + $0x11c] sm:$0xf]
    %v1686 = vunpack.c.l.b16 %v1670
    %v1687 = vunpack.c.l.b16 %v1671
    %v1688 = vunpack.c.l.b16 %v1672
    %v1689 = vunpack.c.l.b16 %v1673
    %v1690 = vunpack.c.l.b16 %v1674
    %v1691 = vunpack.c.l.b16 %v1675
    %v1692 = vunpack.c.l.b16 %v1676
    %v1693 = vunpack.c.l.b16 %v1677
    %v1694 = vpack.c.b16 %v1687, %v1686
    %v1695 = vpack.c.b16 %v1689, %v1688
    %v1696 = vpack.c.b16 %v1691, %v1690
    %v1697 = vpack.c.b16 %v1693, %v1692
    %v1703 = vsel %vm1082, %v1669, 0
    %1705 = vmatprep.subr.bf16.mxu0 0
    %1706 = vmatpush1.bf16.msra.mxu0 0
    %1707 = vmatprep.subr.bf16.mxu0 0
    %1708 = vmatpush1.bf16.msra.mxu0 0
    %1709 = vmatprep.subr.bf16.mxu0 0
    %1710 = vmatpush1.bf16.msra.mxu0 0
    %1711 = vmatprep.subr.bf16.mxu0 0
    %1712 = vmatpush1.bf16.msra.mxu0 0
    %1713 = vmatprep.subr.bf16.mxu0 0
    %1714 = vmatpush1.bf16.msra.mxu0 %v1697
    %1715 = vmatprep.subr.bf16.mxu0 0
    %1716 = vmatpush1.bf16.msra.mxu0 %v1696
    %1717 = vmatprep.subr.bf16.mxu0 0
    %1718 = vmatpush1.bf16.msra.mxu0 %v1695
    %1719 = vmatprep.subr.bf16.mxu0 0
    %1720 = vmatpush1.bf16.msra.mxu0 %v1694
    %1721 = vmatprep.subr.bf16.mxu0 0
    %1722 = vmatpush2.bf16.msra.mxu0 0
    %1723 = vmatprep.subr.bf16.mxu0 0
    %1724 = vmatpush2.bf16.msra.mxu0 0
    %1725 = vmatprep.subr.bf16.mxu0 0
    %1726 = vmatpush2.bf16.msra.mxu0 0
    %1727 = vmatprep.subr.bf16.mxu0 0
    %1728 = vmatpush2.bf16.msra.mxu0 0
    %1729 = vmatprep.subr.bf16.mxu0 0
    %1730 = vmatpush2.bf16.msra.mxu0 0
    %1731 = vmatprep.subr.bf16.mxu0 0
    %1732 = vmatpush2.bf16.msra.mxu0 0
    %1733 = vmatprep.subr.bf16.mxu0 0
    %1734 = vmatpush2.bf16.msra.mxu0 0
    %1735 = vmatprep.subr.bf16.mxu0 0
    %1736 = vmatpush2.bf16.msra.mxu0 0
    %1737 = vmatprep.mubr.bf16.mxu0 0
    %1738 = vmatmul.mubr.bf16.gmra.mxu0 %v1703
    %v1739 = vpop.f32.mrf.mxu0
    %v1740 = vadd.f32 0.0, %v1739
    %v1741 = vpop.f32.mrf.mxu0
    %v1742 = vpop.f32.mrf.mxu0
    %v1743 = vadd.f32 0.0, %v1742
    %v1744 = vpop.f32.mrf.mxu0
    %1745 = vdwg.mxu0
    %v1746 = vadd.f32 %v1667, %v1740
    %v1747 = vadd.f32 %v1668, %v1743
    %v1748 = vpack.c.bf16 %v989, %v986
    %v1749 = vld [vmem:[%s4 + $0x120] sm:$0xf]
    %v1750 = vld [vmem:[%s4 + $0x124] sm:$0xf]
    %v1751 = vld [vmem:[%s4 + $0x128] sm:$0xf]
    %v1752 = vld [vmem:[%s4 + $0x12c] sm:$0xf]
    %v1753 = vld [vmem:[%s4 + $0x130] sm:$0xf]
    %v1754 = vld [vmem:[%s4 + $0x134] sm:$0xf]
    %v1755 = vld [vmem:[%s4 + $0x138] sm:$0xf]
    %v1756 = vld [vmem:[%s4 + $0x13c] sm:$0xf]
    %v1765 = vunpack.c.l.b16 %v1749
    %v1766 = vunpack.c.l.b16 %v1750
    %v1767 = vunpack.c.l.b16 %v1751
    %v1768 = vunpack.c.l.b16 %v1752
    %v1769 = vunpack.c.l.b16 %v1753
    %v1770 = vunpack.c.l.b16 %v1754
    %v1771 = vunpack.c.l.b16 %v1755
    %v1772 = vunpack.c.l.b16 %v1756
    %v1773 = vpack.c.b16 %v1766, %v1765
    %v1774 = vpack.c.b16 %v1768, %v1767
    %v1775 = vpack.c.b16 %v1770, %v1769
    %v1776 = vpack.c.b16 %v1772, %v1771
    %v1782 = vsel %vm1082, %v1748, 0
    %1784 = vmatprep.subr.bf16.mxu0 0
    %1785 = vmatpush1.bf16.msra.mxu0 0
    %1786 = vmatprep.subr.bf16.mxu0 0
    %1787 = vmatpush1.bf16.msra.mxu0 0
    %1788 = vmatprep.subr.bf16.mxu0 0
    %1789 = vmatpush1.bf16.msra.mxu0 0
    %1790 = vmatprep.subr.bf16.mxu0 0
    %1791 = vmatpush1.bf16.msra.mxu0 0
    %1792 = vmatprep.subr.bf16.mxu0 0
    %1793 = vmatpush1.bf16.msra.mxu0 %v1776
    %1794 = vmatprep.subr.bf16.mxu0 0
    %1795 = vmatpush1.bf16.msra.mxu0 %v1775
    %1796 = vmatprep.subr.bf16.mxu0 0
    %1797 = vmatpush1.bf16.msra.mxu0 %v1774
    %1798 = vmatprep.subr.bf16.mxu0 0
    %1799 = vmatpush1.bf16.msra.mxu0 %v1773
    %1800 = vmatprep.subr.bf16.mxu0 0
    %1801 = vmatpush2.bf16.msra.mxu0 0
    %1802 = vmatprep.subr.bf16.mxu0 0
    %1803 = vmatpush2.bf16.msra.mxu0 0
    %1804 = vmatprep.subr.bf16.mxu0 0
    %1805 = vmatpush2.bf16.msra.mxu0 0
    %1806 = vmatprep.subr.bf16.mxu0 0
    %1807 = vmatpush2.bf16.msra.mxu0 0
    %1808 = vmatprep.subr.bf16.mxu0 0
    %1809 = vmatpush2.bf16.msra.mxu0 0
    %1810 = vmatprep.subr.bf16.mxu0 0
    %1811 = vmatpush2.bf16.msra.mxu0 0
    %1812 = vmatprep.subr.bf16.mxu0 0
    %1813 = vmatpush2.bf16.msra.mxu0 0
    %1814 = vmatprep.subr.bf16.mxu0 0
    %1815 = vmatpush2.bf16.msra.mxu0 0
    %1816 = vmatprep.mubr.bf16.mxu0 0
    %1817 = vmatmul.mubr.bf16.gmra.mxu0 %v1782
    %v1818 = vpop.f32.mrf.mxu0
    %v1819 = vadd.f32 0.0, %v1818
    %v1820 = vpop.f32.mrf.mxu0
    %v1821 = vpop.f32.mrf.mxu0
    %v1822 = vadd.f32 0.0, %v1821
    %v1823 = vpop.f32.mrf.mxu0
    %1824 = vdwg.mxu0
    %v1825 = vadd.f32 %v1746, %v1819
    %v1826 = vadd.f32 %v1747, %v1822
    %v1827 = vpack.c.bf16 %v997, %v994
    %v1828 = vld [vmem:[%s4 + $0x140] sm:$0xf]
    %v1829 = vld [vmem:[%s4 + $0x144] sm:$0xf]
    %v1830 = vld [vmem:[%s4 + $0x148] sm:$0xf]
    %v1831 = vld [vmem:[%s4 + $0x14c] sm:$0xf]
    %v1832 = vld [vmem:[%s4 + $0x150] sm:$0xf]
    %v1833 = vld [vmem:[%s4 + $0x154] sm:$0xf]
    %v1834 = vld [vmem:[%s4 + $0x158] sm:$0xf]
    %v1835 = vld [vmem:[%s4 + $0x15c] sm:$0xf]
    %v1844 = vunpack.c.l.b16 %v1828
    %v1845 = vunpack.c.l.b16 %v1829
    %v1846 = vunpack.c.l.b16 %v1830
    %v1847 = vunpack.c.l.b16 %v1831
    %v1848 = vunpack.c.l.b16 %v1832
    %v1849 = vunpack.c.l.b16 %v1833
    %v1850 = vunpack.c.l.b16 %v1834
    %v1851 = vunpack.c.l.b16 %v1835
    %v1852 = vpack.c.b16 %v1845, %v1844
    %v1853 = vpack.c.b16 %v1847, %v1846
    %v1854 = vpack.c.b16 %v1849, %v1848
    %v1855 = vpack.c.b16 %v1851, %v1850
    %v1861 = vsel %vm1082, %v1827, 0
    %1863 = vmatprep.subr.bf16.mxu0 0
    %1864 = vmatpush1.bf16.msra.mxu0 0
    %1865 = vmatprep.subr.bf16.mxu0 0
    %1866 = vmatpush1.bf16.msra.mxu0 0
    %1867 = vmatprep.subr.bf16.mxu0 0
    %1868 = vmatpush1.bf16.msra.mxu0 0
    %1869 = vmatprep.subr.bf16.mxu0 0
    %1870 = vmatpush1.bf16.msra.mxu0 0
    %1871 = vmatprep.subr.bf16.mxu0 0
    %1872 = vmatpush1.bf16.msra.mxu0 %v1855
    %1873 = vmatprep.subr.bf16.mxu0 0
    %1874 = vmatpush1.bf16.msra.mxu0 %v1854
    %1875 = vmatprep.subr.bf16.mxu0 0
    %1876 = vmatpush1.bf16.msra.mxu0 %v1853
    %1877 = vmatprep.subr.bf16.mxu0 0
    %1878 = vmatpush1.bf16.msra.mxu0 %v1852
    %1879 = vmatprep.subr.bf16.mxu0 0
    %1880 = vmatpush2.bf16.msra.mxu0 0
    %1881 = vmatprep.subr.bf16.mxu0 0
    %1882 = vmatpush2.bf16.msra.mxu0 0
    %1883 = vmatprep.subr.bf16.mxu0 0
    %1884 = vmatpush2.bf16.msra.mxu0 0
    %1885 = vmatprep.subr.bf16.mxu0 0
    %1886 = vmatpush2.bf16.msra.mxu0 0
    %1887 = vmatprep.subr.bf16.mxu0 0
    %1888 = vmatpush2.bf16.msra.mxu0 0
    %1889 = vmatprep.subr.bf16.mxu0 0
    %1890 = vmatpush2.bf16.msra.mxu0 0
    %1891 = vmatprep.subr.bf16.mxu0 0
    %1892 = vmatpush2.bf16.msra.mxu0 0
    %1893 = vmatprep.subr.bf16.mxu0 0
    %1894 = vmatpush2.bf16.msra.mxu0 0
    %1895 = vmatprep.mubr.bf16.mxu0 0
    %1896 = vmatmul.mubr.bf16.gmra.mxu0 %v1861
    %v1897 = vpop.f32.mrf.mxu0
    %v1898 = vadd.f32 0.0, %v1897
    %v1899 = vpop.f32.mrf.mxu0
    %v1900 = vpop.f32.mrf.mxu0
    %v1901 = vadd.f32 0.0, %v1900
    %v1902 = vpop.f32.mrf.mxu0
    %1903 = vdwg.mxu0
    %v1904 = vadd.f32 %v1825, %v1898
    %v1905 = vadd.f32 %v1826, %v1901
    %v1906 = vpack.c.bf16 %v1005, %v1002
    %v1907 = vld [vmem:[%s4 + $0x160] sm:$0xf]
    %v1908 = vld [vmem:[%s4 + $0x164] sm:$0xf]
    %v1909 = vld [vmem:[%s4 + $0x168] sm:$0xf]
    %v1910 = vld [vmem:[%s4 + $0x16c] sm:$0xf]
    %v1911 = vld [vmem:[%s4 + $0x170] sm:$0xf]
    %v1912 = vld [vmem:[%s4 + $0x174] sm:$0xf]
    %v1913 = vld [vmem:[%s4 + $0x178] sm:$0xf]
    %v1914 = vld [vmem:[%s4 + $0x17c] sm:$0xf]
    %v1923 = vunpack.c.l.b16 %v1907
    %v1924 = vunpack.c.l.b16 %v1908
    %v1925 = vunpack.c.l.b16 %v1909
    %v1926 = vunpack.c.l.b16 %v1910
    %v1927 = vunpack.c.l.b16 %v1911
    %v1928 = vunpack.c.l.b16 %v1912
    %v1929 = vunpack.c.l.b16 %v1913
    %v1930 = vunpack.c.l.b16 %v1914
    %v1931 = vpack.c.b16 %v1924, %v1923
    %v1932 = vpack.c.b16 %v1926, %v1925
    %v1933 = vpack.c.b16 %v1928, %v1927
    %v1934 = vpack.c.b16 %v1930, %v1929
    %v1940 = vsel %vm1082, %v1906, 0
    %1942 = vmatprep.subr.bf16.mxu0 0
    %1943 = vmatpush1.bf16.msra.mxu0 0
    %1944 = vmatprep.subr.bf16.mxu0 0
    %1945 = vmatpush1.bf16.msra.mxu0 0
    %1946 = vmatprep.subr.bf16.mxu0 0
    %1947 = vmatpush1.bf16.msra.mxu0 0
    %1948 = vmatprep.subr.bf16.mxu0 0
    %1949 = vmatpush1.bf16.msra.mxu0 0
    %1950 = vmatprep.subr.bf16.mxu0 0
    %1951 = vmatpush1.bf16.msra.mxu0 %v1934
    %1952 = vmatprep.subr.bf16.mxu0 0
    %1953 = vmatpush1.bf16.msra.mxu0 %v1933
    %1954 = vmatprep.subr.bf16.mxu0 0
    %1955 = vmatpush1.bf16.msra.mxu0 %v1932
    %1956 = vmatprep.subr.bf16.mxu0 0
    %1957 = vmatpush1.bf16.msra.mxu0 %v1931
    %1958 = vmatprep.subr.bf16.mxu0 0
    %1959 = vmatpush2.bf16.msra.mxu0 0
    %1960 = vmatprep.subr.bf16.mxu0 0
    %1961 = vmatpush2.bf16.msra.mxu0 0
    %1962 = vmatprep.subr.bf16.mxu0 0
    %1963 = vmatpush2.bf16.msra.mxu0 0
    %1964 = vmatprep.subr.bf16.mxu0 0
    %1965 = vmatpush2.bf16.msra.mxu0 0
    %1966 = vmatprep.subr.bf16.mxu0 0
    %1967 = vmatpush2.bf16.msra.mxu0 0
    %1968 = vmatprep.subr.bf16.mxu0 0
    %1969 = vmatpush2.bf16.msra.mxu0 0
    %1970 = vmatprep.subr.bf16.mxu0 0
    %1971 = vmatpush2.bf16.msra.mxu0 0
    %1972 = vmatprep.subr.bf16.mxu0 0
    %1973 = vmatpush2.bf16.msra.mxu0 0
    %1974 = vmatprep.mubr.bf16.mxu0 0
    %1975 = vmatmul.mubr.bf16.gmra.mxu0 %v1940
    %v1976 = vpop.f32.mrf.mxu0
    %v1977 = vadd.f32 0.0, %v1976
    %v1978 = vpop.f32.mrf.mxu0
    %v1979 = vpop.f32.mrf.mxu0
    %v1980 = vadd.f32 0.0, %v1979
    %v1981 = vpop.f32.mrf.mxu0
    %1982 = vdwg.mxu0
    %v1983 = vadd.f32 %v1904, %v1977
    %v1984 = vadd.f32 %v1905, %v1980
    %v1985 = vpack.c.bf16 %v1013, %v1010
    %v1986 = vld [vmem:[%s4 + $0x180] sm:$0xf]
    %v1987 = vld [vmem:[%s4 + $0x184] sm:$0xf]
    %v1988 = vld [vmem:[%s4 + $0x188] sm:$0xf]
    %v1989 = vld [vmem:[%s4 + $0x18c] sm:$0xf]
    %v1990 = vld [vmem:[%s4 + $0x190] sm:$0xf]
    %v1991 = vld [vmem:[%s4 + $0x194] sm:$0xf]
    %v1992 = vld [vmem:[%s4 + $0x198] sm:$0xf]
    %v1993 = vld [vmem:[%s4 + $0x19c] sm:$0xf]
    %v2002 = vunpack.c.l.b16 %v1986
    %v2003 = vunpack.c.l.b16 %v1987
    %v2004 = vunpack.c.l.b16 %v1988
    %v2005 = vunpack.c.l.b16 %v1989
    %v2006 = vunpack.c.l.b16 %v1990
    %v2007 = vunpack.c.l.b16 %v1991
    %v2008 = vunpack.c.l.b16 %v1992
    %v2009 = vunpack.c.l.b16 %v1993
    %v2010 = vpack.c.b16 %v2003, %v2002
    %v2011 = vpack.c.b16 %v2005, %v2004
    %v2012 = vpack.c.b16 %v2007, %v2006
    %v2013 = vpack.c.b16 %v2009, %v2008
    %v2019 = vsel %vm1082, %v1985, 0
    %2021 = vmatprep.subr.bf16.mxu0 0
    %2022 = vmatpush1.bf16.msra.mxu0 0
    %2023 = vmatprep.subr.bf16.mxu0 0
    %2024 = vmatpush1.bf16.msra.mxu0 0
    %2025 = vmatprep.subr.bf16.mxu0 0
    %2026 = vmatpush1.bf16.msra.mxu0 0
    %2027 = vmatprep.subr.bf16.mxu0 0
    %2028 = vmatpush1.bf16.msra.mxu0 0
    %2029 = vmatprep.subr.bf16.mxu0 0
    %2030 = vmatpush1.bf16.msra.mxu0 %v2013
    %2031 = vmatprep.subr.bf16.mxu0 0
    %2032 = vmatpush1.bf16.msra.mxu0 %v2012
    %2033 = vmatprep.subr.bf16.mxu0 0
    %2034 = vmatpush1.bf16.msra.mxu0 %v2011
    %2035 = vmatprep.subr.bf16.mxu0 0
    %2036 = vmatpush1.bf16.msra.mxu0 %v2010
    %2037 = vmatprep.subr.bf16.mxu0 0
    %2038 = vmatpush2.bf16.msra.mxu0 0
    %2039 = vmatprep.subr.bf16.mxu0 0
    %2040 = vmatpush2.bf16.msra.mxu0 0
    %2041 = vmatprep.subr.bf16.mxu0 0
    %2042 = vmatpush2.bf16.msra.mxu0 0
    %2043 = vmatprep.subr.bf16.mxu0 0
    %2044 = vmatpush2.bf16.msra.mxu0 0
    %2045 = vmatprep.subr.bf16.mxu0 0
    %2046 = vmatpush2.bf16.msra.mxu0 0
    %2047 = vmatprep.subr.bf16.mxu0 0
    %2048 = vmatpush2.bf16.msra.mxu0 0
    %2049 = vmatprep.subr.bf16.mxu0 0
    %2050 = vmatpush2.bf16.msra.mxu0 0
    %2051 = vmatprep.subr.bf16.mxu0 0
    %2052 = vmatpush2.bf16.msra.mxu0 0
    %2053 = vmatprep.mubr.bf16.mxu0 0
    %2054 = vmatmul.mubr.bf16.gmra.mxu0 %v2019
    %v2055 = vpop.f32.mrf.mxu0
    %v2056 = vadd.f32 0.0, %v2055
    %v2057 = vpop.f32.mrf.mxu0
    %v2058 = vpop.f32.mrf.mxu0
    %v2059 = vadd.f32 0.0, %v2058
    %v2060 = vpop.f32.mrf.mxu0
    %2061 = vdwg.mxu0
    %v2062 = vadd.f32 %v1983, %v2056
    %v2063 = vadd.f32 %v1984, %v2059
    %v2064 = vpack.c.bf16 %v1021, %v1018
    %v2065 = vld [vmem:[%s4 + $0x1a0] sm:$0xf]
    %v2066 = vld [vmem:[%s4 + $0x1a4] sm:$0xf]
    %v2067 = vld [vmem:[%s4 + $0x1a8] sm:$0xf]
    %v2068 = vld [vmem:[%s4 + $0x1ac] sm:$0xf]
    %v2069 = vld [vmem:[%s4 + $0x1b0] sm:$0xf]
    %v2070 = vld [vmem:[%s4 + $0x1b4] sm:$0xf]
    %v2071 = vld [vmem:[%s4 + $0x1b8] sm:$0xf]
    %v2072 = vld [vmem:[%s4 + $0x1bc] sm:$0xf]
    %v2081 = vunpack.c.l.b16 %v2065
    %v2082 = vunpack.c.l.b16 %v2066
    %v2083 = vunpack.c.l.b16 %v2067
    %v2084 = vunpack.c.l.b16 %v2068
    %v2085 = vunpack.c.l.b16 %v2069
    %v2086 = vunpack.c.l.b16 %v2070
    %v2087 = vunpack.c.l.b16 %v2071
    %v2088 = vunpack.c.l.b16 %v2072
    %v2089 = vpack.c.b16 %v2082, %v2081
    %v2090 = vpack.c.b16 %v2084, %v2083
    %v2091 = vpack.c.b16 %v2086, %v2085
    %v2092 = vpack.c.b16 %v2088, %v2087
    %v2098 = vsel %vm1082, %v2064, 0
    %2100 = vmatprep.subr.bf16.mxu0 0
    %2101 = vmatpush1.bf16.msra.mxu0 0
    %2102 = vmatprep.subr.bf16.mxu0 0
    %2103 = vmatpush1.bf16.msra.mxu0 0
    %2104 = vmatprep.subr.bf16.mxu0 0
    %2105 = vmatpush1.bf16.msra.mxu0 0
    %2106 = vmatprep.subr.bf16.mxu0 0
    %2107 = vmatpush1.bf16.msra.mxu0 0
    %2108 = vmatprep.subr.bf16.mxu0 0
    %2109 = vmatpush1.bf16.msra.mxu0 %v2092
    %2110 = vmatprep.subr.bf16.mxu0 0
    %2111 = vmatpush1.bf16.msra.mxu0 %v2091
    %2112 = vmatprep.subr.bf16.mxu0 0
    %2113 = vmatpush1.bf16.msra.mxu0 %v2090
    %2114 = vmatprep.subr.bf16.mxu0 0
    %2115 = vmatpush1.bf16.msra.mxu0 %v2089
    %2116 = vmatprep.subr.bf16.mxu0 0
    %2117 = vmatpush2.bf16.msra.mxu0 0
    %2118 = vmatprep.subr.bf16.mxu0 0
    %2119 = vmatpush2.bf16.msra.mxu0 0
    %2120 = vmatprep.subr.bf16.mxu0 0
    %2121 = vmatpush2.bf16.msra.mxu0 0
    %2122 = vmatprep.subr.bf16.mxu0 0
    %2123 = vmatpush2.bf16.msra.mxu0 0
    %2124 = vmatprep.subr.bf16.mxu0 0
    %2125 = vmatpush2.bf16.msra.mxu0 0
    %2126 = vmatprep.subr.bf16.mxu0 0
    %2127 = vmatpush2.bf16.msra.mxu0 0
    %2128 = vmatprep.subr.bf16.mxu0 0
    %2129 = vmatpush2.bf16.msra.mxu0 0
    %2130 = vmatprep.subr.bf16.mxu0 0
    %2131 = vmatpush2.bf16.msra.mxu0 0
    %2132 = vmatprep.mubr.bf16.mxu0 0
    %2133 = vmatmul.mubr.bf16.gmra.mxu0 %v2098
    %v2134 = vpop.f32.mrf.mxu0
    %v2135 = vadd.f32 0.0, %v2134
    %v2136 = vpop.f32.mrf.mxu0
    %v2137 = vpop.f32.mrf.mxu0
    %v2138 = vadd.f32 0.0, %v2137
    %v2139 = vpop.f32.mrf.mxu0
    %2140 = vdwg.mxu0
    %v2141 = vadd.f32 %v2062, %v2135
    %v2142 = vadd.f32 %v2063, %v2138
    %v2143 = vpack.c.bf16 %v1029, %v1026
    %v2144 = vld [vmem:[%s4 + $0x1c0] sm:$0xf]
    %v2145 = vld [vmem:[%s4 + $0x1c4] sm:$0xf]
    %v2146 = vld [vmem:[%s4 + $0x1c8] sm:$0xf]
    %v2147 = vld [vmem:[%s4 + $0x1cc] sm:$0xf]
    %v2148 = vld [vmem:[%s4 + $0x1d0] sm:$0xf]
    %v2149 = vld [vmem:[%s4 + $0x1d4] sm:$0xf]
    %v2150 = vld [vmem:[%s4 + $0x1d8] sm:$0xf]
    %v2151 = vld [vmem:[%s4 + $0x1dc] sm:$0xf]
    %v2160 = vunpack.c.l.b16 %v2144
    %v2161 = vunpack.c.l.b16 %v2145
    %v2162 = vunpack.c.l.b16 %v2146
    %v2163 = vunpack.c.l.b16 %v2147
    %v2164 = vunpack.c.l.b16 %v2148
    %v2165 = vunpack.c.l.b16 %v2149
    %v2166 = vunpack.c.l.b16 %v2150
    %v2167 = vunpack.c.l.b16 %v2151
    %v2168 = vpack.c.b16 %v2161, %v2160
    %v2169 = vpack.c.b16 %v2163, %v2162
    %v2170 = vpack.c.b16 %v2165, %v2164
    %v2171 = vpack.c.b16 %v2167, %v2166
    %v2177 = vsel %vm1082, %v2143, 0
    %2179 = vmatprep.subr.bf16.mxu0 0
    %2180 = vmatpush1.bf16.msra.mxu0 0
    %2181 = vmatprep.subr.bf16.mxu0 0
    %2182 = vmatpush1.bf16.msra.mxu0 0
    %2183 = vmatprep.subr.bf16.mxu0 0
    %2184 = vmatpush1.bf16.msra.mxu0 0
    %2185 = vmatprep.subr.bf16.mxu0 0
    %2186 = vmatpush1.bf16.msra.mxu0 0
    %2187 = vmatprep.subr.bf16.mxu0 0
    %2188 = vmatpush1.bf16.msra.mxu0 %v2171
    %2189 = vmatprep.subr.bf16.mxu0 0
    %2190 = vmatpush1.bf16.msra.mxu0 %v2170
    %2191 = vmatprep.subr.bf16.mxu0 0
    %2192 = vmatpush1.bf16.msra.mxu0 %v2169
    %2193 = vmatprep.subr.bf16.mxu0 0
    %2194 = vmatpush1.bf16.msra.mxu0 %v2168
    %2195 = vmatprep.subr.bf16.mxu0 0
    %2196 = vmatpush2.bf16.msra.mxu0 0
    %2197 = vmatprep.subr.bf16.mxu0 0
    %2198 = vmatpush2.bf16.msra.mxu0 0
    %2199 = vmatprep.subr.bf16.mxu0 0
    %2200 = vmatpush2.bf16.msra.mxu0 0
    %2201 = vmatprep.subr.bf16.mxu0 0
    %2202 = vmatpush2.bf16.msra.mxu0 0
    %2203 = vmatprep.subr.bf16.mxu0 0
    %2204 = vmatpush2.bf16.msra.mxu0 0
    %2205 = vmatprep.subr.bf16.mxu0 0
    %2206 = vmatpush2.bf16.msra.mxu0 0
    %2207 = vmatprep.subr.bf16.mxu0 0
    %2208 = vmatpush2.bf16.msra.mxu0 0
    %2209 = vmatprep.subr.bf16.mxu0 0
    %2210 = vmatpush2.bf16.msra.mxu0 0
    %2211 = vmatprep.mubr.bf16.mxu0 0
    %2212 = vmatmul.mubr.bf16.gmra.mxu0 %v2177
    %v2213 = vpop.f32.mrf.mxu0
    %v2214 = vadd.f32 0.0, %v2213
    %v2215 = vpop.f32.mrf.mxu0
    %v2216 = vpop.f32.mrf.mxu0
    %v2217 = vadd.f32 0.0, %v2216
    %v2218 = vpop.f32.mrf.mxu0
    %2219 = vdwg.mxu0
    %v2220 = vadd.f32 %v2141, %v2214
    %v2221 = vadd.f32 %v2142, %v2217
    %v2222 = vpack.c.bf16 %v1037, %v1034
    %v2223 = vld [vmem:[%s4 + $0x1e0] sm:$0xf]
    %v2224 = vld [vmem:[%s4 + $0x1e4] sm:$0xf]
    %v2225 = vld [vmem:[%s4 + $0x1e8] sm:$0xf]
    %v2226 = vld [vmem:[%s4 + $0x1ec] sm:$0xf]
    %v2227 = vld [vmem:[%s4 + $0x1f0] sm:$0xf]
    %v2228 = vld [vmem:[%s4 + $0x1f4] sm:$0xf]
    %v2229 = vld [vmem:[%s4 + $0x1f8] sm:$0xf]
    %v2230 = vld [vmem:[%s4 + $0x1fc] sm:$0xf]
    %v2239 = vunpack.c.l.b16 %v2223
    %v2240 = vunpack.c.l.b16 %v2224
    %v2241 = vunpack.c.l.b16 %v2225
    %v2242 = vunpack.c.l.b16 %v2226
    %v2243 = vunpack.c.l.b16 %v2227
    %v2244 = vunpack.c.l.b16 %v2228
    %v2245 = vunpack.c.l.b16 %v2229
    %v2246 = vunpack.c.l.b16 %v2230
    %v2247 = vpack.c.b16 %v2240, %v2239
    %v2248 = vpack.c.b16 %v2242, %v2241
    %v2249 = vpack.c.b16 %v2244, %v2243
    %v2250 = vpack.c.b16 %v2246, %v2245
    %v2256 = vsel %vm1082, %v2222, 0
    %2258 = vmatprep.subr.bf16.mxu0 0
    %2259 = vmatpush1.bf16.msra.mxu0 0
    %2260 = vmatprep.subr.bf16.mxu0 0
    %2261 = vmatpush1.bf16.msra.mxu0 0
    %2262 = vmatprep.subr.bf16.mxu0 0
    %2263 = vmatpush1.bf16.msra.mxu0 0
    %2264 = vmatprep.subr.bf16.mxu0 0
    %2265 = vmatpush1.bf16.msra.mxu0 0
    %2266 = vmatprep.subr.bf16.mxu0 0
    %2267 = vmatpush1.bf16.msra.mxu0 %v2250
    %2268 = vmatprep.subr.bf16.mxu0 0
    %2269 = vmatpush1.bf16.msra.mxu0 %v2249
    %2270 = vmatprep.subr.bf16.mxu0 0
    %2271 = vmatpush1.bf16.msra.mxu0 %v2248
    %2272 = vmatprep.subr.bf16.mxu0 0
    %2273 = vmatpush1.bf16.msra.mxu0 %v2247
    %2274 = vmatprep.subr.bf16.mxu0 0
    %2275 = vmatpush2.bf16.msra.mxu0 0
    %2276 = vmatprep.subr.bf16.mxu0 0
    %2277 = vmatpush2.bf16.msra.mxu0 0
    %2278 = vmatprep.subr.bf16.mxu0 0
    %2279 = vmatpush2.bf16.msra.mxu0 0
    %2280 = vmatprep.subr.bf16.mxu0 0
    %2281 = vmatpush2.bf16.msra.mxu0 0
    %2282 = vmatprep.subr.bf16.mxu0 0
    %2283 = vmatpush2.bf16.msra.mxu0 0
    %2284 = vmatprep.subr.bf16.mxu0 0
    %2285 = vmatpush2.bf16.msra.mxu0 0
    %2286 = vmatprep.subr.bf16.mxu0 0
    %2287 = vmatpush2.bf16.msra.mxu0 0
    %2288 = vmatprep.subr.bf16.mxu0 0
    %2289 = vmatpush2.bf16.msra.mxu0 0
    %2290 = vmatprep.mubr.bf16.mxu0 0
    %2291 = vmatmul.mubr.bf16.gmra.mxu0 %v2256
    %v2292 = vpop.f32.mrf.mxu0
    %v2293 = vadd.f32 0.0, %v2292
    %v2294 = vpop.f32.mrf.mxu0
    %v2295 = vpop.f32.mrf.mxu0
    %v2296 = vadd.f32 0.0, %v2295
    %v2297 = vpop.f32.mrf.mxu0
    %2298 = vdwg.mxu0
    %v2299 = vadd.f32 %v2220, %v2293
    %v2300 = vadd.f32 %v2221, %v2296
    %v2301 = vld [vmem:[%s510] sm:$0xf]
    %v2302 = vld [vmem:[%s510 + $0x4] sm:$0xf]
    %v2303 = vld [vmem:[%s510 + $0x8] sm:$0xf]
    %v2304 = vld [vmem:[%s510 + $0xc] sm:$0xf]
    %v2305 = vld [vmem:[%s510 + $0x10] sm:$0xf]
    %v2306 = vld [vmem:[%s510 + $0x14] sm:$0xf]
    %v2307 = vld [vmem:[%s510 + $0x18] sm:$0xf]
    %v2308 = vld [vmem:[%s510 + $0x1c] sm:$0xf]
    %v2309 = vld [vmem:[%s510 + $0x20] sm:$0xf]
    %v2310 = vld [vmem:[%s510 + $0x24] sm:$0xf]
    %v2311 = vld [vmem:[%s510 + $0x28] sm:$0xf]
    %v2312 = vld [vmem:[%s510 + $0x2c] sm:$0xf]
    %v2313 = vld [vmem:[%s510 + $0x30] sm:$0x3]
    %v2327 = vunpack.c.l.b16 %v2301
    %v2328 = vunpack.c.l.b16 %v2302
    %v2329 = vunpack.c.l.b16 %v2303
    %v2330 = vunpack.c.l.b16 %v2304
    %v2331 = vunpack.c.l.b16 %v2305
    %v2332 = vunpack.c.l.b16 %v2306
    %v2333 = vunpack.c.l.b16 %v2307
    %v2334 = vunpack.c.l.b16 %v2308
    %v2335 = vunpack.c.l.b16 %v2309
    %v2336 = vunpack.c.l.b16 %v2310
    %v2337 = vunpack.c.l.b16 %v2311
    %v2338 = vunpack.c.l.b16 %v2312
    %v2339 = vunpack.c.l.b16 %v2313
    %v2340 = vpack.c.b16 %v2328, %v2327
    %v2341 = vpack.c.b16 %v2330, %v2329
    %v2342 = vpack.c.b16 %v2332, %v2331
    %v2343 = vpack.c.b16 %v2334, %v2333
    %v2344 = vpack.c.b16 %v2336, %v2335
    %v2345 = vpack.c.b16 %v2338, %v2337
    %v2346 = vpack.c.b16 %v2339, %v2339
    %v2354 = vsel %vm875, %v2346, 0
    %2356 = vmatprep.subr.bf16.mxu0 0
    %2357 = vmatpush1.bf16.msra.mxu0 0
    %2358 = vmatprep.subr.bf16.mxu0 0
    %2359 = vmatpush1.bf16.msra.mxu0 %v2354
    %2360 = vmatprep.subr.bf16.mxu0 0
    %2361 = vmatpush1.bf16.msra.mxu0 %v2345
    %2362 = vmatprep.subr.bf16.mxu0 0
    %2363 = vmatpush1.bf16.msra.mxu0 %v2344
    %2364 = vmatprep.subr.bf16.mxu0 0
    %2365 = vmatpush1.bf16.msra.mxu0 %v2343
    %2366 = vmatprep.subr.bf16.mxu0 0
    %2367 = vmatpush1.bf16.msra.mxu0 %v2342
    %2368 = vmatprep.subr.bf16.mxu0 0
    %2369 = vmatpush1.bf16.msra.mxu0 %v2341
    %2370 = vmatprep.subr.bf16.mxu0 0
    %2371 = vmatpush1.bf16.msra.mxu0 %v2340
    %2372 = vmatprep.subr.bf16.mxu0 0
    %2373 = vmatpush2.bf16.msra.mxu0 0
    %2374 = vmatprep.subr.bf16.mxu0 0
    %2375 = vmatpush2.bf16.msra.mxu0 0
    %2376 = vmatprep.subr.bf16.mxu0 0
    %2377 = vmatpush2.bf16.msra.mxu0 0
    %2378 = vmatprep.subr.bf16.mxu0 0
    %2379 = vmatpush2.bf16.msra.mxu0 0
    %2380 = vmatprep.subr.bf16.mxu0 0
    %2381 = vmatpush2.bf16.msra.mxu0 0
    %2382 = vmatprep.subr.bf16.mxu0 0
    %2383 = vmatpush2.bf16.msra.mxu0 0
    %2384 = vmatprep.subr.bf16.mxu0 0
    %2385 = vmatpush2.bf16.msra.mxu0 0
    %2386 = vmatprep.subr.bf16.mxu0 0
    %2387 = vmatpush2.bf16.msra.mxu0 0
    %2388 = vmatprep.mubr.bf16.mxu0 0
    %2389 = vmatmul.mubr.bf16.gmra.mxu0 %v828
    %v2390 = vpop.f32.mrf.mxu0
    %v2391 = vadd.f32 0.0, %v2390
    %v2392 = vpop.f32.mrf.mxu0
    %v2393 = vpop.f32.mrf.mxu0
    %v2394 = vadd.f32 0.0, %v2393
    %v2395 = vpop.f32.mrf.mxu0
    %2396 = vmatprep.mubr.bf16.mxu0 0
    %2397 = vmatmul.mubr.bf16.gmra.mxu0 %v831
    %v2398 = vpop.f32.mrf.mxu0
    %v2399 = vadd.f32 0.0, %v2398
    %v2400 = vpop.f32.mrf.mxu0
    %v2401 = vpop.f32.mrf.mxu0
    %v2402 = vadd.f32 0.0, %v2401
    %v2403 = vpop.f32.mrf.mxu0
    %2404 = vmatprep.mubr.bf16.mxu0 0
    %2405 = vmatmul.mubr.bf16.gmra.mxu0 %v834
    %v2406 = vpop.f32.mrf.mxu0
    %v2407 = vadd.f32 0.0, %v2406
    %v2408 = vpop.f32.mrf.mxu0
    %v2409 = vpop.f32.mrf.mxu0
    %v2410 = vadd.f32 0.0, %v2409
    %v2411 = vpop.f32.mrf.mxu0
    %2412 = vmatprep.mubr.bf16.mxu0 0
    %2413 = vmatmul.mubr.bf16.gmra.mxu0 %v837
    %v2414 = vpop.f32.mrf.mxu0
    %v2415 = vadd.f32 0.0, %v2414
    %v2416 = vpop.f32.mrf.mxu0
    %v2417 = vpop.f32.mrf.mxu0
    %v2418 = vadd.f32 0.0, %v2417
    %v2419 = vpop.f32.mrf.mxu0
    %2420 = vmatprep.mubr.bf16.mxu0 0
    %2421 = vmatmul.mubr.bf16.gmra.mxu0 %v840
    %v2422 = vpop.f32.mrf.mxu0
    %v2423 = vadd.f32 0.0, %v2422
    %v2424 = vpop.f32.mrf.mxu0
    %v2425 = vpop.f32.mrf.mxu0
    %v2426 = vadd.f32 0.0, %v2425
    %v2427 = vpop.f32.mrf.mxu0
    %2428 = vmatprep.mubr.bf16.mxu0 0
    %2429 = vmatmul.mubr.bf16.gmra.mxu0 %v843
    %v2430 = vpop.f32.mrf.mxu0
    %v2431 = vadd.f32 0.0, %v2430
    %v2432 = vpop.f32.mrf.mxu0
    %v2433 = vpop.f32.mrf.mxu0
    %v2434 = vadd.f32 0.0, %v2433
    %v2435 = vpop.f32.mrf.mxu0
    %2436 = vmatprep.mubr.bf16.mxu0 0
    %2437 = vmatmul.mubr.bf16.gmra.mxu0 %v846
    %v2438 = vpop.f32.mrf.mxu0
    %v2439 = vadd.f32 0.0, %v2438
    %v2440 = vpop.f32.mrf.mxu0
    %v2441 = vpop.f32.mrf.mxu0
    %v2442 = vadd.f32 0.0, %v2441
    %v2443 = vpop.f32.mrf.mxu0
    %2444 = vmatprep.mubr.bf16.mxu0 0
    %2445 = vmatmul.mubr.bf16.gmra.mxu0 %v849
    %v2446 = vpop.f32.mrf.mxu0
    %v2447 = vadd.f32 0.0, %v2446
    %v2448 = vpop.f32.mrf.mxu0
    %v2449 = vpop.f32.mrf.mxu0
    %v2450 = vadd.f32 0.0, %v2449
    %v2451 = vpop.f32.mrf.mxu0
    %2452 = vmatprep.mubr.bf16.mxu0 0
    %2453 = vmatmul.mubr.bf16.gmra.mxu0 %v852
    %v2454 = vpop.f32.mrf.mxu0
    %v2455 = vadd.f32 0.0, %v2454
    %v2456 = vpop.f32.mrf.mxu0
    %v2457 = vpop.f32.mrf.mxu0
    %v2458 = vadd.f32 0.0, %v2457
    %v2459 = vpop.f32.mrf.mxu0
    %2460 = vmatprep.mubr.bf16.mxu0 0
    %2461 = vmatmul.mubr.bf16.gmra.mxu0 %v855
    %v2462 = vpop.f32.mrf.mxu0
    %v2463 = vadd.f32 0.0, %v2462
    %v2464 = vpop.f32.mrf.mxu0
    %v2465 = vpop.f32.mrf.mxu0
    %v2466 = vadd.f32 0.0, %v2465
    %v2467 = vpop.f32.mrf.mxu0
    %2468 = vmatprep.mubr.bf16.mxu0 0
    %2469 = vmatmul.mubr.bf16.gmra.mxu0 %v858
    %v2470 = vpop.f32.mrf.mxu0
    %v2471 = vadd.f32 0.0, %v2470
    %v2472 = vpop.f32.mrf.mxu0
    %v2473 = vpop.f32.mrf.mxu0
    %v2474 = vadd.f32 0.0, %v2473
    %v2475 = vpop.f32.mrf.mxu0
    %2476 = vmatprep.mubr.bf16.mxu0 0
    %2477 = vmatmul.mubr.bf16.gmra.mxu0 %v861
    %v2478 = vpop.f32.mrf.mxu0
    %v2479 = vadd.f32 0.0, %v2478
    %v2480 = vpop.f32.mrf.mxu0
    %v2481 = vpop.f32.mrf.mxu0
    %v2482 = vadd.f32 0.0, %v2481
    %v2483 = vpop.f32.mrf.mxu0
    %2484 = vmatprep.mubr.bf16.mxu0 0
    %2485 = vmatmul.mubr.bf16.gmra.mxu0 %v864
    %v2486 = vpop.f32.mrf.mxu0
    %v2487 = vadd.f32 0.0, %v2486
    %v2488 = vpop.f32.mrf.mxu0
    %v2489 = vpop.f32.mrf.mxu0
    %v2490 = vadd.f32 0.0, %v2489
    %v2491 = vpop.f32.mrf.mxu0
    %2492 = vmatprep.mubr.bf16.mxu0 0
    %2493 = vmatmul.mubr.bf16.gmra.mxu0 %v867
    %v2494 = vpop.f32.mrf.mxu0
    %v2495 = vadd.f32 0.0, %v2494
    %v2496 = vpop.f32.mrf.mxu0
    %v2497 = vpop.f32.mrf.mxu0
    %v2498 = vadd.f32 0.0, %v2497
    %v2499 = vpop.f32.mrf.mxu0
    %2500 = vmatprep.mubr.bf16.mxu0 0
    %2501 = vmatmul.mubr.bf16.gmra.mxu0 %v870
    %v2502 = vpop.f32.mrf.mxu0
    %v2503 = vadd.f32 0.0, %v2502
    %v2504 = vpop.f32.mrf.mxu0
    %v2505 = vpop.f32.mrf.mxu0
    %v2506 = vadd.f32 0.0, %v2505
    %v2507 = vpop.f32.mrf.mxu0
    %2508 = vmatprep.mubr.bf16.mxu0 0
    %2509 = vmatmul.mubr.bf16.gmra.mxu0 %v873
    %v2510 = vpop.f32.mrf.mxu0
    %v2511 = vadd.f32 0.0, %v2510
    %v2512 = vpop.f32.mrf.mxu0
    %v2513 = vpop.f32.mrf.mxu0
    %v2514 = vadd.f32 0.0, %v2513
    %v2515 = vpop.f32.mrf.mxu0
    %2516 = vdwg.mxu0
    %v2517 = vpack.c.bf16 %v2394, %v2391
    %v2518 = vpack.c.bf16 %v2402, %v2399
    %v2520 = vsel %vm1082, %v2518, 0
    %2522 = vmatprep.subr.bf16.mxu0 0
    %2523 = vmatpush1.bf16.msra.mxu0 0
    %2524 = vmatprep.subr.bf16.mxu0 0
    %2525 = vmatpush1.bf16.msra.mxu0 0
    %2526 = vmatprep.subr.bf16.mxu0 0
    %2527 = vmatpush1.bf16.msra.mxu0 0
    %2528 = vmatprep.subr.bf16.mxu0 0
    %2529 = vmatpush1.bf16.msra.mxu0 0
    %2530 = vmatprep.subr.bf16.mxu0 0
    %2531 = vmatpush1.bf16.msra.mxu0 %v1077
    %2532 = vmatprep.subr.bf16.mxu0 0
    %2533 = vmatpush1.bf16.msra.mxu0 %v1076
    %2534 = vmatprep.subr.bf16.mxu0 0
    %2535 = vmatpush1.bf16.msra.mxu0 %v1075
    %2536 = vmatprep.subr.bf16.mxu0 0
    %2537 = vmatpush1.bf16.msra.mxu0 %v1074
    %2538 = vmatprep.subr.bf16.mxu0 0
    %2539 = vmatpush2.bf16.msra.mxu0 0
    %2540 = vmatprep.subr.bf16.mxu0 0
    %2541 = vmatpush2.bf16.msra.mxu0 0
    %2542 = vmatprep.subr.bf16.mxu0 0
    %2543 = vmatpush2.bf16.msra.mxu0 0
    %2544 = vmatprep.subr.bf16.mxu0 0
    %2545 = vmatpush2.bf16.msra.mxu0 0
    %2546 = vmatprep.subr.bf16.mxu0 0
    %2547 = vmatpush2.bf16.msra.mxu0 0
    %2548 = vmatprep.subr.bf16.mxu0 0
    %2549 = vmatpush2.bf16.msra.mxu0 0
    %2550 = vmatprep.subr.bf16.mxu0 0
    %2551 = vmatpush2.bf16.msra.mxu0 0
    %2552 = vmatprep.subr.bf16.mxu0 0
    %2553 = vmatpush2.bf16.msra.mxu0 0
    %2554 = vmatprep.mubr.bf16.mxu0 0
    %2555 = vmatmul.mubr.bf16.gmra.mxu0 %v2520
    %v2556 = vpop.f32.mrf.mxu0
    %v2557 = vadd.f32 0.0, %v2556
    %v2558 = vpop.f32.mrf.mxu0
    %v2559 = vpop.f32.mrf.mxu0
    %v2560 = vadd.f32 0.0, %v2559
    %v2561 = vpop.f32.mrf.mxu0
    %2562 = vdwg.mxu0
    %v2564 = vsel %vm1082, %v2517, 0
    %2566 = vmatprep.subr.bf16.mxu0 0
    %2567 = vmatpush1.bf16.msra.mxu0 0
    %2568 = vmatprep.subr.bf16.mxu0 0
    %2569 = vmatpush1.bf16.msra.mxu0 0
    %2570 = vmatprep.subr.bf16.mxu0 0
    %2571 = vmatpush1.bf16.msra.mxu0 0
    %2572 = vmatprep.subr.bf16.mxu0 0
    %2573 = vmatpush1.bf16.msra.mxu0 0
    %2574 = vmatprep.subr.bf16.mxu0 0
    %2575 = vmatpush1.bf16.msra.mxu0 %v1146
    %2576 = vmatprep.subr.bf16.mxu0 0
    %2577 = vmatpush1.bf16.msra.mxu0 %v1145
    %2578 = vmatprep.subr.bf16.mxu0 0
    %2579 = vmatpush1.bf16.msra.mxu0 %v1144
    %2580 = vmatprep.subr.bf16.mxu0 0
    %2581 = vmatpush1.bf16.msra.mxu0 %v1143
    %2582 = vmatprep.subr.bf16.mxu0 0
    %2583 = vmatpush2.bf16.msra.mxu0 0
    %2584 = vmatprep.subr.bf16.mxu0 0
    %2585 = vmatpush2.bf16.msra.mxu0 0
    %2586 = vmatprep.subr.bf16.mxu0 0
    %2587 = vmatpush2.bf16.msra.mxu0 0
    %2588 = vmatprep.subr.bf16.mxu0 0
    %2589 = vmatpush2.bf16.msra.mxu0 0
    %2590 = vmatprep.subr.bf16.mxu0 0
    %2591 = vmatpush2.bf16.msra.mxu0 0
    %2592 = vmatprep.subr.bf16.mxu0 0
    %2593 = vmatpush2.bf16.msra.mxu0 0
    %2594 = vmatprep.subr.bf16.mxu0 0
    %2595 = vmatpush2.bf16.msra.mxu0 0
    %2596 = vmatprep.subr.bf16.mxu0 0
    %2597 = vmatpush2.bf16.msra.mxu0 0
    %2598 = vmatprep.mubr.bf16.mxu0 0
    %2599 = vmatmul.mubr.bf16.gmra.mxu0 %v2564
    %v2600 = vpop.f32.mrf.mxu0
    %v2601 = vadd.f32 %v2557, %v2600
    %v2602 = vpop.f32.mrf.mxu0
    %v2603 = vpop.f32.mrf.mxu0
    %v2604 = vadd.f32 %v2560, %v2603
    %v2605 = vpop.f32.mrf.mxu0
    %2606 = vdwg.mxu0
    %v2607 = vpack.c.bf16 %v2410, %v2407
    %v2609 = vsel %vm1082, %v2607, 0
    %2611 = vmatprep.subr.bf16.mxu0 0
    %2612 = vmatpush1.bf16.msra.mxu0 0
    %2613 = vmatprep.subr.bf16.mxu0 0
    %2614 = vmatpush1.bf16.msra.mxu0 0
    %2615 = vmatprep.subr.bf16.mxu0 0
    %2616 = vmatpush1.bf16.msra.mxu0 0
    %2617 = vmatprep.subr.bf16.mxu0 0
    %2618 = vmatpush1.bf16.msra.mxu0 0
    %2619 = vmatprep.subr.bf16.mxu0 0
    %2620 = vmatpush1.bf16.msra.mxu0 %v1223
    %2621 = vmatprep.subr.bf16.mxu0 0
    %2622 = vmatpush1.bf16.msra.mxu0 %v1222
    %2623 = vmatprep.subr.bf16.mxu0 0
    %2624 = vmatpush1.bf16.msra.mxu0 %v1221
    %2625 = vmatprep.subr.bf16.mxu0 0
    %2626 = vmatpush1.bf16.msra.mxu0 %v1220
    %2627 = vmatprep.subr.bf16.mxu0 0
    %2628 = vmatpush2.bf16.msra.mxu0 0
    %2629 = vmatprep.subr.bf16.mxu0 0
    %2630 = vmatpush2.bf16.msra.mxu0 0
    %2631 = vmatprep.subr.bf16.mxu0 0
    %2632 = vmatpush2.bf16.msra.mxu0 0
    %2633 = vmatprep.subr.bf16.mxu0 0
    %2634 = vmatpush2.bf16.msra.mxu0 0
    %2635 = vmatprep.subr.bf16.mxu0 0
    %2636 = vmatpush2.bf16.msra.mxu0 0
    %2637 = vmatprep.subr.bf16.mxu0 0
    %2638 = vmatpush2.bf16.msra.mxu0 0
    %2639 = vmatprep.subr.bf16.mxu0 0
    %2640 = vmatpush2.bf16.msra.mxu0 0
    %2641 = vmatprep.subr.bf16.mxu0 0
    %2642 = vmatpush2.bf16.msra.mxu0 0
    %2643 = vmatprep.mubr.bf16.mxu0 0
    %2644 = vmatmul.mubr.bf16.gmra.mxu0 %v2609
    %v2645 = vpop.f32.mrf.mxu0
    %v2646 = vadd.f32 0.0, %v2645
    %v2647 = vpop.f32.mrf.mxu0
    %v2648 = vpop.f32.mrf.mxu0
    %v2649 = vadd.f32 0.0, %v2648
    %v2650 = vpop.f32.mrf.mxu0
    %2651 = vdwg.mxu0
    %v2652 = vadd.f32 %v2601, %v2646
    %v2653 = vadd.f32 %v2604, %v2649
    %v2654 = vpack.c.bf16 %v2418, %v2415
    %v2656 = vsel %vm1082, %v2654, 0
    %2658 = vmatprep.subr.bf16.mxu0 0
    %2659 = vmatpush1.bf16.msra.mxu0 0
    %2660 = vmatprep.subr.bf16.mxu0 0
    %2661 = vmatpush1.bf16.msra.mxu0 0
    %2662 = vmatprep.subr.bf16.mxu0 0
    %2663 = vmatpush1.bf16.msra.mxu0 0
    %2664 = vmatprep.subr.bf16.mxu0 0
    %2665 = vmatpush1.bf16.msra.mxu0 0
    %2666 = vmatprep.subr.bf16.mxu0 0
    %2667 = vmatpush1.bf16.msra.mxu0 %v1302
    %2668 = vmatprep.subr.bf16.mxu0 0
    %2669 = vmatpush1.bf16.msra.mxu0 %v1301
    %2670 = vmatprep.subr.bf16.mxu0 0
    %2671 = vmatpush1.bf16.msra.mxu0 %v1300
    %2672 = vmatprep.subr.bf16.mxu0 0
    %2673 = vmatpush1.bf16.msra.mxu0 %v1299
    %2674 = vmatprep.subr.bf16.mxu0 0
    %2675 = vmatpush2.bf16.msra.mxu0 0
    %2676 = vmatprep.subr.bf16.mxu0 0
    %2677 = vmatpush2.bf16.msra.mxu0 0
    %2678 = vmatprep.subr.bf16.mxu0 0
    %2679 = vmatpush2.bf16.msra.mxu0 0
    %2680 = vmatprep.subr.bf16.mxu0 0
    %2681 = vmatpush2.bf16.msra.mxu0 0
    %2682 = vmatprep.subr.bf16.mxu0 0
    %2683 = vmatpush2.bf16.msra.mxu0 0
    %2684 = vmatprep.subr.bf16.mxu0 0
    %2685 = vmatpush2.bf16.msra.mxu0 0
    %2686 = vmatprep.subr.bf16.mxu0 0
    %2687 = vmatpush2.bf16.msra.mxu0 0
    %2688 = vmatprep.subr.bf16.mxu0 0
    %2689 = vmatpush2.bf16.msra.mxu0 0
    %2690 = vmatprep.mubr.bf16.mxu0 0
    %2691 = vmatmul.mubr.bf16.gmra.mxu0 %v2656
    %v2692 = vpop.f32.mrf.mxu0
    %v2693 = vadd.f32 0.0, %v2692
    %v2694 = vpop.f32.mrf.mxu0
    %v2695 = vpop.f32.mrf.mxu0
    %v2696 = vadd.f32 0.0, %v2695
    %v2697 = vpop.f32.mrf.mxu0
    %2698 = vdwg.mxu0
    %v2699 = vadd.f32 %v2652, %v2693
    %v2700 = vadd.f32 %v2653, %v2696
    %v2701 = vpack.c.bf16 %v2426, %v2423
    %v2703 = vsel %vm1082, %v2701, 0
    %2705 = vmatprep.subr.bf16.mxu0 0
    %2706 = vmatpush1.bf16.msra.mxu0 0
    %2707 = vmatprep.subr.bf16.mxu0 0
    %2708 = vmatpush1.bf16.msra.mxu0 0
    %2709 = vmatprep.subr.bf16.mxu0 0
    %2710 = vmatpush1.bf16.msra.mxu0 0
    %2711 = vmatprep.subr.bf16.mxu0 0
    %2712 = vmatpush1.bf16.msra.mxu0 0
    %2713 = vmatprep.subr.bf16.mxu0 0
    %2714 = vmatpush1.bf16.msra.mxu0 %v1381
    %2715 = vmatprep.subr.bf16.mxu0 0
    %2716 = vmatpush1.bf16.msra.mxu0 %v1380
    %2717 = vmatprep.subr.bf16.mxu0 0
    %2718 = vmatpush1.bf16.msra.mxu0 %v1379
    %2719 = vmatprep.subr.bf16.mxu0 0
    %2720 = vmatpush1.bf16.msra.mxu0 %v1378
    %2721 = vmatprep.subr.bf16.mxu0 0
    %2722 = vmatpush2.bf16.msra.mxu0 0
    %2723 = vmatprep.subr.bf16.mxu0 0
    %2724 = vmatpush2.bf16.msra.mxu0 0
    %2725 = vmatprep.subr.bf16.mxu0 0
    %2726 = vmatpush2.bf16.msra.mxu0 0
    %2727 = vmatprep.subr.bf16.mxu0 0
    %2728 = vmatpush2.bf16.msra.mxu0 0
    %2729 = vmatprep.subr.bf16.mxu0 0
    %2730 = vmatpush2.bf16.msra.mxu0 0
    %2731 = vmatprep.subr.bf16.mxu0 0
    %2732 = vmatpush2.bf16.msra.mxu0 0
    %2733 = vmatprep.subr.bf16.mxu0 0
    %2734 = vmatpush2.bf16.msra.mxu0 0
    %2735 = vmatprep.subr.bf16.mxu0 0
    %2736 = vmatpush2.bf16.msra.mxu0 0
    %2737 = vmatprep.mubr.bf16.mxu0 0
    %2738 = vmatmul.mubr.bf16.gmra.mxu0 %v2703
    %v2739 = vpop.f32.mrf.mxu0
    %v2740 = vadd.f32 0.0, %v2739
    %v2741 = vpop.f32.mrf.mxu0
    %v2742 = vpop.f32.mrf.mxu0
    %v2743 = vadd.f32 0.0, %v2742
    %v2744 = vpop.f32.mrf.mxu0
    %2745 = vdwg.mxu0
    %v2746 = vadd.f32 %v2699, %v2740
    %v2747 = vadd.f32 %v2700, %v2743
    %v2748 = vpack.c.bf16 %v2434, %v2431
    %v2750 = vsel %vm1082, %v2748, 0
    %2752 = vmatprep.subr.bf16.mxu0 0
    %2753 = vmatpush1.bf16.msra.mxu0 0
    %2754 = vmatprep.subr.bf16.mxu0 0
    %2755 = vmatpush1.bf16.msra.mxu0 0
    %2756 = vmatprep.subr.bf16.mxu0 0
    %2757 = vmatpush1.bf16.msra.mxu0 0
    %2758 = vmatprep.subr.bf16.mxu0 0
    %2759 = vmatpush1.bf16.msra.mxu0 0
    %2760 = vmatprep.subr.bf16.mxu0 0
    %2761 = vmatpush1.bf16.msra.mxu0 %v1460
    %2762 = vmatprep.subr.bf16.mxu0 0
    %2763 = vmatpush1.bf16.msra.mxu0 %v1459
    %2764 = vmatprep.subr.bf16.mxu0 0
    %2765 = vmatpush1.bf16.msra.mxu0 %v1458
    %2766 = vmatprep.subr.bf16.mxu0 0
    %2767 = vmatpush1.bf16.msra.mxu0 %v1457
    %2768 = vmatprep.subr.bf16.mxu0 0
    %2769 = vmatpush2.bf16.msra.mxu0 0
    %2770 = vmatprep.subr.bf16.mxu0 0
    %2771 = vmatpush2.bf16.msra.mxu0 0
    %2772 = vmatprep.subr.bf16.mxu0 0
    %2773 = vmatpush2.bf16.msra.mxu0 0
    %2774 = vmatprep.subr.bf16.mxu0 0
    %2775 = vmatpush2.bf16.msra.mxu0 0
    %2776 = vmatprep.subr.bf16.mxu0 0
    %2777 = vmatpush2.bf16.msra.mxu0 0
    %2778 = vmatprep.subr.bf16.mxu0 0
    %2779 = vmatpush2.bf16.msra.mxu0 0
    %2780 = vmatprep.subr.bf16.mxu0 0
    %2781 = vmatpush2.bf16.msra.mxu0 0
    %2782 = vmatprep.subr.bf16.mxu0 0
    %2783 = vmatpush2.bf16.msra.mxu0 0
    %2784 = vmatprep.mubr.bf16.mxu0 0
    %2785 = vmatmul.mubr.bf16.gmra.mxu0 %v2750
    %v2786 = vpop.f32.mrf.mxu0
    %v2787 = vadd.f32 0.0, %v2786
    %v2788 = vpop.f32.mrf.mxu0
    %v2789 = vpop.f32.mrf.mxu0
    %v2790 = vadd.f32 0.0, %v2789
    %v2791 = vpop.f32.mrf.mxu0
    %2792 = vdwg.mxu0
    %v2793 = vadd.f32 %v2746, %v2787
    %v2794 = vadd.f32 %v2747, %v2790
    %v2795 = vpack.c.bf16 %v2442, %v2439
    %v2797 = vsel %vm1082, %v2795, 0
    %2799 = vmatprep.subr.bf16.mxu0 0
    %2800 = vmatpush1.bf16.msra.mxu0 0
    %2801 = vmatprep.subr.bf16.mxu0 0
    %2802 = vmatpush1.bf16.msra.mxu0 0
    %2803 = vmatprep.subr.bf16.mxu0 0
    %2804 = vmatpush1.bf16.msra.mxu0 0
    %2805 = vmatprep.subr.bf16.mxu0 0
    %2806 = vmatpush1.bf16.msra.mxu0 0
    %2807 = vmatprep.subr.bf16.mxu0 0
    %2808 = vmatpush1.bf16.msra.mxu0 %v1539
    %2809 = vmatprep.subr.bf16.mxu0 0
    %2810 = vmatpush1.bf16.msra.mxu0 %v1538
    %2811 = vmatprep.subr.bf16.mxu0 0
    %2812 = vmatpush1.bf16.msra.mxu0 %v1537
    %2813 = vmatprep.subr.bf16.mxu0 0
    %2814 = vmatpush1.bf16.msra.mxu0 %v1536
    %2815 = vmatprep.subr.bf16.mxu0 0
    %2816 = vmatpush2.bf16.msra.mxu0 0
    %2817 = vmatprep.subr.bf16.mxu0 0
    %2818 = vmatpush2.bf16.msra.mxu0 0
    %2819 = vmatprep.subr.bf16.mxu0 0
    %2820 = vmatpush2.bf16.msra.mxu0 0
    %2821 = vmatprep.subr.bf16.mxu0 0
    %2822 = vmatpush2.bf16.msra.mxu0 0
    %2823 = vmatprep.subr.bf16.mxu0 0
    %2824 = vmatpush2.bf16.msra.mxu0 0
    %2825 = vmatprep.subr.bf16.mxu0 0
    %2826 = vmatpush2.bf16.msra.mxu0 0
    %2827 = vmatprep.subr.bf16.mxu0 0
    %2828 = vmatpush2.bf16.msra.mxu0 0
    %2829 = vmatprep.subr.bf16.mxu0 0
    %2830 = vmatpush2.bf16.msra.mxu0 0
    %2831 = vmatprep.mubr.bf16.mxu0 0
    %2832 = vmatmul.mubr.bf16.gmra.mxu0 %v2797
    %v2833 = vpop.f32.mrf.mxu0
    %v2834 = vadd.f32 0.0, %v2833
    %v2835 = vpop.f32.mrf.mxu0
    %v2836 = vpop.f32.mrf.mxu0
    %v2837 = vadd.f32 0.0, %v2836
    %v2838 = vpop.f32.mrf.mxu0
    %2839 = vdwg.mxu0
    %v2840 = vadd.f32 %v2793, %v2834
    %v2841 = vadd.f32 %v2794, %v2837
    %v2842 = vpack.c.bf16 %v2450, %v2447
    %v2844 = vsel %vm1082, %v2842, 0
    %2846 = vmatprep.subr.bf16.mxu0 0
    %2847 = vmatpush1.bf16.msra.mxu0 0
    %2848 = vmatprep.subr.bf16.mxu0 0
    %2849 = vmatpush1.bf16.msra.mxu0 0
    %2850 = vmatprep.subr.bf16.mxu0 0
    %2851 = vmatpush1.bf16.msra.mxu0 0
    %2852 = vmatprep.subr.bf16.mxu0 0
    %2853 = vmatpush1.bf16.msra.mxu0 0
    %2854 = vmatprep.subr.bf16.mxu0 0
    %2855 = vmatpush1.bf16.msra.mxu0 %v1618
    %2856 = vmatprep.subr.bf16.mxu0 0
    %2857 = vmatpush1.bf16.msra.mxu0 %v1617
    %2858 = vmatprep.subr.bf16.mxu0 0
    %2859 = vmatpush1.bf16.msra.mxu0 %v1616
    %2860 = vmatprep.subr.bf16.mxu0 0
    %2861 = vmatpush1.bf16.msra.mxu0 %v1615
    %2862 = vmatprep.subr.bf16.mxu0 0
    %2863 = vmatpush2.bf16.msra.mxu0 0
    %2864 = vmatprep.subr.bf16.mxu0 0
    %2865 = vmatpush2.bf16.msra.mxu0 0
    %2866 = vmatprep.subr.bf16.mxu0 0
    %2867 = vmatpush2.bf16.msra.mxu0 0
    %2868 = vmatprep.subr.bf16.mxu0 0
    %2869 = vmatpush2.bf16.msra.mxu0 0
    %2870 = vmatprep.subr.bf16.mxu0 0
    %2871 = vmatpush2.bf16.msra.mxu0 0
    %2872 = vmatprep.subr.bf16.mxu0 0
    %2873 = vmatpush2.bf16.msra.mxu0 0
    %2874 = vmatprep.subr.bf16.mxu0 0
    %2875 = vmatpush2.bf16.msra.mxu0 0
    %2876 = vmatprep.subr.bf16.mxu0 0
    %2877 = vmatpush2.bf16.msra.mxu0 0
    %2878 = vmatprep.mubr.bf16.mxu0 0
    %2879 = vmatmul.mubr.bf16.gmra.mxu0 %v2844
    %v2880 = vpop.f32.mrf.mxu0
    %v2881 = vadd.f32 0.0, %v2880
    %v2882 = vpop.f32.mrf.mxu0
    %v2883 = vpop.f32.mrf.mxu0
    %v2884 = vadd.f32 0.0, %v2883
    %v2885 = vpop.f32.mrf.mxu0
    %2886 = vdwg.mxu0
    %v2887 = vadd.f32 %v2840, %v2881
    %v2888 = vadd.f32 %v2841, %v2884
    %v2889 = vpack.c.bf16 %v2458, %v2455
    %v2891 = vsel %vm1082, %v2889, 0
    %2893 = vmatprep.subr.bf16.mxu0 0
    %2894 = vmatpush1.bf16.msra.mxu0 0
    %2895 = vmatprep.subr.bf16.mxu0 0
    %2896 = vmatpush1.bf16.msra.mxu0 0
    %2897 = vmatprep.subr.bf16.mxu0 0
    %2898 = vmatpush1.bf16.msra.mxu0 0
    %2899 = vmatprep.subr.bf16.mxu0 0
    %2900 = vmatpush1.bf16.msra.mxu0 0
    %2901 = vmatprep.subr.bf16.mxu0 0
    %2902 = vmatpush1.bf16.msra.mxu0 %v1697
    %2903 = vmatprep.subr.bf16.mxu0 0
    %2904 = vmatpush1.bf16.msra.mxu0 %v1696
    %2905 = vmatprep.subr.bf16.mxu0 0
    %2906 = vmatpush1.bf16.msra.mxu0 %v1695
    %2907 = vmatprep.subr.bf16.mxu0 0
    %2908 = vmatpush1.bf16.msra.mxu0 %v1694
    %2909 = vmatprep.subr.bf16.mxu0 0
    %2910 = vmatpush2.bf16.msra.mxu0 0
    %2911 = vmatprep.subr.bf16.mxu0 0
    %2912 = vmatpush2.bf16.msra.mxu0 0
    %2913 = vmatprep.subr.bf16.mxu0 0
    %2914 = vmatpush2.bf16.msra.mxu0 0
    %2915 = vmatprep.subr.bf16.mxu0 0
    %2916 = vmatpush2.bf16.msra.mxu0 0
    %2917 = vmatprep.subr.bf16.mxu0 0
    %2918 = vmatpush2.bf16.msra.mxu0 0
    %2919 = vmatprep.subr.bf16.mxu0 0
    %2920 = vmatpush2.bf16.msra.mxu0 0
    %2921 = vmatprep.subr.bf16.mxu0 0
    %2922 = vmatpush2.bf16.msra.mxu0 0
    %2923 = vmatprep.subr.bf16.mxu0 0
    %2924 = vmatpush2.bf16.msra.mxu0 0
    %2925 = vmatprep.mubr.bf16.mxu0 0
    %2926 = vmatmul.mubr.bf16.gmra.mxu0 %v2891
    %v2927 = vpop.f32.mrf.mxu0
    %v2928 = vadd.f32 0.0, %v2927
    %v2929 = vpop.f32.mrf.mxu0
    %v2930 = vpop.f32.mrf.mxu0
    %v2931 = vadd.f32 0.0, %v2930
    %v2932 = vpop.f32.mrf.mxu0
    %2933 = vdwg.mxu0
    %v2934 = vadd.f32 %v2887, %v2928
    %v2935 = vadd.f32 %v2888, %v2931
    %v2936 = vpack.c.bf16 %v2466, %v2463
    %v2938 = vsel %vm1082, %v2936, 0
    %2940 = vmatprep.subr.bf16.mxu0 0
    %2941 = vmatpush1.bf16.msra.mxu0 0
    %2942 = vmatprep.subr.bf16.mxu0 0
    %2943 = vmatpush1.bf16.msra.mxu0 0
    %2944 = vmatprep.subr.bf16.mxu0 0
    %2945 = vmatpush1.bf16.msra.mxu0 0
    %2946 = vmatprep.subr.bf16.mxu0 0
    %2947 = vmatpush1.bf16.msra.mxu0 0
    %2948 = vmatprep.subr.bf16.mxu0 0
    %2949 = vmatpush1.bf16.msra.mxu0 %v1776
    %2950 = vmatprep.subr.bf16.mxu0 0
    %2951 = vmatpush1.bf16.msra.mxu0 %v1775
    %2952 = vmatprep.subr.bf16.mxu0 0
    %2953 = vmatpush1.bf16.msra.mxu0 %v1774
    %2954 = vmatprep.subr.bf16.mxu0 0
    %2955 = vmatpush1.bf16.msra.mxu0 %v1773
    %2956 = vmatprep.subr.bf16.mxu0 0
    %2957 = vmatpush2.bf16.msra.mxu0 0
    %2958 = vmatprep.subr.bf16.mxu0 0
    %2959 = vmatpush2.bf16.msra.mxu0 0
    %2960 = vmatprep.subr.bf16.mxu0 0
    %2961 = vmatpush2.bf16.msra.mxu0 0
    %2962 = vmatprep.subr.bf16.mxu0 0
    %2963 = vmatpush2.bf16.msra.mxu0 0
    %2964 = vmatprep.subr.bf16.mxu0 0
    %2965 = vmatpush2.bf16.msra.mxu0 0
    %2966 = vmatprep.subr.bf16.mxu0 0
    %2967 = vmatpush2.bf16.msra.mxu0 0
    %2968 = vmatprep.subr.bf16.mxu0 0
    %2969 = vmatpush2.bf16.msra.mxu0 0
    %2970 = vmatprep.subr.bf16.mxu0 0
    %2971 = vmatpush2.bf16.msra.mxu0 0
    %2972 = vmatprep.mubr.bf16.mxu0 0
    %2973 = vmatmul.mubr.bf16.gmra.mxu0 %v2938
    %v2974 = vpop.f32.mrf.mxu0
    %v2975 = vadd.f32 0.0, %v2974
    %v2976 = vpop.f32.mrf.mxu0
    %v2977 = vpop.f32.mrf.mxu0
    %v2978 = vadd.f32 0.0, %v2977
    %v2979 = vpop.f32.mrf.mxu0
    %2980 = vdwg.mxu0
    %v2981 = vadd.f32 %v2934, %v2975
    %v2982 = vadd.f32 %v2935, %v2978
    %v2983 = vpack.c.bf16 %v2474, %v2471
    %v2985 = vsel %vm1082, %v2983, 0
    %2987 = vmatprep.subr.bf16.mxu0 0
    %2988 = vmatpush1.bf16.msra.mxu0 0
    %2989 = vmatprep.subr.bf16.mxu0 0
    %2990 = vmatpush1.bf16.msra.mxu0 0
    %2991 = vmatprep.subr.bf16.mxu0 0
    %2992 = vmatpush1.bf16.msra.mxu0 0
    %2993 = vmatprep.subr.bf16.mxu0 0
    %2994 = vmatpush1.bf16.msra.mxu0 0
    %2995 = vmatprep.subr.bf16.mxu0 0
    %2996 = vmatpush1.bf16.msra.mxu0 %v1855
    %2997 = vmatprep.subr.bf16.mxu0 0
    %2998 = vmatpush1.bf16.msra.mxu0 %v1854
    %2999 = vmatprep.subr.bf16.mxu0 0
    %3000 = vmatpush1.bf16.msra.mxu0 %v1853
    %3001 = vmatprep.subr.bf16.mxu0 0
    %3002 = vmatpush1.bf16.msra.mxu0 %v1852
    %3003 = vmatprep.subr.bf16.mxu0 0
    %3004 = vmatpush2.bf16.msra.mxu0 0
    %3005 = vmatprep.subr.bf16.mxu0 0
    %3006 = vmatpush2.bf16.msra.mxu0 0
    %3007 = vmatprep.subr.bf16.mxu0 0
    %3008 = vmatpush2.bf16.msra.mxu0 0
    %3009 = vmatprep.subr.bf16.mxu0 0
    %3010 = vmatpush2.bf16.msra.mxu0 0
    %3011 = vmatprep.subr.bf16.mxu0 0
    %3012 = vmatpush2.bf16.msra.mxu0 0
    %3013 = vmatprep.subr.bf16.mxu0 0
    %3014 = vmatpush2.bf16.msra.mxu0 0
    %3015 = vmatprep.subr.bf16.mxu0 0
    %3016 = vmatpush2.bf16.msra.mxu0 0
    %3017 = vmatprep.subr.bf16.mxu0 0
    %3018 = vmatpush2.bf16.msra.mxu0 0
    %3019 = vmatprep.mubr.bf16.mxu0 0
    %3020 = vmatmul.mubr.bf16.gmra.mxu0 %v2985
    %v3021 = vpop.f32.mrf.mxu0
    %v3022 = vadd.f32 0.0, %v3021
    %v3023 = vpop.f32.mrf.mxu0
    %v3024 = vpop.f32.mrf.mxu0
    %v3025 = vadd.f32 0.0, %v3024
    %v3026 = vpop.f32.mrf.mxu0
    %3027 = vdwg.mxu0
    %v3028 = vadd.f32 %v2981, %v3022
    %v3029 = vadd.f32 %v2982, %v3025
    %v3030 = vpack.c.bf16 %v2482, %v2479
    %v3032 = vsel %vm1082, %v3030, 0
    %3034 = vmatprep.subr.bf16.mxu0 0
    %3035 = vmatpush1.bf16.msra.mxu0 0
    %3036 = vmatprep.subr.bf16.mxu0 0
    %3037 = vmatpush1.bf16.msra.mxu0 0
    %3038 = vmatprep.subr.bf16.mxu0 0
    %3039 = vmatpush1.bf16.msra.mxu0 0
    %3040 = vmatprep.subr.bf16.mxu0 0
    %3041 = vmatpush1.bf16.msra.mxu0 0
    %3042 = vmatprep.subr.bf16.mxu0 0
    %3043 = vmatpush1.bf16.msra.mxu0 %v1934
    %3044 = vmatprep.subr.bf16.mxu0 0
    %3045 = vmatpush1.bf16.msra.mxu0 %v1933
    %3046 = vmatprep.subr.bf16.mxu0 0
    %3047 = vmatpush1.bf16.msra.mxu0 %v1932
    %3048 = vmatprep.subr.bf16.mxu0 0
    %3049 = vmatpush1.bf16.msra.mxu0 %v1931
    %3050 = vmatprep.subr.bf16.mxu0 0
    %3051 = vmatpush2.bf16.msra.mxu0 0
    %3052 = vmatprep.subr.bf16.mxu0 0
    %3053 = vmatpush2.bf16.msra.mxu0 0
    %3054 = vmatprep.subr.bf16.mxu0 0
    %3055 = vmatpush2.bf16.msra.mxu0 0
    %3056 = vmatprep.subr.bf16.mxu0 0
    %3057 = vmatpush2.bf16.msra.mxu0 0
    %3058 = vmatprep.subr.bf16.mxu0 0
    %3059 = vmatpush2.bf16.msra.mxu0 0
    %3060 = vmatprep.subr.bf16.mxu0 0
    %3061 = vmatpush2.bf16.msra.mxu0 0
    %3062 = vmatprep.subr.bf16.mxu0 0
    %3063 = vmatpush2.bf16.msra.mxu0 0
    %3064 = vmatprep.subr.bf16.mxu0 0
    %3065 = vmatpush2.bf16.msra.mxu0 0
    %3066 = vmatprep.mubr.bf16.mxu0 0
    %3067 = vmatmul.mubr.bf16.gmra.mxu0 %v3032
    %v3068 = vpop.f32.mrf.mxu0
    %v3069 = vadd.f32 0.0, %v3068
    %v3070 = vpop.f32.mrf.mxu0
    %v3071 = vpop.f32.mrf.mxu0
    %v3072 = vadd.f32 0.0, %v3071
    %v3073 = vpop.f32.mrf.mxu0
    %3074 = vdwg.mxu0
    %v3075 = vadd.f32 %v3028, %v3069
    %v3076 = vadd.f32 %v3029, %v3072
    %v3077 = vpack.c.bf16 %v2490, %v2487
    %v3079 = vsel %vm1082, %v3077, 0
    %3081 = vmatprep.subr.bf16.mxu0 0
    %3082 = vmatpush1.bf16.msra.mxu0 0
    %3083 = vmatprep.subr.bf16.mxu0 0
    %3084 = vmatpush1.bf16.msra.mxu0 0
    %3085 = vmatprep.subr.bf16.mxu0 0
    %3086 = vmatpush1.bf16.msra.mxu0 0
    %3087 = vmatprep.subr.bf16.mxu0 0
    %3088 = vmatpush1.bf16.msra.mxu0 0
    %3089 = vmatprep.subr.bf16.mxu0 0
    %3090 = vmatpush1.bf16.msra.mxu0 %v2013
    %3091 = vmatprep.subr.bf16.mxu0 0
    %3092 = vmatpush1.bf16.msra.mxu0 %v2012
    %3093 = vmatprep.subr.bf16.mxu0 0
    %3094 = vmatpush1.bf16.msra.mxu0 %v2011
    %3095 = vmatprep.subr.bf16.mxu0 0
    %3096 = vmatpush1.bf16.msra.mxu0 %v2010
    %3097 = vmatprep.subr.bf16.mxu0 0
    %3098 = vmatpush2.bf16.msra.mxu0 0
    %3099 = vmatprep.subr.bf16.mxu0 0
    %3100 = vmatpush2.bf16.msra.mxu0 0
    %3101 = vmatprep.subr.bf16.mxu0 0
    %3102 = vmatpush2.bf16.msra.mxu0 0
    %3103 = vmatprep.subr.bf16.mxu0 0
    %3104 = vmatpush2.bf16.msra.mxu0 0
    %3105 = vmatprep.subr.bf16.mxu0 0
    %3106 = vmatpush2.bf16.msra.mxu0 0
    %3107 = vmatprep.subr.bf16.mxu0 0
    %3108 = vmatpush2.bf16.msra.mxu0 0
    %3109 = vmatprep.subr.bf16.mxu0 0
    %3110 = vmatpush2.bf16.msra.mxu0 0
    %3111 = vmatprep.subr.bf16.mxu0 0
    %3112 = vmatpush2.bf16.msra.mxu0 0
    %3113 = vmatprep.mubr.bf16.mxu0 0
    %3114 = vmatmul.mubr.bf16.gmra.mxu0 %v3079
    %v3115 = vpop.f32.mrf.mxu0
    %v3116 = vadd.f32 0.0, %v3115
    %v3117 = vpop.f32.mrf.mxu0
    %v3118 = vpop.f32.mrf.mxu0
    %v3119 = vadd.f32 0.0, %v3118
    %v3120 = vpop.f32.mrf.mxu0
    %3121 = vdwg.mxu0
    %v3122 = vadd.f32 %v3075, %v3116
    %v3123 = vadd.f32 %v3076, %v3119
    %v3124 = vpack.c.bf16 %v2498, %v2495
    %v3126 = vsel %vm1082, %v3124, 0
    %3128 = vmatprep.subr.bf16.mxu0 0
    %3129 = vmatpush1.bf16.msra.mxu0 0
    %3130 = vmatprep.subr.bf16.mxu0 0
    %3131 = vmatpush1.bf16.msra.mxu0 0
    %3132 = vmatprep.subr.bf16.mxu0 0
    %3133 = vmatpush1.bf16.msra.mxu0 0
    %3134 = vmatprep.subr.bf16.mxu0 0
    %3135 = vmatpush1.bf16.msra.mxu0 0
    %3136 = vmatprep.subr.bf16.mxu0 0
    %3137 = vmatpush1.bf16.msra.mxu0 %v2092
    %3138 = vmatprep.subr.bf16.mxu0 0
    %3139 = vmatpush1.bf16.msra.mxu0 %v2091
    %3140 = vmatprep.subr.bf16.mxu0 0
    %3141 = vmatpush1.bf16.msra.mxu0 %v2090
    %3142 = vmatprep.subr.bf16.mxu0 0
    %3143 = vmatpush1.bf16.msra.mxu0 %v2089
    %3144 = vmatprep.subr.bf16.mxu0 0
    %3145 = vmatpush2.bf16.msra.mxu0 0
    %3146 = vmatprep.subr.bf16.mxu0 0
    %3147 = vmatpush2.bf16.msra.mxu0 0
    %3148 = vmatprep.subr.bf16.mxu0 0
    %3149 = vmatpush2.bf16.msra.mxu0 0
    %3150 = vmatprep.subr.bf16.mxu0 0
    %3151 = vmatpush2.bf16.msra.mxu0 0
    %3152 = vmatprep.subr.bf16.mxu0 0
    %3153 = vmatpush2.bf16.msra.mxu0 0
    %3154 = vmatprep.subr.bf16.mxu0 0
    %3155 = vmatpush2.bf16.msra.mxu0 0
    %3156 = vmatprep.subr.bf16.mxu0 0
    %3157 = vmatpush2.bf16.msra.mxu0 0
    %3158 = vmatprep.subr.bf16.mxu0 0
    %3159 = vmatpush2.bf16.msra.mxu0 0
    %3160 = vmatprep.mubr.bf16.mxu0 0
    %3161 = vmatmul.mubr.bf16.gmra.mxu0 %v3126
    %v3162 = vpop.f32.mrf.mxu0
    %v3163 = vadd.f32 0.0, %v3162
    %v3164 = vpop.f32.mrf.mxu0
    %v3165 = vpop.f32.mrf.mxu0
    %v3166 = vadd.f32 0.0, %v3165
    %v3167 = vpop.f32.mrf.mxu0
    %3168 = vdwg.mxu0
    %v3169 = vadd.f32 %v3122, %v3163
    %v3170 = vadd.f32 %v3123, %v3166
    %v3171 = vpack.c.bf16 %v2506, %v2503
    %v3173 = vsel %vm1082, %v3171, 0
    %3175 = vmatprep.subr.bf16.mxu0 0
    %3176 = vmatpush1.bf16.msra.mxu0 0
    %3177 = vmatprep.subr.bf16.mxu0 0
    %3178 = vmatpush1.bf16.msra.mxu0 0
    %3179 = vmatprep.subr.bf16.mxu0 0
    %3180 = vmatpush1.bf16.msra.mxu0 0
    %3181 = vmatprep.subr.bf16.mxu0 0
    %3182 = vmatpush1.bf16.msra.mxu0 0
    %3183 = vmatprep.subr.bf16.mxu0 0
    %3184 = vmatpush1.bf16.msra.mxu0 %v2171
    %3185 = vmatprep.subr.bf16.mxu0 0
    %3186 = vmatpush1.bf16.msra.mxu0 %v2170
    %3187 = vmatprep.subr.bf16.mxu0 0
    %3188 = vmatpush1.bf16.msra.mxu0 %v2169
    %3189 = vmatprep.subr.bf16.mxu0 0
    %3190 = vmatpush1.bf16.msra.mxu0 %v2168
    %3191 = vmatprep.subr.bf16.mxu0 0
    %3192 = vmatpush2.bf16.msra.mxu0 0
    %3193 = vmatprep.subr.bf16.mxu0 0
    %3194 = vmatpush2.bf16.msra.mxu0 0
    %3195 = vmatprep.subr.bf16.mxu0 0
    %3196 = vmatpush2.bf16.msra.mxu0 0
    %3197 = vmatprep.subr.bf16.mxu0 0
    %3198 = vmatpush2.bf16.msra.mxu0 0
    %3199 = vmatprep.subr.bf16.mxu0 0
    %3200 = vmatpush2.bf16.msra.mxu0 0
    %3201 = vmatprep.subr.bf16.mxu0 0
    %3202 = vmatpush2.bf16.msra.mxu0 0
    %3203 = vmatprep.subr.bf16.mxu0 0
    %3204 = vmatpush2.bf16.msra.mxu0 0
    %3205 = vmatprep.subr.bf16.mxu0 0
    %3206 = vmatpush2.bf16.msra.mxu0 0
    %3207 = vmatprep.mubr.bf16.mxu0 0
    %3208 = vmatmul.mubr.bf16.gmra.mxu0 %v3173
    %v3209 = vpop.f32.mrf.mxu0
    %v3210 = vadd.f32 0.0, %v3209
    %v3211 = vpop.f32.mrf.mxu0
    %v3212 = vpop.f32.mrf.mxu0
    %v3213 = vadd.f32 0.0, %v3212
    %v3214 = vpop.f32.mrf.mxu0
    %3215 = vdwg.mxu0
    %v3216 = vadd.f32 %v3169, %v3210
    %v3217 = vadd.f32 %v3170, %v3213
    %v3218 = vpack.c.bf16 %v2514, %v2511
    %v3220 = vsel %vm1082, %v3218, 0
    %3222 = vmatprep.subr.bf16.mxu0 0
    %3223 = vmatpush1.bf16.msra.mxu0 0
    %3224 = vmatprep.subr.bf16.mxu0 0
    %3225 = vmatpush1.bf16.msra.mxu0 0
    %3226 = vmatprep.subr.bf16.mxu0 0
    %3227 = vmatpush1.bf16.msra.mxu0 0
    %3228 = vmatprep.subr.bf16.mxu0 0
    %3229 = vmatpush1.bf16.msra.mxu0 0
    %3230 = vmatprep.subr.bf16.mxu0 0
    %3231 = vmatpush1.bf16.msra.mxu0 %v2250
    %3232 = vmatprep.subr.bf16.mxu0 0
    %3233 = vmatpush1.bf16.msra.mxu0 %v2249
    %3234 = vmatprep.subr.bf16.mxu0 0
    %3235 = vmatpush1.bf16.msra.mxu0 %v2248
    %3236 = vmatprep.subr.bf16.mxu0 0
    %3237 = vmatpush1.bf16.msra.mxu0 %v2247
    %3238 = vmatprep.subr.bf16.mxu0 0
    %3239 = vmatpush2.bf16.msra.mxu0 0
    %3240 = vmatprep.subr.bf16.mxu0 0
    %3241 = vmatpush2.bf16.msra.mxu0 0
    %3242 = vmatprep.subr.bf16.mxu0 0
    %3243 = vmatpush2.bf16.msra.mxu0 0
    %3244 = vmatprep.subr.bf16.mxu0 0
    %3245 = vmatpush2.bf16.msra.mxu0 0
    %3246 = vmatprep.subr.bf16.mxu0 0
    %3247 = vmatpush2.bf16.msra.mxu0 0
    %3248 = vmatprep.subr.bf16.mxu0 0
    %3249 = vmatpush2.bf16.msra.mxu0 0
    %3250 = vmatprep.subr.bf16.mxu0 0
    %3251 = vmatpush2.bf16.msra.mxu0 0
    %3252 = vmatprep.subr.bf16.mxu0 0
    %3253 = vmatpush2.bf16.msra.mxu0 0
    %3254 = vmatprep.mubr.bf16.mxu0 0
    %3255 = vmatmul.mubr.bf16.gmra.mxu0 %v3220
    %v3256 = vpop.f32.mrf.mxu0
    %v3257 = vadd.f32 0.0, %v3256
    %v3258 = vpop.f32.mrf.mxu0
    %v3259 = vpop.f32.mrf.mxu0
    %v3260 = vadd.f32 0.0, %v3259
    %v3261 = vpop.f32.mrf.mxu0
    %3262 = vdwg.mxu0
    %v3263 = vadd.f32 %v3216, %v3257
    %v3264 = vadd.f32 %v3217, %v3260
    %v3265 = vld [vmem:[%s5] sm:$0x1]
    %v3266 = vld [vmem:[%s6] sm:$0x1]
    %v3267 = vadd.f32 %v2299, %v2300
    %v3268 = vadd.f32 %v3267, %v3263
    %v3269 = vadd.f32 %v3268, %v3264
    %v3270 = vrot.slane %v3269, 4
    %v3271 = vadd.f32 %v3269, %v3270
    %v3272 = vrot.slane %v3271, 2
    %v3273 = vadd.f32 %v3271, %v3272
    %v3274 = vrot.slane %v3273, 1
    %v3275 = vadd.f32 %v3273, %v3274
    %v3276 = vrcp.pop 32.0
    %v3277 = vmul.f32 %v3275, %v3276
    %v3278 = vsub.f32 %v2299, %v3277
    %v3279 = vsub.f32 %v2300, %v3277
    %v3280 = vsub.f32 %v3263, %v3277
    %v3281 = vsub.f32 %v3264, %v3277
    %v3282 = vmul.f32 %v3278, %v3278
    %v3283 = vmul.f32 %v3279, %v3279
    %v3284 = vmul.f32 %v3280, %v3280
    %v3285 = vmul.f32 %v3281, %v3281
    %v3286 = vadd.f32 %v3282, %v3283
    %v3287 = vadd.f32 %v3286, %v3284
    %v3288 = vadd.f32 %v3287, %v3285
    %v3289 = vrot.slane %v3288, 4
    %v3290 = vadd.f32 %v3288, %v3289
    %v3291 = vrot.slane %v3290, 2
    %v3292 = vadd.f32 %v3290, %v3291
    %v3293 = vrot.slane %v3292, 1
    %v3294 = vadd.f32 %v3292, %v3293
    %v3295 = vmul.f32 %v3294, %v3276
    %v3296 = vadd.f32 %v3295, 1e-05
    %v3297 = vrsqrt.pop %v3296
    %v3298 = vmul.f32 %v3265, %v3297
    %v3300 = vlaneseq
    %v3301 = vshrl.u32 %v3300, 7
    %v3302 = vsub.s32 0, %v3301
    %v3303 = vrot.slane %v3298, %v3302
    %v3305 = vmul.f32 %v3278, %v3303
    %v3306 = vmul.f32 %v3279, %v3303
    %v3307 = vmul.f32 %v3280, %v3303
    %v3308 = vmul.f32 %v3281, %v3303
    %v3310 = vlaneseq
    %v3311 = vshrl.u32 %v3310, 7
    %v3312 = vsub.s32 0, %v3311
    %v3313 = vrot.slane %v3266, %v3312
    %v3315 = vadd.f32 %v3305, %v3313
    %v3316 = vadd.f32 %v3306, %v3313
    %v3317 = vadd.f32 %v3307, %v3313
    %v3318 = vadd.f32 %v3308, %v3313
    %v3319 = vmul.f32 %v3315, 0.1
    %v3320 = vmul.f32 %v3316, 0.1
    %v3321 = vmul.f32 %v3317, 0.1
    %v3322 = vmul.f32 %v3318, 0.1
    %v3323 = vmax.f32 %v3315, %v3319
    %v3324 = vmax.f32 %v3316, %v3320
    %v3325 = vmax.f32 %v3317, %v3321
    %v3326 = vmax.f32 %v3318, %v3322
    %3327 = vst [vmem:[#allocation3] sm:$0xf] 0
    %3328 = vst [vmem:[#allocation3 + $0x4] sm:$0xf] 0
    %3329 = vst [vmem:[#allocation3 + $0x8] sm:$0xf] 0
    %3330 = vst [vmem:[#allocation3 + $0xc] sm:$0xf] 0
    %3331 = vst [vmem:[#allocation3 + $0x10] sm:$0x3] 0
    %3332 = vst [vmem:[#allocation3 + $0x14] sm:$0xf] 0
    %3333 = vst [vmem:[#allocation3 + $0x18] sm:$0xf] 0
    %3334 = vst [vmem:[#allocation3 + $0x1c] sm:$0xf] 0
    %3335 = vst [vmem:[#allocation3 + $0x20] sm:$0xf] 0
    %3336 = vst [vmem:[#allocation3 + $0x24] sm:$0x3] 0
    %v3337 = vpack.c.bf16 %v3323, %v3323
    %v3339 = vunpack.c.l.b16 %v3337
    %v3340 = vpack.c.b16 %v3339, %v3339
    %v3342 = vshll.u32 %v3340, 16
    %v3344 = vrot.slane %v3342, 5
    %v3345 = vshrl.u32 %v3340, 16
    %v3347 = vrot.slane %v3345, 4
    %v3348 = vor.u32 %v3347, %v3344
    %v3349 = vrot.slane %v3348, 4
    %vm3352 = vcmask 1043459
    %vm3353 = vmand %vm3352, %vm376
    %v3354 = vld [vmem:[#allocation3] sm:$0x8]
    %v3355 = vsel %vm3353, %v3344, %v3354
    %3356 = vst [vmem:[#allocation3] sm:$0x8] %v3355
    %vm3357 = vcmask 1041408
    %vm3358 = vmand %vm3357, %vm328
    %v3359 = vld [vmem:[#allocation3 + $0x4] sm:$0x3]
    %v3360 = vsel %vm3358, %v3349, %v3359
    %3361 = vst [vmem:[#allocation3 + $0x4] sm:$0x3] %v3360
    %v3362 = vrot.slane %v3345, 7
    %v3363 = vor.u32 %v3362, %v3342
    %v3364 = vrot.slane %v3362, 4
    %vm3367 = vcmask 1043458
    %vm3368 = vmand %vm3367, %vm349
    %v3369 = vld [vmem:[#allocation3 + $0x4] sm:$0xc]
    %v3370 = vsel %vm3368, %v3363, %v3369
    %3371 = vst [vmem:[#allocation3 + $0x4] sm:$0xc] %v3370
    %vm3372 = vcmask 1040384
    %vm3373 = vmand %vm3372, %vm407
    %v3374 = vld [vmem:[#allocation3 + $0x8] sm:$0x1]
    %v3375 = vsel %vm3373, %v3364, %v3374
    %3376 = vst [vmem:[#allocation3 + $0x8] sm:$0x1] %v3375
    %v3377 = vpack.c.bf16 %v3324, %v3324
    %v3379 = vunpack.c.l.b16 %v3377
    %v3380 = vpack.c.b16 %v3379, %v3379
    %v3382 = vshrl.u32 %v3380, 16
    %v3384 = vrot.slane %v3382, 6
    %v3385 = vshll.u32 %v3380, 16
    %v3387 = vrot.slane %v3385, 7
    %v3388 = vor.u32 %v3384, %v3387
    %vm3390 = vcmask 1043457
    %vm3391 = vsmask.f32 3334
    %vm3392 = vmand %vm3390, %vm3391
    %v3393 = vld [vmem:[#allocation3 + $0x8] sm:$0xe]
    %v3394 = vsel %vm3392, %v3388, %v3393
    %3395 = vst [vmem:[#allocation3 + $0x8] sm:$0xe] %v3394
    %v3396 = vrot.slane %v3382, 5
    %v3397 = vrot.slane %v3385, 6
    %v3398 = vor.u32 %v3396, %v3397
    %v3399 = vrot.slane %v3398, 4
    %vm3401 = vcmask 1042432
    %vm3402 = vsmask.f32 2306
    %vm3403 = vmand %vm3401, %vm3402
    %v3404 = vld [vmem:[#allocation3 + $0xc] sm:$0x7]
    %v3405 = vsel %vm3403, %v3399, %v3404
    %3406 = vst [vmem:[#allocation3 + $0xc] sm:$0x7] %v3405
    %v3407 = vpack.c.bf16 %v3325, %v3325
    %v3409 = vunpack.c.l.b16 %v3407
    %v3410 = vpack.c.b16 %v3409, %v3409
    %v3412 = vshll.u32 %v3410, 16
    %v3414 = vrot.slane %v3412, 5
    %v3415 = vshrl.u32 %v3410, 16
    %v3417 = vrot.slane %v3415, 4
    %v3418 = vor.u32 %v3417, %v3414
    %v3419 = vrot.slane %v3418, 4
    %s3422 = scalar_lea.vmem [#allocation3], 20
    %v3423 = vld [vmem:[%s3422] sm:$0x8]
    %v3424 = vsel %vm3353, %v3414, %v3423
    %3425 = vst [vmem:[%s3422] sm:$0x8] %v3424
    %v3426 = vld [vmem:[%s3422 + $0x4] sm:$0x3]
    %v3427 = vsel %vm3358, %v3419, %v3426
    %3428 = vst [vmem:[%s3422 + $0x4] sm:$0x3] %v3427
    %v3429 = vrot.slane %v3415, 7
    %v3430 = vor.u32 %v3429, %v3412
    %v3431 = vrot.slane %v3429, 4
    %v3434 = vld [vmem:[%s3422 + $0x4] sm:$0xc]
    %v3435 = vsel %vm3368, %v3430, %v3434
    %3436 = vst [vmem:[%s3422 + $0x4] sm:$0xc] %v3435
    %v3437 = vld [vmem:[%s3422 + $0x8] sm:$0x1]
    %v3438 = vsel %vm3373, %v3431, %v3437
    %3439 = vst [vmem:[%s3422 + $0x8] sm:$0x1] %v3438
    %v3440 = vpack.c.bf16 %v3326, %v3326
    %v3442 = vunpack.c.l.b16 %v3440
    %v3443 = vpack.c.b16 %v3442, %v3442
    %v3445 = vshrl.u32 %v3443, 16
    %v3447 = vrot.slane %v3445, 6
    %v3448 = vshll.u32 %v3443, 16
    %v3450 = vrot.slane %v3448, 7
    %v3451 = vor.u32 %v3447, %v3450
    %v3453 = vld [vmem:[%s3422 + $0x8] sm:$0xe]
    %v3454 = vsel %vm3392, %v3451, %v3453
    %3455 = vst [vmem:[%s3422 + $0x8] sm:$0xe] %v3454
    %v3456 = vrot.slane %v3445, 5
    %v3457 = vrot.slane %v3448, 6
    %v3458 = vor.u32 %v3456, %v3457
    %v3459 = vrot.slane %v3458, 4
    %v3461 = vld [vmem:[%s3422 + $0xc] sm:$0x7]
    %v3462 = vsel %vm3403, %v3459, %v3461
    %3463 = vst [vmem:[%s3422 + $0xc] sm:$0x7] %v3462
    %v3464 = vld [vmem:[%s7] sm:$0xf]
    %v3465 = vld [vmem:[%s7 + $0x4] sm:$0xf]
    %v3466 = vld [vmem:[%s7 + $0x8] sm:$0xf]
    %v3467 = vld [vmem:[%s7 + $0xc] sm:$0xf]
    %v3468 = vld [vmem:[%s7 + $0x10] sm:$0xf]
    %v3469 = vld [vmem:[%s7 + $0x14] sm:$0xf]
    %v3470 = vld [vmem:[%s7 + $0x18] sm:$0xf]
    %v3471 = vld [vmem:[%s7 + $0x1c] sm:$0xf]
    %v3472 = vld [vmem:[#allocation3] sm:$0xf]
    %v3473 = vld [vmem:[#allocation3 + $0x4] sm:$0xf]
    %v3474 = vld [vmem:[#allocation3 + $0x8] sm:$0xf]
    %v3475 = vld [vmem:[#allocation3 + $0xc] sm:$0xf]
    %v3476 = vld [vmem:[#allocation3 + $0x10] sm:$0x3]
    %v3485 = vunpack.c.l.b16 %v3464
    %v3486 = vunpack.c.l.b16 %v3465
    %v3487 = vunpack.c.l.b16 %v3466
    %v3488 = vunpack.c.l.b16 %v3467
    %v3489 = vunpack.c.l.b16 %v3468
    %v3490 = vunpack.c.l.b16 %v3469
    %v3491 = vunpack.c.l.b16 %v3470
    %v3492 = vunpack.c.l.b16 %v3471
    %v3493 = vpack.c.b16 %v3486, %v3485
    %v3494 = vpack.c.b16 %v3488, %v3487
    %v3495 = vpack.c.b16 %v3490, %v3489
    %v3496 = vpack.c.b16 %v3492, %v3491
    %v3502 = vunpack.c.l.b16 %v3472
    %v3503 = vunpack.c.l.b16 %v3473
    %v3504 = vunpack.c.l.b16 %v3474
    %v3505 = vunpack.c.l.b16 %v3475
    %v3506 = vunpack.c.l.b16 %v3476
    %v3507 = vpack.c.b16 %v3503, %v3502
    %v3508 = vpack.c.b16 %v3505, %v3504
    %v3509 = vpack.c.b16 %v3506, %v3506
    %vm3512 = vcmask 293888
    %v3514 = vsel %vm3512, %v3493, 0
    %v3517 = vsel %vm3512, %v3494, 0
    %v3520 = vsel %vm3512, %v3495, 0
    %v3523 = vsel %vm3512, %v3496, 0
    %v3526 = vsel %vm875, %v3509, 0
    %3528 = vmatprep.subr.bf16.mxu0 0
    %3529 = vmatpush1.bf16.msra.mxu0 0
    %3530 = vmatprep.subr.bf16.mxu0 0
    %3531 = vmatpush1.bf16.msra.mxu0 0
    %3532 = vmatprep.subr.bf16.mxu0 0
    %3533 = vmatpush1.bf16.msra.mxu0 0
    %3534 = vmatprep.subr.bf16.mxu0 0
    %3535 = vmatpush1.bf16.msra.mxu0 0
    %3536 = vmatprep.subr.bf16.mxu0 0
    %3537 = vmatpush1.bf16.msra.mxu0 0
    %3538 = vmatprep.subr.bf16.mxu0 0
    %3539 = vmatpush1.bf16.msra.mxu0 %v3526
    %3540 = vmatprep.subr.bf16.mxu0 0
    %3541 = vmatpush1.bf16.msra.mxu0 %v3508
    %3542 = vmatprep.subr.bf16.mxu0 0
    %3543 = vmatpush1.bf16.msra.mxu0 %v3507
    %3544 = vmatprep.subr.bf16.mxu0 0
    %3545 = vmatpush2.bf16.msra.mxu0 0
    %3546 = vmatprep.subr.bf16.mxu0 0
    %3547 = vmatpush2.bf16.msra.mxu0 0
    %3548 = vmatprep.subr.bf16.mxu0 0
    %3549 = vmatpush2.bf16.msra.mxu0 0
    %3550 = vmatprep.subr.bf16.mxu0 0
    %3551 = vmatpush2.bf16.msra.mxu0 0
    %3552 = vmatprep.subr.bf16.mxu0 0
    %3553 = vmatpush2.bf16.msra.mxu0 0
    %3554 = vmatprep.subr.bf16.mxu0 0
    %3555 = vmatpush2.bf16.msra.mxu0 0
    %3556 = vmatprep.subr.bf16.mxu0 0
    %3557 = vmatpush2.bf16.msra.mxu0 0
    %3558 = vmatprep.subr.bf16.mxu0 0
    %3559 = vmatpush2.bf16.msra.mxu0 0
    %3560 = vmatprep.mubr.bf16.mxu0 0
    %3561 = vmatmul.mubr.bf16.gmra.mxu0 %v3514
    %v3562 = vpop.f32.mrf.mxu0
    %v3563 = vadd.f32 0.0, %v3562
    %v3564 = vpop.f32.mrf.mxu0
    %v3565 = vpop.f32.mrf.mxu0
    %v3566 = vadd.f32 0.0, %v3565
    %v3567 = vpop.f32.mrf.mxu0
    %3568 = vmatprep.mubr.bf16.mxu0 0
    %3569 = vmatmul.mubr.bf16.gmra.mxu0 %v3517
    %v3570 = vpop.f32.mrf.mxu0
    %v3571 = vadd.f32 0.0, %v3570
    %v3572 = vpop.f32.mrf.mxu0
    %v3573 = vpop.f32.mrf.mxu0
    %v3574 = vadd.f32 0.0, %v3573
    %v3575 = vpop.f32.mrf.mxu0
    %3576 = vmatprep.mubr.bf16.mxu0 0
    %3577 = vmatmul.mubr.bf16.gmra.mxu0 %v3520
    %v3578 = vpop.f32.mrf.mxu0
    %v3579 = vadd.f32 0.0, %v3578
    %v3580 = vpop.f32.mrf.mxu0
    %v3581 = vpop.f32.mrf.mxu0
    %v3582 = vadd.f32 0.0, %v3581
    %v3583 = vpop.f32.mrf.mxu0
    %3584 = vmatprep.mubr.bf16.mxu0 0
    %3585 = vmatmul.mubr.bf16.gmra.mxu0 %v3523
    %v3586 = vpop.f32.mrf.mxu0
    %v3587 = vadd.f32 0.0, %v3586
    %v3588 = vpop.f32.mrf.mxu0
    %v3589 = vpop.f32.mrf.mxu0
    %v3590 = vadd.f32 0.0, %v3589
    %v3591 = vpop.f32.mrf.mxu0
    %3592 = vdwg.mxu0
    %v3593 = vpack.c.bf16 %v3563, %v3563
    %v3594 = vld [vmem:[#allocation4] sm:$0xff]
    %v3595 = vld [vmem:[#allocation4 + $0x8] sm:$0xff]
    %v3596 = vld [vmem:[#allocation4 + $0x10] sm:$0xff]
    %v3597 = vld [vmem:[#allocation4 + $0x18] sm:$0xff]
    %v3598 = vld [vmem:[#allocation4 + $0x20] sm:$0xff]
    %v3599 = vld [vmem:[#allocation4 + $0x28] sm:$0xff]
    %v3600 = vld [vmem:[#allocation4 + $0x30] sm:$0xff]
    %v3601 = vld [vmem:[#allocation4 + $0x38] sm:$0xff]
    %v3602 = vld [vmem:[#allocation4 + $0x40] sm:$0xff]
    %v3603 = vld [vmem:[#allocation4 + $0x48] sm:$0xff]
    %v3604 = vld [vmem:[#allocation4 + $0x50] sm:$0xff]
    %v3605 = vld [vmem:[#allocation4 + $0x58] sm:$0xff]
    %v3606 = vld [vmem:[#allocation4 + $0x60] sm:$0xff]
    %v3607 = vld [vmem:[#allocation4 + $0x68] sm:$0xff]
    %v3608 = vld [vmem:[#allocation4 + $0x70] sm:$0xff]
    %v3609 = vld [vmem:[#allocation4 + $0x78] sm:$0xff]
    %v3610 = vld [vmem:[#allocation4 + $0x80] sm:$0xff]
    %v3611 = vld [vmem:[#allocation4 + $0x88] sm:$0xff]
    %v3612 = vld [vmem:[#allocation4 + $0x90] sm:$0xff]
    %v3613 = vld [vmem:[#allocation4 + $0x98] sm:$0xff]
    %v3614 = vld [vmem:[#allocation4 + $0xa0] sm:$0xff]
    %v3615 = vld [vmem:[#allocation4 + $0xa8] sm:$0xff]
    %v3616 = vld [vmem:[#allocation4 + $0xb0] sm:$0xff]
    %v3617 = vld [vmem:[#allocation4 + $0xb8] sm:$0xff]
    %v3618 = vld [vmem:[#allocation4 + $0xc0] sm:$0xff]
    %v3619 = vld [vmem:[#allocation4 + $0xc8] sm:$0xff]
    %v3620 = vld [vmem:[#allocation4 + $0xd0] sm:$0xff]
    %v3621 = vld [vmem:[#allocation4 + $0xd8] sm:$0xff]
    %v3622 = vld [vmem:[#allocation4 + $0xe0] sm:$0xff]
    %v3623 = vld [vmem:[#allocation4 + $0xe8] sm:$0xff]
    %v3624 = vld [vmem:[#allocation4 + $0xf0] sm:$0xff]
    %v3625 = vld [vmem:[#allocation4 + $0xf8] sm:$0xff]
    %v3627 = vrot.slane %v3593, 2
    %v3645 = vunpack.c.l.b16 %v3610
    %v3646 = vunpack.c.h.b16 %v3610
    %v3647 = vunpack.c.l.b16 %v3611
    %v3648 = vunpack.c.h.b16 %v3611
    %v3649 = vunpack.c.l.b16 %v3612
    %v3650 = vunpack.c.h.b16 %v3612
    %v3651 = vunpack.c.l.b16 %v3613
    %v3652 = vunpack.c.h.b16 %v3613
    %v3653 = vunpack.c.l.b16 %v3614
    %v3654 = vunpack.c.h.b16 %v3614
    %v3655 = vunpack.c.l.b16 %v3615
    %v3656 = vunpack.c.h.b16 %v3615
    %v3657 = vunpack.c.l.b16 %v3616
    %v3658 = vunpack.c.h.b16 %v3616
    %v3659 = vunpack.c.l.b16 %v3617
    %v3660 = vunpack.c.h.b16 %v3617
    %v3661 = vunpack.c.l.b16 %v3618
    %v3662 = vunpack.c.h.b16 %v3618
    %v3663 = vunpack.c.l.b16 %v3619
    %v3664 = vunpack.c.h.b16 %v3619
    %v3665 = vunpack.c.l.b16 %v3620
    %v3666 = vunpack.c.h.b16 %v3620
    %v3667 = vunpack.c.l.b16 %v3621
    %v3668 = vunpack.c.h.b16 %v3621
    %v3669 = vunpack.c.l.b16 %v3622
    %v3670 = vunpack.c.h.b16 %v3622
    %v3671 = vunpack.c.l.b16 %v3623
    %v3672 = vunpack.c.h.b16 %v3623
    %v3673 = vunpack.c.l.b16 %v3624
    %v3674 = vunpack.c.h.b16 %v3624
    %v3675 = vunpack.c.l.b16 %v3625
    %v3676 = vunpack.c.h.b16 %v3625
    %v3677 = vpack.c.b16 %v3647, %v3645
    %v3678 = vpack.c.b16 %v3648, %v3646
    %v3679 = vpack.c.b16 %v3651, %v3649
    %v3680 = vpack.c.b16 %v3652, %v3650
    %v3681 = vpack.c.b16 %v3655, %v3653
    %v3682 = vpack.c.b16 %v3656, %v3654
    %v3683 = vpack.c.b16 %v3659, %v3657
    %v3684 = vpack.c.b16 %v3660, %v3658
    %v3685 = vpack.c.b16 %v3663, %v3661
    %v3686 = vpack.c.b16 %v3664, %v3662
    %v3687 = vpack.c.b16 %v3667, %v3665
    %v3688 = vpack.c.b16 %v3668, %v3666
    %v3689 = vpack.c.b16 %v3671, %v3669
    %v3690 = vpack.c.b16 %v3672, %v3670
    %v3691 = vpack.c.b16 %v3675, %v3673
    %v3692 = vpack.c.b16 %v3676, %v3674
    %3709 = vmatprep.subr.bf16.mxu0 %v3692
    %3710 = vmatpush1.bf16.msra.mxu0 %v3691
    %3711 = vmatprep.subr.bf16.mxu0 %v3690
    %3712 = vmatpush1.bf16.msra.mxu0 %v3689
    %3713 = vmatprep.subr.bf16.mxu0 %v3688
    %3714 = vmatpush1.bf16.msra.mxu0 %v3687
    %3715 = vmatprep.subr.bf16.mxu0 %v3686
    %3716 = vmatpush1.bf16.msra.mxu0 %v3685
    %3717 = vmatprep.subr.bf16.mxu0 %v3684
    %3718 = vmatpush1.bf16.msra.mxu0 %v3683
    %3719 = vmatprep.subr.bf16.mxu0 %v3682
    %3720 = vmatpush1.bf16.msra.mxu0 %v3681
    %3721 = vmatprep.subr.bf16.mxu0 %v3680
    %3722 = vmatpush1.bf16.msra.mxu0 %v3679
    %3723 = vmatprep.subr.bf16.mxu0 %v3678
    %3724 = vmatpush1.bf16.msra.mxu0 %v3677
    %3725 = vmatprep.subr.bf16.mxu0 0
    %3726 = vmatpush2.bf16.msra.mxu0 0
    %3727 = vmatprep.subr.bf16.mxu0 0
    %3728 = vmatpush2.bf16.msra.mxu0 0
    %3729 = vmatprep.subr.bf16.mxu0 0
    %3730 = vmatpush2.bf16.msra.mxu0 0
    %3731 = vmatprep.subr.bf16.mxu0 0
    %3732 = vmatpush2.bf16.msra.mxu0 0
    %3733 = vmatprep.subr.bf16.mxu0 0
    %3734 = vmatpush2.bf16.msra.mxu0 0
    %3735 = vmatprep.subr.bf16.mxu0 0
    %3736 = vmatpush2.bf16.msra.mxu0 0
    %3737 = vmatprep.subr.bf16.mxu0 0
    %3738 = vmatpush2.bf16.msra.mxu0 0
    %3739 = vmatprep.subr.bf16.mxu0 0
    %3740 = vmatpush2.bf16.msra.mxu0 0
    %3741 = vmatprep.mubr.bf16.mxu0 0
    %3742 = vmatmul.mubr.bf16.gmra.mxu0 %v3627
    %v3743 = vpop.f32.mrf.mxu0
    %v3744 = vadd.f32 0.0, %v3743
    %v3745 = vpop.f32.mrf.mxu0
    %v3746 = vadd.f32 0.0, %v3745
    %v3747 = vpop.f32.mrf.mxu0
    %v3748 = vpop.f32.mrf.mxu0
    %3749 = vdwg.mxu0
    %v3766 = vunpack.c.l.b16 %v3594
    %v3767 = vunpack.c.h.b16 %v3594
    %v3768 = vunpack.c.l.b16 %v3595
    %v3769 = vunpack.c.h.b16 %v3595
    %v3770 = vunpack.c.l.b16 %v3596
    %v3771 = vunpack.c.h.b16 %v3596
    %v3772 = vunpack.c.l.b16 %v3597
    %v3773 = vunpack.c.h.b16 %v3597
    %v3774 = vunpack.c.l.b16 %v3598
    %v3775 = vunpack.c.h.b16 %v3598
    %v3776 = vunpack.c.l.b16 %v3599
    %v3777 = vunpack.c.h.b16 %v3599
    %v3778 = vunpack.c.l.b16 %v3600
    %v3779 = vunpack.c.h.b16 %v3600
    %v3780 = vunpack.c.l.b16 %v3601
    %v3781 = vunpack.c.h.b16 %v3601
    %v3782 = vunpack.c.l.b16 %v3602
    %v3783 = vunpack.c.h.b16 %v3602
    %v3784 = vunpack.c.l.b16 %v3603
    %v3785 = vunpack.c.h.b16 %v3603
    %v3786 = vunpack.c.l.b16 %v3604
    %v3787 = vunpack.c.h.b16 %v3604
    %v3788 = vunpack.c.l.b16 %v3605
    %v3789 = vunpack.c.h.b16 %v3605
    %v3790 = vunpack.c.l.b16 %v3606
    %v3791 = vunpack.c.h.b16 %v3606
    %v3792 = vunpack.c.l.b16 %v3607
    %v3793 = vunpack.c.h.b16 %v3607
    %v3794 = vunpack.c.l.b16 %v3608
    %v3795 = vunpack.c.h.b16 %v3608
    %v3796 = vunpack.c.l.b16 %v3609
    %v3797 = vunpack.c.h.b16 %v3609
    %v3798 = vpack.c.b16 %v3768, %v3766
    %v3799 = vpack.c.b16 %v3769, %v3767
    %v3800 = vpack.c.b16 %v3772, %v3770
    %v3801 = vpack.c.b16 %v3773, %v3771
    %v3802 = vpack.c.b16 %v3776, %v3774
    %v3803 = vpack.c.b16 %v3777, %v3775
    %v3804 = vpack.c.b16 %v3780, %v3778
    %v3805 = vpack.c.b16 %v3781, %v3779
    %v3806 = vpack.c.b16 %v3784, %v3782
    %v3807 = vpack.c.b16 %v3785, %v3783
    %v3808 = vpack.c.b16 %v3788, %v3786
    %v3809 = vpack.c.b16 %v3789, %v3787
    %v3810 = vpack.c.b16 %v3792, %v3790
    %v3811 = vpack.c.b16 %v3793, %v3791
    %v3812 = vpack.c.b16 %v3796, %v3794
    %v3813 = vpack.c.b16 %v3797, %v3795
    %3830 = vmatprep.subr.bf16.mxu0 %v3813
    %3831 = vmatpush1.bf16.msra.mxu0 %v3812
    %3832 = vmatprep.subr.bf16.mxu0 %v3811
    %3833 = vmatpush1.bf16.msra.mxu0 %v3810
    %3834 = vmatprep.subr.bf16.mxu0 %v3809
    %3835 = vmatpush1.bf16.msra.mxu0 %v3808
    %3836 = vmatprep.subr.bf16.mxu0 %v3807
    %3837 = vmatpush1.bf16.msra.mxu0 %v3806
    %3838 = vmatprep.subr.bf16.mxu0 %v3805
    %3839 = vmatpush1.bf16.msra.mxu0 %v3804
    %3840 = vmatprep.subr.bf16.mxu0 %v3803
    %3841 = vmatpush1.bf16.msra.mxu0 %v3802
    %3842 = vmatprep.subr.bf16.mxu0 %v3801
    %3843 = vmatpush1.bf16.msra.mxu0 %v3800
    %3844 = vmatprep.subr.bf16.mxu0 %v3799
    %3845 = vmatpush1.bf16.msra.mxu0 %v3798
    %3846 = vmatprep.subr.bf16.mxu0 0
    %3847 = vmatpush2.bf16.msra.mxu0 0
    %3848 = vmatprep.subr.bf16.mxu0 0
    %3849 = vmatpush2.bf16.msra.mxu0 0
    %3850 = vmatprep.subr.bf16.mxu0 0
    %3851 = vmatpush2.bf16.msra.mxu0 0
    %3852 = vmatprep.subr.bf16.mxu0 0
    %3853 = vmatpush2.bf16.msra.mxu0 0
    %3854 = vmatprep.subr.bf16.mxu0 0
    %3855 = vmatpush2.bf16.msra.mxu0 0
    %3856 = vmatprep.subr.bf16.mxu0 0
    %3857 = vmatpush2.bf16.msra.mxu0 0
    %3858 = vmatprep.subr.bf16.mxu0 0
    %3859 = vmatpush2.bf16.msra.mxu0 0
    %3860 = vmatprep.subr.bf16.mxu0 0
    %3861 = vmatpush2.bf16.msra.mxu0 0
    %3862 = vmatprep.mubr.bf16.mxu0 0
    %3863 = vmatmul.mubr.bf16.gmra.mxu0 %v3593
    %v3864 = vpop.f32.mrf.mxu0
    %v3865 = vadd.f32 %v3744, %v3864
    %v3866 = vpop.f32.mrf.mxu0
    %v3867 = vadd.f32 %v3746, %v3866
    %v3868 = vpop.f32.mrf.mxu0
    %v3869 = vpop.f32.mrf.mxu0
    %3870 = vdwg.mxu0
    %v3871 = vpack.c.bf16 %v3566, %v3566
    %v3872 = vld [vmem:[#allocation4 + $0x100] sm:$0xff]
    %v3873 = vld [vmem:[#allocation4 + $0x108] sm:$0xff]
    %v3874 = vld [vmem:[#allocation4 + $0x110] sm:$0xff]
    %v3875 = vld [vmem:[#allocation4 + $0x118] sm:$0xff]
    %v3876 = vld [vmem:[#allocation4 + $0x120] sm:$0xff]
    %v3877 = vld [vmem:[#allocation4 + $0x128] sm:$0xff]
    %v3878 = vld [vmem:[#allocation4 + $0x130] sm:$0xff]
    %v3879 = vld [vmem:[#allocation4 + $0x138] sm:$0xff]
    %v3880 = vld [vmem:[#allocation4 + $0x140] sm:$0xff]
    %v3881 = vld [vmem:[#allocation4 + $0x148] sm:$0xff]
    %v3882 = vld [vmem:[#allocation4 + $0x150] sm:$0xff]
    %v3883 = vld [vmem:[#allocation4 + $0x158] sm:$0xff]
    %v3884 = vld [vmem:[#allocation4 + $0x160] sm:$0xff]
    %v3885 = vld [vmem:[#allocation4 + $0x168] sm:$0xff]
    %v3886 = vld [vmem:[#allocation4 + $0x170] sm:$0xff]
    %v3887 = vld [vmem:[#allocation4 + $0x178] sm:$0xff]
    %v3904 = vunpack.c.l.b16 %v3872
    %v3905 = vunpack.c.h.b16 %v3872
    %v3906 = vunpack.c.l.b16 %v3873
    %v3907 = vunpack.c.h.b16 %v3873
    %v3908 = vunpack.c.l.b16 %v3874
    %v3909 = vunpack.c.h.b16 %v3874
    %v3910 = vunpack.c.l.b16 %v3875
    %v3911 = vunpack.c.h.b16 %v3875
    %v3912 = vunpack.c.l.b16 %v3876
    %v3913 = vunpack.c.h.b16 %v3876
    %v3914 = vunpack.c.l.b16 %v3877
    %v3915 = vunpack.c.h.b16 %v3877
    %v3916 = vunpack.c.l.b16 %v3878
    %v3917 = vunpack.c.h.b16 %v3878
    %v3918 = vunpack.c.l.b16 %v3879
    %v3919 = vunpack.c.h.b16 %v3879
    %v3920 = vunpack.c.l.b16 %v3880
    %v3921 = vunpack.c.h.b16 %v3880
    %v3922 = vunpack.c.l.b16 %v3881
    %v3923 = vunpack.c.h.b16 %v3881
    %v3924 = vunpack.c.l.b16 %v3882
    %v3925 = vunpack.c.h.b16 %v3882
    %v3926 = vunpack.c.l.b16 %v3883
    %v3927 = vunpack.c.h.b16 %v3883
    %v3928 = vunpack.c.l.b16 %v3884
    %v3929 = vunpack.c.h.b16 %v3884
    %v3930 = vunpack.c.l.b16 %v3885
    %v3931 = vunpack.c.h.b16 %v3885
    %v3932 = vunpack.c.l.b16 %v3886
    %v3933 = vunpack.c.h.b16 %v3886
    %v3934 = vunpack.c.l.b16 %v3887
    %v3935 = vunpack.c.h.b16 %v3887
    %v3936 = vpack.c.b16 %v3906, %v3904
    %v3937 = vpack.c.b16 %v3907, %v3905
    %v3938 = vpack.c.b16 %v3910, %v3908
    %v3939 = vpack.c.b16 %v3911, %v3909
    %v3940 = vpack.c.b16 %v3914, %v3912
    %v3941 = vpack.c.b16 %v3915, %v3913
    %v3942 = vpack.c.b16 %v3918, %v3916
    %v3943 = vpack.c.b16 %v3919, %v3917
    %v3944 = vpack.c.b16 %v3922, %v3920
    %v3945 = vpack.c.b16 %v3923, %v3921
    %v3946 = vpack.c.b16 %v3926, %v3924
    %v3947 = vpack.c.b16 %v3927, %v3925
    %v3948 = vpack.c.b16 %v3930, %v3928
    %v3949 = vpack.c.b16 %v3931, %v3929
    %v3950 = vpack.c.b16 %v3934, %v3932
    %v3951 = vpack.c.b16 %v3935, %v3933
    %3968 = vmatprep.subr.bf16.mxu0 %v3951
    %3969 = vmatpush1.bf16.msra.mxu0 %v3950
    %3970 = vmatprep.subr.bf16.mxu0 %v3949
    %3971 = vmatpush1.bf16.msra.mxu0 %v3948
    %3972 = vmatprep.subr.bf16.mxu0 %v3947
    %3973 = vmatpush1.bf16.msra.mxu0 %v3946
    %3974 = vmatprep.subr.bf16.mxu0 %v3945
    %3975 = vmatpush1.bf16.msra.mxu0 %v3944
    %3976 = vmatprep.subr.bf16.mxu0 %v3943
    %3977 = vmatpush1.bf16.msra.mxu0 %v3942
    %3978 = vmatprep.subr.bf16.mxu0 %v3941
    %3979 = vmatpush1.bf16.msra.mxu0 %v3940
    %3980 = vmatprep.subr.bf16.mxu0 %v3939
    %3981 = vmatpush1.bf16.msra.mxu0 %v3938
    %3982 = vmatprep.subr.bf16.mxu0 %v3937
    %3983 = vmatpush1.bf16.msra.mxu0 %v3936
    %3984 = vmatprep.subr.bf16.mxu0 0
    %3985 = vmatpush2.bf16.msra.mxu0 0
    %3986 = vmatprep.subr.bf16.mxu0 0
    %3987 = vmatpush2.bf16.msra.mxu0 0
    %3988 = vmatprep.subr.bf16.mxu0 0
    %3989 = vmatpush2.bf16.msra.mxu0 0
    %3990 = vmatprep.subr.bf16.mxu0 0
    %3991 = vmatpush2.bf16.msra.mxu0 0
    %3992 = vmatprep.subr.bf16.mxu0 0
    %3993 = vmatpush2.bf16.msra.mxu0 0
    %3994 = vmatprep.subr.bf16.mxu0 0
    %3995 = vmatpush2.bf16.msra.mxu0 0
    %3996 = vmatprep.subr.bf16.mxu0 0
    %3997 = vmatpush2.bf16.msra.mxu0 0
    %3998 = vmatprep.subr.bf16.mxu0 0
    %3999 = vmatpush2.bf16.msra.mxu0 0
    %4000 = vmatprep.mubr.bf16.mxu0 0
    %4001 = vmatmul.mubr.bf16.gmra.mxu0 %v3871
    %v4002 = vpop.f32.mrf.mxu0
    %v4003 = vadd.f32 0.0, %v4002
    %v4004 = vpop.f32.mrf.mxu0
    %v4005 = vadd.f32 0.0, %v4004
    %v4006 = vpop.f32.mrf.mxu0
    %v4007 = vpop.f32.mrf.mxu0
    %4008 = vdwg.mxu0
    %v4009 = vadd.f32 %v3865, %v4003
    %v4010 = vadd.f32 %v3867, %v4005
    %v4011 = vld [vmem:[#allocation4 + $0x180] sm:$0xff]
    %v4012 = vld [vmem:[#allocation4 + $0x188] sm:$0xff]
    %v4013 = vld [vmem:[#allocation4 + $0x190] sm:$0xff]
    %v4014 = vld [vmem:[#allocation4 + $0x198] sm:$0xff]
    %v4015 = vld [vmem:[#allocation4 + $0x1a0] sm:$0xff]
    %v4016 = vld [vmem:[#allocation4 + $0x1a8] sm:$0xff]
    %v4017 = vld [vmem:[#allocation4 + $0x1b0] sm:$0xff]
    %v4018 = vld [vmem:[#allocation4 + $0x1b8] sm:$0xff]
    %v4019 = vld [vmem:[#allocation4 + $0x1c0] sm:$0xff]
    %v4020 = vld [vmem:[#allocation4 + $0x1c8] sm:$0xff]
    %v4021 = vld [vmem:[#allocation4 + $0x1d0] sm:$0xff]
    %v4022 = vld [vmem:[#allocation4 + $0x1d8] sm:$0xff]
    %v4023 = vld [vmem:[#allocation4 + $0x1e0] sm:$0xff]
    %v4024 = vld [vmem:[#allocation4 + $0x1e8] sm:$0xff]
    %v4025 = vld [vmem:[#allocation4 + $0x1f0] sm:$0xff]
    %v4026 = vld [vmem:[#allocation4 + $0x1f8] sm:$0xff]
    %v4028 = vrot.slane %v3871, 2
    %v4046 = vunpack.c.l.b16 %v4011
    %v4047 = vunpack.c.h.b16 %v4011
    %v4048 = vunpack.c.l.b16 %v4012
    %v4049 = vunpack.c.h.b16 %v4012
    %v4050 = vunpack.c.l.b16 %v4013
    %v4051 = vunpack.c.h.b16 %v4013
    %v4052 = vunpack.c.l.b16 %v4014
    %v4053 = vunpack.c.h.b16 %v4014
    %v4054 = vunpack.c.l.b16 %v4015
    %v4055 = vunpack.c.h.b16 %v4015
    %v4056 = vunpack.c.l.b16 %v4016
    %v4057 = vunpack.c.h.b16 %v4016
    %v4058 = vunpack.c.l.b16 %v4017
    %v4059 = vunpack.c.h.b16 %v4017
    %v4060 = vunpack.c.l.b16 %v4018
    %v4061 = vunpack.c.h.b16 %v4018
    %v4062 = vunpack.c.l.b16 %v4019
    %v4063 = vunpack.c.h.b16 %v4019
    %v4064 = vunpack.c.l.b16 %v4020
    %v4065 = vunpack.c.h.b16 %v4020
    %v4066 = vunpack.c.l.b16 %v4021
    %v4067 = vunpack.c.h.b16 %v4021
    %v4068 = vunpack.c.l.b16 %v4022
    %v4069 = vunpack.c.h.b16 %v4022
    %v4070 = vunpack.c.l.b16 %v4023
    %v4071 = vunpack.c.h.b16 %v4023
    %v4072 = vunpack.c.l.b16 %v4024
    %v4073 = vunpack.c.h.b16 %v4024
    %v4074 = vunpack.c.l.b16 %v4025
    %v4075 = vunpack.c.h.b16 %v4025
    %v4076 = vunpack.c.l.b16 %v4026
    %v4077 = vunpack.c.h.b16 %v4026
    %v4078 = vpack.c.b16 %v4048, %v4046
    %v4079 = vpack.c.b16 %v4049, %v4047
    %v4080 = vpack.c.b16 %v4052, %v4050
    %v4081 = vpack.c.b16 %v4053, %v4051
    %v4082 = vpack.c.b16 %v4056, %v4054
    %v4083 = vpack.c.b16 %v4057, %v4055
    %v4084 = vpack.c.b16 %v4060, %v4058
    %v4085 = vpack.c.b16 %v4061, %v4059
    %v4086 = vpack.c.b16 %v4064, %v4062
    %v4087 = vpack.c.b16 %v4065, %v4063
    %v4088 = vpack.c.b16 %v4068, %v4066
    %v4089 = vpack.c.b16 %v4069, %v4067
    %v4090 = vpack.c.b16 %v4072, %v4070
    %v4091 = vpack.c.b16 %v4073, %v4071
    %v4092 = vpack.c.b16 %v4076, %v4074
    %v4093 = vpack.c.b16 %v4077, %v4075
    %4110 = vmatprep.subr.bf16.mxu0 %v4093
    %4111 = vmatpush1.bf16.msra.mxu0 %v4092
    %4112 = vmatprep.subr.bf16.mxu0 %v4091
    %4113 = vmatpush1.bf16.msra.mxu0 %v4090
    %4114 = vmatprep.subr.bf16.mxu0 %v4089
    %4115 = vmatpush1.bf16.msra.mxu0 %v4088
    %4116 = vmatprep.subr.bf16.mxu0 %v4087
    %4117 = vmatpush1.bf16.msra.mxu0 %v4086
    %4118 = vmatprep.subr.bf16.mxu0 %v4085
    %4119 = vmatpush1.bf16.msra.mxu0 %v4084
    %4120 = vmatprep.subr.bf16.mxu0 %v4083
    %4121 = vmatpush1.bf16.msra.mxu0 %v4082
    %4122 = vmatprep.subr.bf16.mxu0 %v4081
    %4123 = vmatpush1.bf16.msra.mxu0 %v4080
    %4124 = vmatprep.subr.bf16.mxu0 %v4079
    %4125 = vmatpush1.bf16.msra.mxu0 %v4078
    %4126 = vmatprep.subr.bf16.mxu0 0
    %4127 = vmatpush2.bf16.msra.mxu0 0
    %4128 = vmatprep.subr.bf16.mxu0 0
    %4129 = vmatpush2.bf16.msra.mxu0 0
    %4130 = vmatprep.subr.bf16.mxu0 0
    %4131 = vmatpush2.bf16.msra.mxu0 0
    %4132 = vmatprep.subr.bf16.mxu0 0
    %4133 = vmatpush2.bf16.msra.mxu0 0
    %4134 = vmatprep.subr.bf16.mxu0 0
    %4135 = vmatpush2.bf16.msra.mxu0 0
    %4136 = vmatprep.subr.bf16.mxu0 0
    %4137 = vmatpush2.bf16.msra.mxu0 0
    %4138 = vmatprep.subr.bf16.mxu0 0
    %4139 = vmatpush2.bf16.msra.mxu0 0
    %4140 = vmatprep.subr.bf16.mxu0 0
    %4141 = vmatpush2.bf16.msra.mxu0 0
    %4142 = vmatprep.mubr.bf16.mxu0 0
    %4143 = vmatmul.mubr.bf16.gmra.mxu0 %v4028
    %v4144 = vpop.f32.mrf.mxu0
    %v4145 = vadd.f32 0.0, %v4144
    %v4146 = vpop.f32.mrf.mxu0
    %v4147 = vadd.f32 0.0, %v4146
    %v4148 = vpop.f32.mrf.mxu0
    %v4149 = vpop.f32.mrf.mxu0
    %4150 = vdwg.mxu0
    %v4151 = vadd.f32 %v4009, %v4145
    %v4152 = vadd.f32 %v4010, %v4147
    %v4153 = vpack.c.bf16 %v3571, %v3571
    %v4154 = vld [vmem:[#allocation4 + $0x200] sm:$0xff]
    %v4155 = vld [vmem:[#allocation4 + $0x208] sm:$0xff]
    %v4156 = vld [vmem:[#allocation4 + $0x210] sm:$0xff]
    %v4157 = vld [vmem:[#allocation4 + $0x218] sm:$0xff]
    %v4158 = vld [vmem:[#allocation4 + $0x220] sm:$0xff]
    %v4159 = vld [vmem:[#allocation4 + $0x228] sm:$0xff]
    %v4160 = vld [vmem:[#allocation4 + $0x230] sm:$0xff]
    %v4161 = vld [vmem:[#allocation4 + $0x238] sm:$0xff]
    %v4162 = vld [vmem:[#allocation4 + $0x240] sm:$0xff]
    %v4163 = vld [vmem:[#allocation4 + $0x248] sm:$0xff]
    %v4164 = vld [vmem:[#allocation4 + $0x250] sm:$0xff]
    %v4165 = vld [vmem:[#allocation4 + $0x258] sm:$0xff]
    %v4166 = vld [vmem:[#allocation4 + $0x260] sm:$0xff]
    %v4167 = vld [vmem:[#allocation4 + $0x268] sm:$0xff]
    %v4168 = vld [vmem:[#allocation4 + $0x270] sm:$0xff]
    %v4169 = vld [vmem:[#allocation4 + $0x278] sm:$0xff]
    %v4186 = vunpack.c.l.b16 %v4154
    %v4187 = vunpack.c.h.b16 %v4154
    %v4188 = vunpack.c.l.b16 %v4155
    %v4189 = vunpack.c.h.b16 %v4155
    %v4190 = vunpack.c.l.b16 %v4156
    %v4191 = vunpack.c.h.b16 %v4156
    %v4192 = vunpack.c.l.b16 %v4157
    %v4193 = vunpack.c.h.b16 %v4157
    %v4194 = vunpack.c.l.b16 %v4158
    %v4195 = vunpack.c.h.b16 %v4158
    %v4196 = vunpack.c.l.b16 %v4159
    %v4197 = vunpack.c.h.b16 %v4159
    %v4198 = vunpack.c.l.b16 %v4160
    %v4199 = vunpack.c.h.b16 %v4160
    %v4200 = vunpack.c.l.b16 %v4161
    %v4201 = vunpack.c.h.b16 %v4161
    %v4202 = vunpack.c.l.b16 %v4162
    %v4203 = vunpack.c.h.b16 %v4162
    %v4204 = vunpack.c.l.b16 %v4163
    %v4205 = vunpack.c.h.b16 %v4163
    %v4206 = vunpack.c.l.b16 %v4164
    %v4207 = vunpack.c.h.b16 %v4164
    %v4208 = vunpack.c.l.b16 %v4165
    %v4209 = vunpack.c.h.b16 %v4165
    %v4210 = vunpack.c.l.b16 %v4166
    %v4211 = vunpack.c.h.b16 %v4166
    %v4212 = vunpack.c.l.b16 %v4167
    %v4213 = vunpack.c.h.b16 %v4167
    %v4214 = vunpack.c.l.b16 %v4168
    %v4215 = vunpack.c.h.b16 %v4168
    %v4216 = vunpack.c.l.b16 %v4169
    %v4217 = vunpack.c.h.b16 %v4169
    %v4218 = vpack.c.b16 %v4188, %v4186
    %v4219 = vpack.c.b16 %v4189, %v4187
    %v4220 = vpack.c.b16 %v4192, %v4190
    %v4221 = vpack.c.b16 %v4193, %v4191
    %v4222 = vpack.c.b16 %v4196, %v4194
    %v4223 = vpack.c.b16 %v4197, %v4195
    %v4224 = vpack.c.b16 %v4200, %v4198
    %v4225 = vpack.c.b16 %v4201, %v4199
    %v4226 = vpack.c.b16 %v4204, %v4202
    %v4227 = vpack.c.b16 %v4205, %v4203
    %v4228 = vpack.c.b16 %v4208, %v4206
    %v4229 = vpack.c.b16 %v4209, %v4207
    %v4230 = vpack.c.b16 %v4212, %v4210
    %v4231 = vpack.c.b16 %v4213, %v4211
    %v4232 = vpack.c.b16 %v4216, %v4214
    %v4233 = vpack.c.b16 %v4217, %v4215
    %4250 = vmatprep.subr.bf16.mxu0 %v4233
    %4251 = vmatpush1.bf16.msra.mxu0 %v4232
    %4252 = vmatprep.subr.bf16.mxu0 %v4231
    %4253 = vmatpush1.bf16.msra.mxu0 %v4230
    %4254 = vmatprep.subr.bf16.mxu0 %v4229
    %4255 = vmatpush1.bf16.msra.mxu0 %v4228
    %4256 = vmatprep.subr.bf16.mxu0 %v4227
    %4257 = vmatpush1.bf16.msra.mxu0 %v4226
    %4258 = vmatprep.subr.bf16.mxu0 %v4225
    %4259 = vmatpush1.bf16.msra.mxu0 %v4224
    %4260 = vmatprep.subr.bf16.mxu0 %v4223
    %4261 = vmatpush1.bf16.msra.mxu0 %v4222
    %4262 = vmatprep.subr.bf16.mxu0 %v4221
    %4263 = vmatpush1.bf16.msra.mxu0 %v4220
    %4264 = vmatprep.subr.bf16.mxu0 %v4219
    %4265 = vmatpush1.bf16.msra.mxu0 %v4218
    %4266 = vmatprep.subr.bf16.mxu0 0
    %4267 = vmatpush2.bf16.msra.mxu0 0
    %4268 = vmatprep.subr.bf16.mxu0 0
    %4269 = vmatpush2.bf16.msra.mxu0 0
    %4270 = vmatprep.subr.bf16.mxu0 0
    %4271 = vmatpush2.bf16.msra.mxu0 0
    %4272 = vmatprep.subr.bf16.mxu0 0
    %4273 = vmatpush2.bf16.msra.mxu0 0
    %4274 = vmatprep.subr.bf16.mxu0 0
    %4275 = vmatpush2.bf16.msra.mxu0 0
    %4276 = vmatprep.subr.bf16.mxu0 0
    %4277 = vmatpush2.bf16.msra.mxu0 0
    %4278 = vmatprep.subr.bf16.mxu0 0
    %4279 = vmatpush2.bf16.msra.mxu0 0
    %4280 = vmatprep.subr.bf16.mxu0 0
    %4281 = vmatpush2.bf16.msra.mxu0 0
    %4282 = vmatprep.mubr.bf16.mxu0 0
    %4283 = vmatmul.mubr.bf16.gmra.mxu0 %v4153
    %v4284 = vpop.f32.mrf.mxu0
    %v4285 = vadd.f32 0.0, %v4284
    %v4286 = vpop.f32.mrf.mxu0
    %v4287 = vadd.f32 0.0, %v4286
    %v4288 = vpop.f32.mrf.mxu0
    %v4289 = vpop.f32.mrf.mxu0
    %4290 = vdwg.mxu0
    %v4291 = vadd.f32 %v4151, %v4285
    %v4292 = vadd.f32 %v4152, %v4287
    %v4293 = vld [vmem:[#allocation4 + $0x280] sm:$0xff]
    %v4294 = vld [vmem:[#allocation4 + $0x288] sm:$0xff]
    %v4295 = vld [vmem:[#allocation4 + $0x290] sm:$0xff]
    %v4296 = vld [vmem:[#allocation4 + $0x298] sm:$0xff]
    %v4297 = vld [vmem:[#allocation4 + $0x2a0] sm:$0xff]
    %v4298 = vld [vmem:[#allocation4 + $0x2a8] sm:$0xff]
    %v4299 = vld [vmem:[#allocation4 + $0x2b0] sm:$0xff]
    %v4300 = vld [vmem:[#allocation4 + $0x2b8] sm:$0xff]
    %v4301 = vld [vmem:[#allocation4 + $0x2c0] sm:$0xff]
    %v4302 = vld [vmem:[#allocation4 + $0x2c8] sm:$0xff]
    %v4303 = vld [vmem:[#allocation4 + $0x2d0] sm:$0xff]
    %v4304 = vld [vmem:[#allocation4 + $0x2d8] sm:$0xff]
    %v4305 = vld [vmem:[#allocation4 + $0x2e0] sm:$0xff]
    %v4306 = vld [vmem:[#allocation4 + $0x2e8] sm:$0xff]
    %v4307 = vld [vmem:[#allocation4 + $0x2f0] sm:$0xff]
    %v4308 = vld [vmem:[#allocation4 + $0x2f8] sm:$0xff]
    %v4310 = vrot.slane %v4153, 2
    %v4328 = vunpack.c.l.b16 %v4293
    %v4329 = vunpack.c.h.b16 %v4293
    %v4330 = vunpack.c.l.b16 %v4294
    %v4331 = vunpack.c.h.b16 %v4294
    %v4332 = vunpack.c.l.b16 %v4295
    %v4333 = vunpack.c.h.b16 %v4295
    %v4334 = vunpack.c.l.b16 %v4296
    %v4335 = vunpack.c.h.b16 %v4296
    %v4336 = vunpack.c.l.b16 %v4297
    %v4337 = vunpack.c.h.b16 %v4297
    %v4338 = vunpack.c.l.b16 %v4298
    %v4339 = vunpack.c.h.b16 %v4298
    %v4340 = vunpack.c.l.b16 %v4299
    %v4341 = vunpack.c.h.b16 %v4299
    %v4342 = vunpack.c.l.b16 %v4300
    %v4343 = vunpack.c.h.b16 %v4300
    %v4344 = vunpack.c.l.b16 %v4301
    %v4345 = vunpack.c.h.b16 %v4301
    %v4346 = vunpack.c.l.b16 %v4302
    %v4347 = vunpack.c.h.b16 %v4302
    %v4348 = vunpack.c.l.b16 %v4303
    %v4349 = vunpack.c.h.b16 %v4303
    %v4350 = vunpack.c.l.b16 %v4304
    %v4351 = vunpack.c.h.b16 %v4304
    %v4352 = vunpack.c.l.b16 %v4305
    %v4353 = vunpack.c.h.b16 %v4305
    %v4354 = vunpack.c.l.b16 %v4306
    %v4355 = vunpack.c.h.b16 %v4306
    %v4356 = vunpack.c.l.b16 %v4307
    %v4357 = vunpack.c.h.b16 %v4307
    %v4358 = vunpack.c.l.b16 %v4308
    %v4359 = vunpack.c.h.b16 %v4308
    %v4360 = vpack.c.b16 %v4330, %v4328
    %v4361 = vpack.c.b16 %v4331, %v4329
    %v4362 = vpack.c.b16 %v4334, %v4332
    %v4363 = vpack.c.b16 %v4335, %v4333
    %v4364 = vpack.c.b16 %v4338, %v4336
    %v4365 = vpack.c.b16 %v4339, %v4337
    %v4366 = vpack.c.b16 %v4342, %v4340
    %v4367 = vpack.c.b16 %v4343, %v4341
    %v4368 = vpack.c.b16 %v4346, %v4344
    %v4369 = vpack.c.b16 %v4347, %v4345
    %v4370 = vpack.c.b16 %v4350, %v4348
    %v4371 = vpack.c.b16 %v4351, %v4349
    %v4372 = vpack.c.b16 %v4354, %v4352
    %v4373 = vpack.c.b16 %v4355, %v4353
    %v4374 = vpack.c.b16 %v4358, %v4356
    %v4375 = vpack.c.b16 %v4359, %v4357
    %4392 = vmatprep.subr.bf16.mxu0 %v4375
    %4393 = vmatpush1.bf16.msra.mxu0 %v4374
    %4394 = vmatprep.subr.bf16.mxu0 %v4373
    %4395 = vmatpush1.bf16.msra.mxu0 %v4372
    %4396 = vmatprep.subr.bf16.mxu0 %v4371
    %4397 = vmatpush1.bf16.msra.mxu0 %v4370
    %4398 = vmatprep.subr.bf16.mxu0 %v4369
    %4399 = vmatpush1.bf16.msra.mxu0 %v4368
    %4400 = vmatprep.subr.bf16.mxu0 %v4367
    %4401 = vmatpush1.bf16.msra.mxu0 %v4366
    %4402 = vmatprep.subr.bf16.mxu0 %v4365
    %4403 = vmatpush1.bf16.msra.mxu0 %v4364
    %4404 = vmatprep.subr.bf16.mxu0 %v4363
    %4405 = vmatpush1.bf16.msra.mxu0 %v4362
    %4406 = vmatprep.subr.bf16.mxu0 %v4361
    %4407 = vmatpush1.bf16.msra.mxu0 %v4360
    %4408 = vmatprep.subr.bf16.mxu0 0
    %4409 = vmatpush2.bf16.msra.mxu0 0
    %4410 = vmatprep.subr.bf16.mxu0 0
    %4411 = vmatpush2.bf16.msra.mxu0 0
    %4412 = vmatprep.subr.bf16.mxu0 0
    %4413 = vmatpush2.bf16.msra.mxu0 0
    %4414 = vmatprep.subr.bf16.mxu0 0
    %4415 = vmatpush2.bf16.msra.mxu0 0
    %4416 = vmatprep.subr.bf16.mxu0 0
    %4417 = vmatpush2.bf16.msra.mxu0 0
    %4418 = vmatprep.subr.bf16.mxu0 0
    %4419 = vmatpush2.bf16.msra.mxu0 0
    %4420 = vmatprep.subr.bf16.mxu0 0
    %4421 = vmatpush2.bf16.msra.mxu0 0
    %4422 = vmatprep.subr.bf16.mxu0 0
    %4423 = vmatpush2.bf16.msra.mxu0 0
    %4424 = vmatprep.mubr.bf16.mxu0 0
    %4425 = vmatmul.mubr.bf16.gmra.mxu0 %v4310
    %v4426 = vpop.f32.mrf.mxu0
    %v4427 = vadd.f32 0.0, %v4426
    %v4428 = vpop.f32.mrf.mxu0
    %v4429 = vadd.f32 0.0, %v4428
    %v4430 = vpop.f32.mrf.mxu0
    %v4431 = vpop.f32.mrf.mxu0
    %4432 = vdwg.mxu0
    %v4433 = vadd.f32 %v4291, %v4427
    %v4434 = vadd.f32 %v4292, %v4429
    %v4435 = vpack.c.bf16 %v3574, %v3574
    %v4436 = vld [vmem:[#allocation4 + $0x300] sm:$0xff]
    %v4437 = vld [vmem:[#allocation4 + $0x308] sm:$0xff]
    %v4438 = vld [vmem:[#allocation4 + $0x310] sm:$0xff]
    %v4439 = vld [vmem:[#allocation4 + $0x318] sm:$0xff]
    %v4440 = vld [vmem:[#allocation4 + $0x320] sm:$0xff]
    %v4441 = vld [vmem:[#allocation4 + $0x328] sm:$0xff]
    %v4442 = vld [vmem:[#allocation4 + $0x330] sm:$0xff]
    %v4443 = vld [vmem:[#allocation4 + $0x338] sm:$0xff]
    %v4444 = vld [vmem:[#allocation4 + $0x340] sm:$0xff]
    %v4445 = vld [vmem:[#allocation4 + $0x348] sm:$0xff]
    %v4446 = vld [vmem:[#allocation4 + $0x350] sm:$0xff]
    %v4447 = vld [vmem:[#allocation4 + $0x358] sm:$0xff]
    %v4448 = vld [vmem:[#allocation4 + $0x360] sm:$0xff]
    %v4449 = vld [vmem:[#allocation4 + $0x368] sm:$0xff]
    %v4450 = vld [vmem:[#allocation4 + $0x370] sm:$0xff]
    %v4451 = vld [vmem:[#allocation4 + $0x378] sm:$0xff]
    %v4468 = vunpack.c.l.b16 %v4436
    %v4469 = vunpack.c.h.b16 %v4436
    %v4470 = vunpack.c.l.b16 %v4437
    %v4471 = vunpack.c.h.b16 %v4437
    %v4472 = vunpack.c.l.b16 %v4438
    %v4473 = vunpack.c.h.b16 %v4438
    %v4474 = vunpack.c.l.b16 %v4439
    %v4475 = vunpack.c.h.b16 %v4439
    %v4476 = vunpack.c.l.b16 %v4440
    %v4477 = vunpack.c.h.b16 %v4440
    %v4478 = vunpack.c.l.b16 %v4441
    %v4479 = vunpack.c.h.b16 %v4441
    %v4480 = vunpack.c.l.b16 %v4442
    %v4481 = vunpack.c.h.b16 %v4442
    %v4482 = vunpack.c.l.b16 %v4443
    %v4483 = vunpack.c.h.b16 %v4443
    %v4484 = vunpack.c.l.b16 %v4444
    %v4485 = vunpack.c.h.b16 %v4444
    %v4486 = vunpack.c.l.b16 %v4445
    %v4487 = vunpack.c.h.b16 %v4445
    %v4488 = vunpack.c.l.b16 %v4446
    %v4489 = vunpack.c.h.b16 %v4446
    %v4490 = vunpack.c.l.b16 %v4447
    %v4491 = vunpack.c.h.b16 %v4447
    %v4492 = vunpack.c.l.b16 %v4448
    %v4493 = vunpack.c.h.b16 %v4448
    %v4494 = vunpack.c.l.b16 %v4449
    %v4495 = vunpack.c.h.b16 %v4449
    %v4496 = vunpack.c.l.b16 %v4450
    %v4497 = vunpack.c.h.b16 %v4450
    %v4498 = vunpack.c.l.b16 %v4451
    %v4499 = vunpack.c.h.b16 %v4451
    %v4500 = vpack.c.b16 %v4470, %v4468
    %v4501 = vpack.c.b16 %v4471, %v4469
    %v4502 = vpack.c.b16 %v4474, %v4472
    %v4503 = vpack.c.b16 %v4475, %v4473
    %v4504 = vpack.c.b16 %v4478, %v4476
    %v4505 = vpack.c.b16 %v4479, %v4477
    %v4506 = vpack.c.b16 %v4482, %v4480
    %v4507 = vpack.c.b16 %v4483, %v4481
    %v4508 = vpack.c.b16 %v4486, %v4484
    %v4509 = vpack.c.b16 %v4487, %v4485
    %v4510 = vpack.c.b16 %v4490, %v4488
    %v4511 = vpack.c.b16 %v4491, %v4489
    %v4512 = vpack.c.b16 %v4494, %v4492
    %v4513 = vpack.c.b16 %v4495, %v4493
    %v4514 = vpack.c.b16 %v4498, %v4496
    %v4515 = vpack.c.b16 %v4499, %v4497
    %4532 = vmatprep.subr.bf16.mxu0 %v4515
    %4533 = vmatpush1.bf16.msra.mxu0 %v4514
    %4534 = vmatprep.subr.bf16.mxu0 %v4513
    %4535 = vmatpush1.bf16.msra.mxu0 %v4512
    %4536 = vmatprep.subr.bf16.mxu0 %v4511
    %4537 = vmatpush1.bf16.msra.mxu0 %v4510
    %4538 = vmatprep.subr.bf16.mxu0 %v4509
    %4539 = vmatpush1.bf16.msra.mxu0 %v4508
    %4540 = vmatprep.subr.bf16.mxu0 %v4507
    %4541 = vmatpush1.bf16.msra.mxu0 %v4506
    %4542 = vmatprep.subr.bf16.mxu0 %v4505
    %4543 = vmatpush1.bf16.msra.mxu0 %v4504
    %4544 = vmatprep.subr.bf16.mxu0 %v4503
    %4545 = vmatpush1.bf16.msra.mxu0 %v4502
    %4546 = vmatprep.subr.bf16.mxu0 %v4501
    %4547 = vmatpush1.bf16.msra.mxu0 %v4500
    %4548 = vmatprep.subr.bf16.mxu0 0
    %4549 = vmatpush2.bf16.msra.mxu0 0
    %4550 = vmatprep.subr.bf16.mxu0 0
    %4551 = vmatpush2.bf16.msra.mxu0 0
    %4552 = vmatprep.subr.bf16.mxu0 0
    %4553 = vmatpush2.bf16.msra.mxu0 0
    %4554 = vmatprep.subr.bf16.mxu0 0
    %4555 = vmatpush2.bf16.msra.mxu0 0
    %4556 = vmatprep.subr.bf16.mxu0 0
    %4557 = vmatpush2.bf16.msra.mxu0 0
    %4558 = vmatprep.subr.bf16.mxu0 0
    %4559 = vmatpush2.bf16.msra.mxu0 0
    %4560 = vmatprep.subr.bf16.mxu0 0
    %4561 = vmatpush2.bf16.msra.mxu0 0
    %4562 = vmatprep.subr.bf16.mxu0 0
    %4563 = vmatpush2.bf16.msra.mxu0 0
    %4564 = vmatprep.mubr.bf16.mxu0 0
    %4565 = vmatmul.mubr.bf16.gmra.mxu0 %v4435
    %v4566 = vpop.f32.mrf.mxu0
    %v4567 = vadd.f32 0.0, %v4566
    %v4568 = vpop.f32.mrf.mxu0
    %v4569 = vadd.f32 0.0, %v4568
    %v4570 = vpop.f32.mrf.mxu0
    %v4571 = vpop.f32.mrf.mxu0
    %4572 = vdwg.mxu0
    %v4573 = vadd.f32 %v4433, %v4567
    %v4574 = vadd.f32 %v4434, %v4569
    %v4575 = vld [vmem:[#allocation4 + $0x380] sm:$0xff]
    %v4576 = vld [vmem:[#allocation4 + $0x388] sm:$0xff]
    %v4577 = vld [vmem:[#allocation4 + $0x390] sm:$0xff]
    %v4578 = vld [vmem:[#allocation4 + $0x398] sm:$0xff]
    %v4579 = vld [vmem:[#allocation4 + $0x3a0] sm:$0xff]
    %v4580 = vld [vmem:[#allocation4 + $0x3a8] sm:$0xff]
    %v4581 = vld [vmem:[#allocation4 + $0x3b0] sm:$0xff]
    %v4582 = vld [vmem:[#allocation4 + $0x3b8] sm:$0xff]
    %v4583 = vld [vmem:[#allocation4 + $0x3c0] sm:$0xff]
    %v4584 = vld [vmem:[#allocation4 + $0x3c8] sm:$0xff]
    %v4585 = vld [vmem:[#allocation4 + $0x3d0] sm:$0xff]
    %v4586 = vld [vmem:[#allocation4 + $0x3d8] sm:$0xff]
    %v4587 = vld [vmem:[#allocation4 + $0x3e0] sm:$0xff]
    %v4588 = vld [vmem:[#allocation4 + $0x3e8] sm:$0xff]
    %v4589 = vld [vmem:[#allocation4 + $0x3f0] sm:$0xff]
    %v4590 = vld [vmem:[#allocation4 + $0x3f8] sm:$0xff]
    %v4592 = vrot.slane %v4435, 2
    %v4610 = vunpack.c.l.b16 %v4575
    %v4611 = vunpack.c.h.b16 %v4575
    %v4612 = vunpack.c.l.b16 %v4576
    %v4613 = vunpack.c.h.b16 %v4576
    %v4614 = vunpack.c.l.b16 %v4577
    %v4615 = vunpack.c.h.b16 %v4577
    %v4616 = vunpack.c.l.b16 %v4578
    %v4617 = vunpack.c.h.b16 %v4578
    %v4618 = vunpack.c.l.b16 %v4579
    %v4619 = vunpack.c.h.b16 %v4579
    %v4620 = vunpack.c.l.b16 %v4580
    %v4621 = vunpack.c.h.b16 %v4580
    %v4622 = vunpack.c.l.b16 %v4581
    %v4623 = vunpack.c.h.b16 %v4581
    %v4624 = vunpack.c.l.b16 %v4582
    %v4625 = vunpack.c.h.b16 %v4582
    %v4626 = vunpack.c.l.b16 %v4583
    %v4627 = vunpack.c.h.b16 %v4583
    %v4628 = vunpack.c.l.b16 %v4584
    %v4629 = vunpack.c.h.b16 %v4584
    %v4630 = vunpack.c.l.b16 %v4585
    %v4631 = vunpack.c.h.b16 %v4585
    %v4632 = vunpack.c.l.b16 %v4586
    %v4633 = vunpack.c.h.b16 %v4586
    %v4634 = vunpack.c.l.b16 %v4587
    %v4635 = vunpack.c.h.b16 %v4587
    %v4636 = vunpack.c.l.b16 %v4588
    %v4637 = vunpack.c.h.b16 %v4588
    %v4638 = vunpack.c.l.b16 %v4589
    %v4639 = vunpack.c.h.b16 %v4589
    %v4640 = vunpack.c.l.b16 %v4590
    %v4641 = vunpack.c.h.b16 %v4590
    %v4642 = vpack.c.b16 %v4612, %v4610
    %v4643 = vpack.c.b16 %v4613, %v4611
    %v4644 = vpack.c.b16 %v4616, %v4614
    %v4645 = vpack.c.b16 %v4617, %v4615
    %v4646 = vpack.c.b16 %v4620, %v4618
    %v4647 = vpack.c.b16 %v4621, %v4619
    %v4648 = vpack.c.b16 %v4624, %v4622
    %v4649 = vpack.c.b16 %v4625, %v4623
    %v4650 = vpack.c.b16 %v4628, %v4626
    %v4651 = vpack.c.b16 %v4629, %v4627
    %v4652 = vpack.c.b16 %v4632, %v4630
    %v4653 = vpack.c.b16 %v4633, %v4631
    %v4654 = vpack.c.b16 %v4636, %v4634
    %v4655 = vpack.c.b16 %v4637, %v4635
    %v4656 = vpack.c.b16 %v4640, %v4638
    %v4657 = vpack.c.b16 %v4641, %v4639
    %4674 = vmatprep.subr.bf16.mxu0 %v4657
    %4675 = vmatpush1.bf16.msra.mxu0 %v4656
    %4676 = vmatprep.subr.bf16.mxu0 %v4655
    %4677 = vmatpush1.bf16.msra.mxu0 %v4654
    %4678 = vmatprep.subr.bf16.mxu0 %v4653
    %4679 = vmatpush1.bf16.msra.mxu0 %v4652
    %4680 = vmatprep.subr.bf16.mxu0 %v4651
    %4681 = vmatpush1.bf16.msra.mxu0 %v4650
    %4682 = vmatprep.subr.bf16.mxu0 %v4649
    %4683 = vmatpush1.bf16.msra.mxu0 %v4648
    %4684 = vmatprep.subr.bf16.mxu0 %v4647
    %4685 = vmatpush1.bf16.msra.mxu0 %v4646
    %4686 = vmatprep.subr.bf16.mxu0 %v4645
    %4687 = vmatpush1.bf16.msra.mxu0 %v4644
    %4688 = vmatprep.subr.bf16.mxu0 %v4643
    %4689 = vmatpush1.bf16.msra.mxu0 %v4642
    %4690 = vmatprep.subr.bf16.mxu0 0
    %4691 = vmatpush2.bf16.msra.mxu0 0
    %4692 = vmatprep.subr.bf16.mxu0 0
    %4693 = vmatpush2.bf16.msra.mxu0 0
    %4694 = vmatprep.subr.bf16.mxu0 0
    %4695 = vmatpush2.bf16.msra.mxu0 0
    %4696 = vmatprep.subr.bf16.mxu0 0
    %4697 = vmatpush2.bf16.msra.mxu0 0
    %4698 = vmatprep.subr.bf16.mxu0 0
    %4699 = vmatpush2.bf16.msra.mxu0 0
    %4700 = vmatprep.subr.bf16.mxu0 0
    %4701 = vmatpush2.bf16.msra.mxu0 0
    %4702 = vmatprep.subr.bf16.mxu0 0
    %4703 = vmatpush2.bf16.msra.mxu0 0
    %4704 = vmatprep.subr.bf16.mxu0 0
    %4705 = vmatpush2.bf16.msra.mxu0 0
    %4706 = vmatprep.mubr.bf16.mxu0 0
    %4707 = vmatmul.mubr.bf16.gmra.mxu0 %v4592
    %v4708 = vpop.f32.mrf.mxu0
    %v4709 = vadd.f32 0.0, %v4708
    %v4710 = vpop.f32.mrf.mxu0
    %v4711 = vadd.f32 0.0, %v4710
    %v4712 = vpop.f32.mrf.mxu0
    %v4713 = vpop.f32.mrf.mxu0
    %4714 = vdwg.mxu0
    %v4715 = vadd.f32 %v4573, %v4709
    %v4716 = vadd.f32 %v4574, %v4711
    %v4717 = vpack.c.bf16 %v3579, %v3579
    %v4718 = vld [vmem:[#allocation4 + $0x400] sm:$0xff]
    %v4719 = vld [vmem:[#allocation4 + $0x408] sm:$0xff]
    %v4720 = vld [vmem:[#allocation4 + $0x410] sm:$0xff]
    %v4721 = vld [vmem:[#allocation4 + $0x418] sm:$0xff]
    %v4722 = vld [vmem:[#allocation4 + $0x420] sm:$0xff]
    %v4723 = vld [vmem:[#allocation4 + $0x428] sm:$0xff]
    %v4724 = vld [vmem:[#allocation4 + $0x430] sm:$0xff]
    %v4725 = vld [vmem:[#allocation4 + $0x438] sm:$0xff]
    %v4726 = vld [vmem:[#allocation4 + $0x440] sm:$0xff]
    %v4727 = vld [vmem:[#allocation4 + $0x448] sm:$0xff]
    %v4728 = vld [vmem:[#allocation4 + $0x450] sm:$0xff]
    %v4729 = vld [vmem:[#allocation4 + $0x458] sm:$0xff]
    %v4730 = vld [vmem:[#allocation4 + $0x460] sm:$0xff]
    %v4731 = vld [vmem:[#allocation4 + $0x468] sm:$0xff]
    %v4732 = vld [vmem:[#allocation4 + $0x470] sm:$0xff]
    %v4733 = vld [vmem:[#allocation4 + $0x478] sm:$0xff]
    %v4750 = vunpack.c.l.b16 %v4718
    %v4751 = vunpack.c.h.b16 %v4718
    %v4752 = vunpack.c.l.b16 %v4719
    %v4753 = vunpack.c.h.b16 %v4719
    %v4754 = vunpack.c.l.b16 %v4720
    %v4755 = vunpack.c.h.b16 %v4720
    %v4756 = vunpack.c.l.b16 %v4721
    %v4757 = vunpack.c.h.b16 %v4721
    %v4758 = vunpack.c.l.b16 %v4722
    %v4759 = vunpack.c.h.b16 %v4722
    %v4760 = vunpack.c.l.b16 %v4723
    %v4761 = vunpack.c.h.b16 %v4723
    %v4762 = vunpack.c.l.b16 %v4724
    %v4763 = vunpack.c.h.b16 %v4724
    %v4764 = vunpack.c.l.b16 %v4725
    %v4765 = vunpack.c.h.b16 %v4725
    %v4766 = vunpack.c.l.b16 %v4726
    %v4767 = vunpack.c.h.b16 %v4726
    %v4768 = vunpack.c.l.b16 %v4727
    %v4769 = vunpack.c.h.b16 %v4727
    %v4770 = vunpack.c.l.b16 %v4728
    %v4771 = vunpack.c.h.b16 %v4728
    %v4772 = vunpack.c.l.b16 %v4729
    %v4773 = vunpack.c.h.b16 %v4729
    %v4774 = vunpack.c.l.b16 %v4730
    %v4775 = vunpack.c.h.b16 %v4730
    %v4776 = vunpack.c.l.b16 %v4731
    %v4777 = vunpack.c.h.b16 %v4731
    %v4778 = vunpack.c.l.b16 %v4732
    %v4779 = vunpack.c.h.b16 %v4732
    %v4780 = vunpack.c.l.b16 %v4733
    %v4781 = vunpack.c.h.b16 %v4733
    %v4782 = vpack.c.b16 %v4752, %v4750
    %v4783 = vpack.c.b16 %v4753, %v4751
    %v4784 = vpack.c.b16 %v4756, %v4754
    %v4785 = vpack.c.b16 %v4757, %v4755
    %v4786 = vpack.c.b16 %v4760, %v4758
    %v4787 = vpack.c.b16 %v4761, %v4759
    %v4788 = vpack.c.b16 %v4764, %v4762
    %v4789 = vpack.c.b16 %v4765, %v4763
    %v4790 = vpack.c.b16 %v4768, %v4766
    %v4791 = vpack.c.b16 %v4769, %v4767
    %v4792 = vpack.c.b16 %v4772, %v4770
    %v4793 = vpack.c.b16 %v4773, %v4771
    %v4794 = vpack.c.b16 %v4776, %v4774
    %v4795 = vpack.c.b16 %v4777, %v4775
    %v4796 = vpack.c.b16 %v4780, %v4778
    %v4797 = vpack.c.b16 %v4781, %v4779
    %4814 = vmatprep.subr.bf16.mxu0 %v4797
    %4815 = vmatpush1.bf16.msra.mxu0 %v4796
    %4816 = vmatprep.subr.bf16.mxu0 %v4795
    %4817 = vmatpush1.bf16.msra.mxu0 %v4794
    %4818 = vmatprep.subr.bf16.mxu0 %v4793
    %4819 = vmatpush1.bf16.msra.mxu0 %v4792
    %4820 = vmatprep.subr.bf16.mxu0 %v4791
    %4821 = vmatpush1.bf16.msra.mxu0 %v4790
    %4822 = vmatprep.subr.bf16.mxu0 %v4789
    %4823 = vmatpush1.bf16.msra.mxu0 %v4788
    %4824 = vmatprep.subr.bf16.mxu0 %v4787
    %4825 = vmatpush1.bf16.msra.mxu0 %v4786
    %4826 = vmatprep.subr.bf16.mxu0 %v4785
    %4827 = vmatpush1.bf16.msra.mxu0 %v4784
    %4828 = vmatprep.subr.bf16.mxu0 %v4783
    %4829 = vmatpush1.bf16.msra.mxu0 %v4782
    %4830 = vmatprep.subr.bf16.mxu0 0
    %4831 = vmatpush2.bf16.msra.mxu0 0
    %4832 = vmatprep.subr.bf16.mxu0 0
    %4833 = vmatpush2.bf16.msra.mxu0 0
    %4834 = vmatprep.subr.bf16.mxu0 0
    %4835 = vmatpush2.bf16.msra.mxu0 0
    %4836 = vmatprep.subr.bf16.mxu0 0
    %4837 = vmatpush2.bf16.msra.mxu0 0
    %4838 = vmatprep.subr.bf16.mxu0 0
    %4839 = vmatpush2.bf16.msra.mxu0 0
    %4840 = vmatprep.subr.bf16.mxu0 0
    %4841 = vmatpush2.bf16.msra.mxu0 0
    %4842 = vmatprep.subr.bf16.mxu0 0
    %4843 = vmatpush2.bf16.msra.mxu0 0
    %4844 = vmatprep.subr.bf16.mxu0 0
    %4845 = vmatpush2.bf16.msra.mxu0 0
    %4846 = vmatprep.mubr.bf16.mxu0 0
    %4847 = vmatmul.mubr.bf16.gmra.mxu0 %v4717
    %v4848 = vpop.f32.mrf.mxu0
    %v4849 = vadd.f32 0.0, %v4848
    %v4850 = vpop.f32.mrf.mxu0
    %v4851 = vadd.f32 0.0, %v4850
    %v4852 = vpop.f32.mrf.mxu0
    %v4853 = vpop.f32.mrf.mxu0
    %4854 = vdwg.mxu0
    %v4855 = vadd.f32 %v4715, %v4849
    %v4856 = vadd.f32 %v4716, %v4851
    %v4857 = vld [vmem:[#allocation4 + $0x480] sm:$0xff]
    %v4858 = vld [vmem:[#allocation4 + $0x488] sm:$0xff]
    %v4859 = vld [vmem:[#allocation4 + $0x490] sm:$0xff]
    %v4860 = vld [vmem:[#allocation4 + $0x498] sm:$0xff]
    %v4861 = vld [vmem:[#allocation4 + $0x4a0] sm:$0xff]
    %v4862 = vld [vmem:[#allocation4 + $0x4a8] sm:$0xff]
    %v4863 = vld [vmem:[#allocation4 + $0x4b0] sm:$0xff]
    %v4864 = vld [vmem:[#allocation4 + $0x4b8] sm:$0xff]
    %v4865 = vld [vmem:[#allocation4 + $0x4c0] sm:$0xff]
    %v4866 = vld [vmem:[#allocation4 + $0x4c8] sm:$0xff]
    %v4867 = vld [vmem:[#allocation4 + $0x4d0] sm:$0xff]
    %v4868 = vld [vmem:[#allocation4 + $0x4d8] sm:$0xff]
    %v4869 = vld [vmem:[#allocation4 + $0x4e0] sm:$0xff]
    %v4870 = vld [vmem:[#allocation4 + $0x4e8] sm:$0xff]
    %v4871 = vld [vmem:[#allocation4 + $0x4f0] sm:$0xff]
    %v4872 = vld [vmem:[#allocation4 + $0x4f8] sm:$0xff]
    %v4874 = vrot.slane %v4717, 2
    %v4892 = vunpack.c.l.b16 %v4857
    %v4893 = vunpack.c.h.b16 %v4857
    %v4894 = vunpack.c.l.b16 %v4858
    %v4895 = vunpack.c.h.b16 %v4858
    %v4896 = vunpack.c.l.b16 %v4859
    %v4897 = vunpack.c.h.b16 %v4859
    %v4898 = vunpack.c.l.b16 %v4860
    %v4899 = vunpack.c.h.b16 %v4860
    %v4900 = vunpack.c.l.b16 %v4861
    %v4901 = vunpack.c.h.b16 %v4861
    %v4902 = vunpack.c.l.b16 %v4862
    %v4903 = vunpack.c.h.b16 %v4862
    %v4904 = vunpack.c.l.b16 %v4863
    %v4905 = vunpack.c.h.b16 %v4863
    %v4906 = vunpack.c.l.b16 %v4864
    %v4907 = vunpack.c.h.b16 %v4864
    %v4908 = vunpack.c.l.b16 %v4865
    %v4909 = vunpack.c.h.b16 %v4865
    %v4910 = vunpack.c.l.b16 %v4866
    %v4911 = vunpack.c.h.b16 %v4866
    %v4912 = vunpack.c.l.b16 %v4867
    %v4913 = vunpack.c.h.b16 %v4867
    %v4914 = vunpack.c.l.b16 %v4868
    %v4915 = vunpack.c.h.b16 %v4868
    %v4916 = vunpack.c.l.b16 %v4869
    %v4917 = vunpack.c.h.b16 %v4869
    %v4918 = vunpack.c.l.b16 %v4870
    %v4919 = vunpack.c.h.b16 %v4870
    %v4920 = vunpack.c.l.b16 %v4871
    %v4921 = vunpack.c.h.b16 %v4871
    %v4922 = vunpack.c.l.b16 %v4872
    %v4923 = vunpack.c.h.b16 %v4872
    %v4924 = vpack.c.b16 %v4894, %v4892
    %v4925 = vpack.c.b16 %v4895, %v4893
    %v4926 = vpack.c.b16 %v4898, %v4896
    %v4927 = vpack.c.b16 %v4899, %v4897
    %v4928 = vpack.c.b16 %v4902, %v4900
    %v4929 = vpack.c.b16 %v4903, %v4901
    %v4930 = vpack.c.b16 %v4906, %v4904
    %v4931 = vpack.c.b16 %v4907, %v4905
    %v4932 = vpack.c.b16 %v4910, %v4908
    %v4933 = vpack.c.b16 %v4911, %v4909
    %v4934 = vpack.c.b16 %v4914, %v4912
    %v4935 = vpack.c.b16 %v4915, %v4913
    %v4936 = vpack.c.b16 %v4918, %v4916
    %v4937 = vpack.c.b16 %v4919, %v4917
    %v4938 = vpack.c.b16 %v4922, %v4920
    %v4939 = vpack.c.b16 %v4923, %v4921
    %4956 = vmatprep.subr.bf16.mxu0 %v4939
    %4957 = vmatpush1.bf16.msra.mxu0 %v4938
    %4958 = vmatprep.subr.bf16.mxu0 %v4937
    %4959 = vmatpush1.bf16.msra.mxu0 %v4936
    %4960 = vmatprep.subr.bf16.mxu0 %v4935
    %4961 = vmatpush1.bf16.msra.mxu0 %v4934
    %4962 = vmatprep.subr.bf16.mxu0 %v4933
    %4963 = vmatpush1.bf16.msra.mxu0 %v4932
    %4964 = vmatprep.subr.bf16.mxu0 %v4931
    %4965 = vmatpush1.bf16.msra.mxu0 %v4930
    %4966 = vmatprep.subr.bf16.mxu0 %v4929
    %4967 = vmatpush1.bf16.msra.mxu0 %v4928
    %4968 = vmatprep.subr.bf16.mxu0 %v4927
    %4969 = vmatpush1.bf16.msra.mxu0 %v4926
    %4970 = vmatprep.subr.bf16.mxu0 %v4925
    %4971 = vmatpush1.bf16.msra.mxu0 %v4924
    %4972 = vmatprep.subr.bf16.mxu0 0
    %4973 = vmatpush2.bf16.msra.mxu0 0
    %4974 = vmatprep.subr.bf16.mxu0 0
    %4975 = vmatpush2.bf16.msra.mxu0 0
    %4976 = vmatprep.subr.bf16.mxu0 0
    %4977 = vmatpush2.bf16.msra.mxu0 0
    %4978 = vmatprep.subr.bf16.mxu0 0
    %4979 = vmatpush2.bf16.msra.mxu0 0
    %4980 = vmatprep.subr.bf16.mxu0 0
    %4981 = vmatpush2.bf16.msra.mxu0 0
    %4982 = vmatprep.subr.bf16.mxu0 0
    %4983 = vmatpush2.bf16.msra.mxu0 0
    %4984 = vmatprep.subr.bf16.mxu0 0
    %4985 = vmatpush2.bf16.msra.mxu0 0
    %4986 = vmatprep.subr.bf16.mxu0 0
    %4987 = vmatpush2.bf16.msra.mxu0 0
    %4988 = vmatprep.mubr.bf16.mxu0 0
    %4989 = vmatmul.mubr.bf16.gmra.mxu0 %v4874
    %v4990 = vpop.f32.mrf.mxu0
    %v4991 = vadd.f32 0.0, %v4990
    %v4992 = vpop.f32.mrf.mxu0
    %v4993 = vadd.f32 0.0, %v4992
    %v4994 = vpop.f32.mrf.mxu0
    %v4995 = vpop.f32.mrf.mxu0
    %4996 = vdwg.mxu0
    %v4997 = vadd.f32 %v4855, %v4991
    %v4998 = vadd.f32 %v4856, %v4993
    %v4999 = vpack.c.bf16 %v3582, %v3582
    %v5000 = vld [vmem:[#allocation4 + $0x500] sm:$0xff]
    %v5001 = vld [vmem:[#allocation4 + $0x508] sm:$0xff]
    %v5002 = vld [vmem:[#allocation4 + $0x510] sm:$0xff]
    %v5003 = vld [vmem:[#allocation4 + $0x518] sm:$0xff]
    %v5004 = vld [vmem:[#allocation4 + $0x520] sm:$0xff]
    %v5005 = vld [vmem:[#allocation4 + $0x528] sm:$0xff]
    %v5006 = vld [vmem:[#allocation4 + $0x530] sm:$0xff]
    %v5007 = vld [vmem:[#allocation4 + $0x538] sm:$0xff]
    %v5008 = vld [vmem:[#allocation4 + $0x540] sm:$0xff]
    %v5009 = vld [vmem:[#allocation4 + $0x548] sm:$0xff]
    %v5010 = vld [vmem:[#allocation4 + $0x550] sm:$0xff]
    %v5011 = vld [vmem:[#allocation4 + $0x558] sm:$0xff]
    %v5012 = vld [vmem:[#allocation4 + $0x560] sm:$0xff]
    %v5013 = vld [vmem:[#allocation4 + $0x568] sm:$0xff]
    %v5014 = vld [vmem:[#allocation4 + $0x570] sm:$0xff]
    %v5015 = vld [vmem:[#allocation4 + $0x578] sm:$0xff]
    %v5032 = vunpack.c.l.b16 %v5000
    %v5033 = vunpack.c.h.b16 %v5000
    %v5034 = vunpack.c.l.b16 %v5001
    %v5035 = vunpack.c.h.b16 %v5001
    %v5036 = vunpack.c.l.b16 %v5002
    %v5037 = vunpack.c.h.b16 %v5002
    %v5038 = vunpack.c.l.b16 %v5003
    %v5039 = vunpack.c.h.b16 %v5003
    %v5040 = vunpack.c.l.b16 %v5004
    %v5041 = vunpack.c.h.b16 %v5004
    %v5042 = vunpack.c.l.b16 %v5005
    %v5043 = vunpack.c.h.b16 %v5005
    %v5044 = vunpack.c.l.b16 %v5006
    %v5045 = vunpack.c.h.b16 %v5006
    %v5046 = vunpack.c.l.b16 %v5007
    %v5047 = vunpack.c.h.b16 %v5007
    %v5048 = vunpack.c.l.b16 %v5008
    %v5049 = vunpack.c.h.b16 %v5008
    %v5050 = vunpack.c.l.b16 %v5009
    %v5051 = vunpack.c.h.b16 %v5009
    %v5052 = vunpack.c.l.b16 %v5010
    %v5053 = vunpack.c.h.b16 %v5010
    %v5054 = vunpack.c.l.b16 %v5011
    %v5055 = vunpack.c.h.b16 %v5011
    %v5056 = vunpack.c.l.b16 %v5012
    %v5057 = vunpack.c.h.b16 %v5012
    %v5058 = vunpack.c.l.b16 %v5013
    %v5059 = vunpack.c.h.b16 %v5013
    %v5060 = vunpack.c.l.b16 %v5014
    %v5061 = vunpack.c.h.b16 %v5014
    %v5062 = vunpack.c.l.b16 %v5015
    %v5063 = vunpack.c.h.b16 %v5015
    %v5064 = vpack.c.b16 %v5034, %v5032
    %v5065 = vpack.c.b16 %v5035, %v5033
    %v5066 = vpack.c.b16 %v5038, %v5036
    %v5067 = vpack.c.b16 %v5039, %v5037
    %v5068 = vpack.c.b16 %v5042, %v5040
    %v5069 = vpack.c.b16 %v5043, %v5041
    %v5070 = vpack.c.b16 %v5046, %v5044
    %v5071 = vpack.c.b16 %v5047, %v5045
    %v5072 = vpack.c.b16 %v5050, %v5048
    %v5073 = vpack.c.b16 %v5051, %v5049
    %v5074 = vpack.c.b16 %v5054, %v5052
    %v5075 = vpack.c.b16 %v5055, %v5053
    %v5076 = vpack.c.b16 %v5058, %v5056
    %v5077 = vpack.c.b16 %v5059, %v5057
    %v5078 = vpack.c.b16 %v5062, %v5060
    %v5079 = vpack.c.b16 %v5063, %v5061
    %5096 = vmatprep.subr.bf16.mxu0 %v5079
    %5097 = vmatpush1.bf16.msra.mxu0 %v5078
    %5098 = vmatprep.subr.bf16.mxu0 %v5077
    %5099 = vmatpush1.bf16.msra.mxu0 %v5076
    %5100 = vmatprep.subr.bf16.mxu0 %v5075
    %5101 = vmatpush1.bf16.msra.mxu0 %v5074
    %5102 = vmatprep.subr.bf16.mxu0 %v5073
    %5103 = vmatpush1.bf16.msra.mxu0 %v5072
    %5104 = vmatprep.subr.bf16.mxu0 %v5071
    %5105 = vmatpush1.bf16.msra.mxu0 %v5070
    %5106 = vmatprep.subr.bf16.mxu0 %v5069
    %5107 = vmatpush1.bf16.msra.mxu0 %v5068
    %5108 = vmatprep.subr.bf16.mxu0 %v5067
    %5109 = vmatpush1.bf16.msra.mxu0 %v5066
    %5110 = vmatprep.subr.bf16.mxu0 %v5065
    %5111 = vmatpush1.bf16.msra.mxu0 %v5064
    %5112 = vmatprep.subr.bf16.mxu0 0
    %5113 = vmatpush2.bf16.msra.mxu0 0
    %5114 = vmatprep.subr.bf16.mxu0 0
    %5115 = vmatpush2.bf16.msra.mxu0 0
    %5116 = vmatprep.subr.bf16.mxu0 0
    %5117 = vmatpush2.bf16.msra.mxu0 0
    %5118 = vmatprep.subr.bf16.mxu0 0
    %5119 = vmatpush2.bf16.msra.mxu0 0
    %5120 = vmatprep.subr.bf16.mxu0 0
    %5121 = vmatpush2.bf16.msra.mxu0 0
    %5122 = vmatprep.subr.bf16.mxu0 0
    %5123 = vmatpush2.bf16.msra.mxu0 0
    %5124 = vmatprep.subr.bf16.mxu0 0
    %5125 = vmatpush2.bf16.msra.mxu0 0
    %5126 = vmatprep.subr.bf16.mxu0 0
    %5127 = vmatpush2.bf16.msra.mxu0 0
    %5128 = vmatprep.mubr.bf16.mxu0 0
    %5129 = vmatmul.mubr.bf16.gmra.mxu0 %v4999
    %v5130 = vpop.f32.mrf.mxu0
    %v5131 = vadd.f32 0.0, %v5130
    %v5132 = vpop.f32.mrf.mxu0
    %v5133 = vadd.f32 0.0, %v5132
    %v5134 = vpop.f32.mrf.mxu0
    %v5135 = vpop.f32.mrf.mxu0
    %5136 = vdwg.mxu0
    %v5137 = vadd.f32 %v4997, %v5131
    %v5138 = vadd.f32 %v4998, %v5133
    %v5139 = vld [vmem:[#allocation4 + $0x580] sm:$0xff]
    %v5140 = vld [vmem:[#allocation4 + $0x588] sm:$0xff]
    %v5141 = vld [vmem:[#allocation4 + $0x590] sm:$0xff]
    %v5142 = vld [vmem:[#allocation4 + $0x598] sm:$0xff]
    %v5143 = vld [vmem:[#allocation4 + $0x5a0] sm:$0xff]
    %v5144 = vld [vmem:[#allocation4 + $0x5a8] sm:$0xff]
    %v5145 = vld [vmem:[#allocation4 + $0x5b0] sm:$0xff]
    %v5146 = vld [vmem:[#allocation4 + $0x5b8] sm:$0xff]
    %v5147 = vld [vmem:[#allocation4 + $0x5c0] sm:$0xff]
    %v5148 = vld [vmem:[#allocation4 + $0x5c8] sm:$0xff]
    %v5149 = vld [vmem:[#allocation4 + $0x5d0] sm:$0xff]
    %v5150 = vld [vmem:[#allocation4 + $0x5d8] sm:$0xff]
    %v5151 = vld [vmem:[#allocation4 + $0x5e0] sm:$0xff]
    %v5152 = vld [vmem:[#allocation4 + $0x5e8] sm:$0xff]
    %v5153 = vld [vmem:[#allocation4 + $0x5f0] sm:$0xff]
    %v5154 = vld [vmem:[#allocation4 + $0x5f8] sm:$0xff]
    %v5156 = vrot.slane %v4999, 2
    %v5174 = vunpack.c.l.b16 %v5139
    %v5175 = vunpack.c.h.b16 %v5139
    %v5176 = vunpack.c.l.b16 %v5140
    %v5177 = vunpack.c.h.b16 %v5140
    %v5178 = vunpack.c.l.b16 %v5141
    %v5179 = vunpack.c.h.b16 %v5141
    %v5180 = vunpack.c.l.b16 %v5142
    %v5181 = vunpack.c.h.b16 %v5142
    %v5182 = vunpack.c.l.b16 %v5143
    %v5183 = vunpack.c.h.b16 %v5143
    %v5184 = vunpack.c.l.b16 %v5144
    %v5185 = vunpack.c.h.b16 %v5144
    %v5186 = vunpack.c.l.b16 %v5145
    %v5187 = vunpack.c.h.b16 %v5145
    %v5188 = vunpack.c.l.b16 %v5146
    %v5189 = vunpack.c.h.b16 %v5146
    %v5190 = vunpack.c.l.b16 %v5147
    %v5191 = vunpack.c.h.b16 %v5147
    %v5192 = vunpack.c.l.b16 %v5148
    %v5193 = vunpack.c.h.b16 %v5148
    %v5194 = vunpack.c.l.b16 %v5149
    %v5195 = vunpack.c.h.b16 %v5149
    %v5196 = vunpack.c.l.b16 %v5150
    %v5197 = vunpack.c.h.b16 %v5150
    %v5198 = vunpack.c.l.b16 %v5151
    %v5199 = vunpack.c.h.b16 %v5151
    %v5200 = vunpack.c.l.b16 %v5152
    %v5201 = vunpack.c.h.b16 %v5152
    %v5202 = vunpack.c.l.b16 %v5153
    %v5203 = vunpack.c.h.b16 %v5153
    %v5204 = vunpack.c.l.b16 %v5154
    %v5205 = vunpack.c.h.b16 %v5154
    %v5206 = vpack.c.b16 %v5176, %v5174
    %v5207 = vpack.c.b16 %v5177, %v5175
    %v5208 = vpack.c.b16 %v5180, %v5178
    %v5209 = vpack.c.b16 %v5181, %v5179
    %v5210 = vpack.c.b16 %v5184, %v5182
    %v5211 = vpack.c.b16 %v5185, %v5183
    %v5212 = vpack.c.b16 %v5188, %v5186
    %v5213 = vpack.c.b16 %v5189, %v5187
    %v5214 = vpack.c.b16 %v5192, %v5190
    %v5215 = vpack.c.b16 %v5193, %v5191
    %v5216 = vpack.c.b16 %v5196, %v5194
    %v5217 = vpack.c.b16 %v5197, %v5195
    %v5218 = vpack.c.b16 %v5200, %v5198
    %v5219 = vpack.c.b16 %v5201, %v5199
    %v5220 = vpack.c.b16 %v5204, %v5202
    %v5221 = vpack.c.b16 %v5205, %v5203
    %5238 = vmatprep.subr.bf16.mxu0 %v5221
    %5239 = vmatpush1.bf16.msra.mxu0 %v5220
    %5240 = vmatprep.subr.bf16.mxu0 %v5219
    %5241 = vmatpush1.bf16.msra.mxu0 %v5218
    %5242 = vmatprep.subr.bf16.mxu0 %v5217
    %5243 = vmatpush1.bf16.msra.mxu0 %v5216
    %5244 = vmatprep.subr.bf16.mxu0 %v5215
    %5245 = vmatpush1.bf16.msra.mxu0 %v5214
    %5246 = vmatprep.subr.bf16.mxu0 %v5213
    %5247 = vmatpush1.bf16.msra.mxu0 %v5212
    %5248 = vmatprep.subr.bf16.mxu0 %v5211
    %5249 = vmatpush1.bf16.msra.mxu0 %v5210
    %5250 = vmatprep.subr.bf16.mxu0 %v5209
    %5251 = vmatpush1.bf16.msra.mxu0 %v5208
    %5252 = vmatprep.subr.bf16.mxu0 %v5207
    %5253 = vmatpush1.bf16.msra.mxu0 %v5206
    %5254 = vmatprep.subr.bf16.mxu0 0
    %5255 = vmatpush2.bf16.msra.mxu0 0
    %5256 = vmatprep.subr.bf16.mxu0 0
    %5257 = vmatpush2.bf16.msra.mxu0 0
    %5258 = vmatprep.subr.bf16.mxu0 0
    %5259 = vmatpush2.bf16.msra.mxu0 0
    %5260 = vmatprep.subr.bf16.mxu0 0
    %5261 = vmatpush2.bf16.msra.mxu0 0
    %5262 = vmatprep.subr.bf16.mxu0 0
    %5263 = vmatpush2.bf16.msra.mxu0 0
    %5264 = vmatprep.subr.bf16.mxu0 0
    %5265 = vmatpush2.bf16.msra.mxu0 0
    %5266 = vmatprep.subr.bf16.mxu0 0
    %5267 = vmatpush2.bf16.msra.mxu0 0
    %5268 = vmatprep.subr.bf16.mxu0 0
    %5269 = vmatpush2.bf16.msra.mxu0 0
    %5270 = vmatprep.mubr.bf16.mxu0 0
    %5271 = vmatmul.mubr.bf16.gmra.mxu0 %v5156
    %v5272 = vpop.f32.mrf.mxu0
    %v5273 = vadd.f32 0.0, %v5272
    %v5274 = vpop.f32.mrf.mxu0
    %v5275 = vadd.f32 0.0, %v5274
    %v5276 = vpop.f32.mrf.mxu0
    %v5277 = vpop.f32.mrf.mxu0
    %5278 = vdwg.mxu0
    %v5279 = vadd.f32 %v5137, %v5273
    %v5280 = vadd.f32 %v5138, %v5275
    %v5281 = vpack.c.bf16 %v3587, %v3587
    %v5282 = vld [vmem:[#allocation4 + $0x600] sm:$0xff]
    %v5283 = vld [vmem:[#allocation4 + $0x608] sm:$0xff]
    %v5284 = vld [vmem:[#allocation4 + $0x610] sm:$0xff]
    %v5285 = vld [vmem:[#allocation4 + $0x618] sm:$0xff]
    %v5286 = vld [vmem:[#allocation4 + $0x620] sm:$0xff]
    %v5287 = vld [vmem:[#allocation4 + $0x628] sm:$0xff]
    %v5288 = vld [vmem:[#allocation4 + $0x630] sm:$0xff]
    %v5289 = vld [vmem:[#allocation4 + $0x638] sm:$0xff]
    %v5290 = vld [vmem:[#allocation4 + $0x640] sm:$0xff]
    %v5291 = vld [vmem:[#allocation4 + $0x648] sm:$0xff]
    %v5292 = vld [vmem:[#allocation4 + $0x650] sm:$0xff]
    %v5293 = vld [vmem:[#allocation4 + $0x658] sm:$0xff]
    %v5294 = vld [vmem:[#allocation4 + $0x660] sm:$0xff]
    %v5295 = vld [vmem:[#allocation4 + $0x668] sm:$0xff]
    %v5296 = vld [vmem:[#allocation4 + $0x670] sm:$0xff]
    %v5297 = vld [vmem:[#allocation4 + $0x678] sm:$0xff]
    %v5314 = vunpack.c.l.b16 %v5282
    %v5315 = vunpack.c.h.b16 %v5282
    %v5316 = vunpack.c.l.b16 %v5283
    %v5317 = vunpack.c.h.b16 %v5283
    %v5318 = vunpack.c.l.b16 %v5284
    %v5319 = vunpack.c.h.b16 %v5284
    %v5320 = vunpack.c.l.b16 %v5285
    %v5321 = vunpack.c.h.b16 %v5285
    %v5322 = vunpack.c.l.b16 %v5286
    %v5323 = vunpack.c.h.b16 %v5286
    %v5324 = vunpack.c.l.b16 %v5287
    %v5325 = vunpack.c.h.b16 %v5287
    %v5326 = vunpack.c.l.b16 %v5288
    %v5327 = vunpack.c.h.b16 %v5288
    %v5328 = vunpack.c.l.b16 %v5289
    %v5329 = vunpack.c.h.b16 %v5289
    %v5330 = vunpack.c.l.b16 %v5290
    %v5331 = vunpack.c.h.b16 %v5290
    %v5332 = vunpack.c.l.b16 %v5291
    %v5333 = vunpack.c.h.b16 %v5291
    %v5334 = vunpack.c.l.b16 %v5292
    %v5335 = vunpack.c.h.b16 %v5292
    %v5336 = vunpack.c.l.b16 %v5293
    %v5337 = vunpack.c.h.b16 %v5293
    %v5338 = vunpack.c.l.b16 %v5294
    %v5339 = vunpack.c.h.b16 %v5294
    %v5340 = vunpack.c.l.b16 %v5295
    %v5341 = vunpack.c.h.b16 %v5295
    %v5342 = vunpack.c.l.b16 %v5296
    %v5343 = vunpack.c.h.b16 %v5296
    %v5344 = vunpack.c.l.b16 %v5297
    %v5345 = vunpack.c.h.b16 %v5297
    %v5346 = vpack.c.b16 %v5316, %v5314
    %v5347 = vpack.c.b16 %v5317, %v5315
    %v5348 = vpack.c.b16 %v5320, %v5318
    %v5349 = vpack.c.b16 %v5321, %v5319
    %v5350 = vpack.c.b16 %v5324, %v5322
    %v5351 = vpack.c.b16 %v5325, %v5323
    %v5352 = vpack.c.b16 %v5328, %v5326
    %v5353 = vpack.c.b16 %v5329, %v5327
    %v5354 = vpack.c.b16 %v5332, %v5330
    %v5355 = vpack.c.b16 %v5333, %v5331
    %v5356 = vpack.c.b16 %v5336, %v5334
    %v5357 = vpack.c.b16 %v5337, %v5335
    %v5358 = vpack.c.b16 %v5340, %v5338
    %v5359 = vpack.c.b16 %v5341, %v5339
    %v5360 = vpack.c.b16 %v5344, %v5342
    %v5361 = vpack.c.b16 %v5345, %v5343
    %5378 = vmatprep.subr.bf16.mxu0 %v5361
    %5379 = vmatpush1.bf16.msra.mxu0 %v5360
    %5380 = vmatprep.subr.bf16.mxu0 %v5359
    %5381 = vmatpush1.bf16.msra.mxu0 %v5358
    %5382 = vmatprep.subr.bf16.mxu0 %v5357
    %5383 = vmatpush1.bf16.msra.mxu0 %v5356
    %5384 = vmatprep.subr.bf16.mxu0 %v5355
    %5385 = vmatpush1.bf16.msra.mxu0 %v5354
    %5386 = vmatprep.subr.bf16.mxu0 %v5353
    %5387 = vmatpush1.bf16.msra.mxu0 %v5352
    %5388 = vmatprep.subr.bf16.mxu0 %v5351
    %5389 = vmatpush1.bf16.msra.mxu0 %v5350
    %5390 = vmatprep.subr.bf16.mxu0 %v5349
    %5391 = vmatpush1.bf16.msra.mxu0 %v5348
    %5392 = vmatprep.subr.bf16.mxu0 %v5347
    %5393 = vmatpush1.bf16.msra.mxu0 %v5346
    %5394 = vmatprep.subr.bf16.mxu0 0
    %5395 = vmatpush2.bf16.msra.mxu0 0
    %5396 = vmatprep.subr.bf16.mxu0 0
    %5397 = vmatpush2.bf16.msra.mxu0 0
    %5398 = vmatprep.subr.bf16.mxu0 0
    %5399 = vmatpush2.bf16.msra.mxu0 0
    %5400 = vmatprep.subr.bf16.mxu0 0
    %5401 = vmatpush2.bf16.msra.mxu0 0
    %5402 = vmatprep.subr.bf16.mxu0 0
    %5403 = vmatpush2.bf16.msra.mxu0 0
    %5404 = vmatprep.subr.bf16.mxu0 0
    %5405 = vmatpush2.bf16.msra.mxu0 0
    %5406 = vmatprep.subr.bf16.mxu0 0
    %5407 = vmatpush2.bf16.msra.mxu0 0
    %5408 = vmatprep.subr.bf16.mxu0 0
    %5409 = vmatpush2.bf16.msra.mxu0 0
    %5410 = vmatprep.mubr.bf16.mxu0 0
    %5411 = vmatmul.mubr.bf16.gmra.mxu0 %v5281
    %v5412 = vpop.f32.mrf.mxu0
    %v5413 = vadd.f32 0.0, %v5412
    %v5414 = vpop.f32.mrf.mxu0
    %v5415 = vadd.f32 0.0, %v5414
    %v5416 = vpop.f32.mrf.mxu0
    %v5417 = vpop.f32.mrf.mxu0
    %5418 = vdwg.mxu0
    %v5419 = vadd.f32 %v5279, %v5413
    %v5420 = vadd.f32 %v5280, %v5415
    %v5421 = vld [vmem:[#allocation4 + $0x680] sm:$0xff]
    %v5422 = vld [vmem:[#allocation4 + $0x688] sm:$0xff]
    %v5423 = vld [vmem:[#allocation4 + $0x690] sm:$0xff]
    %v5424 = vld [vmem:[#allocation4 + $0x698] sm:$0xff]
    %v5425 = vld [vmem:[#allocation4 + $0x6a0] sm:$0xff]
    %v5426 = vld [vmem:[#allocation4 + $0x6a8] sm:$0xff]
    %v5427 = vld [vmem:[#allocation4 + $0x6b0] sm:$0xff]
    %v5428 = vld [vmem:[#allocation4 + $0x6b8] sm:$0xff]
    %v5429 = vld [vmem:[#allocation4 + $0x6c0] sm:$0xff]
    %v5430 = vld [vmem:[#allocation4 + $0x6c8] sm:$0xff]
    %v5431 = vld [vmem:[#allocation4 + $0x6d0] sm:$0xff]
    %v5432 = vld [vmem:[#allocation4 + $0x6d8] sm:$0xff]
    %v5433 = vld [vmem:[#allocation4 + $0x6e0] sm:$0xff]
    %v5434 = vld [vmem:[#allocation4 + $0x6e8] sm:$0xff]
    %v5435 = vld [vmem:[#allocation4 + $0x6f0] sm:$0xff]
    %v5436 = vld [vmem:[#allocation4 + $0x6f8] sm:$0xff]
    %v5438 = vrot.slane %v5281, 2
    %v5456 = vunpack.c.l.b16 %v5421
    %v5457 = vunpack.c.h.b16 %v5421
    %v5458 = vunpack.c.l.b16 %v5422
    %v5459 = vunpack.c.h.b16 %v5422
    %v5460 = vunpack.c.l.b16 %v5423
    %v5461 = vunpack.c.h.b16 %v5423
    %v5462 = vunpack.c.l.b16 %v5424
    %v5463 = vunpack.c.h.b16 %v5424
    %v5464 = vunpack.c.l.b16 %v5425
    %v5465 = vunpack.c.h.b16 %v5425
    %v5466 = vunpack.c.l.b16 %v5426
    %v5467 = vunpack.c.h.b16 %v5426
    %v5468 = vunpack.c.l.b16 %v5427
    %v5469 = vunpack.c.h.b16 %v5427
    %v5470 = vunpack.c.l.b16 %v5428
    %v5471 = vunpack.c.h.b16 %v5428
    %v5472 = vunpack.c.l.b16 %v5429
    %v5473 = vunpack.c.h.b16 %v5429
    %v5474 = vunpack.c.l.b16 %v5430
    %v5475 = vunpack.c.h.b16 %v5430
    %v5476 = vunpack.c.l.b16 %v5431
    %v5477 = vunpack.c.h.b16 %v5431
    %v5478 = vunpack.c.l.b16 %v5432
    %v5479 = vunpack.c.h.b16 %v5432
    %v5480 = vunpack.c.l.b16 %v5433
    %v5481 = vunpack.c.h.b16 %v5433
    %v5482 = vunpack.c.l.b16 %v5434
    %v5483 = vunpack.c.h.b16 %v5434
    %v5484 = vunpack.c.l.b16 %v5435
    %v5485 = vunpack.c.h.b16 %v5435
    %v5486 = vunpack.c.l.b16 %v5436
    %v5487 = vunpack.c.h.b16 %v5436
    %v5488 = vpack.c.b16 %v5458, %v5456
    %v5489 = vpack.c.b16 %v5459, %v5457
    %v5490 = vpack.c.b16 %v5462, %v5460
    %v5491 = vpack.c.b16 %v5463, %v5461
    %v5492 = vpack.c.b16 %v5466, %v5464
    %v5493 = vpack.c.b16 %v5467, %v5465
    %v5494 = vpack.c.b16 %v5470, %v5468
    %v5495 = vpack.c.b16 %v5471, %v5469
    %v5496 = vpack.c.b16 %v5474, %v5472
    %v5497 = vpack.c.b16 %v5475, %v5473
    %v5498 = vpack.c.b16 %v5478, %v5476
    %v5499 = vpack.c.b16 %v5479, %v5477
    %v5500 = vpack.c.b16 %v5482, %v5480
    %v5501 = vpack.c.b16 %v5483, %v5481
    %v5502 = vpack.c.b16 %v5486, %v5484
    %v5503 = vpack.c.b16 %v5487, %v5485
    %5520 = vmatprep.subr.bf16.mxu0 %v5503
    %5521 = vmatpush1.bf16.msra.mxu0 %v5502
    %5522 = vmatprep.subr.bf16.mxu0 %v5501
    %5523 = vmatpush1.bf16.msra.mxu0 %v5500
    %5524 = vmatprep.subr.bf16.mxu0 %v5499
    %5525 = vmatpush1.bf16.msra.mxu0 %v5498
    %5526 = vmatprep.subr.bf16.mxu0 %v5497
    %5527 = vmatpush1.bf16.msra.mxu0 %v5496
    %5528 = vmatprep.subr.bf16.mxu0 %v5495
    %5529 = vmatpush1.bf16.msra.mxu0 %v5494
    %5530 = vmatprep.subr.bf16.mxu0 %v5493
    %5531 = vmatpush1.bf16.msra.mxu0 %v5492
    %5532 = vmatprep.subr.bf16.mxu0 %v5491
    %5533 = vmatpush1.bf16.msra.mxu0 %v5490
    %5534 = vmatprep.subr.bf16.mxu0 %v5489
    %5535 = vmatpush1.bf16.msra.mxu0 %v5488
    %5536 = vmatprep.subr.bf16.mxu0 0
    %5537 = vmatpush2.bf16.msra.mxu0 0
    %5538 = vmatprep.subr.bf16.mxu0 0
    %5539 = vmatpush2.bf16.msra.mxu0 0
    %5540 = vmatprep.subr.bf16.mxu0 0
    %5541 = vmatpush2.bf16.msra.mxu0 0
    %5542 = vmatprep.subr.bf16.mxu0 0
    %5543 = vmatpush2.bf16.msra.mxu0 0
    %5544 = vmatprep.subr.bf16.mxu0 0
    %5545 = vmatpush2.bf16.msra.mxu0 0
    %5546 = vmatprep.subr.bf16.mxu0 0
    %5547 = vmatpush2.bf16.msra.mxu0 0
    %5548 = vmatprep.subr.bf16.mxu0 0
    %5549 = vmatpush2.bf16.msra.mxu0 0
    %5550 = vmatprep.subr.bf16.mxu0 0
    %5551 = vmatpush2.bf16.msra.mxu0 0
    %5552 = vmatprep.mubr.bf16.mxu0 0
    %5553 = vmatmul.mubr.bf16.gmra.mxu0 %v5438
    %v5554 = vpop.f32.mrf.mxu0
    %v5555 = vadd.f32 0.0, %v5554
    %v5556 = vpop.f32.mrf.mxu0
    %v5557 = vadd.f32 0.0, %v5556
    %v5558 = vpop.f32.mrf.mxu0
    %v5559 = vpop.f32.mrf.mxu0
    %5560 = vdwg.mxu0
    %v5561 = vadd.f32 %v5419, %v5555
    %v5562 = vadd.f32 %v5420, %v5557
    %v5563 = vpack.c.bf16 %v3590, %v3590
    %v5564 = vld [vmem:[#allocation4 + $0x700] sm:$0xff]
    %v5565 = vld [vmem:[#allocation4 + $0x708] sm:$0xff]
    %v5566 = vld [vmem:[#allocation4 + $0x710] sm:$0xff]
    %v5567 = vld [vmem:[#allocation4 + $0x718] sm:$0xff]
    %v5568 = vld [vmem:[#allocation4 + $0x720] sm:$0xff]
    %v5569 = vld [vmem:[#allocation4 + $0x728] sm:$0xff]
    %v5570 = vld [vmem:[#allocation4 + $0x730] sm:$0xff]
    %v5571 = vld [vmem:[#allocation4 + $0x738] sm:$0xff]
    %v5572 = vld [vmem:[#allocation4 + $0x740] sm:$0xff]
    %v5573 = vld [vmem:[#allocation4 + $0x748] sm:$0xff]
    %v5574 = vld [vmem:[#allocation4 + $0x750] sm:$0xff]
    %v5575 = vld [vmem:[#allocation4 + $0x758] sm:$0xff]
    %v5576 = vld [vmem:[#allocation4 + $0x760] sm:$0xff]
    %v5577 = vld [vmem:[#allocation4 + $0x768] sm:$0xff]
    %v5578 = vld [vmem:[#allocation4 + $0x770] sm:$0xff]
    %v5579 = vld [vmem:[#allocation4 + $0x778] sm:$0xff]
    %v5596 = vunpack.c.l.b16 %v5564
    %v5597 = vunpack.c.h.b16 %v5564
    %v5598 = vunpack.c.l.b16 %v5565
    %v5599 = vunpack.c.h.b16 %v5565
    %v5600 = vunpack.c.l.b16 %v5566
    %v5601 = vunpack.c.h.b16 %v5566
    %v5602 = vunpack.c.l.b16 %v5567
    %v5603 = vunpack.c.h.b16 %v5567
    %v5604 = vunpack.c.l.b16 %v5568
    %v5605 = vunpack.c.h.b16 %v5568
    %v5606 = vunpack.c.l.b16 %v5569
    %v5607 = vunpack.c.h.b16 %v5569
    %v5608 = vunpack.c.l.b16 %v5570
    %v5609 = vunpack.c.h.b16 %v5570
    %v5610 = vunpack.c.l.b16 %v5571
    %v5611 = vunpack.c.h.b16 %v5571
    %v5612 = vunpack.c.l.b16 %v5572
    %v5613 = vunpack.c.h.b16 %v5572
    %v5614 = vunpack.c.l.b16 %v5573
    %v5615 = vunpack.c.h.b16 %v5573
    %v5616 = vunpack.c.l.b16 %v5574
    %v5617 = vunpack.c.h.b16 %v5574
    %v5618 = vunpack.c.l.b16 %v5575
    %v5619 = vunpack.c.h.b16 %v5575
    %v5620 = vunpack.c.l.b16 %v5576
    %v5621 = vunpack.c.h.b16 %v5576
    %v5622 = vunpack.c.l.b16 %v5577
    %v5623 = vunpack.c.h.b16 %v5577
    %v5624 = vunpack.c.l.b16 %v5578
    %v5625 = vunpack.c.h.b16 %v5578
    %v5626 = vunpack.c.l.b16 %v5579
    %v5627 = vunpack.c.h.b16 %v5579
    %v5628 = vpack.c.b16 %v5598, %v5596
    %v5629 = vpack.c.b16 %v5599, %v5597
    %v5630 = vpack.c.b16 %v5602, %v5600
    %v5631 = vpack.c.b16 %v5603, %v5601
    %v5632 = vpack.c.b16 %v5606, %v5604
    %v5633 = vpack.c.b16 %v5607, %v5605
    %v5634 = vpack.c.b16 %v5610, %v5608
    %v5635 = vpack.c.b16 %v5611, %v5609
    %v5636 = vpack.c.b16 %v5614, %v5612
    %v5637 = vpack.c.b16 %v5615, %v5613
    %v5638 = vpack.c.b16 %v5618, %v5616
    %v5639 = vpack.c.b16 %v5619, %v5617
    %v5640 = vpack.c.b16 %v5622, %v5620
    %v5641 = vpack.c.b16 %v5623, %v5621
    %v5642 = vpack.c.b16 %v5626, %v5624
    %v5643 = vpack.c.b16 %v5627, %v5625
    %5660 = vmatprep.subr.bf16.mxu0 %v5643
    %5661 = vmatpush1.bf16.msra.mxu0 %v5642
    %5662 = vmatprep.subr.bf16.mxu0 %v5641
    %5663 = vmatpush1.bf16.msra.mxu0 %v5640
    %5664 = vmatprep.subr.bf16.mxu0 %v5639
    %5665 = vmatpush1.bf16.msra.mxu0 %v5638
    %5666 = vmatprep.subr.bf16.mxu0 %v5637
    %5667 = vmatpush1.bf16.msra.mxu0 %v5636
    %5668 = vmatprep.subr.bf16.mxu0 %v5635
    %5669 = vmatpush1.bf16.msra.mxu0 %v5634
    %5670 = vmatprep.subr.bf16.mxu0 %v5633
    %5671 = vmatpush1.bf16.msra.mxu0 %v5632
    %5672 = vmatprep.subr.bf16.mxu0 %v5631
    %5673 = vmatpush1.bf16.msra.mxu0 %v5630
    %5674 = vmatprep.subr.bf16.mxu0 %v5629
    %5675 = vmatpush1.bf16.msra.mxu0 %v5628
    %5676 = vmatprep.subr.bf16.mxu0 0
    %5677 = vmatpush2.bf16.msra.mxu0 0
    %5678 = vmatprep.subr.bf16.mxu0 0
    %5679 = vmatpush2.bf16.msra.mxu0 0
    %5680 = vmatprep.subr.bf16.mxu0 0
    %5681 = vmatpush2.bf16.msra.mxu0 0
    %5682 = vmatprep.subr.bf16.mxu0 0
    %5683 = vmatpush2.bf16.msra.mxu0 0
    %5684 = vmatprep.subr.bf16.mxu0 0
    %5685 = vmatpush2.bf16.msra.mxu0 0
    %5686 = vmatprep.subr.bf16.mxu0 0
    %5687 = vmatpush2.bf16.msra.mxu0 0
    %5688 = vmatprep.subr.bf16.mxu0 0
    %5689 = vmatpush2.bf16.msra.mxu0 0
    %5690 = vmatprep.subr.bf16.mxu0 0
    %5691 = vmatpush2.bf16.msra.mxu0 0
    %5692 = vmatprep.mubr.bf16.mxu0 0
    %5693 = vmatmul.mubr.bf16.gmra.mxu0 %v5563
    %v5694 = vpop.f32.mrf.mxu0
    %v5695 = vadd.f32 0.0, %v5694
    %v5696 = vpop.f32.mrf.mxu0
    %v5697 = vadd.f32 0.0, %v5696
    %v5698 = vpop.f32.mrf.mxu0
    %v5699 = vpop.f32.mrf.mxu0
    %5700 = vdwg.mxu0
    %v5701 = vadd.f32 %v5561, %v5695
    %v5702 = vadd.f32 %v5562, %v5697
    %v5703 = vld [vmem:[#allocation4 + $0x780] sm:$0xff]
    %v5704 = vld [vmem:[#allocation4 + $0x788] sm:$0xff]
    %v5705 = vld [vmem:[#allocation4 + $0x790] sm:$0xff]
    %v5706 = vld [vmem:[#allocation4 + $0x798] sm:$0xff]
    %v5707 = vld [vmem:[#allocation4 + $0x7a0] sm:$0xff]
    %v5708 = vld [vmem:[#allocation4 + $0x7a8] sm:$0xff]
    %v5709 = vld [vmem:[#allocation4 + $0x7b0] sm:$0xff]
    %v5710 = vld [vmem:[#allocation4 + $0x7b8] sm:$0xff]
    %v5711 = vld [vmem:[#allocation4 + $0x7c0] sm:$0xff]
    %v5712 = vld [vmem:[#allocation4 + $0x7c8] sm:$0xff]
    %v5713 = vld [vmem:[#allocation4 + $0x7d0] sm:$0xff]
    %v5714 = vld [vmem:[#allocation4 + $0x7d8] sm:$0xff]
    %v5715 = vld [vmem:[#allocation4 + $0x7e0] sm:$0xff]
    %v5716 = vld [vmem:[#allocation4 + $0x7e8] sm:$0xff]
    %v5717 = vld [vmem:[#allocation4 + $0x7f0] sm:$0xff]
    %v5718 = vld [vmem:[#allocation4 + $0x7f8] sm:$0xff]
    %v5720 = vrot.slane %v5563, 2
    %v5738 = vunpack.c.l.b16 %v5703
    %v5739 = vunpack.c.h.b16 %v5703
    %v5740 = vunpack.c.l.b16 %v5704
    %v5741 = vunpack.c.h.b16 %v5704
    %v5742 = vunpack.c.l.b16 %v5705
    %v5743 = vunpack.c.h.b16 %v5705
    %v5744 = vunpack.c.l.b16 %v5706
    %v5745 = vunpack.c.h.b16 %v5706
    %v5746 = vunpack.c.l.b16 %v5707
    %v5747 = vunpack.c.h.b16 %v5707
    %v5748 = vunpack.c.l.b16 %v5708
    %v5749 = vunpack.c.h.b16 %v5708
    %v5750 = vunpack.c.l.b16 %v5709
    %v5751 = vunpack.c.h.b16 %v5709
    %v5752 = vunpack.c.l.b16 %v5710
    %v5753 = vunpack.c.h.b16 %v5710
    %v5754 = vunpack.c.l.b16 %v5711
    %v5755 = vunpack.c.h.b16 %v5711
    %v5756 = vunpack.c.l.b16 %v5712
    %v5757 = vunpack.c.h.b16 %v5712
    %v5758 = vunpack.c.l.b16 %v5713
    %v5759 = vunpack.c.h.b16 %v5713
    %v5760 = vunpack.c.l.b16 %v5714
    %v5761 = vunpack.c.h.b16 %v5714
    %v5762 = vunpack.c.l.b16 %v5715
    %v5763 = vunpack.c.h.b16 %v5715
    %v5764 = vunpack.c.l.b16 %v5716
    %v5765 = vunpack.c.h.b16 %v5716
    %v5766 = vunpack.c.l.b16 %v5717
    %v5767 = vunpack.c.h.b16 %v5717
    %v5768 = vunpack.c.l.b16 %v5718
    %v5769 = vunpack.c.h.b16 %v5718
    %v5770 = vpack.c.b16 %v5740, %v5738
    %v5771 = vpack.c.b16 %v5741, %v5739
    %v5772 = vpack.c.b16 %v5744, %v5742
    %v5773 = vpack.c.b16 %v5745, %v5743
    %v5774 = vpack.c.b16 %v5748, %v5746
    %v5775 = vpack.c.b16 %v5749, %v5747
    %v5776 = vpack.c.b16 %v5752, %v5750
    %v5777 = vpack.c.b16 %v5753, %v5751
    %v5778 = vpack.c.b16 %v5756, %v5754
    %v5779 = vpack.c.b16 %v5757, %v5755
    %v5780 = vpack.c.b16 %v5760, %v5758
    %v5781 = vpack.c.b16 %v5761, %v5759
    %v5782 = vpack.c.b16 %v5764, %v5762
    %v5783 = vpack.c.b16 %v5765, %v5763
    %v5784 = vpack.c.b16 %v5768, %v5766
    %v5785 = vpack.c.b16 %v5769, %v5767
    %5802 = vmatprep.subr.bf16.mxu0 %v5785
    %5803 = vmatpush1.bf16.msra.mxu0 %v5784
    %5804 = vmatprep.subr.bf16.mxu0 %v5783
    %5805 = vmatpush1.bf16.msra.mxu0 %v5782
    %5806 = vmatprep.subr.bf16.mxu0 %v5781
    %5807 = vmatpush1.bf16.msra.mxu0 %v5780
    %5808 = vmatprep.subr.bf16.mxu0 %v5779
    %5809 = vmatpush1.bf16.msra.mxu0 %v5778
    %5810 = vmatprep.subr.bf16.mxu0 %v5777
    %5811 = vmatpush1.bf16.msra.mxu0 %v5776
    %5812 = vmatprep.subr.bf16.mxu0 %v5775
    %5813 = vmatpush1.bf16.msra.mxu0 %v5774
    %5814 = vmatprep.subr.bf16.mxu0 %v5773
    %5815 = vmatpush1.bf16.msra.mxu0 %v5772
    %5816 = vmatprep.subr.bf16.mxu0 %v5771
    %5817 = vmatpush1.bf16.msra.mxu0 %v5770
    %5818 = vmatprep.subr.bf16.mxu0 0
    %5819 = vmatpush2.bf16.msra.mxu0 0
    %5820 = vmatprep.subr.bf16.mxu0 0
    %5821 = vmatpush2.bf16.msra.mxu0 0
    %5822 = vmatprep.subr.bf16.mxu0 0
    %5823 = vmatpush2.bf16.msra.mxu0 0
    %5824 = vmatprep.subr.bf16.mxu0 0
    %5825 = vmatpush2.bf16.msra.mxu0 0
    %5826 = vmatprep.subr.bf16.mxu0 0
    %5827 = vmatpush2.bf16.msra.mxu0 0
    %5828 = vmatprep.subr.bf16.mxu0 0
    %5829 = vmatpush2.bf16.msra.mxu0 0
    %5830 = vmatprep.subr.bf16.mxu0 0
    %5831 = vmatpush2.bf16.msra.mxu0 0
    %5832 = vmatprep.subr.bf16.mxu0 0
    %5833 = vmatpush2.bf16.msra.mxu0 0
    %5834 = vmatprep.mubr.bf16.mxu0 0
    %5835 = vmatmul.mubr.bf16.gmra.mxu0 %v5720
    %v5836 = vpop.f32.mrf.mxu0
    %v5837 = vadd.f32 0.0, %v5836
    %v5838 = vpop.f32.mrf.mxu0
    %v5839 = vadd.f32 0.0, %v5838
    %v5840 = vpop.f32.mrf.mxu0
    %v5841 = vpop.f32.mrf.mxu0
    %5842 = vdwg.mxu0
    %v5843 = vadd.f32 %v5701, %v5837
    %v5844 = vadd.f32 %v5702, %v5839
    %v5845 = vld [vmem:[%s3422] sm:$0xf]
    %v5846 = vld [vmem:[%s3422 + $0x4] sm:$0xf]
    %v5847 = vld [vmem:[%s3422 + $0x8] sm:$0xf]
    %v5848 = vld [vmem:[%s3422 + $0xc] sm:$0xf]
    %v5849 = vld [vmem:[%s3422 + $0x10] sm:$0x3]
    %v5855 = vunpack.c.l.b16 %v5845
    %v5856 = vunpack.c.l.b16 %v5846
    %v5857 = vunpack.c.l.b16 %v5847
    %v5858 = vunpack.c.l.b16 %v5848
    %v5859 = vunpack.c.l.b16 %v5849
    %v5860 = vpack.c.b16 %v5856, %v5855
    %v5861 = vpack.c.b16 %v5858, %v5857
    %v5862 = vpack.c.b16 %v5859, %v5859
    %v5866 = vsel %vm875, %v5862, 0
    %5868 = vmatprep.subr.bf16.mxu0 0
    %5869 = vmatpush1.bf16.msra.mxu0 0
    %5870 = vmatprep.subr.bf16.mxu0 0
    %5871 = vmatpush1.bf16.msra.mxu0 0
    %5872 = vmatprep.subr.bf16.mxu0 0
    %5873 = vmatpush1.bf16.msra.mxu0 0
    %5874 = vmatprep.subr.bf16.mxu0 0
    %5875 = vmatpush1.bf16.msra.mxu0 0
    %5876 = vmatprep.subr.bf16.mxu0 0
    %5877 = vmatpush1.bf16.msra.mxu0 0
    %5878 = vmatprep.subr.bf16.mxu0 0
    %5879 = vmatpush1.bf16.msra.mxu0 %v5866
    %5880 = vmatprep.subr.bf16.mxu0 0
    %5881 = vmatpush1.bf16.msra.mxu0 %v5861
    %5882 = vmatprep.subr.bf16.mxu0 0
    %5883 = vmatpush1.bf16.msra.mxu0 %v5860
    %5884 = vmatprep.subr.bf16.mxu0 0
    %5885 = vmatpush2.bf16.msra.mxu0 0
    %5886 = vmatprep.subr.bf16.mxu0 0
    %5887 = vmatpush2.bf16.msra.mxu0 0
    %5888 = vmatprep.subr.bf16.mxu0 0
    %5889 = vmatpush2.bf16.msra.mxu0 0
    %5890 = vmatprep.subr.bf16.mxu0 0
    %5891 = vmatpush2.bf16.msra.mxu0 0
    %5892 = vmatprep.subr.bf16.mxu0 0
    %5893 = vmatpush2.bf16.msra.mxu0 0
    %5894 = vmatprep.subr.bf16.mxu0 0
    %5895 = vmatpush2.bf16.msra.mxu0 0
    %5896 = vmatprep.subr.bf16.mxu0 0
    %5897 = vmatpush2.bf16.msra.mxu0 0
    %5898 = vmatprep.subr.bf16.mxu0 0
    %5899 = vmatpush2.bf16.msra.mxu0 0
    %5900 = vmatprep.mubr.bf16.mxu0 0
    %5901 = vmatmul.mubr.bf16.gmra.mxu0 %v3514
    %v5902 = vpop.f32.mrf.mxu0
    %v5903 = vadd.f32 0.0, %v5902
    %v5904 = vpop.f32.mrf.mxu0
    %v5905 = vpop.f32.mrf.mxu0
    %v5906 = vadd.f32 0.0, %v5905
    %v5907 = vpop.f32.mrf.mxu0
    %5908 = vmatprep.mubr.bf16.mxu0 0
    %5909 = vmatmul.mubr.bf16.gmra.mxu0 %v3517
    %v5910 = vpop.f32.mrf.mxu0
    %v5911 = vadd.f32 0.0, %v5910
    %v5912 = vpop.f32.mrf.mxu0
    %v5913 = vpop.f32.mrf.mxu0
    %v5914 = vadd.f32 0.0, %v5913
    %v5915 = vpop.f32.mrf.mxu0
    %5916 = vmatprep.mubr.bf16.mxu0 0
    %5917 = vmatmul.mubr.bf16.gmra.mxu0 %v3520
    %v5918 = vpop.f32.mrf.mxu0
    %v5919 = vadd.f32 0.0, %v5918
    %v5920 = vpop.f32.mrf.mxu0
    %v5921 = vpop.f32.mrf.mxu0
    %v5922 = vadd.f32 0.0, %v5921
    %v5923 = vpop.f32.mrf.mxu0
    %5924 = vmatprep.mubr.bf16.mxu0 0
    %5925 = vmatmul.mubr.bf16.gmra.mxu0 %v3523
    %v5926 = vpop.f32.mrf.mxu0
    %v5927 = vadd.f32 0.0, %v5926
    %v5928 = vpop.f32.mrf.mxu0
    %v5929 = vpop.f32.mrf.mxu0
    %v5930 = vadd.f32 0.0, %v5929
    %v5931 = vpop.f32.mrf.mxu0
    %5932 = vdwg.mxu0
    %v5933 = vpack.c.bf16 %v5903, %v5903
    %v5935 = vrot.slane %v5933, 2
    %5937 = vmatprep.subr.bf16.mxu0 %v3692
    %5938 = vmatpush1.bf16.msra.mxu0 %v3691
    %5939 = vmatprep.subr.bf16.mxu0 %v3690
    %5940 = vmatpush1.bf16.msra.mxu0 %v3689
    %5941 = vmatprep.subr.bf16.mxu0 %v3688
    %5942 = vmatpush1.bf16.msra.mxu0 %v3687
    %5943 = vmatprep.subr.bf16.mxu0 %v3686
    %5944 = vmatpush1.bf16.msra.mxu0 %v3685
    %5945 = vmatprep.subr.bf16.mxu0 %v3684
    %5946 = vmatpush1.bf16.msra.mxu0 %v3683
    %5947 = vmatprep.subr.bf16.mxu0 %v3682
    %5948 = vmatpush1.bf16.msra.mxu0 %v3681
    %5949 = vmatprep.subr.bf16.mxu0 %v3680
    %5950 = vmatpush1.bf16.msra.mxu0 %v3679
    %5951 = vmatprep.subr.bf16.mxu0 %v3678
    %5952 = vmatpush1.bf16.msra.mxu0 %v3677
    %5953 = vmatprep.subr.bf16.mxu0 0
    %5954 = vmatpush2.bf16.msra.mxu0 0
    %5955 = vmatprep.subr.bf16.mxu0 0
    %5956 = vmatpush2.bf16.msra.mxu0 0
    %5957 = vmatprep.subr.bf16.mxu0 0
    %5958 = vmatpush2.bf16.msra.mxu0 0
    %5959 = vmatprep.subr.bf16.mxu0 0
    %5960 = vmatpush2.bf16.msra.mxu0 0
    %5961 = vmatprep.subr.bf16.mxu0 0
    %5962 = vmatpush2.bf16.msra.mxu0 0
    %5963 = vmatprep.subr.bf16.mxu0 0
    %5964 = vmatpush2.bf16.msra.mxu0 0
    %5965 = vmatprep.subr.bf16.mxu0 0
    %5966 = vmatpush2.bf16.msra.mxu0 0
    %5967 = vmatprep.subr.bf16.mxu0 0
    %5968 = vmatpush2.bf16.msra.mxu0 0
    %5969 = vmatprep.mubr.bf16.mxu0 0
    %5970 = vmatmul.mubr.bf16.gmra.mxu0 %v5935
    %v5971 = vpop.f32.mrf.mxu0
    %v5972 = vadd.f32 0.0, %v5971
    %v5973 = vpop.f32.mrf.mxu0
    %v5974 = vadd.f32 0.0, %v5973
    %v5975 = vpop.f32.mrf.mxu0
    %v5976 = vpop.f32.mrf.mxu0
    %5977 = vdwg.mxu0
    %5978 = vmatprep.subr.bf16.mxu0 %v3813
    %5979 = vmatpush1.bf16.msra.mxu0 %v3812
    %5980 = vmatprep.subr.bf16.mxu0 %v3811
    %5981 = vmatpush1.bf16.msra.mxu0 %v3810
    %5982 = vmatprep.subr.bf16.mxu0 %v3809
    %5983 = vmatpush1.bf16.msra.mxu0 %v3808
    %5984 = vmatprep.subr.bf16.mxu0 %v3807
    %5985 = vmatpush1.bf16.msra.mxu0 %v3806
    %5986 = vmatprep.subr.bf16.mxu0 %v3805
    %5987 = vmatpush1.bf16.msra.mxu0 %v3804
    %5988 = vmatprep.subr.bf16.mxu0 %v3803
    %5989 = vmatpush1.bf16.msra.mxu0 %v3802
    %5990 = vmatprep.subr.bf16.mxu0 %v3801
    %5991 = vmatpush1.bf16.msra.mxu0 %v3800
    %5992 = vmatprep.subr.bf16.mxu0 %v3799
    %5993 = vmatpush1.bf16.msra.mxu0 %v3798
    %5994 = vmatprep.subr.bf16.mxu0 0
    %5995 = vmatpush2.bf16.msra.mxu0 0
    %5996 = vmatprep.subr.bf16.mxu0 0
    %5997 = vmatpush2.bf16.msra.mxu0 0
    %5998 = vmatprep.subr.bf16.mxu0 0
    %5999 = vmatpush2.bf16.msra.mxu0 0
    %6000 = vmatprep.subr.bf16.mxu0 0
    %6001 = vmatpush2.bf16.msra.mxu0 0
    %6002 = vmatprep.subr.bf16.mxu0 0
    %6003 = vmatpush2.bf16.msra.mxu0 0
    %6004 = vmatprep.subr.bf16.mxu0 0
    %6005 = vmatpush2.bf16.msra.mxu0 0
    %6006 = vmatprep.subr.bf16.mxu0 0
    %6007 = vmatpush2.bf16.msra.mxu0 0
    %6008 = vmatprep.subr.bf16.mxu0 0
    %6009 = vmatpush2.bf16.msra.mxu0 0
    %6010 = vmatprep.mubr.bf16.mxu0 0
    %6011 = vmatmul.mubr.bf16.gmra.mxu0 %v5933
    %v6012 = vpop.f32.mrf.mxu0
    %v6013 = vadd.f32 %v5972, %v6012
    %v6014 = vpop.f32.mrf.mxu0
    %v6015 = vadd.f32 %v5974, %v6014
    %v6016 = vpop.f32.mrf.mxu0
    %v6017 = vpop.f32.mrf.mxu0
    %6018 = vdwg.mxu0
    %v6019 = vpack.c.bf16 %v5906, %v5906
    %6020 = vmatprep.subr.bf16.mxu0 %v3951
    %6021 = vmatpush1.bf16.msra.mxu0 %v3950
    %6022 = vmatprep.subr.bf16.mxu0 %v3949
    %6023 = vmatpush1.bf16.msra.mxu0 %v3948
    %6024 = vmatprep.subr.bf16.mxu0 %v3947
    %6025 = vmatpush1.bf16.msra.mxu0 %v3946
    %6026 = vmatprep.subr.bf16.mxu0 %v3945
    %6027 = vmatpush1.bf16.msra.mxu0 %v3944
    %6028 = vmatprep.subr.bf16.mxu0 %v3943
    %6029 = vmatpush1.bf16.msra.mxu0 %v3942
    %6030 = vmatprep.subr.bf16.mxu0 %v3941
    %6031 = vmatpush1.bf16.msra.mxu0 %v3940
    %6032 = vmatprep.subr.bf16.mxu0 %v3939
    %6033 = vmatpush1.bf16.msra.mxu0 %v3938
    %6034 = vmatprep.subr.bf16.mxu0 %v3937
    %6035 = vmatpush1.bf16.msra.mxu0 %v3936
    %6036 = vmatprep.subr.bf16.mxu0 0
    %6037 = vmatpush2.bf16.msra.mxu0 0
    %6038 = vmatprep.subr.bf16.mxu0 0
    %6039 = vmatpush2.bf16.msra.mxu0 0
    %6040 = vmatprep.subr.bf16.mxu0 0
    %6041 = vmatpush2.bf16.msra.mxu0 0
    %6042 = vmatprep.subr.bf16.mxu0 0
    %6043 = vmatpush2.bf16.msra.mxu0 0
    %6044 = vmatprep.subr.bf16.mxu0 0
    %6045 = vmatpush2.bf16.msra.mxu0 0
    %6046 = vmatprep.subr.bf16.mxu0 0
    %6047 = vmatpush2.bf16.msra.mxu0 0
    %6048 = vmatprep.subr.bf16.mxu0 0
    %6049 = vmatpush2.bf16.msra.mxu0 0
    %6050 = vmatprep.subr.bf16.mxu0 0
    %6051 = vmatpush2.bf16.msra.mxu0 0
    %6052 = vmatprep.mubr.bf16.mxu0 0
    %6053 = vmatmul.mubr.bf16.gmra.mxu0 %v6019
    %v6054 = vpop.f32.mrf.mxu0
    %v6055 = vadd.f32 0.0, %v6054
    %v6056 = vpop.f32.mrf.mxu0
    %v6057 = vadd.f32 0.0, %v6056
    %v6058 = vpop.f32.mrf.mxu0
    %v6059 = vpop.f32.mrf.mxu0
    %6060 = vdwg.mxu0
    %v6061 = vadd.f32 %v6013, %v6055
    %v6062 = vadd.f32 %v6015, %v6057
    %v6064 = vrot.slane %v6019, 2
    %6066 = vmatprep.subr.bf16.mxu0 %v4093
    %6067 = vmatpush1.bf16.msra.mxu0 %v4092
    %6068 = vmatprep.subr.bf16.mxu0 %v4091
    %6069 = vmatpush1.bf16.msra.mxu0 %v4090
    %6070 = vmatprep.subr.bf16.mxu0 %v4089
    %6071 = vmatpush1.bf16.msra.mxu0 %v4088
    %6072 = vmatprep.subr.bf16.mxu0 %v4087
    %6073 = vmatpush1.bf16.msra.mxu0 %v4086
    %6074 = vmatprep.subr.bf16.mxu0 %v4085
    %6075 = vmatpush1.bf16.msra.mxu0 %v4084
    %6076 = vmatprep.subr.bf16.mxu0 %v4083
    %6077 = vmatpush1.bf16.msra.mxu0 %v4082
    %6078 = vmatprep.subr.bf16.mxu0 %v4081
    %6079 = vmatpush1.bf16.msra.mxu0 %v4080
    %6080 = vmatprep.subr.bf16.mxu0 %v4079
    %6081 = vmatpush1.bf16.msra.mxu0 %v4078
    %6082 = vmatprep.subr.bf16.mxu0 0
    %6083 = vmatpush2.bf16.msra.mxu0 0
    %6084 = vmatprep.subr.bf16.mxu0 0
    %6085 = vmatpush2.bf16.msra.mxu0 0
    %6086 = vmatprep.subr.bf16.mxu0 0
    %6087 = vmatpush2.bf16.msra.mxu0 0
    %6088 = vmatprep.subr.bf16.mxu0 0
    %6089 = vmatpush2.bf16.msra.mxu0 0
    %6090 = vmatprep.subr.bf16.mxu0 0
    %6091 = vmatpush2.bf16.msra.mxu0 0
    %6092 = vmatprep.subr.bf16.mxu0 0
    %6093 = vmatpush2.bf16.msra.mxu0 0
    %6094 = vmatprep.subr.bf16.mxu0 0
    %6095 = vmatpush2.bf16.msra.mxu0 0
    %6096 = vmatprep.subr.bf16.mxu0 0
    %6097 = vmatpush2.bf16.msra.mxu0 0
    %6098 = vmatprep.mubr.bf16.mxu0 0
    %6099 = vmatmul.mubr.bf16.gmra.mxu0 %v6064
    %v6100 = vpop.f32.mrf.mxu0
    %v6101 = vadd.f32 0.0, %v6100
    %v6102 = vpop.f32.mrf.mxu0
    %v6103 = vadd.f32 0.0, %v6102
    %v6104 = vpop.f32.mrf.mxu0
    %v6105 = vpop.f32.mrf.mxu0
    %6106 = vdwg.mxu0
    %v6107 = vadd.f32 %v6061, %v6101
    %v6108 = vadd.f32 %v6062, %v6103
    %v6109 = vpack.c.bf16 %v5911, %v5911
    %6110 = vmatprep.subr.bf16.mxu0 %v4233
    %6111 = vmatpush1.bf16.msra.mxu0 %v4232
    %6112 = vmatprep.subr.bf16.mxu0 %v4231
    %6113 = vmatpush1.bf16.msra.mxu0 %v4230
    %6114 = vmatprep.subr.bf16.mxu0 %v4229
    %6115 = vmatpush1.bf16.msra.mxu0 %v4228
    %6116 = vmatprep.subr.bf16.mxu0 %v4227
    %6117 = vmatpush1.bf16.msra.mxu0 %v4226
    %6118 = vmatprep.subr.bf16.mxu0 %v4225
    %6119 = vmatpush1.bf16.msra.mxu0 %v4224
    %6120 = vmatprep.subr.bf16.mxu0 %v4223
    %6121 = vmatpush1.bf16.msra.mxu0 %v4222
    %6122 = vmatprep.subr.bf16.mxu0 %v4221
    %6123 = vmatpush1.bf16.msra.mxu0 %v4220
    %6124 = vmatprep.subr.bf16.mxu0 %v4219
    %6125 = vmatpush1.bf16.msra.mxu0 %v4218
    %6126 = vmatprep.subr.bf16.mxu0 0
    %6127 = vmatpush2.bf16.msra.mxu0 0
    %6128 = vmatprep.subr.bf16.mxu0 0
    %6129 = vmatpush2.bf16.msra.mxu0 0
    %6130 = vmatprep.subr.bf16.mxu0 0
    %6131 = vmatpush2.bf16.msra.mxu0 0
    %6132 = vmatprep.subr.bf16.mxu0 0
    %6133 = vmatpush2.bf16.msra.mxu0 0
    %6134 = vmatprep.subr.bf16.mxu0 0
    %6135 = vmatpush2.bf16.msra.mxu0 0
    %6136 = vmatprep.subr.bf16.mxu0 0
    %6137 = vmatpush2.bf16.msra.mxu0 0
    %6138 = vmatprep.subr.bf16.mxu0 0
    %6139 = vmatpush2.bf16.msra.mxu0 0
    %6140 = vmatprep.subr.bf16.mxu0 0
    %6141 = vmatpush2.bf16.msra.mxu0 0
    %6142 = vmatprep.mubr.bf16.mxu0 0
    %6143 = vmatmul.mubr.bf16.gmra.mxu0 %v6109
    %v6144 = vpop.f32.mrf.mxu0
    %v6145 = vadd.f32 0.0, %v6144
    %v6146 = vpop.f32.mrf.mxu0
    %v6147 = vadd.f32 0.0, %v6146
    %v6148 = vpop.f32.mrf.mxu0
    %v6149 = vpop.f32.mrf.mxu0
    %6150 = vdwg.mxu0
    %v6151 = vadd.f32 %v6107, %v6145
    %v6152 = vadd.f32 %v6108, %v6147
    %v6154 = vrot.slane %v6109, 2
    %6156 = vmatprep.subr.bf16.mxu0 %v4375
    %6157 = vmatpush1.bf16.msra.mxu0 %v4374
    %6158 = vmatprep.subr.bf16.mxu0 %v4373
    %6159 = vmatpush1.bf16.msra.mxu0 %v4372
    %6160 = vmatprep.subr.bf16.mxu0 %v4371
    %6161 = vmatpush1.bf16.msra.mxu0 %v4370
    %6162 = vmatprep.subr.bf16.mxu0 %v4369
    %6163 = vmatpush1.bf16.msra.mxu0 %v4368
    %6164 = vmatprep.subr.bf16.mxu0 %v4367
    %6165 = vmatpush1.bf16.msra.mxu0 %v4366
    %6166 = vmatprep.subr.bf16.mxu0 %v4365
    %6167 = vmatpush1.bf16.msra.mxu0 %v4364
    %6168 = vmatprep.subr.bf16.mxu0 %v4363
    %6169 = vmatpush1.bf16.msra.mxu0 %v4362
    %6170 = vmatprep.subr.bf16.mxu0 %v4361
    %6171 = vmatpush1.bf16.msra.mxu0 %v4360
    %6172 = vmatprep.subr.bf16.mxu0 0
    %6173 = vmatpush2.bf16.msra.mxu0 0
    %6174 = vmatprep.subr.bf16.mxu0 0
    %6175 = vmatpush2.bf16.msra.mxu0 0
    %6176 = vmatprep.subr.bf16.mxu0 0
    %6177 = vmatpush2.bf16.msra.mxu0 0
    %6178 = vmatprep.subr.bf16.mxu0 0
    %6179 = vmatpush2.bf16.msra.mxu0 0
    %6180 = vmatprep.subr.bf16.mxu0 0
    %6181 = vmatpush2.bf16.msra.mxu0 0
    %6182 = vmatprep.subr.bf16.mxu0 0
    %6183 = vmatpush2.bf16.msra.mxu0 0
    %6184 = vmatprep.subr.bf16.mxu0 0
    %6185 = vmatpush2.bf16.msra.mxu0 0
    %6186 = vmatprep.subr.bf16.mxu0 0
    %6187 = vmatpush2.bf16.msra.mxu0 0
    %6188 = vmatprep.mubr.bf16.mxu0 0
    %6189 = vmatmul.mubr.bf16.gmra.mxu0 %v6154
    %v6190 = vpop.f32.mrf.mxu0
    %v6191 = vadd.f32 0.0, %v6190
    %v6192 = vpop.f32.mrf.mxu0
    %v6193 = vadd.f32 0.0, %v6192
    %v6194 = vpop.f32.mrf.mxu0
    %v6195 = vpop.f32.mrf.mxu0
    %6196 = vdwg.mxu0
    %v6197 = vadd.f32 %v6151, %v6191
    %v6198 = vadd.f32 %v6152, %v6193
    %v6199 = vpack.c.bf16 %v5914, %v5914
    %6200 = vmatprep.subr.bf16.mxu0 %v4515
    %6201 = vmatpush1.bf16.msra.mxu0 %v4514
    %6202 = vmatprep.subr.bf16.mxu0 %v4513
    %6203 = vmatpush1.bf16.msra.mxu0 %v4512
    %6204 = vmatprep.subr.bf16.mxu0 %v4511
    %6205 = vmatpush1.bf16.msra.mxu0 %v4510
    %6206 = vmatprep.subr.bf16.mxu0 %v4509
    %6207 = vmatpush1.bf16.msra.mxu0 %v4508
    %6208 = vmatprep.subr.bf16.mxu0 %v4507
    %6209 = vmatpush1.bf16.msra.mxu0 %v4506
    %6210 = vmatprep.subr.bf16.mxu0 %v4505
    %6211 = vmatpush1.bf16.msra.mxu0 %v4504
    %6212 = vmatprep.subr.bf16.mxu0 %v4503
    %6213 = vmatpush1.bf16.msra.mxu0 %v4502
    %6214 = vmatprep.subr.bf16.mxu0 %v4501
    %6215 = vmatpush1.bf16.msra.mxu0 %v4500
    %6216 = vmatprep.subr.bf16.mxu0 0
    %6217 = vmatpush2.bf16.msra.mxu0 0
    %6218 = vmatprep.subr.bf16.mxu0 0
    %6219 = vmatpush2.bf16.msra.mxu0 0
    %6220 = vmatprep.subr.bf16.mxu0 0
    %6221 = vmatpush2.bf16.msra.mxu0 0
    %6222 = vmatprep.subr.bf16.mxu0 0
    %6223 = vmatpush2.bf16.msra.mxu0 0
    %6224 = vmatprep.subr.bf16.mxu0 0
    %6225 = vmatpush2.bf16.msra.mxu0 0
    %6226 = vmatprep.subr.bf16.mxu0 0
    %6227 = vmatpush2.bf16.msra.mxu0 0
    %6228 = vmatprep.subr.bf16.mxu0 0
    %6229 = vmatpush2.bf16.msra.mxu0 0
    %6230 = vmatprep.subr.bf16.mxu0 0
    %6231 = vmatpush2.bf16.msra.mxu0 0
    %6232 = vmatprep.mubr.bf16.mxu0 0
    %6233 = vmatmul.mubr.bf16.gmra.mxu0 %v6199
    %v6234 = vpop.f32.mrf.mxu0
    %v6235 = vadd.f32 0.0, %v6234
    %v6236 = vpop.f32.mrf.mxu0
    %v6237 = vadd.f32 0.0, %v6236
    %v6238 = vpop.f32.mrf.mxu0
    %v6239 = vpop.f32.mrf.mxu0
    %6240 = vdwg.mxu0
    %v6241 = vadd.f32 %v6197, %v6235
    %v6242 = vadd.f32 %v6198, %v6237
    %v6244 = vrot.slane %v6199, 2
    %6246 = vmatprep.subr.bf16.mxu0 %v4657
    %6247 = vmatpush1.bf16.msra.mxu0 %v4656
    %6248 = vmatprep.subr.bf16.mxu0 %v4655
    %6249 = vmatpush1.bf16.msra.mxu0 %v4654
    %6250 = vmatprep.subr.bf16.mxu0 %v4653
    %6251 = vmatpush1.bf16.msra.mxu0 %v4652
    %6252 = vmatprep.subr.bf16.mxu0 %v4651
    %6253 = vmatpush1.bf16.msra.mxu0 %v4650
    %6254 = vmatprep.subr.bf16.mxu0 %v4649
    %6255 = vmatpush1.bf16.msra.mxu0 %v4648
    %6256 = vmatprep.subr.bf16.mxu0 %v4647
    %6257 = vmatpush1.bf16.msra.mxu0 %v4646
    %6258 = vmatprep.subr.bf16.mxu0 %v4645
    %6259 = vmatpush1.bf16.msra.mxu0 %v4644
    %6260 = vmatprep.subr.bf16.mxu0 %v4643
    %6261 = vmatpush1.bf16.msra.mxu0 %v4642
    %6262 = vmatprep.subr.bf16.mxu0 0
    %6263 = vmatpush2.bf16.msra.mxu0 0
    %6264 = vmatprep.subr.bf16.mxu0 0
    %6265 = vmatpush2.bf16.msra.mxu0 0
    %6266 = vmatprep.subr.bf16.mxu0 0
    %6267 = vmatpush2.bf16.msra.mxu0 0
    %6268 = vmatprep.subr.bf16.mxu0 0
    %6269 = vmatpush2.bf16.msra.mxu0 0
    %6270 = vmatprep.subr.bf16.mxu0 0
    %6271 = vmatpush2.bf16.msra.mxu0 0
    %6272 = vmatprep.subr.bf16.mxu0 0
    %6273 = vmatpush2.bf16.msra.mxu0 0
    %6274 = vmatprep.subr.bf16.mxu0 0
    %6275 = vmatpush2.bf16.msra.mxu0 0
    %6276 = vmatprep.subr.bf16.mxu0 0
    %6277 = vmatpush2.bf16.msra.mxu0 0
    %6278 = vmatprep.mubr.bf16.mxu0 0
    %6279 = vmatmul.mubr.bf16.gmra.mxu0 %v6244
    %v6280 = vpop.f32.mrf.mxu0
    %v6281 = vadd.f32 0.0, %v6280
    %v6282 = vpop.f32.mrf.mxu0
    %v6283 = vadd.f32 0.0, %v6282
    %v6284 = vpop.f32.mrf.mxu0
    %v6285 = vpop.f32.mrf.mxu0
    %6286 = vdwg.mxu0
    %v6287 = vadd.f32 %v6241, %v6281
    %v6288 = vadd.f32 %v6242, %v6283
    %v6289 = vpack.c.bf16 %v5919, %v5919
    %6290 = vmatprep.subr.bf16.mxu0 %v4797
    %6291 = vmatpush1.bf16.msra.mxu0 %v4796
    %6292 = vmatprep.subr.bf16.mxu0 %v4795
    %6293 = vmatpush1.bf16.msra.mxu0 %v4794
    %6294 = vmatprep.subr.bf16.mxu0 %v4793
    %6295 = vmatpush1.bf16.msra.mxu0 %v4792
    %6296 = vmatprep.subr.bf16.mxu0 %v4791
    %6297 = vmatpush1.bf16.msra.mxu0 %v4790
    %6298 = vmatprep.subr.bf16.mxu0 %v4789
    %6299 = vmatpush1.bf16.msra.mxu0 %v4788
    %6300 = vmatprep.subr.bf16.mxu0 %v4787
    %6301 = vmatpush1.bf16.msra.mxu0 %v4786
    %6302 = vmatprep.subr.bf16.mxu0 %v4785
    %6303 = vmatpush1.bf16.msra.mxu0 %v4784
    %6304 = vmatprep.subr.bf16.mxu0 %v4783
    %6305 = vmatpush1.bf16.msra.mxu0 %v4782
    %6306 = vmatprep.subr.bf16.mxu0 0
    %6307 = vmatpush2.bf16.msra.mxu0 0
    %6308 = vmatprep.subr.bf16.mxu0 0
    %6309 = vmatpush2.bf16.msra.mxu0 0
    %6310 = vmatprep.subr.bf16.mxu0 0
    %6311 = vmatpush2.bf16.msra.mxu0 0
    %6312 = vmatprep.subr.bf16.mxu0 0
    %6313 = vmatpush2.bf16.msra.mxu0 0
    %6314 = vmatprep.subr.bf16.mxu0 0
    %6315 = vmatpush2.bf16.msra.mxu0 0
    %6316 = vmatprep.subr.bf16.mxu0 0
    %6317 = vmatpush2.bf16.msra.mxu0 0
    %6318 = vmatprep.subr.bf16.mxu0 0
    %6319 = vmatpush2.bf16.msra.mxu0 0
    %6320 = vmatprep.subr.bf16.mxu0 0
    %6321 = vmatpush2.bf16.msra.mxu0 0
    %6322 = vmatprep.mubr.bf16.mxu0 0
    %6323 = vmatmul.mubr.bf16.gmra.mxu0 %v6289
    %v6324 = vpop.f32.mrf.mxu0
    %v6325 = vadd.f32 0.0, %v6324
    %v6326 = vpop.f32.mrf.mxu0
    %v6327 = vadd.f32 0.0, %v6326
    %v6328 = vpop.f32.mrf.mxu0
    %v6329 = vpop.f32.mrf.mxu0
    %6330 = vdwg.mxu0
    %v6331 = vadd.f32 %v6287, %v6325
    %v6332 = vadd.f32 %v6288, %v6327
    %v6334 = vrot.slane %v6289, 2
    %6336 = vmatprep.subr.bf16.mxu0 %v4939
    %6337 = vmatpush1.bf16.msra.mxu0 %v4938
    %6338 = vmatprep.subr.bf16.mxu0 %v4937
    %6339 = vmatpush1.bf16.msra.mxu0 %v4936
    %6340 = vmatprep.subr.bf16.mxu0 %v4935
    %6341 = vmatpush1.bf16.msra.mxu0 %v4934
    %6342 = vmatprep.subr.bf16.mxu0 %v4933
    %6343 = vmatpush1.bf16.msra.mxu0 %v4932
    %6344 = vmatprep.subr.bf16.mxu0 %v4931
    %6345 = vmatpush1.bf16.msra.mxu0 %v4930
    %6346 = vmatprep.subr.bf16.mxu0 %v4929
    %6347 = vmatpush1.bf16.msra.mxu0 %v4928
    %6348 = vmatprep.subr.bf16.mxu0 %v4927
    %6349 = vmatpush1.bf16.msra.mxu0 %v4926
    %6350 = vmatprep.subr.bf16.mxu0 %v4925
    %6351 = vmatpush1.bf16.msra.mxu0 %v4924
    %6352 = vmatprep.subr.bf16.mxu0 0
    %6353 = vmatpush2.bf16.msra.mxu0 0
    %6354 = vmatprep.subr.bf16.mxu0 0
    %6355 = vmatpush2.bf16.msra.mxu0 0
    %6356 = vmatprep.subr.bf16.mxu0 0
    %6357 = vmatpush2.bf16.msra.mxu0 0
    %6358 = vmatprep.subr.bf16.mxu0 0
    %6359 = vmatpush2.bf16.msra.mxu0 0
    %6360 = vmatprep.subr.bf16.mxu0 0
    %6361 = vmatpush2.bf16.msra.mxu0 0
    %6362 = vmatprep.subr.bf16.mxu0 0
    %6363 = vmatpush2.bf16.msra.mxu0 0
    %6364 = vmatprep.subr.bf16.mxu0 0
    %6365 = vmatpush2.bf16.msra.mxu0 0
    %6366 = vmatprep.subr.bf16.mxu0 0
    %6367 = vmatpush2.bf16.msra.mxu0 0
    %6368 = vmatprep.mubr.bf16.mxu0 0
    %6369 = vmatmul.mubr.bf16.gmra.mxu0 %v6334
    %v6370 = vpop.f32.mrf.mxu0
    %v6371 = vadd.f32 0.0, %v6370
    %v6372 = vpop.f32.mrf.mxu0
    %v6373 = vadd.f32 0.0, %v6372
    %v6374 = vpop.f32.mrf.mxu0
    %v6375 = vpop.f32.mrf.mxu0
    %6376 = vdwg.mxu0
    %v6377 = vadd.f32 %v6331, %v6371
    %v6378 = vadd.f32 %v6332, %v6373
    %v6379 = vpack.c.bf16 %v5922, %v5922
    %6380 = vmatprep.subr.bf16.mxu0 %v5079
    %6381 = vmatpush1.bf16.msra.mxu0 %v5078
    %6382 = vmatprep.subr.bf16.mxu0 %v5077
    %6383 = vmatpush1.bf16.msra.mxu0 %v5076
    %6384 = vmatprep.subr.bf16.mxu0 %v5075
    %6385 = vmatpush1.bf16.msra.mxu0 %v5074
    %6386 = vmatprep.subr.bf16.mxu0 %v5073
    %6387 = vmatpush1.bf16.msra.mxu0 %v5072
    %6388 = vmatprep.subr.bf16.mxu0 %v5071
    %6389 = vmatpush1.bf16.msra.mxu0 %v5070
    %6390 = vmatprep.subr.bf16.mxu0 %v5069
    %6391 = vmatpush1.bf16.msra.mxu0 %v5068
    %6392 = vmatprep.subr.bf16.mxu0 %v5067
    %6393 = vmatpush1.bf16.msra.mxu0 %v5066
    %6394 = vmatprep.subr.bf16.mxu0 %v5065
    %6395 = vmatpush1.bf16.msra.mxu0 %v5064
    %6396 = vmatprep.subr.bf16.mxu0 0
    %6397 = vmatpush2.bf16.msra.mxu0 0
    %6398 = vmatprep.subr.bf16.mxu0 0
    %6399 = vmatpush2.bf16.msra.mxu0 0
    %6400 = vmatprep.subr.bf16.mxu0 0
    %6401 = vmatpush2.bf16.msra.mxu0 0
    %6402 = vmatprep.subr.bf16.mxu0 0
    %6403 = vmatpush2.bf16.msra.mxu0 0
    %6404 = vmatprep.subr.bf16.mxu0 0
    %6405 = vmatpush2.bf16.msra.mxu0 0
    %6406 = vmatprep.subr.bf16.mxu0 0
    %6407 = vmatpush2.bf16.msra.mxu0 0
    %6408 = vmatprep.subr.bf16.mxu0 0
    %6409 = vmatpush2.bf16.msra.mxu0 0
    %6410 = vmatprep.subr.bf16.mxu0 0
    %6411 = vmatpush2.bf16.msra.mxu0 0
    %6412 = vmatprep.mubr.bf16.mxu0 0
    %6413 = vmatmul.mubr.bf16.gmra.mxu0 %v6379
    %v6414 = vpop.f32.mrf.mxu0
    %v6415 = vadd.f32 0.0, %v6414
    %v6416 = vpop.f32.mrf.mxu0
    %v6417 = vadd.f32 0.0, %v6416
    %v6418 = vpop.f32.mrf.mxu0
    %v6419 = vpop.f32.mrf.mxu0
    %6420 = vdwg.mxu0
    %v6421 = vadd.f32 %v6377, %v6415
    %v6422 = vadd.f32 %v6378, %v6417
    %v6424 = vrot.slane %v6379, 2
    %6426 = vmatprep.subr.bf16.mxu0 %v5221
    %6427 = vmatpush1.bf16.msra.mxu0 %v5220
    %6428 = vmatprep.subr.bf16.mxu0 %v5219
    %6429 = vmatpush1.bf16.msra.mxu0 %v5218
    %6430 = vmatprep.subr.bf16.mxu0 %v5217
    %6431 = vmatpush1.bf16.msra.mxu0 %v5216
    %6432 = vmatprep.subr.bf16.mxu0 %v5215
    %6433 = vmatpush1.bf16.msra.mxu0 %v5214
    %6434 = vmatprep.subr.bf16.mxu0 %v5213
    %6435 = vmatpush1.bf16.msra.mxu0 %v5212
    %6436 = vmatprep.subr.bf16.mxu0 %v5211
    %6437 = vmatpush1.bf16.msra.mxu0 %v5210
    %6438 = vmatprep.subr.bf16.mxu0 %v5209
    %6439 = vmatpush1.bf16.msra.mxu0 %v5208
    %6440 = vmatprep.subr.bf16.mxu0 %v5207
    %6441 = vmatpush1.bf16.msra.mxu0 %v5206
    %6442 = vmatprep.subr.bf16.mxu0 0
    %6443 = vmatpush2.bf16.msra.mxu0 0
    %6444 = vmatprep.subr.bf16.mxu0 0
    %6445 = vmatpush2.bf16.msra.mxu0 0
    %6446 = vmatprep.subr.bf16.mxu0 0
    %6447 = vmatpush2.bf16.msra.mxu0 0
    %6448 = vmatprep.subr.bf16.mxu0 0
    %6449 = vmatpush2.bf16.msra.mxu0 0
    %6450 = vmatprep.subr.bf16.mxu0 0
    %6451 = vmatpush2.bf16.msra.mxu0 0
    %6452 = vmatprep.subr.bf16.mxu0 0
    %6453 = vmatpush2.bf16.msra.mxu0 0
    %6454 = vmatprep.subr.bf16.mxu0 0
    %6455 = vmatpush2.bf16.msra.mxu0 0
    %6456 = vmatprep.subr.bf16.mxu0 0
    %6457 = vmatpush2.bf16.msra.mxu0 0
    %6458 = vmatprep.mubr.bf16.mxu0 0
    %6459 = vmatmul.mubr.bf16.gmra.mxu0 %v6424
    %v6460 = vpop.f32.mrf.mxu0
    %v6461 = vadd.f32 0.0, %v6460
    %v6462 = vpop.f32.mrf.mxu0
    %v6463 = vadd.f32 0.0, %v6462
    %v6464 = vpop.f32.mrf.mxu0
    %v6465 = vpop.f32.mrf.mxu0
    %6466 = vdwg.mxu0
    %v6467 = vadd.f32 %v6421, %v6461
    %v6468 = vadd.f32 %v6422, %v6463
    %v6469 = vpack.c.bf16 %v5927, %v5927
    %6470 = vmatprep.subr.bf16.mxu0 %v5361
    %6471 = vmatpush1.bf16.msra.mxu0 %v5360
    %6472 = vmatprep.subr.bf16.mxu0 %v5359
    %6473 = vmatpush1.bf16.msra.mxu0 %v5358
    %6474 = vmatprep.subr.bf16.mxu0 %v5357
    %6475 = vmatpush1.bf16.msra.mxu0 %v5356
    %6476 = vmatprep.subr.bf16.mxu0 %v5355
    %6477 = vmatpush1.bf16.msra.mxu0 %v5354
    %6478 = vmatprep.subr.bf16.mxu0 %v5353
    %6479 = vmatpush1.bf16.msra.mxu0 %v5352
    %6480 = vmatprep.subr.bf16.mxu0 %v5351
    %6481 = vmatpush1.bf16.msra.mxu0 %v5350
    %6482 = vmatprep.subr.bf16.mxu0 %v5349
    %6483 = vmatpush1.bf16.msra.mxu0 %v5348
    %6484 = vmatprep.subr.bf16.mxu0 %v5347
    %6485 = vmatpush1.bf16.msra.mxu0 %v5346
    %6486 = vmatprep.subr.bf16.mxu0 0
    %6487 = vmatpush2.bf16.msra.mxu0 0
    %6488 = vmatprep.subr.bf16.mxu0 0
    %6489 = vmatpush2.bf16.msra.mxu0 0
    %6490 = vmatprep.subr.bf16.mxu0 0
    %6491 = vmatpush2.bf16.msra.mxu0 0
    %6492 = vmatprep.subr.bf16.mxu0 0
    %6493 = vmatpush2.bf16.msra.mxu0 0
    %6494 = vmatprep.subr.bf16.mxu0 0
    %6495 = vmatpush2.bf16.msra.mxu0 0
    %6496 = vmatprep.subr.bf16.mxu0 0
    %6497 = vmatpush2.bf16.msra.mxu0 0
    %6498 = vmatprep.subr.bf16.mxu0 0
    %6499 = vmatpush2.bf16.msra.mxu0 0
    %6500 = vmatprep.subr.bf16.mxu0 0
    %6501 = vmatpush2.bf16.msra.mxu0 0
    %6502 = vmatprep.mubr.bf16.mxu0 0
    %6503 = vmatmul.mubr.bf16.gmra.mxu0 %v6469
    %v6504 = vpop.f32.mrf.mxu0
    %v6505 = vadd.f32 0.0, %v6504
    %v6506 = vpop.f32.mrf.mxu0
    %v6507 = vadd.f32 0.0, %v6506
    %v6508 = vpop.f32.mrf.mxu0
    %v6509 = vpop.f32.mrf.mxu0
    %6510 = vdwg.mxu0
    %v6511 = vadd.f32 %v6467, %v6505
    %v6512 = vadd.f32 %v6468, %v6507
    %v6514 = vrot.slane %v6469, 2
    %6516 = vmatprep.subr.bf16.mxu0 %v5503
    %6517 = vmatpush1.bf16.msra.mxu0 %v5502
    %6518 = vmatprep.subr.bf16.mxu0 %v5501
    %6519 = vmatpush1.bf16.msra.mxu0 %v5500
    %6520 = vmatprep.subr.bf16.mxu0 %v5499
    %6521 = vmatpush1.bf16.msra.mxu0 %v5498
    %6522 = vmatprep.subr.bf16.mxu0 %v5497
    %6523 = vmatpush1.bf16.msra.mxu0 %v5496
    %6524 = vmatprep.subr.bf16.mxu0 %v5495
    %6525 = vmatpush1.bf16.msra.mxu0 %v5494
    %6526 = vmatprep.subr.bf16.mxu0 %v5493
    %6527 = vmatpush1.bf16.msra.mxu0 %v5492
    %6528 = vmatprep.subr.bf16.mxu0 %v5491
    %6529 = vmatpush1.bf16.msra.mxu0 %v5490
    %6530 = vmatprep.subr.bf16.mxu0 %v5489
    %6531 = vmatpush1.bf16.msra.mxu0 %v5488
    %6532 = vmatprep.subr.bf16.mxu0 0
    %6533 = vmatpush2.bf16.msra.mxu0 0
    %6534 = vmatprep.subr.bf16.mxu0 0
    %6535 = vmatpush2.bf16.msra.mxu0 0
    %6536 = vmatprep.subr.bf16.mxu0 0
    %6537 = vmatpush2.bf16.msra.mxu0 0
    %6538 = vmatprep.subr.bf16.mxu0 0
    %6539 = vmatpush2.bf16.msra.mxu0 0
    %6540 = vmatprep.subr.bf16.mxu0 0
    %6541 = vmatpush2.bf16.msra.mxu0 0
    %6542 = vmatprep.subr.bf16.mxu0 0
    %6543 = vmatpush2.bf16.msra.mxu0 0
    %6544 = vmatprep.subr.bf16.mxu0 0
    %6545 = vmatpush2.bf16.msra.mxu0 0
    %6546 = vmatprep.subr.bf16.mxu0 0
    %6547 = vmatpush2.bf16.msra.mxu0 0
    %6548 = vmatprep.mubr.bf16.mxu0 0
    %6549 = vmatmul.mubr.bf16.gmra.mxu0 %v6514
    %v6550 = vpop.f32.mrf.mxu0
    %v6551 = vadd.f32 0.0, %v6550
    %v6552 = vpop.f32.mrf.mxu0
    %v6553 = vadd.f32 0.0, %v6552
    %v6554 = vpop.f32.mrf.mxu0
    %v6555 = vpop.f32.mrf.mxu0
    %6556 = vdwg.mxu0
    %v6557 = vadd.f32 %v6511, %v6551
    %v6558 = vadd.f32 %v6512, %v6553
    %v6559 = vpack.c.bf16 %v5930, %v5930
    %6560 = vmatprep.subr.bf16.mxu0 %v5643
    %6561 = vmatpush1.bf16.msra.mxu0 %v5642
    %6562 = vmatprep.subr.bf16.mxu0 %v5641
    %6563 = vmatpush1.bf16.msra.mxu0 %v5640
    %6564 = vmatprep.subr.bf16.mxu0 %v5639
    %6565 = vmatpush1.bf16.msra.mxu0 %v5638
    %6566 = vmatprep.subr.bf16.mxu0 %v5637
    %6567 = vmatpush1.bf16.msra.mxu0 %v5636
    %6568 = vmatprep.subr.bf16.mxu0 %v5635
    %6569 = vmatpush1.bf16.msra.mxu0 %v5634
    %6570 = vmatprep.subr.bf16.mxu0 %v5633
    %6571 = vmatpush1.bf16.msra.mxu0 %v5632
    %6572 = vmatprep.subr.bf16.mxu0 %v5631
    %6573 = vmatpush1.bf16.msra.mxu0 %v5630
    %6574 = vmatprep.subr.bf16.mxu0 %v5629
    %6575 = vmatpush1.bf16.msra.mxu0 %v5628
    %6576 = vmatprep.subr.bf16.mxu0 0
    %6577 = vmatpush2.bf16.msra.mxu0 0
    %6578 = vmatprep.subr.bf16.mxu0 0
    %6579 = vmatpush2.bf16.msra.mxu0 0
    %6580 = vmatprep.subr.bf16.mxu0 0
    %6581 = vmatpush2.bf16.msra.mxu0 0
    %6582 = vmatprep.subr.bf16.mxu0 0
    %6583 = vmatpush2.bf16.msra.mxu0 0
    %6584 = vmatprep.subr.bf16.mxu0 0
    %6585 = vmatpush2.bf16.msra.mxu0 0
    %6586 = vmatprep.subr.bf16.mxu0 0
    %6587 = vmatpush2.bf16.msra.mxu0 0
    %6588 = vmatprep.subr.bf16.mxu0 0
    %6589 = vmatpush2.bf16.msra.mxu0 0
    %6590 = vmatprep.subr.bf16.mxu0 0
    %6591 = vmatpush2.bf16.msra.mxu0 0
    %6592 = vmatprep.mubr.bf16.mxu0 0
    %6593 = vmatmul.mubr.bf16.gmra.mxu0 %v6559
    %v6594 = vpop.f32.mrf.mxu0
    %v6595 = vadd.f32 0.0, %v6594
    %v6596 = vpop.f32.mrf.mxu0
    %v6597 = vadd.f32 0.0, %v6596
    %v6598 = vpop.f32.mrf.mxu0
    %v6599 = vpop.f32.mrf.mxu0
    %6600 = vdwg.mxu0
    %v6601 = vadd.f32 %v6557, %v6595
    %v6602 = vadd.f32 %v6558, %v6597
    %v6604 = vrot.slane %v6559, 2
    %6606 = vmatprep.subr.bf16.mxu0 %v5785
    %6607 = vmatpush1.bf16.msra.mxu0 %v5784
    %6608 = vmatprep.subr.bf16.mxu0 %v5783
    %6609 = vmatpush1.bf16.msra.mxu0 %v5782
    %6610 = vmatprep.subr.bf16.mxu0 %v5781
    %6611 = vmatpush1.bf16.msra.mxu0 %v5780
    %6612 = vmatprep.subr.bf16.mxu0 %v5779
    %6613 = vmatpush1.bf16.msra.mxu0 %v5778
    %6614 = vmatprep.subr.bf16.mxu0 %v5777
    %6615 = vmatpush1.bf16.msra.mxu0 %v5776
    %6616 = vmatprep.subr.bf16.mxu0 %v5775
    %6617 = vmatpush1.bf16.msra.mxu0 %v5774
    %6618 = vmatprep.subr.bf16.mxu0 %v5773
    %6619 = vmatpush1.bf16.msra.mxu0 %v5772
    %6620 = vmatprep.subr.bf16.mxu0 %v5771
    %6621 = vmatpush1.bf16.msra.mxu0 %v5770
    %6622 = vmatprep.subr.bf16.mxu0 0
    %6623 = vmatpush2.bf16.msra.mxu0 0
    %6624 = vmatprep.subr.bf16.mxu0 0
    %6625 = vmatpush2.bf16.msra.mxu0 0
    %6626 = vmatprep.subr.bf16.mxu0 0
    %6627 = vmatpush2.bf16.msra.mxu0 0
    %6628 = vmatprep.subr.bf16.mxu0 0
    %6629 = vmatpush2.bf16.msra.mxu0 0
    %6630 = vmatprep.subr.bf16.mxu0 0
    %6631 = vmatpush2.bf16.msra.mxu0 0
    %6632 = vmatprep.subr.bf16.mxu0 0
    %6633 = vmatpush2.bf16.msra.mxu0 0
    %6634 = vmatprep.subr.bf16.mxu0 0
    %6635 = vmatpush2.bf16.msra.mxu0 0
    %6636 = vmatprep.subr.bf16.mxu0 0
    %6637 = vmatpush2.bf16.msra.mxu0 0
    %6638 = vmatprep.mubr.bf16.mxu0 0
    %6639 = vmatmul.mubr.bf16.gmra.mxu0 %v6604
    %v6640 = vpop.f32.mrf.mxu0
    %v6641 = vadd.f32 0.0, %v6640
    %v6642 = vpop.f32.mrf.mxu0
    %v6643 = vadd.f32 0.0, %v6642
    %v6644 = vpop.f32.mrf.mxu0
    %v6645 = vpop.f32.mrf.mxu0
    %6646 = vdwg.mxu0
    %v6647 = vadd.f32 %v6601, %v6641
    %v6648 = vadd.f32 %v6602, %v6643
    %v6651 = vrot.slane %v6647, 4
    %v6652 = vrot.slane %v6648, 4
    %vm6655 = vcmask 1043456
    %v6656 = vsel %vm6655, %v5843, %v6651
    %v6657 = vsel %vm6655, %v5844, %v6652
    %v6658 = vld [vmem:[%s9] sm:$0x3]
    %v6659 = vld [vmem:[%s10] sm:$0x3]
    %v6660 = vrot.slane %v6656, 4
    %v6661 = vadd.f32 %v6656, %v6660
    %v6662 = vrot.slane %v6661, 2
    %v6663 = vadd.f32 %v6661, %v6662
    %v6664 = vrot.slane %v6663, 1
    %v6665 = vadd.f32 %v6663, %v6664
    %v6666 = vrot.slane %v6657, 4
    %v6667 = vadd.f32 %v6657, %v6666
    %v6668 = vrot.slane %v6667, 2
    %v6669 = vadd.f32 %v6667, %v6668
    %v6670 = vrot.slane %v6669, 1
    %v6671 = vadd.f32 %v6669, %v6670
    %v6672 = vrcp.pop 8.0
    %v6673 = vmul.f32 %v6665, %v6672
    %v6674 = vmul.f32 %v6671, %v6672
    %v6675 = vsub.f32 %v6656, %v6673
    %v6676 = vsub.f32 %v6657, %v6674
    %v6677 = vmul.f32 %v6675, %v6675
    %v6678 = vmul.f32 %v6676, %v6676
    %v6679 = vrot.slane %v6677, 4
    %v6680 = vadd.f32 %v6677, %v6679
    %v6681 = vrot.slane %v6680, 2
    %v6682 = vadd.f32 %v6680, %v6681
    %v6683 = vrot.slane %v6682, 1
    %v6684 = vadd.f32 %v6682, %v6683
    %v6685 = vrot.slane %v6678, 4
    %v6686 = vadd.f32 %v6678, %v6685
    %v6687 = vrot.slane %v6686, 2
    %v6688 = vadd.f32 %v6686, %v6687
    %v6689 = vrot.slane %v6688, 1
    %v6690 = vadd.f32 %v6688, %v6689
    %v6691 = vmul.f32 %v6684, %v6672
    %v6692 = vmul.f32 %v6690, %v6672
    %v6693 = vadd.f32 %v6691, 1e-05
    %v6694 = vadd.f32 %v6692, 1e-05
    %v6695 = vrsqrt.pop %v6693
    %v6696 = vrsqrt.pop %v6694
    %v6699 = vcombine.low %v6695, %v6696
    %v6701 = vunpack.c.l.s4 1966171168
    %v6702 = vunpack.c.0.s8 %v6701
    %v6703 = vlaneseq
    %v6704 = vshrl.u32 %v6703, 7
    %v6705 = vsub.s32 %v6702, %v6704
    %v6706 = vrot.slane %v6699, %v6705
    %v6708 = vunpack.c.l.s4 1966171168
    %v6709 = vunpack.c.0.s8 %v6708
    %v6710 = vlaneseq
    %v6711 = vshrl.u32 %v6710, 7
    %v6712 = vsub.s32 %v6709, %v6711
    %v6713 = vrot.slane %v6706, %v6712
    %v6715 = vmul.f32 %v6658, %v6713
    %v6717 = vlaneseq
    %v6718 = vshrl.u32 %v6717, 7
    %v6719 = vsub.s32 0, %v6718
    %v6720 = vrot.slane %v6715, %v6719
    %v6721 = vlaneseq
    %v6722 = vshrl.u32 %v6721, 7
    %v6723 = vsub.s32 1, %v6722
    %v6724 = vrot.slane %v6715, %v6723
    %v6727 = vmul.f32 %v6675, %v6720
    %v6728 = vmul.f32 %v6676, %v6724
    %v6730 = vlaneseq
    %v6731 = vshrl.u32 %v6730, 7
    %v6732 = vsub.s32 0, %v6731
    %v6733 = vrot.slane %v6659, %v6732
    %v6734 = vlaneseq
    %v6735 = vshrl.u32 %v6734, 7
    %v6736 = vsub.s32 1, %v6735
    %v6737 = vrot.slane %v6659, %v6736
    %v6740 = vadd.f32 %v6727, %v6733
    %v6741 = vadd.f32 %v6728, %v6737
    %v6742 = vmul.f32 %v6740, 0.1
    %v6743 = vmul.f32 %v6741, 0.1
    %v6744 = vmax.f32 %v6740, %v6742
    %v6745 = vmax.f32 %v6741, %v6743
    %6746 = vst [vmem:[%s11] sm:$0xff] %v6744
    %6747 = vst [vmem:[%s11 + $0x8] sm:$0xff] %v6745
    // Predicated region
    $region50: #{discriminator_forward.1} parent=1 // pred_check
      _
    $region51: #{discriminator_forward.1} parent=1 // pred_check_branch
      %6749 = sbr.rel (0) target = $region53
    $region52: #{discriminator_forward.1} parent=1 // pred_region
      _
    $region53: #{discriminator_forward.1} parent=1 // pred_fallthru
      _
    // Predicated region
    $region54: #{discriminator_forward.1} parent=1 // pred_check
      _
    $region55: #{discriminator_forward.1} parent=1 // pred_check_branch
      %6751 = sbr.rel (0) target = $region57
    $region56: #{discriminator_forward.1} parent=1 // pred_region
      _
    $region57: #{discriminator_forward.1} parent=1 // pred_fallthru
      _
    %6752 = vsyncpa [#allocation5], 1

</llo_original>
